<compile_context>
chip_gen: v7x
topology: tpu7x:2x2x1
jax: 0.10.0
libtpu: 0.0.40
codegen_flags: <defaults>
</compile_context>

<pallas_src>
import functools

import jax
import jax.numpy as jnp
import numpy as np
from jax import lax
from jax.experimental import pallas as pl
from jax.experimental.pallas import tpu as pltpu

EPS = 1e-5  # PyTorch InstanceNorm3d default (affine=False, no running stats)


def _round_up(v, m):
    return (v + m - 1) // m * m


# ---------------------------------------------------------------------------
# Fused kernel: one sample per grid step.
# ---------------------------------------------------------------------------
def _res_block_kernel(idx_ref, x_ref, w1_ref, w2_ref, ws_ref, o_ref, xcol_ref,
                      *, D, H, W, ci_p, cm_p, co_p):
    S = D * H * W
    pos = idx_ref[0:1, :]    # (1, S) flattened spatial index s   (f32 integers)
    dpos = idx_ref[1:2, :]   # d = s // (H*W)
    hpos = idx_ref[2:3, :]   # h = (s // W) % H
    wpos = idx_ref[3:4, :]   # w = s % W

    x = x_ref[0]             # (ci_p, S): channels on sublanes, S lane-dense

    def shifted(src, off):
        # y[:, s] == src[:, s + off] for every lane where s + off is the flat
        # index of an in-range neighbour (other lanes are boundary-masked later).
        # Both circular-roll directions are generated and the correct one is
        # selected per-lane with a rolled position vector, so the result is
        # independent of the hardware rotation convention.
        if off == 0:
            return src
        r_a = off % S
        r_b = (-off) % S
        a = pltpu.roll(src, r_a, 1)
        b = pltpu.roll(src, r_b, 1)
        pa = pltpu.roll(pos, r_a, 1)
        sel = (pa == pos + off).astype(jnp.float32)      # (1, S)
        return a * sel + b * (1.0 - sel)

    def conv3x3x3(src, w_mat, c_in):
        # src: (c_in, S); w_mat: (c_out, 27*c_in).  Build the 27 shifted and
        # boundary-masked taps in the VMEM scratch, then one MXU matmul.
        t = 0
        for kd in range(3):
            for kh in range(3):
                for kw in range(3):
                    off = (kd - 1) * H * W + (kh - 1) * W + (kw - 1)
                    xs = shifted(src, off)
                    conds = []
                    if kd == 0:
                        conds.append(dpos >= 1)
                    if kd == 2:
                        conds.append(dpos <= D - 2)
                    if kh == 0:
                        conds.append(hpos >= 1)
                    if kh == 2:
                        conds.append(hpos <= H - 2)
                    if kw == 0:
                        conds.append(wpos >= 1)
                    if kw == 2:
                        conds.append(wpos <= W - 2)
                    if conds:
                        valid = conds[0]
                        for c in conds[1:]:
                            valid = jnp.logical_and(valid, c)
                        xs = xs * valid.astype(jnp.float32)
                    xcol_ref[t * c_in:(t + 1) * c_in, :] = xs
                    t += 1
        patches = xcol_ref[:27 * c_in, :]
        return jnp.dot(w_mat, patches, preferred_element_type=jnp.float32)

    def inorm(y):
        # InstanceNorm over the lane (spatial) axis; biased variance, eps=1e-5.
        mean = jnp.mean(y, axis=1, keepdims=True)
        var = jnp.mean(jnp.square(y - mean), axis=1, keepdims=True)
        return (y - mean) * lax.rsqrt(var + EPS)

    # residual branch, layer 1: conv3x3x3 -> IN -> Dropout3d(identity) -> ReLU
    h = jnp.maximum(inorm(conv3x3x3(x, w1_ref[...], ci_p)), 0.0)
    # residual branch, layer 2: conv3x3x3 -> IN
    r = inorm(conv3x3x3(h, w2_ref[...], cm_p))
    # shortcut branch (fused): 1x1x1 conv -> IN
    s = inorm(jnp.dot(ws_ref[...], x, preferred_element_type=jnp.float32))
    o_ref[0] = jnp.maximum(r + s, 0.0).astype(o_ref.dtype)


# ---------------------------------------------------------------------------
# Wrapper
# ---------------------------------------------------------------------------
def _pack_taps(w_conv, c_out_p, c_in_p):
    """(c_out, c_in, 3, 3, 3) -> zero-padded (c_out_p, 27*c_in_p), tap-major."""
    c_out, c_in = w_conv.shape[0], w_conv.shape[1]
    w = jnp.transpose(w_conv, (0, 2, 3, 4, 1))                  # (c_out,3,3,3,c_in)
    w = jnp.pad(w, ((0, c_out_p - c_out), (0, 0), (0, 0), (0, 0),
                    (0, c_in_p - c_in)))
    return w.reshape(c_out_p, 27 * c_in_p)


def res_two_layer_conv_block(x, w1, w2, ws):
    """Forward pass of ResTwoLayerConvBlock (inference, stride=1).

    x : (N, Cin, D, H, W) f32  (PyTorch NCDHW layout)
    w1: (Cinter, Cin, 3, 3, 3)   residual layer-1 conv weights (bias-free)
    w2: (Cout, Cinter, 3, 3, 3)  residual layer-2 conv weights
    ws: (Cout, Cin)              1x1x1 shortcut conv weights
    returns (N, Cout, D, H, W)
    """
    N, Cin, D, H, W = x.shape
    Cinter = w1.shape[0]
    Cout = w2.shape[0]
    S = D * H * W

    ci_p = _round_up(Cin, 8)
    cm_p = _round_up(Cinter, 8)
    co_p = _round_up(Cout, 8)

    # channels-first, flattened spatial, zero-padded channel axis
    xk = jnp.pad(x.reshape(N, Cin, S), ((0, 0), (0, ci_p - Cin), (0, 0)))
    w1m = _pack_taps(w1, cm_p, ci_p)
    w2m = _pack_taps(w2, co_p, cm_p)
    wsm = jnp.pad(ws, ((0, co_p - Cout), (0, ci_p - Cin)))

    # static (s, d, h, w) decomposition of the flattened spatial index,
    # kept in f32 (values are small integers, exact in f32)
    s_idx = np.arange(S, dtype=np.float32)
    idx = jnp.asarray(np.stack(
        [s_idx,
         np.floor_divide(s_idx, H * W),
         np.mod(np.floor_divide(s_idx, W), H),
         np.mod(s_idx, W)], axis=0).astype(np.float32))          # (4, S)

    kern = functools.partial(_res_block_kernel, D=D, H=H, W=W,
                             ci_p=ci_p, cm_p=cm_p, co_p=co_p)
    out = pl.pallas_call(
        kern,
        out_shape=jax.ShapeDtypeStruct((N, co_p, S), jnp.float32),
        grid=(N,),
        in_specs=[
            pl.BlockSpec((4, S), lambda n: (0, 0)),             # index vectors
            pl.BlockSpec((1, ci_p, S), lambda n: (n, 0, 0)),    # x (per sample)
            pl.BlockSpec((cm_p, 27 * ci_p), lambda n: (0, 0)),  # conv1 weights
            pl.BlockSpec((co_p, 27 * cm_p), lambda n: (0, 0)),  # conv2 weights
            pl.BlockSpec((co_p, ci_p), lambda n: (0, 0)),       # shortcut weights
        ],
        out_specs=pl.BlockSpec((1, co_p, S), lambda n: (n, 0, 0)),
        scratch_shapes=[pltpu.VMEM((27 * max(ci_p, cm_p), S), jnp.float32)],
        compiler_params=pltpu.CompilerParams(dimension_semantics=("parallel",)),
    )(idx, xk, w1m, w2m, wsm)

    return out[:, :Cout, :].reshape(N, Cout, D, H, W)


# ---------------------------------------------------------------------------
# Pure-JAX reference (for correctness check)
# ---------------------------------------------------------------------------
def _ref_forward(x, w1, w2, ws):
    dn = ("NCDHW", "OIDHW", "NCDHW")

    def inorm(y):
        m = jnp.mean(y, axis=(2, 3, 4), keepdims=True)
        v = jnp.mean((y - m) ** 2, axis=(2, 3, 4), keepdims=True)
        return (y - m) * lax.rsqrt(v + EPS)

    h = lax.conv_general_dilated(x, w1, (1, 1, 1), "SAME", dimension_numbers=dn)
    h = jnp.maximum(inorm(h), 0.0)
    r = lax.conv_general_dilated(h, w2, (1, 1, 1), "SAME", dimension_numbers=dn)
    r = inorm(r)
    ws5 = ws.reshape(ws.shape[0], ws.shape[1], 1, 1, 1)
    s = lax.conv_general_dilated(x, ws5, (1, 1, 1), "VALID", dimension_numbers=dn)
    s = inorm(s)
    return jnp.maximum(r + s, 0.0)


# ---------------------------------------------------------------------------
if __name__ == "__main__":
    # Small shapes consistent with the module (stride=1 default).
    N, Cin, Cinter, Cout = 2, 4, 8, 4
    D = H = W = 8

    key = jax.random.PRNGKey(0)
    kx, k1, k2, k3 = jax.random.split(key, 4)

    x = jax.random.normal(kx, (N, Cin, D, H, W), dtype=jnp.float32)
    # deterministic parameter init (kaiming-ish scaling), no checkpoint loading
    w1 = jax.random.normal(k1, (Cinter, Cin, 3, 3, 3), jnp.float32) * (2.0 / (27 * Cin)) ** 0.5
    w2 = jax.random.normal(k2, (Cout, Cinter, 3, 3, 3), jnp.float32) * (2.0 / (27 * Cinter)) ** 0.5
    ws = jax.random.normal(k3, (Cout, Cin), jnp.float32) * (2.0 / Cin) ** 0.5

    out = jax.block_until_ready(res_two_layer_conv_block(x, w1, w2, ws))
    ref = jax.block_until_ready(_ref_forward(x, w1, w2, ws))

    assert out.shape == (N, Cout, D, H, W)
    max_err = float(jnp.max(jnp.abs(out - ref)))
    assert jnp.allclose(out, ref, atol=2e-4, rtol=2e-4), f"mismatch: max abs err {max_err}"

    print("KERNEL_OK")
</pallas_src>

<mosaic_0001>
module attributes {stable_mosaic.version = 11 : i64} {
  func.func @_res_block_kernel(%arg0: i32, %arg1: memref<4x512xf32, #tpu.memory_space<vmem>>, %arg2: memref<1x8x512xf32, #tpu.memory_space<vmem>>, %arg3: memref<8x216xf32, #tpu.memory_space<vmem>>, %arg4: memref<8x216xf32, #tpu.memory_space<vmem>>, %arg5: memref<8x8xf32, #tpu.memory_space<vmem>>, %arg6: memref<1x8x512xf32, #tpu.memory_space<vmem>>, %arg7: memref<216x512xf32, #tpu.memory_space<vmem>>) attributes {dimension_semantics = [#tpu.dimension_semantics<parallel>], iteration_bounds = array<i64: 2>, scalar_prefetch = 0 : i64, scratch_operands = 1 : i64, tpu.core_type = #tpu.core_type<tc>, window_params = [{pipeline_mode = #tpu.pipeline_mode<synchronous>, transform_indices = @transform_0, window_bounds = array<i64: 4, 512>}, {transform_indices = @transform_1, window_bounds = array<i64: 1, 8, 512>}, {pipeline_mode = #tpu.pipeline_mode<synchronous>, transform_indices = @transform_2, window_bounds = array<i64: 8, 216>}, {pipeline_mode = #tpu.pipeline_mode<synchronous>, transform_indices = @transform_3, window_bounds = array<i64: 8, 216>}, {pipeline_mode = #tpu.pipeline_mode<synchronous>, transform_indices = @transform_4, window_bounds = array<i64: 8, 8>}, {transform_indices = @transform_5, window_bounds = array<i64: 1, 8, 512>}]} {
    %c0 = arith.constant 0 : index
    %c0_0 = arith.constant 0 : index
    %0 = vector.load %arg1[%c0, %c0_0] : memref<4x512xf32, #tpu.memory_space<vmem>>, vector<1x512xf32>
    %c1 = arith.constant 1 : index
    %c0_1 = arith.constant 0 : index
    %1 = vector.load %arg1[%c1, %c0_1] : memref<4x512xf32, #tpu.memory_space<vmem>>, vector<1x512xf32>
    %c2 = arith.constant 2 : index
    %c0_2 = arith.constant 0 : index
    %2 = vector.load %arg1[%c2, %c0_2] : memref<4x512xf32, #tpu.memory_space<vmem>>, vector<1x512xf32>
    %c3 = arith.constant 3 : index
    %c0_3 = arith.constant 0 : index
    %3 = vector.load %arg1[%c3, %c0_3] : memref<4x512xf32, #tpu.memory_space<vmem>>, vector<1x512xf32>
    %c0_4 = arith.constant 0 : index
    %c0_5 = arith.constant 0 : index
    %c0_6 = arith.constant 0 : index
    %4 = vector.load %arg2[%c0_4, %c0_5, %c0_6] : memref<1x8x512xf32, #tpu.memory_space<vmem>>, vector<1x8x512xf32>
    %5 = vector.shape_cast %4 : vector<1x8x512xf32> to vector<8x512xf32>
    %c0_7 = arith.constant 0 : index
    %c0_8 = arith.constant 0 : index
    %6 = vector.load %arg3[%c0_7, %c0_8] : memref<8x216xf32, #tpu.memory_space<vmem>>, vector<8x216xf32>
    %c439_i32 = arith.constant 439 : i32
    %7 = tpu.dynamic_rotate %5 by %c439_i32 dim 1 : vector<8x512xf32>, i32 -> vector<8x512xf32>
    %c73_i32 = arith.constant 73 : i32
    %8 = tpu.dynamic_rotate %5 by %c73_i32 dim 1 : vector<8x512xf32>, i32 -> vector<8x512xf32>
    %c439_i32_9 = arith.constant 439 : i32
    %9 = tpu.dynamic_rotate %0 by %c439_i32_9 dim 1 : vector<1x512xf32>, i32 -> vector<1x512xf32>
    %cst = arith.constant -7.300000e+01 : f32
    %10 = vector.broadcast %cst : f32 to vector<1x512xf32>
    %11 = arith.addf %0, %10 : vector<1x512xf32>
    %12 = arith.cmpf oeq, %9, %11 : vector<1x512xf32>
    %13 = arith.extui %12 : vector<1x512xi1> to vector<1x512xi32>
    %14 = arith.sitofp %13 : vector<1x512xi32> to vector<1x512xf32>
    %15 = vector.broadcast %14 : vector<1x512xf32> to vector<8x512xf32>
    %16 = arith.mulf %7, %15 : vector<8x512xf32>
    %cst_10 = arith.constant 1.000000e+00 : f32
    %17 = vector.broadcast %cst_10 : f32 to vector<1x512xf32>
    %18 = arith.subf %17, %14 : vector<1x512xf32>
    %19 = vector.broadcast %18 : vector<1x512xf32> to vector<8x512xf32>
    %20 = arith.mulf %8, %19 : vector<8x512xf32>
    %21 = arith.addf %16, %20 : vector<8x512xf32>
    %cst_11 = arith.constant 1.000000e+00 : f32
    %22 = vector.broadcast %cst_11 : f32 to vector<1x512xf32>
    %23 = arith.cmpf oge, %1, %22 : vector<1x512xf32>
    %cst_12 = arith.constant 1.000000e+00 : f32
    %24 = vector.broadcast %cst_12 : f32 to vector<1x512xf32>
    %25 = arith.cmpf oge, %2, %24 : vector<1x512xf32>
    %cst_13 = arith.constant 1.000000e+00 : f32
    %26 = vector.broadcast %cst_13 : f32 to vector<1x512xf32>
    %27 = arith.cmpf oge, %3, %26 : vector<1x512xf32>
    %28 = arith.andi %23, %25 : vector<1x512xi1>
    %29 = arith.andi %28, %27 : vector<1x512xi1>
    %30 = arith.extui %29 : vector<1x512xi1> to vector<1x512xi32>
    %31 = arith.sitofp %30 : vector<1x512xi32> to vector<1x512xf32>
    %32 = vector.broadcast %31 : vector<1x512xf32> to vector<8x512xf32>
    %33 = arith.mulf %21, %32 : vector<8x512xf32>
    %c0_14 = arith.constant 0 : index
    %c0_15 = arith.constant 0 : index
    %34 = vector.load %arg7[%c0_14, %c0_15] : memref<216x512xf32, #tpu.memory_space<vmem>>, vector<8x512xf32>
    tpu.vector_store %arg7[%c0_14, %c0_15], %33 {strides = array<i32>} : memref<216x512xf32, #tpu.memory_space<vmem>>, vector<8x512xf32>,
    %c440_i32 = arith.constant 440 : i32
    %35 = tpu.dynamic_rotate %5 by %c440_i32 dim 1 : vector<8x512xf32>, i32 -> vector<8x512xf32>
    %c72_i32 = arith.constant 72 : i32
    %36 = tpu.dynamic_rotate %5 by %c72_i32 dim 1 : vector<8x512xf32>, i32 -> vector<8x512xf32>
    %c440_i32_16 = arith.constant 440 : i32
    %37 = tpu.dynamic_rotate %0 by %c440_i32_16 dim 1 : vector<1x512xf32>, i32 -> vector<1x512xf32>
    %cst_17 = arith.constant -7.200000e+01 : f32
    %38 = vector.broadcast %cst_17 : f32 to vector<1x512xf32>
    %39 = arith.addf %0, %38 : vector<1x512xf32>
    %40 = arith.cmpf oeq, %37, %39 : vector<1x512xf32>
    %41 = arith.extui %40 : vector<1x512xi1> to vector<1x512xi32>
    %42 = arith.sitofp %41 : vector<1x512xi32> to vector<1x512xf32>
    %43 = vector.broadcast %42 : vector<1x512xf32> to vector<8x512xf32>
    %44 = arith.mulf %35, %43 : vector<8x512xf32>
    %cst_18 = arith.constant 1.000000e+00 : f32
    %45 = vector.broadcast %cst_18 : f32 to vector<1x512xf32>
    %46 = arith.subf %45, %42 : vector<1x512xf32>
    %47 = vector.broadcast %46 : vector<1x512xf32> to vector<8x512xf32>
    %48 = arith.mulf %36, %47 : vector<8x512xf32>
    %49 = arith.addf %44, %48 : vector<8x512xf32>
    %cst_19 = arith.constant 1.000000e+00 : f32
    %50 = vector.broadcast %cst_19 : f32 to vector<1x512xf32>
    %51 = arith.cmpf oge, %1, %50 : vector<1x512xf32>
    %cst_20 = arith.constant 1.000000e+00 : f32
    %52 = vector.broadcast %cst_20 : f32 to vector<1x512xf32>
    %53 = arith.cmpf oge, %2, %52 : vector<1x512xf32>
    %54 = arith.andi %51, %53 : vector<1x512xi1>
    %55 = arith.extui %54 : vector<1x512xi1> to vector<1x512xi32>
    %56 = arith.sitofp %55 : vector<1x512xi32> to vector<1x512xf32>
    %57 = vector.broadcast %56 : vector<1x512xf32> to vector<8x512xf32>
    %58 = arith.mulf %49, %57 : vector<8x512xf32>
    %c8 = arith.constant 8 : index
    %c0_21 = arith.constant 0 : index
    %59 = vector.load %arg7[%c8, %c0_21] : memref<216x512xf32, #tpu.memory_space<vmem>>, vector<8x512xf32>
    tpu.vector_store %arg7[%c8, %c0_21], %58 {strides = array<i32>} : memref<216x512xf32, #tpu.memory_space<vmem>>, vector<8x512xf32>,
    %c441_i32 = arith.constant 441 : i32
    %60 = tpu.dynamic_rotate %5 by %c441_i32 dim 1 : vector<8x512xf32>, i32 -> vector<8x512xf32>
    %c71_i32 = arith.constant 71 : i32
    %61 = tpu.dynamic_rotate %5 by %c71_i32 dim 1 : vector<8x512xf32>, i32 -> vector<8x512xf32>
    %c441_i32_22 = arith.constant 441 : i32
    %62 = tpu.dynamic_rotate %0 by %c441_i32_22 dim 1 : vector<1x512xf32>, i32 -> vector<1x512xf32>
    %cst_23 = arith.constant -7.100000e+01 : f32
    %63 = vector.broadcast %cst_23 : f32 to vector<1x512xf32>
    %64 = arith.addf %0, %63 : vector<1x512xf32>
    %65 = arith.cmpf oeq, %62, %64 : vector<1x512xf32>
    %66 = arith.extui %65 : vector<1x512xi1> to vector<1x512xi32>
    %67 = arith.sitofp %66 : vector<1x512xi32> to vector<1x512xf32>
    %68 = vector.broadcast %67 : vector<1x512xf32> to vector<8x512xf32>
    %69 = arith.mulf %60, %68 : vector<8x512xf32>
    %cst_24 = arith.constant 1.000000e+00 : f32
    %70 = vector.broadcast %cst_24 : f32 to vector<1x512xf32>
    %71 = arith.subf %70, %67 : vector<1x512xf32>
    %72 = vector.broadcast %71 : vector<1x512xf32> to vector<8x512xf32>
    %73 = arith.mulf %61, %72 : vector<8x512xf32>
    %74 = arith.addf %69, %73 : vector<8x512xf32>
    %cst_25 = arith.constant 1.000000e+00 : f32
    %75 = vector.broadcast %cst_25 : f32 to vector<1x512xf32>
    %76 = arith.cmpf oge, %1, %75 : vector<1x512xf32>
    %cst_26 = arith.constant 1.000000e+00 : f32
    %77 = vector.broadcast %cst_26 : f32 to vector<1x512xf32>
    %78 = arith.cmpf oge, %2, %77 : vector<1x512xf32>
    %cst_27 = arith.constant 6.000000e+00 : f32
    %79 = vector.broadcast %cst_27 : f32 to vector<1x512xf32>
    %80 = arith.cmpf ole, %3, %79 : vector<1x512xf32>
    %81 = arith.andi %76, %78 : vector<1x512xi1>
    %82 = arith.andi %81, %80 : vector<1x512xi1>
    %83 = arith.extui %82 : vector<1x512xi1> to vector<1x512xi32>
    %84 = arith.sitofp %83 : vector<1x512xi32> to vector<1x512xf32>
    %85 = vector.broadcast %84 : vector<1x512xf32> to vector<8x512xf32>
    %86 = arith.mulf %74, %85 : vector<8x512xf32>
    %c16 = arith.constant 16 : index
    %c0_28 = arith.constant 0 : index
    %87 = vector.load %arg7[%c16, %c0_28] : memref<216x512xf32, #tpu.memory_space<vmem>>, vector<8x512xf32>
    tpu.vector_store %arg7[%c16, %c0_28], %86 {strides = array<i32>} : memref<216x512xf32, #tpu.memory_space<vmem>>, vector<8x512xf32>,
    %c447_i32 = arith.constant 447 : i32
    %88 = tpu.dynamic_rotate %5 by %c447_i32 dim 1 : vector<8x512xf32>, i32 -> vector<8x512xf32>
    %c65_i32 = arith.constant 65 : i32
    %89 = tpu.dynamic_rotate %5 by %c65_i32 dim 1 : vector<8x512xf32>, i32 -> vector<8x512xf32>
    %c447_i32_29 = arith.constant 447 : i32
    %90 = tpu.dynamic_rotate %0 by %c447_i32_29 dim 1 : vector<1x512xf32>, i32 -> vector<1x512xf32>
    %cst_30 = arith.constant -6.500000e+01 : f32
    %91 = vector.broadcast %cst_30 : f32 to vector<1x512xf32>
    %92 = arith.addf %0, %91 : vector<1x512xf32>
    %93 = arith.cmpf oeq, %90, %92 : vector<1x512xf32>
    %94 = arith.extui %93 : vector<1x512xi1> to vector<1x512xi32>
    %95 = arith.sitofp %94 : vector<1x512xi32> to vector<1x512xf32>
    %96 = vector.broadcast %95 : vector<1x512xf32> to vector<8x512xf32>
    %97 = arith.mulf %88, %96 : vector<8x512xf32>
    %cst_31 = arith.constant 1.000000e+00 : f32
    %98 = vector.broadcast %cst_31 : f32 to vector<1x512xf32>
    %99 = arith.subf %98, %95 : vector<1x512xf32>
    %100 = vector.broadcast %99 : vector<1x512xf32> to vector<8x512xf32>
    %101 = arith.mulf %89, %100 : vector<8x512xf32>
    %102 = arith.addf %97, %101 : vector<8x512xf32>
    %cst_32 = arith.constant 1.000000e+00 : f32
    %103 = vector.broadcast %cst_32 : f32 to vector<1x512xf32>
    %104 = arith.cmpf oge, %1, %103 : vector<1x512xf32>
    %cst_33 = arith.constant 1.000000e+00 : f32
    %105 = vector.broadcast %cst_33 : f32 to vector<1x512xf32>
    %106 = arith.cmpf oge, %3, %105 : vector<1x512xf32>
    %107 = arith.andi %104, %106 : vector<1x512xi1>
    %108 = arith.extui %107 : vector<1x512xi1> to vector<1x512xi32>
    %109 = arith.sitofp %108 : vector<1x512xi32> to vector<1x512xf32>
    %110 = vector.broadcast %109 : vector<1x512xf32> to vector<8x512xf32>
    %111 = arith.mulf %102, %110 : vector<8x512xf32>
    %c24 = arith.constant 24 : index
    %c0_34 = arith.constant 0 : index
    %112 = vector.load %arg7[%c24, %c0_34] : memref<216x512xf32, #tpu.memory_space<vmem>>, vector<8x512xf32>
    tpu.vector_store %arg7[%c24, %c0_34], %111 {strides = array<i32>} : memref<216x512xf32, #tpu.memory_space<vmem>>, vector<8x512xf32>,
    %c448_i32 = arith.constant 448 : i32
    %113 = tpu.dynamic_rotate %5 by %c448_i32 dim 1 : vector<8x512xf32>, i32 -> vector<8x512xf32>
    %c64_i32 = arith.constant 64 : i32
    %114 = tpu.dynamic_rotate %5 by %c64_i32 dim 1 : vector<8x512xf32>, i32 -> vector<8x512xf32>
    %c448_i32_35 = arith.constant 448 : i32
    %115 = tpu.dynamic_rotate %0 by %c448_i32_35 dim 1 : vector<1x512xf32>, i32 -> vector<1x512xf32>
    %cst_36 = arith.constant -6.400000e+01 : f32
    %116 = vector.broadcast %cst_36 : f32 to vector<1x512xf32>
    %117 = arith.addf %0, %116 : vector<1x512xf32>
    %118 = arith.cmpf oeq, %115, %117 : vector<1x512xf32>
    %119 = arith.extui %118 : vector<1x512xi1> to vector<1x512xi32>
    %120 = arith.sitofp %119 : vector<1x512xi32> to vector<1x512xf32>
    %121 = vector.broadcast %120 : vector<1x512xf32> to vector<8x512xf32>
    %122 = arith.mulf %113, %121 : vector<8x512xf32>
    %cst_37 = arith.constant 1.000000e+00 : f32
    %123 = vector.broadcast %cst_37 : f32 to vector<1x512xf32>
    %124 = arith.subf %123, %120 : vector<1x512xf32>
    %125 = vector.broadcast %124 : vector<1x512xf32> to vector<8x512xf32>
    %126 = arith.mulf %114, %125 : vector<8x512xf32>
    %127 = arith.addf %122, %126 : vector<8x512xf32>
    %cst_38 = arith.constant 1.000000e+00 : f32
    %128 = vector.broadcast %cst_38 : f32 to vector<1x512xf32>
    %129 = arith.cmpf oge, %1, %128 : vector<1x512xf32>
    %130 = arith.extui %129 : vector<1x512xi1> to vector<1x512xi32>
    %131 = arith.sitofp %130 : vector<1x512xi32> to vector<1x512xf32>
    %132 = vector.broadcast %131 : vector<1x512xf32> to vector<8x512xf32>
    %133 = arith.mulf %127, %132 : vector<8x512xf32>
    %c32 = arith.constant 32 : index
    %c0_39 = arith.constant 0 : index
    %134 = vector.load %arg7[%c32, %c0_39] : memref<216x512xf32, #tpu.memory_space<vmem>>, vector<8x512xf32>
    tpu.vector_store %arg7[%c32, %c0_39], %133 {strides = array<i32>} : memref<216x512xf32, #tpu.memory_space<vmem>>, vector<8x512xf32>,
    %c449_i32 = arith.constant 449 : i32
    %135 = tpu.dynamic_rotate %5 by %c449_i32 dim 1 : vector<8x512xf32>, i32 -> vector<8x512xf32>
    %c63_i32 = arith.constant 63 : i32
    %136 = tpu.dynamic_rotate %5 by %c63_i32 dim 1 : vector<8x512xf32>, i32 -> vector<8x512xf32>
    %c449_i32_40 = arith.constant 449 : i32
    %137 = tpu.dynamic_rotate %0 by %c449_i32_40 dim 1 : vector<1x512xf32>, i32 -> vector<1x512xf32>
    %cst_41 = arith.constant -6.300000e+01 : f32
    %138 = vector.broadcast %cst_41 : f32 to vector<1x512xf32>
    %139 = arith.addf %0, %138 : vector<1x512xf32>
    %140 = arith.cmpf oeq, %137, %139 : vector<1x512xf32>
    %141 = arith.extui %140 : vector<1x512xi1> to vector<1x512xi32>
    %142 = arith.sitofp %141 : vector<1x512xi32> to vector<1x512xf32>
    %143 = vector.broadcast %142 : vector<1x512xf32> to vector<8x512xf32>
    %144 = arith.mulf %135, %143 : vector<8x512xf32>
    %cst_42 = arith.constant 1.000000e+00 : f32
    %145 = vector.broadcast %cst_42 : f32 to vector<1x512xf32>
    %146 = arith.subf %145, %142 : vector<1x512xf32>
    %147 = vector.broadcast %146 : vector<1x512xf32> to vector<8x512xf32>
    %148 = arith.mulf %136, %147 : vector<8x512xf32>
    %149 = arith.addf %144, %148 : vector<8x512xf32>
    %cst_43 = arith.constant 1.000000e+00 : f32
    %150 = vector.broadcast %cst_43 : f32 to vector<1x512xf32>
    %151 = arith.cmpf oge, %1, %150 : vector<1x512xf32>
    %cst_44 = arith.constant 6.000000e+00 : f32
    %152 = vector.broadcast %cst_44 : f32 to vector<1x512xf32>
    %153 = arith.cmpf ole, %3, %152 : vector<1x512xf32>
    %154 = arith.andi %151, %153 : vector<1x512xi1>
    %155 = arith.extui %154 : vector<1x512xi1> to vector<1x512xi32>
    %156 = arith.sitofp %155 : vector<1x512xi32> to vector<1x512xf32>
    %157 = vector.broadcast %156 : vector<1x512xf32> to vector<8x512xf32>
    %158 = arith.mulf %149, %157 : vector<8x512xf32>
    %c40 = arith.constant 40 : index
    %c0_45 = arith.constant 0 : index
    %159 = vector.load %arg7[%c40, %c0_45] : memref<216x512xf32, #tpu.memory_space<vmem>>, vector<8x512xf32>
    tpu.vector_store %arg7[%c40, %c0_45], %158 {strides = array<i32>} : memref<216x512xf32, #tpu.memory_space<vmem>>, vector<8x512xf32>,
    %c455_i32 = arith.constant 455 : i32
    %160 = tpu.dynamic_rotate %5 by %c455_i32 dim 1 : vector<8x512xf32>, i32 -> vector<8x512xf32>
    %c57_i32 = arith.constant 57 : i32
    %161 = tpu.dynamic_rotate %5 by %c57_i32 dim 1 : vector<8x512xf32>, i32 -> vector<8x512xf32>
    %c455_i32_46 = arith.constant 455 : i32
    %162 = tpu.dynamic_rotate %0 by %c455_i32_46 dim 1 : vector<1x512xf32>, i32 -> vector<1x512xf32>
    %cst_47 = arith.constant -5.700000e+01 : f32
    %163 = vector.broadcast %cst_47 : f32 to vector<1x512xf32>
    %164 = arith.addf %0, %163 : vector<1x512xf32>
    %165 = arith.cmpf oeq, %162, %164 : vector<1x512xf32>
    %166 = arith.extui %165 : vector<1x512xi1> to vector<1x512xi32>
    %167 = arith.sitofp %166 : vector<1x512xi32> to vector<1x512xf32>
    %168 = vector.broadcast %167 : vector<1x512xf32> to vector<8x512xf32>
    %169 = arith.mulf %160, %168 : vector<8x512xf32>
    %cst_48 = arith.constant 1.000000e+00 : f32
    %170 = vector.broadcast %cst_48 : f32 to vector<1x512xf32>
    %171 = arith.subf %170, %167 : vector<1x512xf32>
    %172 = vector.broadcast %171 : vector<1x512xf32> to vector<8x512xf32>
    %173 = arith.mulf %161, %172 : vector<8x512xf32>
    %174 = arith.addf %169, %173 : vector<8x512xf32>
    %cst_49 = arith.constant 1.000000e+00 : f32
    %175 = vector.broadcast %cst_49 : f32 to vector<1x512xf32>
    %176 = arith.cmpf oge, %1, %175 : vector<1x512xf32>
    %cst_50 = arith.constant 6.000000e+00 : f32
    %177 = vector.broadcast %cst_50 : f32 to vector<1x512xf32>
    %178 = arith.cmpf ole, %2, %177 : vector<1x512xf32>
    %cst_51 = arith.constant 1.000000e+00 : f32
    %179 = vector.broadcast %cst_51 : f32 to vector<1x512xf32>
    %180 = arith.cmpf oge, %3, %179 : vector<1x512xf32>
    %181 = arith.andi %176, %178 : vector<1x512xi1>
    %182 = arith.andi %181, %180 : vector<1x512xi1>
    %183 = arith.extui %182 : vector<1x512xi1> to vector<1x512xi32>
    %184 = arith.sitofp %183 : vector<1x512xi32> to vector<1x512xf32>
    %185 = vector.broadcast %184 : vector<1x512xf32> to vector<8x512xf32>
    %186 = arith.mulf %174, %185 : vector<8x512xf32>
    %c48 = arith.constant 48 : index
    %c0_52 = arith.constant 0 : index
    %187 = vector.load %arg7[%c48, %c0_52] : memref<216x512xf32, #tpu.memory_space<vmem>>, vector<8x512xf32>
    tpu.vector_store %arg7[%c48, %c0_52], %186 {strides = array<i32>} : memref<216x512xf32, #tpu.memory_space<vmem>>, vector<8x512xf32>,
    %c456_i32 = arith.constant 456 : i32
    %188 = tpu.dynamic_rotate %5 by %c456_i32 dim 1 : vector<8x512xf32>, i32 -> vector<8x512xf32>
    %c56_i32 = arith.constant 56 : i32
    %189 = tpu.dynamic_rotate %5 by %c56_i32 dim 1 : vector<8x512xf32>, i32 -> vector<8x512xf32>
    %c456_i32_53 = arith.constant 456 : i32
    %190 = tpu.dynamic_rotate %0 by %c456_i32_53 dim 1 : vector<1x512xf32>, i32 -> vector<1x512xf32>
    %cst_54 = arith.constant -5.600000e+01 : f32
    %191 = vector.broadcast %cst_54 : f32 to vector<1x512xf32>
    %192 = arith.addf %0, %191 : vector<1x512xf32>
    %193 = arith.cmpf oeq, %190, %192 : vector<1x512xf32>
    %194 = arith.extui %193 : vector<1x512xi1> to vector<1x512xi32>
    %195 = arith.sitofp %194 : vector<1x512xi32> to vector<1x512xf32>
    %196 = vector.broadcast %195 : vector<1x512xf32> to vector<8x512xf32>
    %197 = arith.mulf %188, %196 : vector<8x512xf32>
    %cst_55 = arith.constant 1.000000e+00 : f32
    %198 = vector.broadcast %cst_55 : f32 to vector<1x512xf32>
    %199 = arith.subf %198, %195 : vector<1x512xf32>
    %200 = vector.broadcast %199 : vector<1x512xf32> to vector<8x512xf32>
    %201 = arith.mulf %189, %200 : vector<8x512xf32>
    %202 = arith.addf %197, %201 : vector<8x512xf32>
    %cst_56 = arith.constant 1.000000e+00 : f32
    %203 = vector.broadcast %cst_56 : f32 to vector<1x512xf32>
    %204 = arith.cmpf oge, %1, %203 : vector<1x512xf32>
    %cst_57 = arith.constant 6.000000e+00 : f32
    %205 = vector.broadcast %cst_57 : f32 to vector<1x512xf32>
    %206 = arith.cmpf ole, %2, %205 : vector<1x512xf32>
    %207 = arith.andi %204, %206 : vector<1x512xi1>
    %208 = arith.extui %207 : vector<1x512xi1> to vector<1x512xi32>
    %209 = arith.sitofp %208 : vector<1x512xi32> to vector<1x512xf32>
    %210 = vector.broadcast %209 : vector<1x512xf32> to vector<8x512xf32>
    %211 = arith.mulf %202, %210 : vector<8x512xf32>
    %c56 = arith.constant 56 : index
    %c0_58 = arith.constant 0 : index
    %212 = vector.load %arg7[%c56, %c0_58] : memref<216x512xf32, #tpu.memory_space<vmem>>, vector<8x512xf32>
    tpu.vector_store %arg7[%c56, %c0_58], %211 {strides = array<i32>} : memref<216x512xf32, #tpu.memory_space<vmem>>, vector<8x512xf32>,
    %c457_i32 = arith.constant 457 : i32
    %213 = tpu.dynamic_rotate %5 by %c457_i32 dim 1 : vector<8x512xf32>, i32 -> vector<8x512xf32>
    %c55_i32 = arith.constant 55 : i32
    %214 = tpu.dynamic_rotate %5 by %c55_i32 dim 1 : vector<8x512xf32>, i32 -> vector<8x512xf32>
    %c457_i32_59 = arith.constant 457 : i32
    %215 = tpu.dynamic_rotate %0 by %c457_i32_59 dim 1 : vector<1x512xf32>, i32 -> vector<1x512xf32>
    %cst_60 = arith.constant -5.500000e+01 : f32
    %216 = vector.broadcast %cst_60 : f32 to vector<1x512xf32>
    %217 = arith.addf %0, %216 : vector<1x512xf32>
    %218 = arith.cmpf oeq, %215, %217 : vector<1x512xf32>
    %219 = arith.extui %218 : vector<1x512xi1> to vector<1x512xi32>
    %220 = arith.sitofp %219 : vector<1x512xi32> to vector<1x512xf32>
    %221 = vector.broadcast %220 : vector<1x512xf32> to vector<8x512xf32>
    %222 = arith.mulf %213, %221 : vector<8x512xf32>
    %cst_61 = arith.constant 1.000000e+00 : f32
    %223 = vector.broadcast %cst_61 : f32 to vector<1x512xf32>
    %224 = arith.subf %223, %220 : vector<1x512xf32>
    %225 = vector.broadcast %224 : vector<1x512xf32> to vector<8x512xf32>
    %226 = arith.mulf %214, %225 : vector<8x512xf32>
    %227 = arith.addf %222, %226 : vector<8x512xf32>
    %cst_62 = arith.constant 1.000000e+00 : f32
    %228 = vector.broadcast %cst_62 : f32 to vector<1x512xf32>
    %229 = arith.cmpf oge, %1, %228 : vector<1x512xf32>
    %cst_63 = arith.constant 6.000000e+00 : f32
    %230 = vector.broadcast %cst_63 : f32 to vector<1x512xf32>
    %231 = arith.cmpf ole, %2, %230 : vector<1x512xf32>
    %cst_64 = arith.constant 6.000000e+00 : f32
    %232 = vector.broadcast %cst_64 : f32 to vector<1x512xf32>
    %233 = arith.cmpf ole, %3, %232 : vector<1x512xf32>
    %234 = arith.andi %229, %231 : vector<1x512xi1>
    %235 = arith.andi %234, %233 : vector<1x512xi1>
    %236 = arith.extui %235 : vector<1x512xi1> to vector<1x512xi32>
    %237 = arith.sitofp %236 : vector<1x512xi32> to vector<1x512xf32>
    %238 = vector.broadcast %237 : vector<1x512xf32> to vector<8x512xf32>
    %239 = arith.mulf %227, %238 : vector<8x512xf32>
    %c64 = arith.constant 64 : index
    %c0_65 = arith.constant 0 : index
    %240 = vector.load %arg7[%c64, %c0_65] : memref<216x512xf32, #tpu.memory_space<vmem>>, vector<8x512xf32>
    tpu.vector_store %arg7[%c64, %c0_65], %239 {strides = array<i32>} : memref<216x512xf32, #tpu.memory_space<vmem>>, vector<8x512xf32>,
    %c503_i32 = arith.constant 503 : i32
    %241 = tpu.dynamic_rotate %5 by %c503_i32 dim 1 : vector<8x512xf32>, i32 -> vector<8x512xf32>
    %c9_i32 = arith.constant 9 : i32
    %242 = tpu.dynamic_rotate %5 by %c9_i32 dim 1 : vector<8x512xf32>, i32 -> vector<8x512xf32>
    %c503_i32_66 = arith.constant 503 : i32
    %243 = tpu.dynamic_rotate %0 by %c503_i32_66 dim 1 : vector<1x512xf32>, i32 -> vector<1x512xf32>
    %cst_67 = arith.constant -9.000000e+00 : f32
    %244 = vector.broadcast %cst_67 : f32 to vector<1x512xf32>
    %245 = arith.addf %0, %244 : vector<1x512xf32>
    %246 = arith.cmpf oeq, %243, %245 : vector<1x512xf32>
    %247 = arith.extui %246 : vector<1x512xi1> to vector<1x512xi32>
    %248 = arith.sitofp %247 : vector<1x512xi32> to vector<1x512xf32>
    %249 = vector.broadcast %248 : vector<1x512xf32> to vector<8x512xf32>
    %250 = arith.mulf %241, %249 : vector<8x512xf32>
    %cst_68 = arith.constant 1.000000e+00 : f32
    %251 = vector.broadcast %cst_68 : f32 to vector<1x512xf32>
    %252 = arith.subf %251, %248 : vector<1x512xf32>
    %253 = vector.broadcast %252 : vector<1x512xf32> to vector<8x512xf32>
    %254 = arith.mulf %242, %253 : vector<8x512xf32>
    %255 = arith.addf %250, %254 : vector<8x512xf32>
    %cst_69 = arith.constant 1.000000e+00 : f32
    %256 = vector.broadcast %cst_69 : f32 to vector<1x512xf32>
    %257 = arith.cmpf oge, %2, %256 : vector<1x512xf32>
    %cst_70 = arith.constant 1.000000e+00 : f32
    %258 = vector.broadcast %cst_70 : f32 to vector<1x512xf32>
    %259 = arith.cmpf oge, %3, %258 : vector<1x512xf32>
    %260 = arith.andi %257, %259 : vector<1x512xi1>
    %261 = arith.extui %260 : vector<1x512xi1> to vector<1x512xi32>
    %262 = arith.sitofp %261 : vector<1x512xi32> to vector<1x512xf32>
    %263 = vector.broadcast %262 : vector<1x512xf32> to vector<8x512xf32>
    %264 = arith.mulf %255, %263 : vector<8x512xf32>
    %c72 = arith.constant 72 : index
    %c0_71 = arith.constant 0 : index
    %265 = vector.load %arg7[%c72, %c0_71] : memref<216x512xf32, #tpu.memory_space<vmem>>, vector<8x512xf32>
    tpu.vector_store %arg7[%c72, %c0_71], %264 {strides = array<i32>} : memref<216x512xf32, #tpu.memory_space<vmem>>, vector<8x512xf32>,
    %c504_i32 = arith.constant 504 : i32
    %266 = tpu.dynamic_rotate %5 by %c504_i32 dim 1 : vector<8x512xf32>, i32 -> vector<8x512xf32>
    %c8_i32 = arith.constant 8 : i32
    %267 = tpu.dynamic_rotate %5 by %c8_i32 dim 1 : vector<8x512xf32>, i32 -> vector<8x512xf32>
    %c504_i32_72 = arith.constant 504 : i32
    %268 = tpu.dynamic_rotate %0 by %c504_i32_72 dim 1 : vector<1x512xf32>, i32 -> vector<1x512xf32>
    %cst_73 = arith.constant -8.000000e+00 : f32
    %269 = vector.broadcast %cst_73 : f32 to vector<1x512xf32>
    %270 = arith.addf %0, %269 : vector<1x512xf32>
    %271 = arith.cmpf oeq, %268, %270 : vector<1x512xf32>
    %272 = arith.extui %271 : vector<1x512xi1> to vector<1x512xi32>
    %273 = arith.sitofp %272 : vector<1x512xi32> to vector<1x512xf32>
    %274 = vector.broadcast %273 : vector<1x512xf32> to vector<8x512xf32>
    %275 = arith.mulf %266, %274 : vector<8x512xf32>
    %cst_74 = arith.constant 1.000000e+00 : f32
    %276 = vector.broadcast %cst_74 : f32 to vector<1x512xf32>
    %277 = arith.subf %276, %273 : vector<1x512xf32>
    %278 = vector.broadcast %277 : vector<1x512xf32> to vector<8x512xf32>
    %279 = arith.mulf %267, %278 : vector<8x512xf32>
    %280 = arith.addf %275, %279 : vector<8x512xf32>
    %cst_75 = arith.constant 1.000000e+00 : f32
    %281 = vector.broadcast %cst_75 : f32 to vector<1x512xf32>
    %282 = arith.cmpf oge, %2, %281 : vector<1x512xf32>
    %283 = arith.extui %282 : vector<1x512xi1> to vector<1x512xi32>
    %284 = arith.sitofp %283 : vector<1x512xi32> to vector<1x512xf32>
    %285 = vector.broadcast %284 : vector<1x512xf32> to vector<8x512xf32>
    %286 = arith.mulf %280, %285 : vector<8x512xf32>
    %c80 = arith.constant 80 : index
    %c0_76 = arith.constant 0 : index
    %287 = vector.load %arg7[%c80, %c0_76] : memref<216x512xf32, #tpu.memory_space<vmem>>, vector<8x512xf32>
    tpu.vector_store %arg7[%c80, %c0_76], %286 {strides = array<i32>} : memref<216x512xf32, #tpu.memory_space<vmem>>, vector<8x512xf32>,
    %c505_i32 = arith.constant 505 : i32
    %288 = tpu.dynamic_rotate %5 by %c505_i32 dim 1 : vector<8x512xf32>, i32 -> vector<8x512xf32>
    %c7_i32 = arith.constant 7 : i32
    %289 = tpu.dynamic_rotate %5 by %c7_i32 dim 1 : vector<8x512xf32>, i32 -> vector<8x512xf32>
    %c505_i32_77 = arith.constant 505 : i32
    %290 = tpu.dynamic_rotate %0 by %c505_i32_77 dim 1 : vector<1x512xf32>, i32 -> vector<1x512xf32>
    %cst_78 = arith.constant -7.000000e+00 : f32
    %291 = vector.broadcast %cst_78 : f32 to vector<1x512xf32>
    %292 = arith.addf %0, %291 : vector<1x512xf32>
    %293 = arith.cmpf oeq, %290, %292 : vector<1x512xf32>
    %294 = arith.extui %293 : vector<1x512xi1> to vector<1x512xi32>
    %295 = arith.sitofp %294 : vector<1x512xi32> to vector<1x512xf32>
    %296 = vector.broadcast %295 : vector<1x512xf32> to vector<8x512xf32>
    %297 = arith.mulf %288, %296 : vector<8x512xf32>
    %cst_79 = arith.constant 1.000000e+00 : f32
    %298 = vector.broadcast %cst_79 : f32 to vector<1x512xf32>
    %299 = arith.subf %298, %295 : vector<1x512xf32>
    %300 = vector.broadcast %299 : vector<1x512xf32> to vector<8x512xf32>
    %301 = arith.mulf %289, %300 : vector<8x512xf32>
    %302 = arith.addf %297, %301 : vector<8x512xf32>
    %cst_80 = arith.constant 1.000000e+00 : f32
    %303 = vector.broadcast %cst_80 : f32 to vector<1x512xf32>
    %304 = arith.cmpf oge, %2, %303 : vector<1x512xf32>
    %cst_81 = arith.constant 6.000000e+00 : f32
    %305 = vector.broadcast %cst_81 : f32 to vector<1x512xf32>
    %306 = arith.cmpf ole, %3, %305 : vector<1x512xf32>
    %307 = arith.andi %304, %306 : vector<1x512xi1>
    %308 = arith.extui %307 : vector<1x512xi1> to vector<1x512xi32>
    %309 = arith.sitofp %308 : vector<1x512xi32> to vector<1x512xf32>
    %310 = vector.broadcast %309 : vector<1x512xf32> to vector<8x512xf32>
    %311 = arith.mulf %302, %310 : vector<8x512xf32>
    %c88 = arith.constant 88 : index
    %c0_82 = arith.constant 0 : index
    %312 = vector.load %arg7[%c88, %c0_82] : memref<216x512xf32, #tpu.memory_space<vmem>>, vector<8x512xf32>
    tpu.vector_store %arg7[%c88, %c0_82], %311 {strides = array<i32>} : memref<216x512xf32, #tpu.memory_space<vmem>>, vector<8x512xf32>,
    %c511_i32 = arith.constant 511 : i32
    %313 = tpu.dynamic_rotate %5 by %c511_i32 dim 1 : vector<8x512xf32>, i32 -> vector<8x512xf32>
    %c1_i32 = arith.constant 1 : i32
    %314 = tpu.dynamic_rotate %5 by %c1_i32 dim 1 : vector<8x512xf32>, i32 -> vector<8x512xf32>
    %c511_i32_83 = arith.constant 511 : i32
    %315 = tpu.dynamic_rotate %0 by %c511_i32_83 dim 1 : vector<1x512xf32>, i32 -> vector<1x512xf32>
    %cst_84 = arith.constant -1.000000e+00 : f32
    %316 = vector.broadcast %cst_84 : f32 to vector<1x512xf32>
    %317 = arith.addf %0, %316 : vector<1x512xf32>
    %318 = arith.cmpf oeq, %315, %317 : vector<1x512xf32>
    %319 = arith.extui %318 : vector<1x512xi1> to vector<1x512xi32>
    %320 = arith.sitofp %319 : vector<1x512xi32> to vector<1x512xf32>
    %321 = vector.broadcast %320 : vector<1x512xf32> to vector<8x512xf32>
    %322 = arith.mulf %313, %321 : vector<8x512xf32>
    %cst_85 = arith.constant 1.000000e+00 : f32
    %323 = vector.broadcast %cst_85 : f32 to vector<1x512xf32>
    %324 = arith.subf %323, %320 : vector<1x512xf32>
    %325 = vector.broadcast %324 : vector<1x512xf32> to vector<8x512xf32>
    %326 = arith.mulf %314, %325 : vector<8x512xf32>
    %327 = arith.addf %322, %326 : vector<8x512xf32>
    %cst_86 = arith.constant 1.000000e+00 : f32
    %328 = vector.broadcast %cst_86 : f32 to vector<1x512xf32>
    %329 = arith.cmpf oge, %3, %328 : vector<1x512xf32>
    %330 = arith.extui %329 : vector<1x512xi1> to vector<1x512xi32>
    %331 = arith.sitofp %330 : vector<1x512xi32> to vector<1x512xf32>
    %332 = vector.broadcast %331 : vector<1x512xf32> to vector<8x512xf32>
    %333 = arith.mulf %327, %332 : vector<8x512xf32>
    %c96 = arith.constant 96 : index
    %c0_87 = arith.constant 0 : index
    %334 = vector.load %arg7[%c96, %c0_87] : memref<216x512xf32, #tpu.memory_space<vmem>>, vector<8x512xf32>
    tpu.vector_store %arg7[%c96, %c0_87], %333 {strides = array<i32>} : memref<216x512xf32, #tpu.memory_space<vmem>>, vector<8x512xf32>,
    %c104 = arith.constant 104 : index
    %c0_88 = arith.constant 0 : index
    %335 = vector.load %arg7[%c104, %c0_88] : memref<216x512xf32, #tpu.memory_space<vmem>>, vector<8x512xf32>
    tpu.vector_store %arg7[%c104, %c0_88], %5 {strides = array<i32>} : memref<216x512xf32, #tpu.memory_space<vmem>>, vector<8x512xf32>,
    %c1_i32_89 = arith.constant 1 : i32
    %336 = tpu.dynamic_rotate %5 by %c1_i32_89 dim 1 : vector<8x512xf32>, i32 -> vector<8x512xf32>
    %c511_i32_90 = arith.constant 511 : i32
    %337 = tpu.dynamic_rotate %5 by %c511_i32_90 dim 1 : vector<8x512xf32>, i32 -> vector<8x512xf32>
    %c1_i32_91 = arith.constant 1 : i32
    %338 = tpu.dynamic_rotate %0 by %c1_i32_91 dim 1 : vector<1x512xf32>, i32 -> vector<1x512xf32>
    %cst_92 = arith.constant 1.000000e+00 : f32
    %339 = vector.broadcast %cst_92 : f32 to vector<1x512xf32>
    %340 = arith.addf %0, %339 : vector<1x512xf32>
    %341 = arith.cmpf oeq, %338, %340 : vector<1x512xf32>
    %342 = arith.extui %341 : vector<1x512xi1> to vector<1x512xi32>
    %343 = arith.sitofp %342 : vector<1x512xi32> to vector<1x512xf32>
    %344 = vector.broadcast %343 : vector<1x512xf32> to vector<8x512xf32>
    %345 = arith.mulf %336, %344 : vector<8x512xf32>
    %cst_93 = arith.constant 1.000000e+00 : f32
    %346 = vector.broadcast %cst_93 : f32 to vector<1x512xf32>
    %347 = arith.subf %346, %343 : vector<1x512xf32>
    %348 = vector.broadcast %347 : vector<1x512xf32> to vector<8x512xf32>
    %349 = arith.mulf %337, %348 : vector<8x512xf32>
    %350 = arith.addf %345, %349 : vector<8x512xf32>
    %cst_94 = arith.constant 6.000000e+00 : f32
    %351 = vector.broadcast %cst_94 : f32 to vector<1x512xf32>
    %352 = arith.cmpf ole, %3, %351 : vector<1x512xf32>
    %353 = arith.extui %352 : vector<1x512xi1> to vector<1x512xi32>
    %354 = arith.sitofp %353 : vector<1x512xi32> to vector<1x512xf32>
    %355 = vector.broadcast %354 : vector<1x512xf32> to vector<8x512xf32>
    %356 = arith.mulf %350, %355 : vector<8x512xf32>
    %c112 = arith.constant 112 : index
    %c0_95 = arith.constant 0 : index
    %357 = vector.load %arg7[%c112, %c0_95] : memref<216x512xf32, #tpu.memory_space<vmem>>, vector<8x512xf32>
    tpu.vector_store %arg7[%c112, %c0_95], %356 {strides = array<i32>} : memref<216x512xf32, #tpu.memory_space<vmem>>, vector<8x512xf32>,
    %c7_i32_96 = arith.constant 7 : i32
    %358 = tpu.dynamic_rotate %5 by %c7_i32_96 dim 1 : vector<8x512xf32>, i32 -> vector<8x512xf32>
    %c505_i32_97 = arith.constant 505 : i32
    %359 = tpu.dynamic_rotate %5 by %c505_i32_97 dim 1 : vector<8x512xf32>, i32 -> vector<8x512xf32>
    %c7_i32_98 = arith.constant 7 : i32
    %360 = tpu.dynamic_rotate %0 by %c7_i32_98 dim 1 : vector<1x512xf32>, i32 -> vector<1x512xf32>
    %cst_99 = arith.constant 7.000000e+00 : f32
    %361 = vector.broadcast %cst_99 : f32 to vector<1x512xf32>
    %362 = arith.addf %0, %361 : vector<1x512xf32>
    %363 = arith.cmpf oeq, %360, %362 : vector<1x512xf32>
    %364 = arith.extui %363 : vector<1x512xi1> to vector<1x512xi32>
    %365 = arith.sitofp %364 : vector<1x512xi32> to vector<1x512xf32>
    %366 = vector.broadcast %365 : vector<1x512xf32> to vector<8x512xf32>
    %367 = arith.mulf %358, %366 : vector<8x512xf32>
    %cst_100 = arith.constant 1.000000e+00 : f32
    %368 = vector.broadcast %cst_100 : f32 to vector<1x512xf32>
    %369 = arith.subf %368, %365 : vector<1x512xf32>
    %370 = vector.broadcast %369 : vector<1x512xf32> to vector<8x512xf32>
    %371 = arith.mulf %359, %370 : vector<8x512xf32>
    %372 = arith.addf %367, %371 : vector<8x512xf32>
    %cst_101 = arith.constant 6.000000e+00 : f32
    %373 = vector.broadcast %cst_101 : f32 to vector<1x512xf32>
    %374 = arith.cmpf ole, %2, %373 : vector<1x512xf32>
    %cst_102 = arith.constant 1.000000e+00 : f32
    %375 = vector.broadcast %cst_102 : f32 to vector<1x512xf32>
    %376 = arith.cmpf oge, %3, %375 : vector<1x512xf32>
    %377 = arith.andi %374, %376 : vector<1x512xi1>
    %378 = arith.extui %377 : vector<1x512xi1> to vector<1x512xi32>
    %379 = arith.sitofp %378 : vector<1x512xi32> to vector<1x512xf32>
    %380 = vector.broadcast %379 : vector<1x512xf32> to vector<8x512xf32>
    %381 = arith.mulf %372, %380 : vector<8x512xf32>
    %c120 = arith.constant 120 : index
    %c0_103 = arith.constant 0 : index
    %382 = vector.load %arg7[%c120, %c0_103] : memref<216x512xf32, #tpu.memory_space<vmem>>, vector<8x512xf32>
    tpu.vector_store %arg7[%c120, %c0_103], %381 {strides = array<i32>} : memref<216x512xf32, #tpu.memory_space<vmem>>, vector<8x512xf32>,
    %c8_i32_104 = arith.constant 8 : i32
    %383 = tpu.dynamic_rotate %5 by %c8_i32_104 dim 1 : vector<8x512xf32>, i32 -> vector<8x512xf32>
    %c504_i32_105 = arith.constant 504 : i32
    %384 = tpu.dynamic_rotate %5 by %c504_i32_105 dim 1 : vector<8x512xf32>, i32 -> vector<8x512xf32>
    %c8_i32_106 = arith.constant 8 : i32
    %385 = tpu.dynamic_rotate %0 by %c8_i32_106 dim 1 : vector<1x512xf32>, i32 -> vector<1x512xf32>
    %cst_107 = arith.constant 8.000000e+00 : f32
    %386 = vector.broadcast %cst_107 : f32 to vector<1x512xf32>
    %387 = arith.addf %0, %386 : vector<1x512xf32>
    %388 = arith.cmpf oeq, %385, %387 : vector<1x512xf32>
    %389 = arith.extui %388 : vector<1x512xi1> to vector<1x512xi32>
    %390 = arith.sitofp %389 : vector<1x512xi32> to vector<1x512xf32>
    %391 = vector.broadcast %390 : vector<1x512xf32> to vector<8x512xf32>
    %392 = arith.mulf %383, %391 : vector<8x512xf32>
    %cst_108 = arith.constant 1.000000e+00 : f32
    %393 = vector.broadcast %cst_108 : f32 to vector<1x512xf32>
    %394 = arith.subf %393, %390 : vector<1x512xf32>
    %395 = vector.broadcast %394 : vector<1x512xf32> to vector<8x512xf32>
    %396 = arith.mulf %384, %395 : vector<8x512xf32>
    %397 = arith.addf %392, %396 : vector<8x512xf32>
    %cst_109 = arith.constant 6.000000e+00 : f32
    %398 = vector.broadcast %cst_109 : f32 to vector<1x512xf32>
    %399 = arith.cmpf ole, %2, %398 : vector<1x512xf32>
    %400 = arith.extui %399 : vector<1x512xi1> to vector<1x512xi32>
    %401 = arith.sitofp %400 : vector<1x512xi32> to vector<1x512xf32>
    %402 = vector.broadcast %401 : vector<1x512xf32> to vector<8x512xf32>
    %403 = arith.mulf %397, %402 : vector<8x512xf32>
    %c128 = arith.constant 128 : index
    %c0_110 = arith.constant 0 : index
    %404 = vector.load %arg7[%c128, %c0_110] : memref<216x512xf32, #tpu.memory_space<vmem>>, vector<8x512xf32>
    tpu.vector_store %arg7[%c128, %c0_110], %403 {strides = array<i32>} : memref<216x512xf32, #tpu.memory_space<vmem>>, vector<8x512xf32>,
    %c9_i32_111 = arith.constant 9 : i32
    %405 = tpu.dynamic_rotate %5 by %c9_i32_111 dim 1 : vector<8x512xf32>, i32 -> vector<8x512xf32>
    %c503_i32_112 = arith.constant 503 : i32
    %406 = tpu.dynamic_rotate %5 by %c503_i32_112 dim 1 : vector<8x512xf32>, i32 -> vector<8x512xf32>
    %c9_i32_113 = arith.constant 9 : i32
    %407 = tpu.dynamic_rotate %0 by %c9_i32_113 dim 1 : vector<1x512xf32>, i32 -> vector<1x512xf32>
    %cst_114 = arith.constant 9.000000e+00 : f32
    %408 = vector.broadcast %cst_114 : f32 to vector<1x512xf32>
    %409 = arith.addf %0, %408 : vector<1x512xf32>
    %410 = arith.cmpf oeq, %407, %409 : vector<1x512xf32>
    %411 = arith.extui %410 : vector<1x512xi1> to vector<1x512xi32>
    %412 = arith.sitofp %411 : vector<1x512xi32> to vector<1x512xf32>
    %413 = vector.broadcast %412 : vector<1x512xf32> to vector<8x512xf32>
    %414 = arith.mulf %405, %413 : vector<8x512xf32>
    %cst_115 = arith.constant 1.000000e+00 : f32
    %415 = vector.broadcast %cst_115 : f32 to vector<1x512xf32>
    %416 = arith.subf %415, %412 : vector<1x512xf32>
    %417 = vector.broadcast %416 : vector<1x512xf32> to vector<8x512xf32>
    %418 = arith.mulf %406, %417 : vector<8x512xf32>
    %419 = arith.addf %414, %418 : vector<8x512xf32>
    %cst_116 = arith.constant 6.000000e+00 : f32
    %420 = vector.broadcast %cst_116 : f32 to vector<1x512xf32>
    %421 = arith.cmpf ole, %2, %420 : vector<1x512xf32>
    %cst_117 = arith.constant 6.000000e+00 : f32
    %422 = vector.broadcast %cst_117 : f32 to vector<1x512xf32>
    %423 = arith.cmpf ole, %3, %422 : vector<1x512xf32>
    %424 = arith.andi %421, %423 : vector<1x512xi1>
    %425 = arith.extui %424 : vector<1x512xi1> to vector<1x512xi32>
    %426 = arith.sitofp %425 : vector<1x512xi32> to vector<1x512xf32>
    %427 = vector.broadcast %426 : vector<1x512xf32> to vector<8x512xf32>
    %428 = arith.mulf %419, %427 : vector<8x512xf32>
    %c136 = arith.constant 136 : index
    %c0_118 = arith.constant 0 : index
    %429 = vector.load %arg7[%c136, %c0_118] : memref<216x512xf32, #tpu.memory_space<vmem>>, vector<8x512xf32>
    tpu.vector_store %arg7[%c136, %c0_118], %428 {strides = array<i32>} : memref<216x512xf32, #tpu.memory_space<vmem>>, vector<8x512xf32>,
    %c55_i32_119 = arith.constant 55 : i32
    %430 = tpu.dynamic_rotate %5 by %c55_i32_119 dim 1 : vector<8x512xf32>, i32 -> vector<8x512xf32>
    %c457_i32_120 = arith.constant 457 : i32
    %431 = tpu.dynamic_rotate %5 by %c457_i32_120 dim 1 : vector<8x512xf32>, i32 -> vector<8x512xf32>
    %c55_i32_121 = arith.constant 55 : i32
    %432 = tpu.dynamic_rotate %0 by %c55_i32_121 dim 1 : vector<1x512xf32>, i32 -> vector<1x512xf32>
    %cst_122 = arith.constant 5.500000e+01 : f32
    %433 = vector.broadcast %cst_122 : f32 to vector<1x512xf32>
    %434 = arith.addf %0, %433 : vector<1x512xf32>
    %435 = arith.cmpf oeq, %432, %434 : vector<1x512xf32>
    %436 = arith.extui %435 : vector<1x512xi1> to vector<1x512xi32>
    %437 = arith.sitofp %436 : vector<1x512xi32> to vector<1x512xf32>
    %438 = vector.broadcast %437 : vector<1x512xf32> to vector<8x512xf32>
    %439 = arith.mulf %430, %438 : vector<8x512xf32>
    %cst_123 = arith.constant 1.000000e+00 : f32
    %440 = vector.broadcast %cst_123 : f32 to vector<1x512xf32>
    %441 = arith.subf %440, %437 : vector<1x512xf32>
    %442 = vector.broadcast %441 : vector<1x512xf32> to vector<8x512xf32>
    %443 = arith.mulf %431, %442 : vector<8x512xf32>
    %444 = arith.addf %439, %443 : vector<8x512xf32>
    %cst_124 = arith.constant 6.000000e+00 : f32
    %445 = vector.broadcast %cst_124 : f32 to vector<1x512xf32>
    %446 = arith.cmpf ole, %1, %445 : vector<1x512xf32>
    %cst_125 = arith.constant 1.000000e+00 : f32
    %447 = vector.broadcast %cst_125 : f32 to vector<1x512xf32>
    %448 = arith.cmpf oge, %2, %447 : vector<1x512xf32>
    %cst_126 = arith.constant 1.000000e+00 : f32
    %449 = vector.broadcast %cst_126 : f32 to vector<1x512xf32>
    %450 = arith.cmpf oge, %3, %449 : vector<1x512xf32>
    %451 = arith.andi %446, %448 : vector<1x512xi1>
    %452 = arith.andi %451, %450 : vector<1x512xi1>
    %453 = arith.extui %452 : vector<1x512xi1> to vector<1x512xi32>
    %454 = arith.sitofp %453 : vector<1x512xi32> to vector<1x512xf32>
    %455 = vector.broadcast %454 : vector<1x512xf32> to vector<8x512xf32>
    %456 = arith.mulf %444, %455 : vector<8x512xf32>
    %c144 = arith.constant 144 : index
    %c0_127 = arith.constant 0 : index
    %457 = vector.load %arg7[%c144, %c0_127] : memref<216x512xf32, #tpu.memory_space<vmem>>, vector<8x512xf32>
    tpu.vector_store %arg7[%c144, %c0_127], %456 {strides = array<i32>} : memref<216x512xf32, #tpu.memory_space<vmem>>, vector<8x512xf32>,
    %c56_i32_128 = arith.constant 56 : i32
    %458 = tpu.dynamic_rotate %5 by %c56_i32_128 dim 1 : vector<8x512xf32>, i32 -> vector<8x512xf32>
    %c456_i32_129 = arith.constant 456 : i32
    %459 = tpu.dynamic_rotate %5 by %c456_i32_129 dim 1 : vector<8x512xf32>, i32 -> vector<8x512xf32>
    %c56_i32_130 = arith.constant 56 : i32
    %460 = tpu.dynamic_rotate %0 by %c56_i32_130 dim 1 : vector<1x512xf32>, i32 -> vector<1x512xf32>
    %cst_131 = arith.constant 5.600000e+01 : f32
    %461 = vector.broadcast %cst_131 : f32 to vector<1x512xf32>
    %462 = arith.addf %0, %461 : vector<1x512xf32>
    %463 = arith.cmpf oeq, %460, %462 : vector<1x512xf32>
    %464 = arith.extui %463 : vector<1x512xi1> to vector<1x512xi32>
    %465 = arith.sitofp %464 : vector<1x512xi32> to vector<1x512xf32>
    %466 = vector.broadcast %465 : vector<1x512xf32> to vector<8x512xf32>
    %467 = arith.mulf %458, %466 : vector<8x512xf32>
    %cst_132 = arith.constant 1.000000e+00 : f32
    %468 = vector.broadcast %cst_132 : f32 to vector<1x512xf32>
    %469 = arith.subf %468, %465 : vector<1x512xf32>
    %470 = vector.broadcast %469 : vector<1x512xf32> to vector<8x512xf32>
    %471 = arith.mulf %459, %470 : vector<8x512xf32>
    %472 = arith.addf %467, %471 : vector<8x512xf32>
    %cst_133 = arith.constant 6.000000e+00 : f32
    %473 = vector.broadcast %cst_133 : f32 to vector<1x512xf32>
    %474 = arith.cmpf ole, %1, %473 : vector<1x512xf32>
    %cst_134 = arith.constant 1.000000e+00 : f32
    %475 = vector.broadcast %cst_134 : f32 to vector<1x512xf32>
    %476 = arith.cmpf oge, %2, %475 : vector<1x512xf32>
    %477 = arith.andi %474, %476 : vector<1x512xi1>
    %478 = arith.extui %477 : vector<1x512xi1> to vector<1x512xi32>
    %479 = arith.sitofp %478 : vector<1x512xi32> to vector<1x512xf32>
    %480 = vector.broadcast %479 : vector<1x512xf32> to vector<8x512xf32>
    %481 = arith.mulf %472, %480 : vector<8x512xf32>
    %c152 = arith.constant 152 : index
    %c0_135 = arith.constant 0 : index
    %482 = vector.load %arg7[%c152, %c0_135] : memref<216x512xf32, #tpu.memory_space<vmem>>, vector<8x512xf32>
    tpu.vector_store %arg7[%c152, %c0_135], %481 {strides = array<i32>} : memref<216x512xf32, #tpu.memory_space<vmem>>, vector<8x512xf32>,
    %c57_i32_136 = arith.constant 57 : i32
    %483 = tpu.dynamic_rotate %5 by %c57_i32_136 dim 1 : vector<8x512xf32>, i32 -> vector<8x512xf32>
    %c455_i32_137 = arith.constant 455 : i32
    %484 = tpu.dynamic_rotate %5 by %c455_i32_137 dim 1 : vector<8x512xf32>, i32 -> vector<8x512xf32>
    %c57_i32_138 = arith.constant 57 : i32
    %485 = tpu.dynamic_rotate %0 by %c57_i32_138 dim 1 : vector<1x512xf32>, i32 -> vector<1x512xf32>
    %cst_139 = arith.constant 5.700000e+01 : f32
    %486 = vector.broadcast %cst_139 : f32 to vector<1x512xf32>
    %487 = arith.addf %0, %486 : vector<1x512xf32>
    %488 = arith.cmpf oeq, %485, %487 : vector<1x512xf32>
    %489 = arith.extui %488 : vector<1x512xi1> to vector<1x512xi32>
    %490 = arith.sitofp %489 : vector<1x512xi32> to vector<1x512xf32>
    %491 = vector.broadcast %490 : vector<1x512xf32> to vector<8x512xf32>
    %492 = arith.mulf %483, %491 : vector<8x512xf32>
    %cst_140 = arith.constant 1.000000e+00 : f32
    %493 = vector.broadcast %cst_140 : f32 to vector<1x512xf32>
    %494 = arith.subf %493, %490 : vector<1x512xf32>
    %495 = vector.broadcast %494 : vector<1x512xf32> to vector<8x512xf32>
    %496 = arith.mulf %484, %495 : vector<8x512xf32>
    %497 = arith.addf %492, %496 : vector<8x512xf32>
    %cst_141 = arith.constant 6.000000e+00 : f32
    %498 = vector.broadcast %cst_141 : f32 to vector<1x512xf32>
    %499 = arith.cmpf ole, %1, %498 : vector<1x512xf32>
    %cst_142 = arith.constant 1.000000e+00 : f32
    %500 = vector.broadcast %cst_142 : f32 to vector<1x512xf32>
    %501 = arith.cmpf oge, %2, %500 : vector<1x512xf32>
    %cst_143 = arith.constant 6.000000e+00 : f32
    %502 = vector.broadcast %cst_143 : f32 to vector<1x512xf32>
    %503 = arith.cmpf ole, %3, %502 : vector<1x512xf32>
    %504 = arith.andi %499, %501 : vector<1x512xi1>
    %505 = arith.andi %504, %503 : vector<1x512xi1>
    %506 = arith.extui %505 : vector<1x512xi1> to vector<1x512xi32>
    %507 = arith.sitofp %506 : vector<1x512xi32> to vector<1x512xf32>
    %508 = vector.broadcast %507 : vector<1x512xf32> to vector<8x512xf32>
    %509 = arith.mulf %497, %508 : vector<8x512xf32>
    %c160 = arith.constant 160 : index
    %c0_144 = arith.constant 0 : index
    %510 = vector.load %arg7[%c160, %c0_144] : memref<216x512xf32, #tpu.memory_space<vmem>>, vector<8x512xf32>
    tpu.vector_store %arg7[%c160, %c0_144], %509 {strides = array<i32>} : memref<216x512xf32, #tpu.memory_space<vmem>>, vector<8x512xf32>,
    %c63_i32_145 = arith.constant 63 : i32
    %511 = tpu.dynamic_rotate %5 by %c63_i32_145 dim 1 : vector<8x512xf32>, i32 -> vector<8x512xf32>
    %c449_i32_146 = arith.constant 449 : i32
    %512 = tpu.dynamic_rotate %5 by %c449_i32_146 dim 1 : vector<8x512xf32>, i32 -> vector<8x512xf32>
    %c63_i32_147 = arith.constant 63 : i32
    %513 = tpu.dynamic_rotate %0 by %c63_i32_147 dim 1 : vector<1x512xf32>, i32 -> vector<1x512xf32>
    %cst_148 = arith.constant 6.300000e+01 : f32
    %514 = vector.broadcast %cst_148 : f32 to vector<1x512xf32>
    %515 = arith.addf %0, %514 : vector<1x512xf32>
    %516 = arith.cmpf oeq, %513, %515 : vector<1x512xf32>
    %517 = arith.extui %516 : vector<1x512xi1> to vector<1x512xi32>
    %518 = arith.sitofp %517 : vector<1x512xi32> to vector<1x512xf32>
    %519 = vector.broadcast %518 : vector<1x512xf32> to vector<8x512xf32>
    %520 = arith.mulf %511, %519 : vector<8x512xf32>
    %cst_149 = arith.constant 1.000000e+00 : f32
    %521 = vector.broadcast %cst_149 : f32 to vector<1x512xf32>
    %522 = arith.subf %521, %518 : vector<1x512xf32>
    %523 = vector.broadcast %522 : vector<1x512xf32> to vector<8x512xf32>
    %524 = arith.mulf %512, %523 : vector<8x512xf32>
    %525 = arith.addf %520, %524 : vector<8x512xf32>
    %cst_150 = arith.constant 6.000000e+00 : f32
    %526 = vector.broadcast %cst_150 : f32 to vector<1x512xf32>
    %527 = arith.cmpf ole, %1, %526 : vector<1x512xf32>
    %cst_151 = arith.constant 1.000000e+00 : f32
    %528 = vector.broadcast %cst_151 : f32 to vector<1x512xf32>
    %529 = arith.cmpf oge, %3, %528 : vector<1x512xf32>
    %530 = arith.andi %527, %529 : vector<1x512xi1>
    %531 = arith.extui %530 : vector<1x512xi1> to vector<1x512xi32>
    %532 = arith.sitofp %531 : vector<1x512xi32> to vector<1x512xf32>
    %533 = vector.broadcast %532 : vector<1x512xf32> to vector<8x512xf32>
    %534 = arith.mulf %525, %533 : vector<8x512xf32>
    %c168 = arith.constant 168 : index
    %c0_152 = arith.constant 0 : index
    %535 = vector.load %arg7[%c168, %c0_152] : memref<216x512xf32, #tpu.memory_space<vmem>>, vector<8x512xf32>
    tpu.vector_store %arg7[%c168, %c0_152], %534 {strides = array<i32>} : memref<216x512xf32, #tpu.memory_space<vmem>>, vector<8x512xf32>,
    %c64_i32_153 = arith.constant 64 : i32
    %536 = tpu.dynamic_rotate %5 by %c64_i32_153 dim 1 : vector<8x512xf32>, i32 -> vector<8x512xf32>
    %c448_i32_154 = arith.constant 448 : i32
    %537 = tpu.dynamic_rotate %5 by %c448_i32_154 dim 1 : vector<8x512xf32>, i32 -> vector<8x512xf32>
    %c64_i32_155 = arith.constant 64 : i32
    %538 = tpu.dynamic_rotate %0 by %c64_i32_155 dim 1 : vector<1x512xf32>, i32 -> vector<1x512xf32>
    %cst_156 = arith.constant 6.400000e+01 : f32
    %539 = vector.broadcast %cst_156 : f32 to vector<1x512xf32>
    %540 = arith.addf %0, %539 : vector<1x512xf32>
    %541 = arith.cmpf oeq, %538, %540 : vector<1x512xf32>
    %542 = arith.extui %541 : vector<1x512xi1> to vector<1x512xi32>
    %543 = arith.sitofp %542 : vector<1x512xi32> to vector<1x512xf32>
    %544 = vector.broadcast %543 : vector<1x512xf32> to vector<8x512xf32>
    %545 = arith.mulf %536, %544 : vector<8x512xf32>
    %cst_157 = arith.constant 1.000000e+00 : f32
    %546 = vector.broadcast %cst_157 : f32 to vector<1x512xf32>
    %547 = arith.subf %546, %543 : vector<1x512xf32>
    %548 = vector.broadcast %547 : vector<1x512xf32> to vector<8x512xf32>
    %549 = arith.mulf %537, %548 : vector<8x512xf32>
    %550 = arith.addf %545, %549 : vector<8x512xf32>
    %cst_158 = arith.constant 6.000000e+00 : f32
    %551 = vector.broadcast %cst_158 : f32 to vector<1x512xf32>
    %552 = arith.cmpf ole, %1, %551 : vector<1x512xf32>
    %553 = arith.extui %552 : vector<1x512xi1> to vector<1x512xi32>
    %554 = arith.sitofp %553 : vector<1x512xi32> to vector<1x512xf32>
    %555 = vector.broadcast %554 : vector<1x512xf32> to vector<8x512xf32>
    %556 = arith.mulf %550, %555 : vector<8x512xf32>
    %c176 = arith.constant 176 : index
    %c0_159 = arith.constant 0 : index
    %557 = vector.load %arg7[%c176, %c0_159] : memref<216x512xf32, #tpu.memory_space<vmem>>, vector<8x512xf32>
    tpu.vector_store %arg7[%c176, %c0_159], %556 {strides = array<i32>} : memref<216x512xf32, #tpu.memory_space<vmem>>, vector<8x512xf32>,
    %c65_i32_160 = arith.constant 65 : i32
    %558 = tpu.dynamic_rotate %5 by %c65_i32_160 dim 1 : vector<8x512xf32>, i32 -> vector<8x512xf32>
    %c447_i32_161 = arith.constant 447 : i32
    %559 = tpu.dynamic_rotate %5 by %c447_i32_161 dim 1 : vector<8x512xf32>, i32 -> vector<8x512xf32>
    %c65_i32_162 = arith.constant 65 : i32
    %560 = tpu.dynamic_rotate %0 by %c65_i32_162 dim 1 : vector<1x512xf32>, i32 -> vector<1x512xf32>
    %cst_163 = arith.constant 6.500000e+01 : f32
    %561 = vector.broadcast %cst_163 : f32 to vector<1x512xf32>
    %562 = arith.addf %0, %561 : vector<1x512xf32>
    %563 = arith.cmpf oeq, %560, %562 : vector<1x512xf32>
    %564 = arith.extui %563 : vector<1x512xi1> to vector<1x512xi32>
    %565 = arith.sitofp %564 : vector<1x512xi32> to vector<1x512xf32>
    %566 = vector.broadcast %565 : vector<1x512xf32> to vector<8x512xf32>
    %567 = arith.mulf %558, %566 : vector<8x512xf32>
    %cst_164 = arith.constant 1.000000e+00 : f32
    %568 = vector.broadcast %cst_164 : f32 to vector<1x512xf32>
    %569 = arith.subf %568, %565 : vector<1x512xf32>
    %570 = vector.broadcast %569 : vector<1x512xf32> to vector<8x512xf32>
    %571 = arith.mulf %559, %570 : vector<8x512xf32>
    %572 = arith.addf %567, %571 : vector<8x512xf32>
    %cst_165 = arith.constant 6.000000e+00 : f32
    %573 = vector.broadcast %cst_165 : f32 to vector<1x512xf32>
    %574 = arith.cmpf ole, %1, %573 : vector<1x512xf32>
    %cst_166 = arith.constant 6.000000e+00 : f32
    %575 = vector.broadcast %cst_166 : f32 to vector<1x512xf32>
    %576 = arith.cmpf ole, %3, %575 : vector<1x512xf32>
    %577 = arith.andi %574, %576 : vector<1x512xi1>
    %578 = arith.extui %577 : vector<1x512xi1> to vector<1x512xi32>
    %579 = arith.sitofp %578 : vector<1x512xi32> to vector<1x512xf32>
    %580 = vector.broadcast %579 : vector<1x512xf32> to vector<8x512xf32>
    %581 = arith.mulf %572, %580 : vector<8x512xf32>
    %c184 = arith.constant 184 : index
    %c0_167 = arith.constant 0 : index
    %582 = vector.load %arg7[%c184, %c0_167] : memref<216x512xf32, #tpu.memory_space<vmem>>, vector<8x512xf32>
    tpu.vector_store %arg7[%c184, %c0_167], %581 {strides = array<i32>} : memref<216x512xf32, #tpu.memory_space<vmem>>, vector<8x512xf32>,
    %c71_i32_168 = arith.constant 71 : i32
    %583 = tpu.dynamic_rotate %5 by %c71_i32_168 dim 1 : vector<8x512xf32>, i32 -> vector<8x512xf32>
    %c441_i32_169 = arith.constant 441 : i32
    %584 = tpu.dynamic_rotate %5 by %c441_i32_169 dim 1 : vector<8x512xf32>, i32 -> vector<8x512xf32>
    %c71_i32_170 = arith.constant 71 : i32
    %585 = tpu.dynamic_rotate %0 by %c71_i32_170 dim 1 : vector<1x512xf32>, i32 -> vector<1x512xf32>
    %cst_171 = arith.constant 7.100000e+01 : f32
    %586 = vector.broadcast %cst_171 : f32 to vector<1x512xf32>
    %587 = arith.addf %0, %586 : vector<1x512xf32>
    %588 = arith.cmpf oeq, %585, %587 : vector<1x512xf32>
    %589 = arith.extui %588 : vector<1x512xi1> to vector<1x512xi32>
    %590 = arith.sitofp %589 : vector<1x512xi32> to vector<1x512xf32>
    %591 = vector.broadcast %590 : vector<1x512xf32> to vector<8x512xf32>
    %592 = arith.mulf %583, %591 : vector<8x512xf32>
    %cst_172 = arith.constant 1.000000e+00 : f32
    %593 = vector.broadcast %cst_172 : f32 to vector<1x512xf32>
    %594 = arith.subf %593, %590 : vector<1x512xf32>
    %595 = vector.broadcast %594 : vector<1x512xf32> to vector<8x512xf32>
    %596 = arith.mulf %584, %595 : vector<8x512xf32>
    %597 = arith.addf %592, %596 : vector<8x512xf32>
    %cst_173 = arith.constant 6.000000e+00 : f32
    %598 = vector.broadcast %cst_173 : f32 to vector<1x512xf32>
    %599 = arith.cmpf ole, %1, %598 : vector<1x512xf32>
    %cst_174 = arith.constant 6.000000e+00 : f32
    %600 = vector.broadcast %cst_174 : f32 to vector<1x512xf32>
    %601 = arith.cmpf ole, %2, %600 : vector<1x512xf32>
    %cst_175 = arith.constant 1.000000e+00 : f32
    %602 = vector.broadcast %cst_175 : f32 to vector<1x512xf32>
    %603 = arith.cmpf oge, %3, %602 : vector<1x512xf32>
    %604 = arith.andi %599, %601 : vector<1x512xi1>
    %605 = arith.andi %604, %603 : vector<1x512xi1>
    %606 = arith.extui %605 : vector<1x512xi1> to vector<1x512xi32>
    %607 = arith.sitofp %606 : vector<1x512xi32> to vector<1x512xf32>
    %608 = vector.broadcast %607 : vector<1x512xf32> to vector<8x512xf32>
    %609 = arith.mulf %597, %608 : vector<8x512xf32>
    %c192 = arith.constant 192 : index
    %c0_176 = arith.constant 0 : index
    %610 = vector.load %arg7[%c192, %c0_176] : memref<216x512xf32, #tpu.memory_space<vmem>>, vector<8x512xf32>
    tpu.vector_store %arg7[%c192, %c0_176], %609 {strides = array<i32>} : memref<216x512xf32, #tpu.memory_space<vmem>>, vector<8x512xf32>,
    %c72_i32_177 = arith.constant 72 : i32
    %611 = tpu.dynamic_rotate %5 by %c72_i32_177 dim 1 : vector<8x512xf32>, i32 -> vector<8x512xf32>
    %c440_i32_178 = arith.constant 440 : i32
    %612 = tpu.dynamic_rotate %5 by %c440_i32_178 dim 1 : vector<8x512xf32>, i32 -> vector<8x512xf32>
    %c72_i32_179 = arith.constant 72 : i32
    %613 = tpu.dynamic_rotate %0 by %c72_i32_179 dim 1 : vector<1x512xf32>, i32 -> vector<1x512xf32>
    %cst_180 = arith.constant 7.200000e+01 : f32
    %614 = vector.broadcast %cst_180 : f32 to vector<1x512xf32>
    %615 = arith.addf %0, %614 : vector<1x512xf32>
    %616 = arith.cmpf oeq, %613, %615 : vector<1x512xf32>
    %617 = arith.extui %616 : vector<1x512xi1> to vector<1x512xi32>
    %618 = arith.sitofp %617 : vector<1x512xi32> to vector<1x512xf32>
    %619 = vector.broadcast %618 : vector<1x512xf32> to vector<8x512xf32>
    %620 = arith.mulf %611, %619 : vector<8x512xf32>
    %cst_181 = arith.constant 1.000000e+00 : f32
    %621 = vector.broadcast %cst_181 : f32 to vector<1x512xf32>
    %622 = arith.subf %621, %618 : vector<1x512xf32>
    %623 = vector.broadcast %622 : vector<1x512xf32> to vector<8x512xf32>
    %624 = arith.mulf %612, %623 : vector<8x512xf32>
    %625 = arith.addf %620, %624 : vector<8x512xf32>
    %cst_182 = arith.constant 6.000000e+00 : f32
    %626 = vector.broadcast %cst_182 : f32 to vector<1x512xf32>
    %627 = arith.cmpf ole, %1, %626 : vector<1x512xf32>
    %cst_183 = arith.constant 6.000000e+00 : f32
    %628 = vector.broadcast %cst_183 : f32 to vector<1x512xf32>
    %629 = arith.cmpf ole, %2, %628 : vector<1x512xf32>
    %630 = arith.andi %627, %629 : vector<1x512xi1>
    %631 = arith.extui %630 : vector<1x512xi1> to vector<1x512xi32>
    %632 = arith.sitofp %631 : vector<1x512xi32> to vector<1x512xf32>
    %633 = vector.broadcast %632 : vector<1x512xf32> to vector<8x512xf32>
    %634 = arith.mulf %625, %633 : vector<8x512xf32>
    %c200 = arith.constant 200 : index
    %c0_184 = arith.constant 0 : index
    %635 = vector.load %arg7[%c200, %c0_184] : memref<216x512xf32, #tpu.memory_space<vmem>>, vector<8x512xf32>
    tpu.vector_store %arg7[%c200, %c0_184], %634 {strides = array<i32>} : memref<216x512xf32, #tpu.memory_space<vmem>>, vector<8x512xf32>,
    %c73_i32_185 = arith.constant 73 : i32
    %636 = tpu.dynamic_rotate %5 by %c73_i32_185 dim 1 : vector<8x512xf32>, i32 -> vector<8x512xf32>
    %c439_i32_186 = arith.constant 439 : i32
    %637 = tpu.dynamic_rotate %5 by %c439_i32_186 dim 1 : vector<8x512xf32>, i32 -> vector<8x512xf32>
    %c73_i32_187 = arith.constant 73 : i32
    %638 = tpu.dynamic_rotate %0 by %c73_i32_187 dim 1 : vector<1x512xf32>, i32 -> vector<1x512xf32>
    %cst_188 = arith.constant 7.300000e+01 : f32
    %639 = vector.broadcast %cst_188 : f32 to vector<1x512xf32>
    %640 = arith.addf %0, %639 : vector<1x512xf32>
    %641 = arith.cmpf oeq, %638, %640 : vector<1x512xf32>
    %642 = arith.extui %641 : vector<1x512xi1> to vector<1x512xi32>
    %643 = arith.sitofp %642 : vector<1x512xi32> to vector<1x512xf32>
    %644 = vector.broadcast %643 : vector<1x512xf32> to vector<8x512xf32>
    %645 = arith.mulf %636, %644 : vector<8x512xf32>
    %cst_189 = arith.constant 1.000000e+00 : f32
    %646 = vector.broadcast %cst_189 : f32 to vector<1x512xf32>
    %647 = arith.subf %646, %643 : vector<1x512xf32>
    %648 = vector.broadcast %647 : vector<1x512xf32> to vector<8x512xf32>
    %649 = arith.mulf %637, %648 : vector<8x512xf32>
    %650 = arith.addf %645, %649 : vector<8x512xf32>
    %cst_190 = arith.constant 6.000000e+00 : f32
    %651 = vector.broadcast %cst_190 : f32 to vector<1x512xf32>
    %652 = arith.cmpf ole, %1, %651 : vector<1x512xf32>
    %cst_191 = arith.constant 6.000000e+00 : f32
    %653 = vector.broadcast %cst_191 : f32 to vector<1x512xf32>
    %654 = arith.cmpf ole, %2, %653 : vector<1x512xf32>
    %cst_192 = arith.constant 6.000000e+00 : f32
    %655 = vector.broadcast %cst_192 : f32 to vector<1x512xf32>
    %656 = arith.cmpf ole, %3, %655 : vector<1x512xf32>
    %657 = arith.andi %652, %654 : vector<1x512xi1>
    %658 = arith.andi %657, %656 : vector<1x512xi1>
    %659 = arith.extui %658 : vector<1x512xi1> to vector<1x512xi32>
    %660 = arith.sitofp %659 : vector<1x512xi32> to vector<1x512xf32>
    %661 = vector.broadcast %660 : vector<1x512xf32> to vector<8x512xf32>
    %662 = arith.mulf %650, %661 : vector<8x512xf32>
    %c208 = arith.constant 208 : index
    %c0_193 = arith.constant 0 : index
    %663 = vector.load %arg7[%c208, %c0_193] : memref<216x512xf32, #tpu.memory_space<vmem>>, vector<8x512xf32>
    tpu.vector_store %arg7[%c208, %c0_193], %662 {strides = array<i32>} : memref<216x512xf32, #tpu.memory_space<vmem>>, vector<8x512xf32>,
    %c0_194 = arith.constant 0 : index
    %c0_195 = arith.constant 0 : index
    %664 = vector.load %arg7[%c0_194, %c0_195] : memref<216x512xf32, #tpu.memory_space<vmem>>, vector<216x512xf32>
    %cst_196 = arith.constant dense<0.000000e+00> : vector<8x512xf32>
    %665 = tpu.matmul %6, %664, %cst_196 {dimension_numbers = #tpu.dot_dimension_numbers<[1], [0], [0], [1], [0, 0, 1, 1], [], []>} : vector<8x216xf32>, vector<216x512xf32>, vector<8x512xf32> -> vector<8x512xf32>
    %cst_197 = arith.constant dense<0.000000e+00> : vector<8xf32>
    %666 = vector.multi_reduction <add>, %665, %cst_197 [1] : vector<8x512xf32> to vector<8xf32>
    %667 = vector.shape_cast %666 : vector<8xf32> to vector<8x1xf32>
    %cst_198 = arith.constant 5.120000e+02 : f32
    %668 = vector.broadcast %cst_198 : f32 to vector<8x1xf32>
    %669 = arith.divf %667, %668 : vector<8x1xf32>
    %670 = vector.broadcast %669 : vector<8x1xf32> to vector<8x512xf32>
    %671 = arith.subf %665, %670 : vector<8x512xf32>
    %672 = arith.mulf %671, %671 : vector<8x512xf32>
    %cst_199 = arith.constant dense<0.000000e+00> : vector<8xf32>
    %673 = vector.multi_reduction <add>, %672, %cst_199 [1] : vector<8x512xf32> to vector<8xf32>
    %674 = vector.shape_cast %673 : vector<8xf32> to vector<8x1xf32>
    %cst_200 = arith.constant 5.120000e+02 : f32
    %675 = vector.broadcast %cst_200 : f32 to vector<8x1xf32>
    %676 = arith.divf %674, %675 : vector<8x1xf32>
    %677 = vector.broadcast %669 : vector<8x1xf32> to vector<8x512xf32>
    %678 = arith.subf %665, %677 : vector<8x512xf32>
    %cst_201 = arith.constant 9.99999974E-6 : f32
    %679 = vector.broadcast %cst_201 : f32 to vector<8x1xf32>
    %680 = arith.addf %676, %679 : vector<8x1xf32>
    %681 = math.rsqrt %680 : vector<8x1xf32>
    %682 = vector.broadcast %681 : vector<8x1xf32> to vector<8x512xf32>
    %683 = arith.mulf %678, %682 : vector<8x512xf32>
    %cst_202 = arith.constant 0.000000e+00 : f32
    %684 = vector.broadcast %cst_202 : f32 to vector<8x512xf32>
    %685 = arith.maximumf %683, %684 : vector<8x512xf32>
    %c0_203 = arith.constant 0 : index
    %c0_204 = arith.constant 0 : index
    %686 = vector.load %arg4[%c0_203, %c0_204] : memref<8x216xf32, #tpu.memory_space<vmem>>, vector<8x216xf32>
    %c439_i32_205 = arith.constant 439 : i32
    %687 = tpu.dynamic_rotate %685 by %c439_i32_205 dim 1 : vector<8x512xf32>, i32 -> vector<8x512xf32>
    %c73_i32_206 = arith.constant 73 : i32
    %688 = tpu.dynamic_rotate %685 by %c73_i32_206 dim 1 : vector<8x512xf32>, i32 -> vector<8x512xf32>
    %c439_i32_207 = arith.constant 439 : i32
    %689 = tpu.dynamic_rotate %0 by %c439_i32_207 dim 1 : vector<1x512xf32>, i32 -> vector<1x512xf32>
    %cst_208 = arith.constant -7.300000e+01 : f32
    %690 = vector.broadcast %cst_208 : f32 to vector<1x512xf32>
    %691 = arith.addf %0, %690 : vector<1x512xf32>
    %692 = arith.cmpf oeq, %689, %691 : vector<1x512xf32>
    %693 = arith.extui %692 : vector<1x512xi1> to vector<1x512xi32>
    %694 = arith.sitofp %693 : vector<1x512xi32> to vector<1x512xf32>
    %695 = vector.broadcast %694 : vector<1x512xf32> to vector<8x512xf32>
    %696 = arith.mulf %687, %695 : vector<8x512xf32>
    %cst_209 = arith.constant 1.000000e+00 : f32
    %697 = vector.broadcast %cst_209 : f32 to vector<1x512xf32>
    %698 = arith.subf %697, %694 : vector<1x512xf32>
    %699 = vector.broadcast %698 : vector<1x512xf32> to vector<8x512xf32>
    %700 = arith.mulf %688, %699 : vector<8x512xf32>
    %701 = arith.addf %696, %700 : vector<8x512xf32>
    %cst_210 = arith.constant 1.000000e+00 : f32
    %702 = vector.broadcast %cst_210 : f32 to vector<1x512xf32>
    %703 = arith.cmpf oge, %1, %702 : vector<1x512xf32>
    %cst_211 = arith.constant 1.000000e+00 : f32
    %704 = vector.broadcast %cst_211 : f32 to vector<1x512xf32>
    %705 = arith.cmpf oge, %2, %704 : vector<1x512xf32>
    %cst_212 = arith.constant 1.000000e+00 : f32
    %706 = vector.broadcast %cst_212 : f32 to vector<1x512xf32>
    %707 = arith.cmpf oge, %3, %706 : vector<1x512xf32>
    %708 = arith.andi %703, %705 : vector<1x512xi1>
    %709 = arith.andi %708, %707 : vector<1x512xi1>
    %710 = arith.extui %709 : vector<1x512xi1> to vector<1x512xi32>
    %711 = arith.sitofp %710 : vector<1x512xi32> to vector<1x512xf32>
    %712 = vector.broadcast %711 : vector<1x512xf32> to vector<8x512xf32>
    %713 = arith.mulf %701, %712 : vector<8x512xf32>
    %c0_213 = arith.constant 0 : index
    %c0_214 = arith.constant 0 : index
    %714 = vector.load %arg7[%c0_213, %c0_214] : memref<216x512xf32, #tpu.memory_space<vmem>>, vector<8x512xf32>
    tpu.vector_store %arg7[%c0_213, %c0_214], %713 {strides = array<i32>} : memref<216x512xf32, #tpu.memory_space<vmem>>, vector<8x512xf32>,
    %c440_i32_215 = arith.constant 440 : i32
    %715 = tpu.dynamic_rotate %685 by %c440_i32_215 dim 1 : vector<8x512xf32>, i32 -> vector<8x512xf32>
    %c72_i32_216 = arith.constant 72 : i32
    %716 = tpu.dynamic_rotate %685 by %c72_i32_216 dim 1 : vector<8x512xf32>, i32 -> vector<8x512xf32>
    %c440_i32_217 = arith.constant 440 : i32
    %717 = tpu.dynamic_rotate %0 by %c440_i32_217 dim 1 : vector<1x512xf32>, i32 -> vector<1x512xf32>
    %cst_218 = arith.constant -7.200000e+01 : f32
    %718 = vector.broadcast %cst_218 : f32 to vector<1x512xf32>
    %719 = arith.addf %0, %718 : vector<1x512xf32>
    %720 = arith.cmpf oeq, %717, %719 : vector<1x512xf32>
    %721 = arith.extui %720 : vector<1x512xi1> to vector<1x512xi32>
    %722 = arith.sitofp %721 : vector<1x512xi32> to vector<1x512xf32>
    %723 = vector.broadcast %722 : vector<1x512xf32> to vector<8x512xf32>
    %724 = arith.mulf %715, %723 : vector<8x512xf32>
    %cst_219 = arith.constant 1.000000e+00 : f32
    %725 = vector.broadcast %cst_219 : f32 to vector<1x512xf32>
    %726 = arith.subf %725, %722 : vector<1x512xf32>
    %727 = vector.broadcast %726 : vector<1x512xf32> to vector<8x512xf32>
    %728 = arith.mulf %716, %727 : vector<8x512xf32>
    %729 = arith.addf %724, %728 : vector<8x512xf32>
    %cst_220 = arith.constant 1.000000e+00 : f32
    %730 = vector.broadcast %cst_220 : f32 to vector<1x512xf32>
    %731 = arith.cmpf oge, %1, %730 : vector<1x512xf32>
    %cst_221 = arith.constant 1.000000e+00 : f32
    %732 = vector.broadcast %cst_221 : f32 to vector<1x512xf32>
    %733 = arith.cmpf oge, %2, %732 : vector<1x512xf32>
    %734 = arith.andi %731, %733 : vector<1x512xi1>
    %735 = arith.extui %734 : vector<1x512xi1> to vector<1x512xi32>
    %736 = arith.sitofp %735 : vector<1x512xi32> to vector<1x512xf32>
    %737 = vector.broadcast %736 : vector<1x512xf32> to vector<8x512xf32>
    %738 = arith.mulf %729, %737 : vector<8x512xf32>
    %c8_222 = arith.constant 8 : index
    %c0_223 = arith.constant 0 : index
    %739 = vector.load %arg7[%c8_222, %c0_223] : memref<216x512xf32, #tpu.memory_space<vmem>>, vector<8x512xf32>
    tpu.vector_store %arg7[%c8_222, %c0_223], %738 {strides = array<i32>} : memref<216x512xf32, #tpu.memory_space<vmem>>, vector<8x512xf32>,
    %c441_i32_224 = arith.constant 441 : i32
    %740 = tpu.dynamic_rotate %685 by %c441_i32_224 dim 1 : vector<8x512xf32>, i32 -> vector<8x512xf32>
    %c71_i32_225 = arith.constant 71 : i32
    %741 = tpu.dynamic_rotate %685 by %c71_i32_225 dim 1 : vector<8x512xf32>, i32 -> vector<8x512xf32>
    %c441_i32_226 = arith.constant 441 : i32
    %742 = tpu.dynamic_rotate %0 by %c441_i32_226 dim 1 : vector<1x512xf32>, i32 -> vector<1x512xf32>
    %cst_227 = arith.constant -7.100000e+01 : f32
    %743 = vector.broadcast %cst_227 : f32 to vector<1x512xf32>
    %744 = arith.addf %0, %743 : vector<1x512xf32>
    %745 = arith.cmpf oeq, %742, %744 : vector<1x512xf32>
    %746 = arith.extui %745 : vector<1x512xi1> to vector<1x512xi32>
    %747 = arith.sitofp %746 : vector<1x512xi32> to vector<1x512xf32>
    %748 = vector.broadcast %747 : vector<1x512xf32> to vector<8x512xf32>
    %749 = arith.mulf %740, %748 : vector<8x512xf32>
    %cst_228 = arith.constant 1.000000e+00 : f32
    %750 = vector.broadcast %cst_228 : f32 to vector<1x512xf32>
    %751 = arith.subf %750, %747 : vector<1x512xf32>
    %752 = vector.broadcast %751 : vector<1x512xf32> to vector<8x512xf32>
    %753 = arith.mulf %741, %752 : vector<8x512xf32>
    %754 = arith.addf %749, %753 : vector<8x512xf32>
    %cst_229 = arith.constant 1.000000e+00 : f32
    %755 = vector.broadcast %cst_229 : f32 to vector<1x512xf32>
    %756 = arith.cmpf oge, %1, %755 : vector<1x512xf32>
    %cst_230 = arith.constant 1.000000e+00 : f32
    %757 = vector.broadcast %cst_230 : f32 to vector<1x512xf32>
    %758 = arith.cmpf oge, %2, %757 : vector<1x512xf32>
    %cst_231 = arith.constant 6.000000e+00 : f32
    %759 = vector.broadcast %cst_231 : f32 to vector<1x512xf32>
    %760 = arith.cmpf ole, %3, %759 : vector<1x512xf32>
    %761 = arith.andi %756, %758 : vector<1x512xi1>
    %762 = arith.andi %761, %760 : vector<1x512xi1>
    %763 = arith.extui %762 : vector<1x512xi1> to vector<1x512xi32>
    %764 = arith.sitofp %763 : vector<1x512xi32> to vector<1x512xf32>
    %765 = vector.broadcast %764 : vector<1x512xf32> to vector<8x512xf32>
    %766 = arith.mulf %754, %765 : vector<8x512xf32>
    %c16_232 = arith.constant 16 : index
    %c0_233 = arith.constant 0 : index
    %767 = vector.load %arg7[%c16_232, %c0_233] : memref<216x512xf32, #tpu.memory_space<vmem>>, vector<8x512xf32>
    tpu.vector_store %arg7[%c16_232, %c0_233], %766 {strides = array<i32>} : memref<216x512xf32, #tpu.memory_space<vmem>>, vector<8x512xf32>,
    %c447_i32_234 = arith.constant 447 : i32
    %768 = tpu.dynamic_rotate %685 by %c447_i32_234 dim 1 : vector<8x512xf32>, i32 -> vector<8x512xf32>
    %c65_i32_235 = arith.constant 65 : i32
    %769 = tpu.dynamic_rotate %685 by %c65_i32_235 dim 1 : vector<8x512xf32>, i32 -> vector<8x512xf32>
    %c447_i32_236 = arith.constant 447 : i32
    %770 = tpu.dynamic_rotate %0 by %c447_i32_236 dim 1 : vector<1x512xf32>, i32 -> vector<1x512xf32>
    %cst_237 = arith.constant -6.500000e+01 : f32
    %771 = vector.broadcast %cst_237 : f32 to vector<1x512xf32>
    %772 = arith.addf %0, %771 : vector<1x512xf32>
    %773 = arith.cmpf oeq, %770, %772 : vector<1x512xf32>
    %774 = arith.extui %773 : vector<1x512xi1> to vector<1x512xi32>
    %775 = arith.sitofp %774 : vector<1x512xi32> to vector<1x512xf32>
    %776 = vector.broadcast %775 : vector<1x512xf32> to vector<8x512xf32>
    %777 = arith.mulf %768, %776 : vector<8x512xf32>
    %cst_238 = arith.constant 1.000000e+00 : f32
    %778 = vector.broadcast %cst_238 : f32 to vector<1x512xf32>
    %779 = arith.subf %778, %775 : vector<1x512xf32>
    %780 = vector.broadcast %779 : vector<1x512xf32> to vector<8x512xf32>
    %781 = arith.mulf %769, %780 : vector<8x512xf32>
    %782 = arith.addf %777, %781 : vector<8x512xf32>
    %cst_239 = arith.constant 1.000000e+00 : f32
    %783 = vector.broadcast %cst_239 : f32 to vector<1x512xf32>
    %784 = arith.cmpf oge, %1, %783 : vector<1x512xf32>
    %cst_240 = arith.constant 1.000000e+00 : f32
    %785 = vector.broadcast %cst_240 : f32 to vector<1x512xf32>
    %786 = arith.cmpf oge, %3, %785 : vector<1x512xf32>
    %787 = arith.andi %784, %786 : vector<1x512xi1>
    %788 = arith.extui %787 : vector<1x512xi1> to vector<1x512xi32>
    %789 = arith.sitofp %788 : vector<1x512xi32> to vector<1x512xf32>
    %790 = vector.broadcast %789 : vector<1x512xf32> to vector<8x512xf32>
    %791 = arith.mulf %782, %790 : vector<8x512xf32>
    %c24_241 = arith.constant 24 : index
    %c0_242 = arith.constant 0 : index
    %792 = vector.load %arg7[%c24_241, %c0_242] : memref<216x512xf32, #tpu.memory_space<vmem>>, vector<8x512xf32>
    tpu.vector_store %arg7[%c24_241, %c0_242], %791 {strides = array<i32>} : memref<216x512xf32, #tpu.memory_space<vmem>>, vector<8x512xf32>,
    %c448_i32_243 = arith.constant 448 : i32
    %793 = tpu.dynamic_rotate %685 by %c448_i32_243 dim 1 : vector<8x512xf32>, i32 -> vector<8x512xf32>
    %c64_i32_244 = arith.constant 64 : i32
    %794 = tpu.dynamic_rotate %685 by %c64_i32_244 dim 1 : vector<8x512xf32>, i32 -> vector<8x512xf32>
    %c448_i32_245 = arith.constant 448 : i32
    %795 = tpu.dynamic_rotate %0 by %c448_i32_245 dim 1 : vector<1x512xf32>, i32 -> vector<1x512xf32>
    %cst_246 = arith.constant -6.400000e+01 : f32
    %796 = vector.broadcast %cst_246 : f32 to vector<1x512xf32>
    %797 = arith.addf %0, %796 : vector<1x512xf32>
    %798 = arith.cmpf oeq, %795, %797 : vector<1x512xf32>
    %799 = arith.extui %798 : vector<1x512xi1> to vector<1x512xi32>
    %800 = arith.sitofp %799 : vector<1x512xi32> to vector<1x512xf32>
    %801 = vector.broadcast %800 : vector<1x512xf32> to vector<8x512xf32>
    %802 = arith.mulf %793, %801 : vector<8x512xf32>
    %cst_247 = arith.constant 1.000000e+00 : f32
    %803 = vector.broadcast %cst_247 : f32 to vector<1x512xf32>
    %804 = arith.subf %803, %800 : vector<1x512xf32>
    %805 = vector.broadcast %804 : vector<1x512xf32> to vector<8x512xf32>
    %806 = arith.mulf %794, %805 : vector<8x512xf32>
    %807 = arith.addf %802, %806 : vector<8x512xf32>
    %cst_248 = arith.constant 1.000000e+00 : f32
    %808 = vector.broadcast %cst_248 : f32 to vector<1x512xf32>
    %809 = arith.cmpf oge, %1, %808 : vector<1x512xf32>
    %810 = arith.extui %809 : vector<1x512xi1> to vector<1x512xi32>
    %811 = arith.sitofp %810 : vector<1x512xi32> to vector<1x512xf32>
    %812 = vector.broadcast %811 : vector<1x512xf32> to vector<8x512xf32>
    %813 = arith.mulf %807, %812 : vector<8x512xf32>
    %c32_249 = arith.constant 32 : index
    %c0_250 = arith.constant 0 : index
    %814 = vector.load %arg7[%c32_249, %c0_250] : memref<216x512xf32, #tpu.memory_space<vmem>>, vector<8x512xf32>
    tpu.vector_store %arg7[%c32_249, %c0_250], %813 {strides = array<i32>} : memref<216x512xf32, #tpu.memory_space<vmem>>, vector<8x512xf32>,
    %c449_i32_251 = arith.constant 449 : i32
    %815 = tpu.dynamic_rotate %685 by %c449_i32_251 dim 1 : vector<8x512xf32>, i32 -> vector<8x512xf32>
    %c63_i32_252 = arith.constant 63 : i32
    %816 = tpu.dynamic_rotate %685 by %c63_i32_252 dim 1 : vector<8x512xf32>, i32 -> vector<8x512xf32>
    %c449_i32_253 = arith.constant 449 : i32
    %817 = tpu.dynamic_rotate %0 by %c449_i32_253 dim 1 : vector<1x512xf32>, i32 -> vector<1x512xf32>
    %cst_254 = arith.constant -6.300000e+01 : f32
    %818 = vector.broadcast %cst_254 : f32 to vector<1x512xf32>
    %819 = arith.addf %0, %818 : vector<1x512xf32>
    %820 = arith.cmpf oeq, %817, %819 : vector<1x512xf32>
    %821 = arith.extui %820 : vector<1x512xi1> to vector<1x512xi32>
    %822 = arith.sitofp %821 : vector<1x512xi32> to vector<1x512xf32>
    %823 = vector.broadcast %822 : vector<1x512xf32> to vector<8x512xf32>
    %824 = arith.mulf %815, %823 : vector<8x512xf32>
    %cst_255 = arith.constant 1.000000e+00 : f32
    %825 = vector.broadcast %cst_255 : f32 to vector<1x512xf32>
    %826 = arith.subf %825, %822 : vector<1x512xf32>
    %827 = vector.broadcast %826 : vector<1x512xf32> to vector<8x512xf32>
    %828 = arith.mulf %816, %827 : vector<8x512xf32>
    %829 = arith.addf %824, %828 : vector<8x512xf32>
    %cst_256 = arith.constant 1.000000e+00 : f32
    %830 = vector.broadcast %cst_256 : f32 to vector<1x512xf32>
    %831 = arith.cmpf oge, %1, %830 : vector<1x512xf32>
    %cst_257 = arith.constant 6.000000e+00 : f32
    %832 = vector.broadcast %cst_257 : f32 to vector<1x512xf32>
    %833 = arith.cmpf ole, %3, %832 : vector<1x512xf32>
    %834 = arith.andi %831, %833 : vector<1x512xi1>
    %835 = arith.extui %834 : vector<1x512xi1> to vector<1x512xi32>
    %836 = arith.sitofp %835 : vector<1x512xi32> to vector<1x512xf32>
    %837 = vector.broadcast %836 : vector<1x512xf32> to vector<8x512xf32>
    %838 = arith.mulf %829, %837 : vector<8x512xf32>
    %c40_258 = arith.constant 40 : index
    %c0_259 = arith.constant 0 : index
    %839 = vector.load %arg7[%c40_258, %c0_259] : memref<216x512xf32, #tpu.memory_space<vmem>>, vector<8x512xf32>
    tpu.vector_store %arg7[%c40_258, %c0_259], %838 {strides = array<i32>} : memref<216x512xf32, #tpu.memory_space<vmem>>, vector<8x512xf32>,
    %c455_i32_260 = arith.constant 455 : i32
    %840 = tpu.dynamic_rotate %685 by %c455_i32_260 dim 1 : vector<8x512xf32>, i32 -> vector<8x512xf32>
    %c57_i32_261 = arith.constant 57 : i32
    %841 = tpu.dynamic_rotate %685 by %c57_i32_261 dim 1 : vector<8x512xf32>, i32 -> vector<8x512xf32>
    %c455_i32_262 = arith.constant 455 : i32
    %842 = tpu.dynamic_rotate %0 by %c455_i32_262 dim 1 : vector<1x512xf32>, i32 -> vector<1x512xf32>
    %cst_263 = arith.constant -5.700000e+01 : f32
    %843 = vector.broadcast %cst_263 : f32 to vector<1x512xf32>
    %844 = arith.addf %0, %843 : vector<1x512xf32>
    %845 = arith.cmpf oeq, %842, %844 : vector<1x512xf32>
    %846 = arith.extui %845 : vector<1x512xi1> to vector<1x512xi32>
    %847 = arith.sitofp %846 : vector<1x512xi32> to vector<1x512xf32>
    %848 = vector.broadcast %847 : vector<1x512xf32> to vector<8x512xf32>
    %849 = arith.mulf %840, %848 : vector<8x512xf32>
    %cst_264 = arith.constant 1.000000e+00 : f32
    %850 = vector.broadcast %cst_264 : f32 to vector<1x512xf32>
    %851 = arith.subf %850, %847 : vector<1x512xf32>
    %852 = vector.broadcast %851 : vector<1x512xf32> to vector<8x512xf32>
    %853 = arith.mulf %841, %852 : vector<8x512xf32>
    %854 = arith.addf %849, %853 : vector<8x512xf32>
    %cst_265 = arith.constant 1.000000e+00 : f32
    %855 = vector.broadcast %cst_265 : f32 to vector<1x512xf32>
    %856 = arith.cmpf oge, %1, %855 : vector<1x512xf32>
    %cst_266 = arith.constant 6.000000e+00 : f32
    %857 = vector.broadcast %cst_266 : f32 to vector<1x512xf32>
    %858 = arith.cmpf ole, %2, %857 : vector<1x512xf32>
    %cst_267 = arith.constant 1.000000e+00 : f32
    %859 = vector.broadcast %cst_267 : f32 to vector<1x512xf32>
    %860 = arith.cmpf oge, %3, %859 : vector<1x512xf32>
    %861 = arith.andi %856, %858 : vector<1x512xi1>
    %862 = arith.andi %861, %860 : vector<1x512xi1>
    %863 = arith.extui %862 : vector<1x512xi1> to vector<1x512xi32>
    %864 = arith.sitofp %863 : vector<1x512xi32> to vector<1x512xf32>
    %865 = vector.broadcast %864 : vector<1x512xf32> to vector<8x512xf32>
    %866 = arith.mulf %854, %865 : vector<8x512xf32>
    %c48_268 = arith.constant 48 : index
    %c0_269 = arith.constant 0 : index
    %867 = vector.load %arg7[%c48_268, %c0_269] : memref<216x512xf32, #tpu.memory_space<vmem>>, vector<8x512xf32>
    tpu.vector_store %arg7[%c48_268, %c0_269], %866 {strides = array<i32>} : memref<216x512xf32, #tpu.memory_space<vmem>>, vector<8x512xf32>,
    %c456_i32_270 = arith.constant 456 : i32
    %868 = tpu.dynamic_rotate %685 by %c456_i32_270 dim 1 : vector<8x512xf32>, i32 -> vector<8x512xf32>
    %c56_i32_271 = arith.constant 56 : i32
    %869 = tpu.dynamic_rotate %685 by %c56_i32_271 dim 1 : vector<8x512xf32>, i32 -> vector<8x512xf32>
    %c456_i32_272 = arith.constant 456 : i32
    %870 = tpu.dynamic_rotate %0 by %c456_i32_272 dim 1 : vector<1x512xf32>, i32 -> vector<1x512xf32>
    %cst_273 = arith.constant -5.600000e+01 : f32
    %871 = vector.broadcast %cst_273 : f32 to vector<1x512xf32>
    %872 = arith.addf %0, %871 : vector<1x512xf32>
    %873 = arith.cmpf oeq, %870, %872 : vector<1x512xf32>
    %874 = arith.extui %873 : vector<1x512xi1> to vector<1x512xi32>
    %875 = arith.sitofp %874 : vector<1x512xi32> to vector<1x512xf32>
    %876 = vector.broadcast %875 : vector<1x512xf32> to vector<8x512xf32>
    %877 = arith.mulf %868, %876 : vector<8x512xf32>
    %cst_274 = arith.constant 1.000000e+00 : f32
    %878 = vector.broadcast %cst_274 : f32 to vector<1x512xf32>
    %879 = arith.subf %878, %875 : vector<1x512xf32>
    %880 = vector.broadcast %879 : vector<1x512xf32> to vector<8x512xf32>
    %881 = arith.mulf %869, %880 : vector<8x512xf32>
    %882 = arith.addf %877, %881 : vector<8x512xf32>
    %cst_275 = arith.constant 1.000000e+00 : f32
    %883 = vector.broadcast %cst_275 : f32 to vector<1x512xf32>
    %884 = arith.cmpf oge, %1, %883 : vector<1x512xf32>
    %cst_276 = arith.constant 6.000000e+00 : f32
    %885 = vector.broadcast %cst_276 : f32 to vector<1x512xf32>
    %886 = arith.cmpf ole, %2, %885 : vector<1x512xf32>
    %887 = arith.andi %884, %886 : vector<1x512xi1>
    %888 = arith.extui %887 : vector<1x512xi1> to vector<1x512xi32>
    %889 = arith.sitofp %888 : vector<1x512xi32> to vector<1x512xf32>
    %890 = vector.broadcast %889 : vector<1x512xf32> to vector<8x512xf32>
    %891 = arith.mulf %882, %890 : vector<8x512xf32>
    %c56_277 = arith.constant 56 : index
    %c0_278 = arith.constant 0 : index
    %892 = vector.load %arg7[%c56_277, %c0_278] : memref<216x512xf32, #tpu.memory_space<vmem>>, vector<8x512xf32>
    tpu.vector_store %arg7[%c56_277, %c0_278], %891 {strides = array<i32>} : memref<216x512xf32, #tpu.memory_space<vmem>>, vector<8x512xf32>,
    %c457_i32_279 = arith.constant 457 : i32
    %893 = tpu.dynamic_rotate %685 by %c457_i32_279 dim 1 : vector<8x512xf32>, i32 -> vector<8x512xf32>
    %c55_i32_280 = arith.constant 55 : i32
    %894 = tpu.dynamic_rotate %685 by %c55_i32_280 dim 1 : vector<8x512xf32>, i32 -> vector<8x512xf32>
    %c457_i32_281 = arith.constant 457 : i32
    %895 = tpu.dynamic_rotate %0 by %c457_i32_281 dim 1 : vector<1x512xf32>, i32 -> vector<1x512xf32>
    %cst_282 = arith.constant -5.500000e+01 : f32
    %896 = vector.broadcast %cst_282 : f32 to vector<1x512xf32>
    %897 = arith.addf %0, %896 : vector<1x512xf32>
    %898 = arith.cmpf oeq, %895, %897 : vector<1x512xf32>
    %899 = arith.extui %898 : vector<1x512xi1> to vector<1x512xi32>
    %900 = arith.sitofp %899 : vector<1x512xi32> to vector<1x512xf32>
    %901 = vector.broadcast %900 : vector<1x512xf32> to vector<8x512xf32>
    %902 = arith.mulf %893, %901 : vector<8x512xf32>
    %cst_283 = arith.constant 1.000000e+00 : f32
    %903 = vector.broadcast %cst_283 : f32 to vector<1x512xf32>
    %904 = arith.subf %903, %900 : vector<1x512xf32>
    %905 = vector.broadcast %904 : vector<1x512xf32> to vector<8x512xf32>
    %906 = arith.mulf %894, %905 : vector<8x512xf32>
    %907 = arith.addf %902, %906 : vector<8x512xf32>
    %cst_284 = arith.constant 1.000000e+00 : f32
    %908 = vector.broadcast %cst_284 : f32 to vector<1x512xf32>
    %909 = arith.cmpf oge, %1, %908 : vector<1x512xf32>
    %cst_285 = arith.constant 6.000000e+00 : f32
    %910 = vector.broadcast %cst_285 : f32 to vector<1x512xf32>
    %911 = arith.cmpf ole, %2, %910 : vector<1x512xf32>
    %cst_286 = arith.constant 6.000000e+00 : f32
    %912 = vector.broadcast %cst_286 : f32 to vector<1x512xf32>
    %913 = arith.cmpf ole, %3, %912 : vector<1x512xf32>
    %914 = arith.andi %909, %911 : vector<1x512xi1>
    %915 = arith.andi %914, %913 : vector<1x512xi1>
    %916 = arith.extui %915 : vector<1x512xi1> to vector<1x512xi32>
    %917 = arith.sitofp %916 : vector<1x512xi32> to vector<1x512xf32>
    %918 = vector.broadcast %917 : vector<1x512xf32> to vector<8x512xf32>
    %919 = arith.mulf %907, %918 : vector<8x512xf32>
    %c64_287 = arith.constant 64 : index
    %c0_288 = arith.constant 0 : index
    %920 = vector.load %arg7[%c64_287, %c0_288] : memref<216x512xf32, #tpu.memory_space<vmem>>, vector<8x512xf32>
    tpu.vector_store %arg7[%c64_287, %c0_288], %919 {strides = array<i32>} : memref<216x512xf32, #tpu.memory_space<vmem>>, vector<8x512xf32>,
    %c503_i32_289 = arith.constant 503 : i32
    %921 = tpu.dynamic_rotate %685 by %c503_i32_289 dim 1 : vector<8x512xf32>, i32 -> vector<8x512xf32>
    %c9_i32_290 = arith.constant 9 : i32
    %922 = tpu.dynamic_rotate %685 by %c9_i32_290 dim 1 : vector<8x512xf32>, i32 -> vector<8x512xf32>
    %c503_i32_291 = arith.constant 503 : i32
    %923 = tpu.dynamic_rotate %0 by %c503_i32_291 dim 1 : vector<1x512xf32>, i32 -> vector<1x512xf32>
    %cst_292 = arith.constant -9.000000e+00 : f32
    %924 = vector.broadcast %cst_292 : f32 to vector<1x512xf32>
    %925 = arith.addf %0, %924 : vector<1x512xf32>
    %926 = arith.cmpf oeq, %923, %925 : vector<1x512xf32>
    %927 = arith.extui %926 : vector<1x512xi1> to vector<1x512xi32>
    %928 = arith.sitofp %927 : vector<1x512xi32> to vector<1x512xf32>
    %929 = vector.broadcast %928 : vector<1x512xf32> to vector<8x512xf32>
    %930 = arith.mulf %921, %929 : vector<8x512xf32>
    %cst_293 = arith.constant 1.000000e+00 : f32
    %931 = vector.broadcast %cst_293 : f32 to vector<1x512xf32>
    %932 = arith.subf %931, %928 : vector<1x512xf32>
    %933 = vector.broadcast %932 : vector<1x512xf32> to vector<8x512xf32>
    %934 = arith.mulf %922, %933 : vector<8x512xf32>
    %935 = arith.addf %930, %934 : vector<8x512xf32>
    %cst_294 = arith.constant 1.000000e+00 : f32
    %936 = vector.broadcast %cst_294 : f32 to vector<1x512xf32>
    %937 = arith.cmpf oge, %2, %936 : vector<1x512xf32>
    %cst_295 = arith.constant 1.000000e+00 : f32
    %938 = vector.broadcast %cst_295 : f32 to vector<1x512xf32>
    %939 = arith.cmpf oge, %3, %938 : vector<1x512xf32>
    %940 = arith.andi %937, %939 : vector<1x512xi1>
    %941 = arith.extui %940 : vector<1x512xi1> to vector<1x512xi32>
    %942 = arith.sitofp %941 : vector<1x512xi32> to vector<1x512xf32>
    %943 = vector.broadcast %942 : vector<1x512xf32> to vector<8x512xf32>
    %944 = arith.mulf %935, %943 : vector<8x512xf32>
    %c72_296 = arith.constant 72 : index
    %c0_297 = arith.constant 0 : index
    %945 = vector.load %arg7[%c72_296, %c0_297] : memref<216x512xf32, #tpu.memory_space<vmem>>, vector<8x512xf32>
    tpu.vector_store %arg7[%c72_296, %c0_297], %944 {strides = array<i32>} : memref<216x512xf32, #tpu.memory_space<vmem>>, vector<8x512xf32>,
    %c504_i32_298 = arith.constant 504 : i32
    %946 = tpu.dynamic_rotate %685 by %c504_i32_298 dim 1 : vector<8x512xf32>, i32 -> vector<8x512xf32>
    %c8_i32_299 = arith.constant 8 : i32
    %947 = tpu.dynamic_rotate %685 by %c8_i32_299 dim 1 : vector<8x512xf32>, i32 -> vector<8x512xf32>
    %c504_i32_300 = arith.constant 504 : i32
    %948 = tpu.dynamic_rotate %0 by %c504_i32_300 dim 1 : vector<1x512xf32>, i32 -> vector<1x512xf32>
    %cst_301 = arith.constant -8.000000e+00 : f32
    %949 = vector.broadcast %cst_301 : f32 to vector<1x512xf32>
    %950 = arith.addf %0, %949 : vector<1x512xf32>
    %951 = arith.cmpf oeq, %948, %950 : vector<1x512xf32>
    %952 = arith.extui %951 : vector<1x512xi1> to vector<1x512xi32>
    %953 = arith.sitofp %952 : vector<1x512xi32> to vector<1x512xf32>
    %954 = vector.broadcast %953 : vector<1x512xf32> to vector<8x512xf32>
    %955 = arith.mulf %946, %954 : vector<8x512xf32>
    %cst_302 = arith.constant 1.000000e+00 : f32
    %956 = vector.broadcast %cst_302 : f32 to vector<1x512xf32>
    %957 = arith.subf %956, %953 : vector<1x512xf32>
    %958 = vector.broadcast %957 : vector<1x512xf32> to vector<8x512xf32>
    %959 = arith.mulf %947, %958 : vector<8x512xf32>
    %960 = arith.addf %955, %959 : vector<8x512xf32>
    %cst_303 = arith.constant 1.000000e+00 : f32
    %961 = vector.broadcast %cst_303 : f32 to vector<1x512xf32>
    %962 = arith.cmpf oge, %2, %961 : vector<1x512xf32>
    %963 = arith.extui %962 : vector<1x512xi1> to vector<1x512xi32>
    %964 = arith.sitofp %963 : vector<1x512xi32> to vector<1x512xf32>
    %965 = vector.broadcast %964 : vector<1x512xf32> to vector<8x512xf32>
    %966 = arith.mulf %960, %965 : vector<8x512xf32>
    %c80_304 = arith.constant 80 : index
    %c0_305 = arith.constant 0 : index
    %967 = vector.load %arg7[%c80_304, %c0_305] : memref<216x512xf32, #tpu.memory_space<vmem>>, vector<8x512xf32>
    tpu.vector_store %arg7[%c80_304, %c0_305], %966 {strides = array<i32>} : memref<216x512xf32, #tpu.memory_space<vmem>>, vector<8x512xf32>,
    %c505_i32_306 = arith.constant 505 : i32
    %968 = tpu.dynamic_rotate %685 by %c505_i32_306 dim 1 : vector<8x512xf32>, i32 -> vector<8x512xf32>
    %c7_i32_307 = arith.constant 7 : i32
    %969 = tpu.dynamic_rotate %685 by %c7_i32_307 dim 1 : vector<8x512xf32>, i32 -> vector<8x512xf32>
    %c505_i32_308 = arith.constant 505 : i32
    %970 = tpu.dynamic_rotate %0 by %c505_i32_308 dim 1 : vector<1x512xf32>, i32 -> vector<1x512xf32>
    %cst_309 = arith.constant -7.000000e+00 : f32
    %971 = vector.broadcast %cst_309 : f32 to vector<1x512xf32>
    %972 = arith.addf %0, %971 : vector<1x512xf32>
    %973 = arith.cmpf oeq, %970, %972 : vector<1x512xf32>
    %974 = arith.extui %973 : vector<1x512xi1> to vector<1x512xi32>
    %975 = arith.sitofp %974 : vector<1x512xi32> to vector<1x512xf32>
    %976 = vector.broadcast %975 : vector<1x512xf32> to vector<8x512xf32>
    %977 = arith.mulf %968, %976 : vector<8x512xf32>
    %cst_310 = arith.constant 1.000000e+00 : f32
    %978 = vector.broadcast %cst_310 : f32 to vector<1x512xf32>
    %979 = arith.subf %978, %975 : vector<1x512xf32>
    %980 = vector.broadcast %979 : vector<1x512xf32> to vector<8x512xf32>
    %981 = arith.mulf %969, %980 : vector<8x512xf32>
    %982 = arith.addf %977, %981 : vector<8x512xf32>
    %cst_311 = arith.constant 1.000000e+00 : f32
    %983 = vector.broadcast %cst_311 : f32 to vector<1x512xf32>
    %984 = arith.cmpf oge, %2, %983 : vector<1x512xf32>
    %cst_312 = arith.constant 6.000000e+00 : f32
    %985 = vector.broadcast %cst_312 : f32 to vector<1x512xf32>
    %986 = arith.cmpf ole, %3, %985 : vector<1x512xf32>
    %987 = arith.andi %984, %986 : vector<1x512xi1>
    %988 = arith.extui %987 : vector<1x512xi1> to vector<1x512xi32>
    %989 = arith.sitofp %988 : vector<1x512xi32> to vector<1x512xf32>
    %990 = vector.broadcast %989 : vector<1x512xf32> to vector<8x512xf32>
    %991 = arith.mulf %982, %990 : vector<8x512xf32>
    %c88_313 = arith.constant 88 : index
    %c0_314 = arith.constant 0 : index
    %992 = vector.load %arg7[%c88_313, %c0_314] : memref<216x512xf32, #tpu.memory_space<vmem>>, vector<8x512xf32>
    tpu.vector_store %arg7[%c88_313, %c0_314], %991 {strides = array<i32>} : memref<216x512xf32, #tpu.memory_space<vmem>>, vector<8x512xf32>,
    %c511_i32_315 = arith.constant 511 : i32
    %993 = tpu.dynamic_rotate %685 by %c511_i32_315 dim 1 : vector<8x512xf32>, i32 -> vector<8x512xf32>
    %c1_i32_316 = arith.constant 1 : i32
    %994 = tpu.dynamic_rotate %685 by %c1_i32_316 dim 1 : vector<8x512xf32>, i32 -> vector<8x512xf32>
    %c511_i32_317 = arith.constant 511 : i32
    %995 = tpu.dynamic_rotate %0 by %c511_i32_317 dim 1 : vector<1x512xf32>, i32 -> vector<1x512xf32>
    %cst_318 = arith.constant -1.000000e+00 : f32
    %996 = vector.broadcast %cst_318 : f32 to vector<1x512xf32>
    %997 = arith.addf %0, %996 : vector<1x512xf32>
    %998 = arith.cmpf oeq, %995, %997 : vector<1x512xf32>
    %999 = arith.extui %998 : vector<1x512xi1> to vector<1x512xi32>
    %1000 = arith.sitofp %999 : vector<1x512xi32> to vector<1x512xf32>
    %1001 = vector.broadcast %1000 : vector<1x512xf32> to vector<8x512xf32>
    %1002 = arith.mulf %993, %1001 : vector<8x512xf32>
    %cst_319 = arith.constant 1.000000e+00 : f32
    %1003 = vector.broadcast %cst_319 : f32 to vector<1x512xf32>
    %1004 = arith.subf %1003, %1000 : vector<1x512xf32>
    %1005 = vector.broadcast %1004 : vector<1x512xf32> to vector<8x512xf32>
    %1006 = arith.mulf %994, %1005 : vector<8x512xf32>
    %1007 = arith.addf %1002, %1006 : vector<8x512xf32>
    %cst_320 = arith.constant 1.000000e+00 : f32
    %1008 = vector.broadcast %cst_320 : f32 to vector<1x512xf32>
    %1009 = arith.cmpf oge, %3, %1008 : vector<1x512xf32>
    %1010 = arith.extui %1009 : vector<1x512xi1> to vector<1x512xi32>
    %1011 = arith.sitofp %1010 : vector<1x512xi32> to vector<1x512xf32>
    %1012 = vector.broadcast %1011 : vector<1x512xf32> to vector<8x512xf32>
    %1013 = arith.mulf %1007, %1012 : vector<8x512xf32>
    %c96_321 = arith.constant 96 : index
    %c0_322 = arith.constant 0 : index
    %1014 = vector.load %arg7[%c96_321, %c0_322] : memref<216x512xf32, #tpu.memory_space<vmem>>, vector<8x512xf32>
    tpu.vector_store %arg7[%c96_321, %c0_322], %1013 {strides = array<i32>} : memref<216x512xf32, #tpu.memory_space<vmem>>, vector<8x512xf32>,
    %c104_323 = arith.constant 104 : index
    %c0_324 = arith.constant 0 : index
    %1015 = vector.load %arg7[%c104_323, %c0_324] : memref<216x512xf32, #tpu.memory_space<vmem>>, vector<8x512xf32>
    tpu.vector_store %arg7[%c104_323, %c0_324], %685 {strides = array<i32>} : memref<216x512xf32, #tpu.memory_space<vmem>>, vector<8x512xf32>,
    %c1_i32_325 = arith.constant 1 : i32
    %1016 = tpu.dynamic_rotate %685 by %c1_i32_325 dim 1 : vector<8x512xf32>, i32 -> vector<8x512xf32>
    %c511_i32_326 = arith.constant 511 : i32
    %1017 = tpu.dynamic_rotate %685 by %c511_i32_326 dim 1 : vector<8x512xf32>, i32 -> vector<8x512xf32>
    %c1_i32_327 = arith.constant 1 : i32
    %1018 = tpu.dynamic_rotate %0 by %c1_i32_327 dim 1 : vector<1x512xf32>, i32 -> vector<1x512xf32>
    %cst_328 = arith.constant 1.000000e+00 : f32
    %1019 = vector.broadcast %cst_328 : f32 to vector<1x512xf32>
    %1020 = arith.addf %0, %1019 : vector<1x512xf32>
    %1021 = arith.cmpf oeq, %1018, %1020 : vector<1x512xf32>
    %1022 = arith.extui %1021 : vector<1x512xi1> to vector<1x512xi32>
    %1023 = arith.sitofp %1022 : vector<1x512xi32> to vector<1x512xf32>
    %1024 = vector.broadcast %1023 : vector<1x512xf32> to vector<8x512xf32>
    %1025 = arith.mulf %1016, %1024 : vector<8x512xf32>
    %cst_329 = arith.constant 1.000000e+00 : f32
    %1026 = vector.broadcast %cst_329 : f32 to vector<1x512xf32>
    %1027 = arith.subf %1026, %1023 : vector<1x512xf32>
    %1028 = vector.broadcast %1027 : vector<1x512xf32> to vector<8x512xf32>
    %1029 = arith.mulf %1017, %1028 : vector<8x512xf32>
    %1030 = arith.addf %1025, %1029 : vector<8x512xf32>
    %cst_330 = arith.constant 6.000000e+00 : f32
    %1031 = vector.broadcast %cst_330 : f32 to vector<1x512xf32>
    %1032 = arith.cmpf ole, %3, %1031 : vector<1x512xf32>
    %1033 = arith.extui %1032 : vector<1x512xi1> to vector<1x512xi32>
    %1034 = arith.sitofp %1033 : vector<1x512xi32> to vector<1x512xf32>
    %1035 = vector.broadcast %1034 : vector<1x512xf32> to vector<8x512xf32>
    %1036 = arith.mulf %1030, %1035 : vector<8x512xf32>
    %c112_331 = arith.constant 112 : index
    %c0_332 = arith.constant 0 : index
    %1037 = vector.load %arg7[%c112_331, %c0_332] : memref<216x512xf32, #tpu.memory_space<vmem>>, vector<8x512xf32>
    tpu.vector_store %arg7[%c112_331, %c0_332], %1036 {strides = array<i32>} : memref<216x512xf32, #tpu.memory_space<vmem>>, vector<8x512xf32>,
    %c7_i32_333 = arith.constant 7 : i32
    %1038 = tpu.dynamic_rotate %685 by %c7_i32_333 dim 1 : vector<8x512xf32>, i32 -> vector<8x512xf32>
    %c505_i32_334 = arith.constant 505 : i32
    %1039 = tpu.dynamic_rotate %685 by %c505_i32_334 dim 1 : vector<8x512xf32>, i32 -> vector<8x512xf32>
    %c7_i32_335 = arith.constant 7 : i32
    %1040 = tpu.dynamic_rotate %0 by %c7_i32_335 dim 1 : vector<1x512xf32>, i32 -> vector<1x512xf32>
    %cst_336 = arith.constant 7.000000e+00 : f32
    %1041 = vector.broadcast %cst_336 : f32 to vector<1x512xf32>
    %1042 = arith.addf %0, %1041 : vector<1x512xf32>
    %1043 = arith.cmpf oeq, %1040, %1042 : vector<1x512xf32>
    %1044 = arith.extui %1043 : vector<1x512xi1> to vector<1x512xi32>
    %1045 = arith.sitofp %1044 : vector<1x512xi32> to vector<1x512xf32>
    %1046 = vector.broadcast %1045 : vector<1x512xf32> to vector<8x512xf32>
    %1047 = arith.mulf %1038, %1046 : vector<8x512xf32>
    %cst_337 = arith.constant 1.000000e+00 : f32
    %1048 = vector.broadcast %cst_337 : f32 to vector<1x512xf32>
    %1049 = arith.subf %1048, %1045 : vector<1x512xf32>
    %1050 = vector.broadcast %1049 : vector<1x512xf32> to vector<8x512xf32>
    %1051 = arith.mulf %1039, %1050 : vector<8x512xf32>
    %1052 = arith.addf %1047, %1051 : vector<8x512xf32>
    %cst_338 = arith.constant 6.000000e+00 : f32
    %1053 = vector.broadcast %cst_338 : f32 to vector<1x512xf32>
    %1054 = arith.cmpf ole, %2, %1053 : vector<1x512xf32>
    %cst_339 = arith.constant 1.000000e+00 : f32
    %1055 = vector.broadcast %cst_339 : f32 to vector<1x512xf32>
    %1056 = arith.cmpf oge, %3, %1055 : vector<1x512xf32>
    %1057 = arith.andi %1054, %1056 : vector<1x512xi1>
    %1058 = arith.extui %1057 : vector<1x512xi1> to vector<1x512xi32>
    %1059 = arith.sitofp %1058 : vector<1x512xi32> to vector<1x512xf32>
    %1060 = vector.broadcast %1059 : vector<1x512xf32> to vector<8x512xf32>
    %1061 = arith.mulf %1052, %1060 : vector<8x512xf32>
    %c120_340 = arith.constant 120 : index
    %c0_341 = arith.constant 0 : index
    %1062 = vector.load %arg7[%c120_340, %c0_341] : memref<216x512xf32, #tpu.memory_space<vmem>>, vector<8x512xf32>
    tpu.vector_store %arg7[%c120_340, %c0_341], %1061 {strides = array<i32>} : memref<216x512xf32, #tpu.memory_space<vmem>>, vector<8x512xf32>,
    %c8_i32_342 = arith.constant 8 : i32
    %1063 = tpu.dynamic_rotate %685 by %c8_i32_342 dim 1 : vector<8x512xf32>, i32 -> vector<8x512xf32>
    %c504_i32_343 = arith.constant 504 : i32
    %1064 = tpu.dynamic_rotate %685 by %c504_i32_343 dim 1 : vector<8x512xf32>, i32 -> vector<8x512xf32>
    %c8_i32_344 = arith.constant 8 : i32
    %1065 = tpu.dynamic_rotate %0 by %c8_i32_344 dim 1 : vector<1x512xf32>, i32 -> vector<1x512xf32>
    %cst_345 = arith.constant 8.000000e+00 : f32
    %1066 = vector.broadcast %cst_345 : f32 to vector<1x512xf32>
    %1067 = arith.addf %0, %1066 : vector<1x512xf32>
    %1068 = arith.cmpf oeq, %1065, %1067 : vector<1x512xf32>
    %1069 = arith.extui %1068 : vector<1x512xi1> to vector<1x512xi32>
    %1070 = arith.sitofp %1069 : vector<1x512xi32> to vector<1x512xf32>
    %1071 = vector.broadcast %1070 : vector<1x512xf32> to vector<8x512xf32>
    %1072 = arith.mulf %1063, %1071 : vector<8x512xf32>
    %cst_346 = arith.constant 1.000000e+00 : f32
    %1073 = vector.broadcast %cst_346 : f32 to vector<1x512xf32>
    %1074 = arith.subf %1073, %1070 : vector<1x512xf32>
    %1075 = vector.broadcast %1074 : vector<1x512xf32> to vector<8x512xf32>
    %1076 = arith.mulf %1064, %1075 : vector<8x512xf32>
    %1077 = arith.addf %1072, %1076 : vector<8x512xf32>
    %cst_347 = arith.constant 6.000000e+00 : f32
    %1078 = vector.broadcast %cst_347 : f32 to vector<1x512xf32>
    %1079 = arith.cmpf ole, %2, %1078 : vector<1x512xf32>
    %1080 = arith.extui %1079 : vector<1x512xi1> to vector<1x512xi32>
    %1081 = arith.sitofp %1080 : vector<1x512xi32> to vector<1x512xf32>
    %1082 = vector.broadcast %1081 : vector<1x512xf32> to vector<8x512xf32>
    %1083 = arith.mulf %1077, %1082 : vector<8x512xf32>
    %c128_348 = arith.constant 128 : index
    %c0_349 = arith.constant 0 : index
    %1084 = vector.load %arg7[%c128_348, %c0_349] : memref<216x512xf32, #tpu.memory_space<vmem>>, vector<8x512xf32>
    tpu.vector_store %arg7[%c128_348, %c0_349], %1083 {strides = array<i32>} : memref<216x512xf32, #tpu.memory_space<vmem>>, vector<8x512xf32>,
    %c9_i32_350 = arith.constant 9 : i32
    %1085 = tpu.dynamic_rotate %685 by %c9_i32_350 dim 1 : vector<8x512xf32>, i32 -> vector<8x512xf32>
    %c503_i32_351 = arith.constant 503 : i32
    %1086 = tpu.dynamic_rotate %685 by %c503_i32_351 dim 1 : vector<8x512xf32>, i32 -> vector<8x512xf32>
    %c9_i32_352 = arith.constant 9 : i32
    %1087 = tpu.dynamic_rotate %0 by %c9_i32_352 dim 1 : vector<1x512xf32>, i32 -> vector<1x512xf32>
    %cst_353 = arith.constant 9.000000e+00 : f32
    %1088 = vector.broadcast %cst_353 : f32 to vector<1x512xf32>
    %1089 = arith.addf %0, %1088 : vector<1x512xf32>
    %1090 = arith.cmpf oeq, %1087, %1089 : vector<1x512xf32>
    %1091 = arith.extui %1090 : vector<1x512xi1> to vector<1x512xi32>
    %1092 = arith.sitofp %1091 : vector<1x512xi32> to vector<1x512xf32>
    %1093 = vector.broadcast %1092 : vector<1x512xf32> to vector<8x512xf32>
    %1094 = arith.mulf %1085, %1093 : vector<8x512xf32>
    %cst_354 = arith.constant 1.000000e+00 : f32
    %1095 = vector.broadcast %cst_354 : f32 to vector<1x512xf32>
    %1096 = arith.subf %1095, %1092 : vector<1x512xf32>
    %1097 = vector.broadcast %1096 : vector<1x512xf32> to vector<8x512xf32>
    %1098 = arith.mulf %1086, %1097 : vector<8x512xf32>
    %1099 = arith.addf %1094, %1098 : vector<8x512xf32>
    %cst_355 = arith.constant 6.000000e+00 : f32
    %1100 = vector.broadcast %cst_355 : f32 to vector<1x512xf32>
    %1101 = arith.cmpf ole, %2, %1100 : vector<1x512xf32>
    %cst_356 = arith.constant 6.000000e+00 : f32
    %1102 = vector.broadcast %cst_356 : f32 to vector<1x512xf32>
    %1103 = arith.cmpf ole, %3, %1102 : vector<1x512xf32>
    %1104 = arith.andi %1101, %1103 : vector<1x512xi1>
    %1105 = arith.extui %1104 : vector<1x512xi1> to vector<1x512xi32>
    %1106 = arith.sitofp %1105 : vector<1x512xi32> to vector<1x512xf32>
    %1107 = vector.broadcast %1106 : vector<1x512xf32> to vector<8x512xf32>
    %1108 = arith.mulf %1099, %1107 : vector<8x512xf32>
    %c136_357 = arith.constant 136 : index
    %c0_358 = arith.constant 0 : index
    %1109 = vector.load %arg7[%c136_357, %c0_358] : memref<216x512xf32, #tpu.memory_space<vmem>>, vector<8x512xf32>
    tpu.vector_store %arg7[%c136_357, %c0_358], %1108 {strides = array<i32>} : memref<216x512xf32, #tpu.memory_space<vmem>>, vector<8x512xf32>,
    %c55_i32_359 = arith.constant 55 : i32
    %1110 = tpu.dynamic_rotate %685 by %c55_i32_359 dim 1 : vector<8x512xf32>, i32 -> vector<8x512xf32>
    %c457_i32_360 = arith.constant 457 : i32
    %1111 = tpu.dynamic_rotate %685 by %c457_i32_360 dim 1 : vector<8x512xf32>, i32 -> vector<8x512xf32>
    %c55_i32_361 = arith.constant 55 : i32
    %1112 = tpu.dynamic_rotate %0 by %c55_i32_361 dim 1 : vector<1x512xf32>, i32 -> vector<1x512xf32>
    %cst_362 = arith.constant 5.500000e+01 : f32
    %1113 = vector.broadcast %cst_362 : f32 to vector<1x512xf32>
    %1114 = arith.addf %0, %1113 : vector<1x512xf32>
    %1115 = arith.cmpf oeq, %1112, %1114 : vector<1x512xf32>
    %1116 = arith.extui %1115 : vector<1x512xi1> to vector<1x512xi32>
    %1117 = arith.sitofp %1116 : vector<1x512xi32> to vector<1x512xf32>
    %1118 = vector.broadcast %1117 : vector<1x512xf32> to vector<8x512xf32>
    %1119 = arith.mulf %1110, %1118 : vector<8x512xf32>
    %cst_363 = arith.constant 1.000000e+00 : f32
    %1120 = vector.broadcast %cst_363 : f32 to vector<1x512xf32>
    %1121 = arith.subf %1120, %1117 : vector<1x512xf32>
    %1122 = vector.broadcast %1121 : vector<1x512xf32> to vector<8x512xf32>
    %1123 = arith.mulf %1111, %1122 : vector<8x512xf32>
    %1124 = arith.addf %1119, %1123 : vector<8x512xf32>
    %cst_364 = arith.constant 6.000000e+00 : f32
    %1125 = vector.broadcast %cst_364 : f32 to vector<1x512xf32>
    %1126 = arith.cmpf ole, %1, %1125 : vector<1x512xf32>
    %cst_365 = arith.constant 1.000000e+00 : f32
    %1127 = vector.broadcast %cst_365 : f32 to vector<1x512xf32>
    %1128 = arith.cmpf oge, %2, %1127 : vector<1x512xf32>
    %cst_366 = arith.constant 1.000000e+00 : f32
    %1129 = vector.broadcast %cst_366 : f32 to vector<1x512xf32>
    %1130 = arith.cmpf oge, %3, %1129 : vector<1x512xf32>
    %1131 = arith.andi %1126, %1128 : vector<1x512xi1>
    %1132 = arith.andi %1131, %1130 : vector<1x512xi1>
    %1133 = arith.extui %1132 : vector<1x512xi1> to vector<1x512xi32>
    %1134 = arith.sitofp %1133 : vector<1x512xi32> to vector<1x512xf32>
    %1135 = vector.broadcast %1134 : vector<1x512xf32> to vector<8x512xf32>
    %1136 = arith.mulf %1124, %1135 : vector<8x512xf32>
    %c144_367 = arith.constant 144 : index
    %c0_368 = arith.constant 0 : index
    %1137 = vector.load %arg7[%c144_367, %c0_368] : memref<216x512xf32, #tpu.memory_space<vmem>>, vector<8x512xf32>
    tpu.vector_store %arg7[%c144_367, %c0_368], %1136 {strides = array<i32>} : memref<216x512xf32, #tpu.memory_space<vmem>>, vector<8x512xf32>,
    %c56_i32_369 = arith.constant 56 : i32
    %1138 = tpu.dynamic_rotate %685 by %c56_i32_369 dim 1 : vector<8x512xf32>, i32 -> vector<8x512xf32>
    %c456_i32_370 = arith.constant 456 : i32
    %1139 = tpu.dynamic_rotate %685 by %c456_i32_370 dim 1 : vector<8x512xf32>, i32 -> vector<8x512xf32>
    %c56_i32_371 = arith.constant 56 : i32
    %1140 = tpu.dynamic_rotate %0 by %c56_i32_371 dim 1 : vector<1x512xf32>, i32 -> vector<1x512xf32>
    %cst_372 = arith.constant 5.600000e+01 : f32
    %1141 = vector.broadcast %cst_372 : f32 to vector<1x512xf32>
    %1142 = arith.addf %0, %1141 : vector<1x512xf32>
    %1143 = arith.cmpf oeq, %1140, %1142 : vector<1x512xf32>
    %1144 = arith.extui %1143 : vector<1x512xi1> to vector<1x512xi32>
    %1145 = arith.sitofp %1144 : vector<1x512xi32> to vector<1x512xf32>
    %1146 = vector.broadcast %1145 : vector<1x512xf32> to vector<8x512xf32>
    %1147 = arith.mulf %1138, %1146 : vector<8x512xf32>
    %cst_373 = arith.constant 1.000000e+00 : f32
    %1148 = vector.broadcast %cst_373 : f32 to vector<1x512xf32>
    %1149 = arith.subf %1148, %1145 : vector<1x512xf32>
    %1150 = vector.broadcast %1149 : vector<1x512xf32> to vector<8x512xf32>
    %1151 = arith.mulf %1139, %1150 : vector<8x512xf32>
    %1152 = arith.addf %1147, %1151 : vector<8x512xf32>
    %cst_374 = arith.constant 6.000000e+00 : f32
    %1153 = vector.broadcast %cst_374 : f32 to vector<1x512xf32>
    %1154 = arith.cmpf ole, %1, %1153 : vector<1x512xf32>
    %cst_375 = arith.constant 1.000000e+00 : f32
    %1155 = vector.broadcast %cst_375 : f32 to vector<1x512xf32>
    %1156 = arith.cmpf oge, %2, %1155 : vector<1x512xf32>
    %1157 = arith.andi %1154, %1156 : vector<1x512xi1>
    %1158 = arith.extui %1157 : vector<1x512xi1> to vector<1x512xi32>
    %1159 = arith.sitofp %1158 : vector<1x512xi32> to vector<1x512xf32>
    %1160 = vector.broadcast %1159 : vector<1x512xf32> to vector<8x512xf32>
    %1161 = arith.mulf %1152, %1160 : vector<8x512xf32>
    %c152_376 = arith.constant 152 : index
    %c0_377 = arith.constant 0 : index
    %1162 = vector.load %arg7[%c152_376, %c0_377] : memref<216x512xf32, #tpu.memory_space<vmem>>, vector<8x512xf32>
    tpu.vector_store %arg7[%c152_376, %c0_377], %1161 {strides = array<i32>} : memref<216x512xf32, #tpu.memory_space<vmem>>, vector<8x512xf32>,
    %c57_i32_378 = arith.constant 57 : i32
    %1163 = tpu.dynamic_rotate %685 by %c57_i32_378 dim 1 : vector<8x512xf32>, i32 -> vector<8x512xf32>
    %c455_i32_379 = arith.constant 455 : i32
    %1164 = tpu.dynamic_rotate %685 by %c455_i32_379 dim 1 : vector<8x512xf32>, i32 -> vector<8x512xf32>
    %c57_i32_380 = arith.constant 57 : i32
    %1165 = tpu.dynamic_rotate %0 by %c57_i32_380 dim 1 : vector<1x512xf32>, i32 -> vector<1x512xf32>
    %cst_381 = arith.constant 5.700000e+01 : f32
    %1166 = vector.broadcast %cst_381 : f32 to vector<1x512xf32>
    %1167 = arith.addf %0, %1166 : vector<1x512xf32>
    %1168 = arith.cmpf oeq, %1165, %1167 : vector<1x512xf32>
    %1169 = arith.extui %1168 : vector<1x512xi1> to vector<1x512xi32>
    %1170 = arith.sitofp %1169 : vector<1x512xi32> to vector<1x512xf32>
    %1171 = vector.broadcast %1170 : vector<1x512xf32> to vector<8x512xf32>
    %1172 = arith.mulf %1163, %1171 : vector<8x512xf32>
    %cst_382 = arith.constant 1.000000e+00 : f32
    %1173 = vector.broadcast %cst_382 : f32 to vector<1x512xf32>
    %1174 = arith.subf %1173, %1170 : vector<1x512xf32>
    %1175 = vector.broadcast %1174 : vector<1x512xf32> to vector<8x512xf32>
    %1176 = arith.mulf %1164, %1175 : vector<8x512xf32>
    %1177 = arith.addf %1172, %1176 : vector<8x512xf32>
    %cst_383 = arith.constant 6.000000e+00 : f32
    %1178 = vector.broadcast %cst_383 : f32 to vector<1x512xf32>
    %1179 = arith.cmpf ole, %1, %1178 : vector<1x512xf32>
    %cst_384 = arith.constant 1.000000e+00 : f32
    %1180 = vector.broadcast %cst_384 : f32 to vector<1x512xf32>
    %1181 = arith.cmpf oge, %2, %1180 : vector<1x512xf32>
    %cst_385 = arith.constant 6.000000e+00 : f32
    %1182 = vector.broadcast %cst_385 : f32 to vector<1x512xf32>
    %1183 = arith.cmpf ole, %3, %1182 : vector<1x512xf32>
    %1184 = arith.andi %1179, %1181 : vector<1x512xi1>
    %1185 = arith.andi %1184, %1183 : vector<1x512xi1>
    %1186 = arith.extui %1185 : vector<1x512xi1> to vector<1x512xi32>
    %1187 = arith.sitofp %1186 : vector<1x512xi32> to vector<1x512xf32>
    %1188 = vector.broadcast %1187 : vector<1x512xf32> to vector<8x512xf32>
    %1189 = arith.mulf %1177, %1188 : vector<8x512xf32>
    %c160_386 = arith.constant 160 : index
    %c0_387 = arith.constant 0 : index
    %1190 = vector.load %arg7[%c160_386, %c0_387] : memref<216x512xf32, #tpu.memory_space<vmem>>, vector<8x512xf32>
    tpu.vector_store %arg7[%c160_386, %c0_387], %1189 {strides = array<i32>} : memref<216x512xf32, #tpu.memory_space<vmem>>, vector<8x512xf32>,
    %c63_i32_388 = arith.constant 63 : i32
    %1191 = tpu.dynamic_rotate %685 by %c63_i32_388 dim 1 : vector<8x512xf32>, i32 -> vector<8x512xf32>
    %c449_i32_389 = arith.constant 449 : i32
    %1192 = tpu.dynamic_rotate %685 by %c449_i32_389 dim 1 : vector<8x512xf32>, i32 -> vector<8x512xf32>
    %c63_i32_390 = arith.constant 63 : i32
    %1193 = tpu.dynamic_rotate %0 by %c63_i32_390 dim 1 : vector<1x512xf32>, i32 -> vector<1x512xf32>
    %cst_391 = arith.constant 6.300000e+01 : f32
    %1194 = vector.broadcast %cst_391 : f32 to vector<1x512xf32>
    %1195 = arith.addf %0, %1194 : vector<1x512xf32>
    %1196 = arith.cmpf oeq, %1193, %1195 : vector<1x512xf32>
    %1197 = arith.extui %1196 : vector<1x512xi1> to vector<1x512xi32>
    %1198 = arith.sitofp %1197 : vector<1x512xi32> to vector<1x512xf32>
    %1199 = vector.broadcast %1198 : vector<1x512xf32> to vector<8x512xf32>
    %1200 = arith.mulf %1191, %1199 : vector<8x512xf32>
    %cst_392 = arith.constant 1.000000e+00 : f32
    %1201 = vector.broadcast %cst_392 : f32 to vector<1x512xf32>
    %1202 = arith.subf %1201, %1198 : vector<1x512xf32>
    %1203 = vector.broadcast %1202 : vector<1x512xf32> to vector<8x512xf32>
    %1204 = arith.mulf %1192, %1203 : vector<8x512xf32>
    %1205 = arith.addf %1200, %1204 : vector<8x512xf32>
    %cst_393 = arith.constant 6.000000e+00 : f32
    %1206 = vector.broadcast %cst_393 : f32 to vector<1x512xf32>
    %1207 = arith.cmpf ole, %1, %1206 : vector<1x512xf32>
    %cst_394 = arith.constant 1.000000e+00 : f32
    %1208 = vector.broadcast %cst_394 : f32 to vector<1x512xf32>
    %1209 = arith.cmpf oge, %3, %1208 : vector<1x512xf32>
    %1210 = arith.andi %1207, %1209 : vector<1x512xi1>
    %1211 = arith.extui %1210 : vector<1x512xi1> to vector<1x512xi32>
    %1212 = arith.sitofp %1211 : vector<1x512xi32> to vector<1x512xf32>
    %1213 = vector.broadcast %1212 : vector<1x512xf32> to vector<8x512xf32>
    %1214 = arith.mulf %1205, %1213 : vector<8x512xf32>
    %c168_395 = arith.constant 168 : index
    %c0_396 = arith.constant 0 : index
    %1215 = vector.load %arg7[%c168_395, %c0_396] : memref<216x512xf32, #tpu.memory_space<vmem>>, vector<8x512xf32>
    tpu.vector_store %arg7[%c168_395, %c0_396], %1214 {strides = array<i32>} : memref<216x512xf32, #tpu.memory_space<vmem>>, vector<8x512xf32>,
    %c64_i32_397 = arith.constant 64 : i32
    %1216 = tpu.dynamic_rotate %685 by %c64_i32_397 dim 1 : vector<8x512xf32>, i32 -> vector<8x512xf32>
    %c448_i32_398 = arith.constant 448 : i32
    %1217 = tpu.dynamic_rotate %685 by %c448_i32_398 dim 1 : vector<8x512xf32>, i32 -> vector<8x512xf32>
    %c64_i32_399 = arith.constant 64 : i32
    %1218 = tpu.dynamic_rotate %0 by %c64_i32_399 dim 1 : vector<1x512xf32>, i32 -> vector<1x512xf32>
    %cst_400 = arith.constant 6.400000e+01 : f32
    %1219 = vector.broadcast %cst_400 : f32 to vector<1x512xf32>
    %1220 = arith.addf %0, %1219 : vector<1x512xf32>
    %1221 = arith.cmpf oeq, %1218, %1220 : vector<1x512xf32>
    %1222 = arith.extui %1221 : vector<1x512xi1> to vector<1x512xi32>
    %1223 = arith.sitofp %1222 : vector<1x512xi32> to vector<1x512xf32>
    %1224 = vector.broadcast %1223 : vector<1x512xf32> to vector<8x512xf32>
    %1225 = arith.mulf %1216, %1224 : vector<8x512xf32>
    %cst_401 = arith.constant 1.000000e+00 : f32
    %1226 = vector.broadcast %cst_401 : f32 to vector<1x512xf32>
    %1227 = arith.subf %1226, %1223 : vector<1x512xf32>
    %1228 = vector.broadcast %1227 : vector<1x512xf32> to vector<8x512xf32>
    %1229 = arith.mulf %1217, %1228 : vector<8x512xf32>
    %1230 = arith.addf %1225, %1229 : vector<8x512xf32>
    %cst_402 = arith.constant 6.000000e+00 : f32
    %1231 = vector.broadcast %cst_402 : f32 to vector<1x512xf32>
    %1232 = arith.cmpf ole, %1, %1231 : vector<1x512xf32>
    %1233 = arith.extui %1232 : vector<1x512xi1> to vector<1x512xi32>
    %1234 = arith.sitofp %1233 : vector<1x512xi32> to vector<1x512xf32>
    %1235 = vector.broadcast %1234 : vector<1x512xf32> to vector<8x512xf32>
    %1236 = arith.mulf %1230, %1235 : vector<8x512xf32>
    %c176_403 = arith.constant 176 : index
    %c0_404 = arith.constant 0 : index
    %1237 = vector.load %arg7[%c176_403, %c0_404] : memref<216x512xf32, #tpu.memory_space<vmem>>, vector<8x512xf32>
    tpu.vector_store %arg7[%c176_403, %c0_404], %1236 {strides = array<i32>} : memref<216x512xf32, #tpu.memory_space<vmem>>, vector<8x512xf32>,
    %c65_i32_405 = arith.constant 65 : i32
    %1238 = tpu.dynamic_rotate %685 by %c65_i32_405 dim 1 : vector<8x512xf32>, i32 -> vector<8x512xf32>
    %c447_i32_406 = arith.constant 447 : i32
    %1239 = tpu.dynamic_rotate %685 by %c447_i32_406 dim 1 : vector<8x512xf32>, i32 -> vector<8x512xf32>
    %c65_i32_407 = arith.constant 65 : i32
    %1240 = tpu.dynamic_rotate %0 by %c65_i32_407 dim 1 : vector<1x512xf32>, i32 -> vector<1x512xf32>
    %cst_408 = arith.constant 6.500000e+01 : f32
    %1241 = vector.broadcast %cst_408 : f32 to vector<1x512xf32>
    %1242 = arith.addf %0, %1241 : vector<1x512xf32>
    %1243 = arith.cmpf oeq, %1240, %1242 : vector<1x512xf32>
    %1244 = arith.extui %1243 : vector<1x512xi1> to vector<1x512xi32>
    %1245 = arith.sitofp %1244 : vector<1x512xi32> to vector<1x512xf32>
    %1246 = vector.broadcast %1245 : vector<1x512xf32> to vector<8x512xf32>
    %1247 = arith.mulf %1238, %1246 : vector<8x512xf32>
    %cst_409 = arith.constant 1.000000e+00 : f32
    %1248 = vector.broadcast %cst_409 : f32 to vector<1x512xf32>
    %1249 = arith.subf %1248, %1245 : vector<1x512xf32>
    %1250 = vector.broadcast %1249 : vector<1x512xf32> to vector<8x512xf32>
    %1251 = arith.mulf %1239, %1250 : vector<8x512xf32>
    %1252 = arith.addf %1247, %1251 : vector<8x512xf32>
    %cst_410 = arith.constant 6.000000e+00 : f32
    %1253 = vector.broadcast %cst_410 : f32 to vector<1x512xf32>
    %1254 = arith.cmpf ole, %1, %1253 : vector<1x512xf32>
    %cst_411 = arith.constant 6.000000e+00 : f32
    %1255 = vector.broadcast %cst_411 : f32 to vector<1x512xf32>
    %1256 = arith.cmpf ole, %3, %1255 : vector<1x512xf32>
    %1257 = arith.andi %1254, %1256 : vector<1x512xi1>
    %1258 = arith.extui %1257 : vector<1x512xi1> to vector<1x512xi32>
    %1259 = arith.sitofp %1258 : vector<1x512xi32> to vector<1x512xf32>
    %1260 = vector.broadcast %1259 : vector<1x512xf32> to vector<8x512xf32>
    %1261 = arith.mulf %1252, %1260 : vector<8x512xf32>
    %c184_412 = arith.constant 184 : index
    %c0_413 = arith.constant 0 : index
    %1262 = vector.load %arg7[%c184_412, %c0_413] : memref<216x512xf32, #tpu.memory_space<vmem>>, vector<8x512xf32>
    tpu.vector_store %arg7[%c184_412, %c0_413], %1261 {strides = array<i32>} : memref<216x512xf32, #tpu.memory_space<vmem>>, vector<8x512xf32>,
    %c71_i32_414 = arith.constant 71 : i32
    %1263 = tpu.dynamic_rotate %685 by %c71_i32_414 dim 1 : vector<8x512xf32>, i32 -> vector<8x512xf32>
    %c441_i32_415 = arith.constant 441 : i32
    %1264 = tpu.dynamic_rotate %685 by %c441_i32_415 dim 1 : vector<8x512xf32>, i32 -> vector<8x512xf32>
    %c71_i32_416 = arith.constant 71 : i32
    %1265 = tpu.dynamic_rotate %0 by %c71_i32_416 dim 1 : vector<1x512xf32>, i32 -> vector<1x512xf32>
    %cst_417 = arith.constant 7.100000e+01 : f32
    %1266 = vector.broadcast %cst_417 : f32 to vector<1x512xf32>
    %1267 = arith.addf %0, %1266 : vector<1x512xf32>
    %1268 = arith.cmpf oeq, %1265, %1267 : vector<1x512xf32>
    %1269 = arith.extui %1268 : vector<1x512xi1> to vector<1x512xi32>
    %1270 = arith.sitofp %1269 : vector<1x512xi32> to vector<1x512xf32>
    %1271 = vector.broadcast %1270 : vector<1x512xf32> to vector<8x512xf32>
    %1272 = arith.mulf %1263, %1271 : vector<8x512xf32>
    %cst_418 = arith.constant 1.000000e+00 : f32
    %1273 = vector.broadcast %cst_418 : f32 to vector<1x512xf32>
    %1274 = arith.subf %1273, %1270 : vector<1x512xf32>
    %1275 = vector.broadcast %1274 : vector<1x512xf32> to vector<8x512xf32>
    %1276 = arith.mulf %1264, %1275 : vector<8x512xf32>
    %1277 = arith.addf %1272, %1276 : vector<8x512xf32>
    %cst_419 = arith.constant 6.000000e+00 : f32
    %1278 = vector.broadcast %cst_419 : f32 to vector<1x512xf32>
    %1279 = arith.cmpf ole, %1, %1278 : vector<1x512xf32>
    %cst_420 = arith.constant 6.000000e+00 : f32
    %1280 = vector.broadcast %cst_420 : f32 to vector<1x512xf32>
    %1281 = arith.cmpf ole, %2, %1280 : vector<1x512xf32>
    %cst_421 = arith.constant 1.000000e+00 : f32
    %1282 = vector.broadcast %cst_421 : f32 to vector<1x512xf32>
    %1283 = arith.cmpf oge, %3, %1282 : vector<1x512xf32>
    %1284 = arith.andi %1279, %1281 : vector<1x512xi1>
    %1285 = arith.andi %1284, %1283 : vector<1x512xi1>
    %1286 = arith.extui %1285 : vector<1x512xi1> to vector<1x512xi32>
    %1287 = arith.sitofp %1286 : vector<1x512xi32> to vector<1x512xf32>
    %1288 = vector.broadcast %1287 : vector<1x512xf32> to vector<8x512xf32>
    %1289 = arith.mulf %1277, %1288 : vector<8x512xf32>
    %c192_422 = arith.constant 192 : index
    %c0_423 = arith.constant 0 : index
    %1290 = vector.load %arg7[%c192_422, %c0_423] : memref<216x512xf32, #tpu.memory_space<vmem>>, vector<8x512xf32>
    tpu.vector_store %arg7[%c192_422, %c0_423], %1289 {strides = array<i32>} : memref<216x512xf32, #tpu.memory_space<vmem>>, vector<8x512xf32>,
    %c72_i32_424 = arith.constant 72 : i32
    %1291 = tpu.dynamic_rotate %685 by %c72_i32_424 dim 1 : vector<8x512xf32>, i32 -> vector<8x512xf32>
    %c440_i32_425 = arith.constant 440 : i32
    %1292 = tpu.dynamic_rotate %685 by %c440_i32_425 dim 1 : vector<8x512xf32>, i32 -> vector<8x512xf32>
    %c72_i32_426 = arith.constant 72 : i32
    %1293 = tpu.dynamic_rotate %0 by %c72_i32_426 dim 1 : vector<1x512xf32>, i32 -> vector<1x512xf32>
    %cst_427 = arith.constant 7.200000e+01 : f32
    %1294 = vector.broadcast %cst_427 : f32 to vector<1x512xf32>
    %1295 = arith.addf %0, %1294 : vector<1x512xf32>
    %1296 = arith.cmpf oeq, %1293, %1295 : vector<1x512xf32>
    %1297 = arith.extui %1296 : vector<1x512xi1> to vector<1x512xi32>
    %1298 = arith.sitofp %1297 : vector<1x512xi32> to vector<1x512xf32>
    %1299 = vector.broadcast %1298 : vector<1x512xf32> to vector<8x512xf32>
    %1300 = arith.mulf %1291, %1299 : vector<8x512xf32>
    %cst_428 = arith.constant 1.000000e+00 : f32
    %1301 = vector.broadcast %cst_428 : f32 to vector<1x512xf32>
    %1302 = arith.subf %1301, %1298 : vector<1x512xf32>
    %1303 = vector.broadcast %1302 : vector<1x512xf32> to vector<8x512xf32>
    %1304 = arith.mulf %1292, %1303 : vector<8x512xf32>
    %1305 = arith.addf %1300, %1304 : vector<8x512xf32>
    %cst_429 = arith.constant 6.000000e+00 : f32
    %1306 = vector.broadcast %cst_429 : f32 to vector<1x512xf32>
    %1307 = arith.cmpf ole, %1, %1306 : vector<1x512xf32>
    %cst_430 = arith.constant 6.000000e+00 : f32
    %1308 = vector.broadcast %cst_430 : f32 to vector<1x512xf32>
    %1309 = arith.cmpf ole, %2, %1308 : vector<1x512xf32>
    %1310 = arith.andi %1307, %1309 : vector<1x512xi1>
    %1311 = arith.extui %1310 : vector<1x512xi1> to vector<1x512xi32>
    %1312 = arith.sitofp %1311 : vector<1x512xi32> to vector<1x512xf32>
    %1313 = vector.broadcast %1312 : vector<1x512xf32> to vector<8x512xf32>
    %1314 = arith.mulf %1305, %1313 : vector<8x512xf32>
    %c200_431 = arith.constant 200 : index
    %c0_432 = arith.constant 0 : index
    %1315 = vector.load %arg7[%c200_431, %c0_432] : memref<216x512xf32, #tpu.memory_space<vmem>>, vector<8x512xf32>
    tpu.vector_store %arg7[%c200_431, %c0_432], %1314 {strides = array<i32>} : memref<216x512xf32, #tpu.memory_space<vmem>>, vector<8x512xf32>,
    %c73_i32_433 = arith.constant 73 : i32
    %1316 = tpu.dynamic_rotate %685 by %c73_i32_433 dim 1 : vector<8x512xf32>, i32 -> vector<8x512xf32>
    %c439_i32_434 = arith.constant 439 : i32
    %1317 = tpu.dynamic_rotate %685 by %c439_i32_434 dim 1 : vector<8x512xf32>, i32 -> vector<8x512xf32>
    %c73_i32_435 = arith.constant 73 : i32
    %1318 = tpu.dynamic_rotate %0 by %c73_i32_435 dim 1 : vector<1x512xf32>, i32 -> vector<1x512xf32>
    %cst_436 = arith.constant 7.300000e+01 : f32
    %1319 = vector.broadcast %cst_436 : f32 to vector<1x512xf32>
    %1320 = arith.addf %0, %1319 : vector<1x512xf32>
    %1321 = arith.cmpf oeq, %1318, %1320 : vector<1x512xf32>
    %1322 = arith.extui %1321 : vector<1x512xi1> to vector<1x512xi32>
    %1323 = arith.sitofp %1322 : vector<1x512xi32> to vector<1x512xf32>
    %1324 = vector.broadcast %1323 : vector<1x512xf32> to vector<8x512xf32>
    %1325 = arith.mulf %1316, %1324 : vector<8x512xf32>
    %cst_437 = arith.constant 1.000000e+00 : f32
    %1326 = vector.broadcast %cst_437 : f32 to vector<1x512xf32>
    %1327 = arith.subf %1326, %1323 : vector<1x512xf32>
    %1328 = vector.broadcast %1327 : vector<1x512xf32> to vector<8x512xf32>
    %1329 = arith.mulf %1317, %1328 : vector<8x512xf32>
    %1330 = arith.addf %1325, %1329 : vector<8x512xf32>
    %cst_438 = arith.constant 6.000000e+00 : f32
    %1331 = vector.broadcast %cst_438 : f32 to vector<1x512xf32>
    %1332 = arith.cmpf ole, %1, %1331 : vector<1x512xf32>
    %cst_439 = arith.constant 6.000000e+00 : f32
    %1333 = vector.broadcast %cst_439 : f32 to vector<1x512xf32>
    %1334 = arith.cmpf ole, %2, %1333 : vector<1x512xf32>
    %cst_440 = arith.constant 6.000000e+00 : f32
    %1335 = vector.broadcast %cst_440 : f32 to vector<1x512xf32>
    %1336 = arith.cmpf ole, %3, %1335 : vector<1x512xf32>
    %1337 = arith.andi %1332, %1334 : vector<1x512xi1>
    %1338 = arith.andi %1337, %1336 : vector<1x512xi1>
    %1339 = arith.extui %1338 : vector<1x512xi1> to vector<1x512xi32>
    %1340 = arith.sitofp %1339 : vector<1x512xi32> to vector<1x512xf32>
    %1341 = vector.broadcast %1340 : vector<1x512xf32> to vector<8x512xf32>
    %1342 = arith.mulf %1330, %1341 : vector<8x512xf32>
    %c208_441 = arith.constant 208 : index
    %c0_442 = arith.constant 0 : index
    %1343 = vector.load %arg7[%c208_441, %c0_442] : memref<216x512xf32, #tpu.memory_space<vmem>>, vector<8x512xf32>
    tpu.vector_store %arg7[%c208_441, %c0_442], %1342 {strides = array<i32>} : memref<216x512xf32, #tpu.memory_space<vmem>>, vector<8x512xf32>,
    %c0_443 = arith.constant 0 : index
    %c0_444 = arith.constant 0 : index
    %1344 = vector.load %arg7[%c0_443, %c0_444] : memref<216x512xf32, #tpu.memory_space<vmem>>, vector<216x512xf32>
    %cst_445 = arith.constant dense<0.000000e+00> : vector<8x512xf32>
    %1345 = tpu.matmul %686, %1344, %cst_445 {dimension_numbers = #tpu.dot_dimension_numbers<[1], [0], [0], [1], [0, 0, 1, 1], [], []>} : vector<8x216xf32>, vector<216x512xf32>, vector<8x512xf32> -> vector<8x512xf32>
    %cst_446 = arith.constant dense<0.000000e+00> : vector<8xf32>
    %1346 = vector.multi_reduction <add>, %1345, %cst_446 [1] : vector<8x512xf32> to vector<8xf32>
    %1347 = vector.shape_cast %1346 : vector<8xf32> to vector<8x1xf32>
    %cst_447 = arith.constant 5.120000e+02 : f32
    %1348 = vector.broadcast %cst_447 : f32 to vector<8x1xf32>
    %1349 = arith.divf %1347, %1348 : vector<8x1xf32>
    %1350 = vector.broadcast %1349 : vector<8x1xf32> to vector<8x512xf32>
    %1351 = arith.subf %1345, %1350 : vector<8x512xf32>
    %1352 = arith.mulf %1351, %1351 : vector<8x512xf32>
    %cst_448 = arith.constant dense<0.000000e+00> : vector<8xf32>
    %1353 = vector.multi_reduction <add>, %1352, %cst_448 [1] : vector<8x512xf32> to vector<8xf32>
    %1354 = vector.shape_cast %1353 : vector<8xf32> to vector<8x1xf32>
    %cst_449 = arith.constant 5.120000e+02 : f32
    %1355 = vector.broadcast %cst_449 : f32 to vector<8x1xf32>
    %1356 = arith.divf %1354, %1355 : vector<8x1xf32>
    %1357 = vector.broadcast %1349 : vector<8x1xf32> to vector<8x512xf32>
    %1358 = arith.subf %1345, %1357 : vector<8x512xf32>
    %cst_450 = arith.constant 9.99999974E-6 : f32
    %1359 = vector.broadcast %cst_450 : f32 to vector<8x1xf32>
    %1360 = arith.addf %1356, %1359 : vector<8x1xf32>
    %1361 = math.rsqrt %1360 : vector<8x1xf32>
    %1362 = vector.broadcast %1361 : vector<8x1xf32> to vector<8x512xf32>
    %1363 = arith.mulf %1358, %1362 : vector<8x512xf32>
    %c0_451 = arith.constant 0 : index
    %c0_452 = arith.constant 0 : index
    %1364 = vector.load %arg5[%c0_451, %c0_452] : memref<8x8xf32, #tpu.memory_space<vmem>>, vector<8x8xf32>
    %cst_453 = arith.constant dense<0.000000e+00> : vector<8x512xf32>
    %1365 = tpu.matmul %1364, %5, %cst_453 {dimension_numbers = #tpu.dot_dimension_numbers<[1], [0], [0], [1], [0, 0, 1, 1], [], []>} : vector<8x8xf32>, vector<8x512xf32>, vector<8x512xf32> -> vector<8x512xf32>
    %cst_454 = arith.constant dense<0.000000e+00> : vector<8xf32>
    %1366 = vector.multi_reduction <add>, %1365, %cst_454 [1] : vector<8x512xf32> to vector<8xf32>
    %1367 = vector.shape_cast %1366 : vector<8xf32> to vector<8x1xf32>
    %cst_455 = arith.constant 5.120000e+02 : f32
    %1368 = vector.broadcast %cst_455 : f32 to vector<8x1xf32>
    %1369 = arith.divf %1367, %1368 : vector<8x1xf32>
    %1370 = vector.broadcast %1369 : vector<8x1xf32> to vector<8x512xf32>
    %1371 = arith.subf %1365, %1370 : vector<8x512xf32>
    %1372 = arith.mulf %1371, %1371 : vector<8x512xf32>
    %cst_456 = arith.constant dense<0.000000e+00> : vector<8xf32>
    %1373 = vector.multi_reduction <add>, %1372, %cst_456 [1] : vector<8x512xf32> to vector<8xf32>
    %1374 = vector.shape_cast %1373 : vector<8xf32> to vector<8x1xf32>
    %cst_457 = arith.constant 5.120000e+02 : f32
    %1375 = vector.broadcast %cst_457 : f32 to vector<8x1xf32>
    %1376 = arith.divf %1374, %1375 : vector<8x1xf32>
    %1377 = vector.broadcast %1369 : vector<8x1xf32> to vector<8x512xf32>
    %1378 = arith.subf %1365, %1377 : vector<8x512xf32>
    %cst_458 = arith.constant 9.99999974E-6 : f32
    %1379 = vector.broadcast %cst_458 : f32 to vector<8x1xf32>
    %1380 = arith.addf %1376, %1379 : vector<8x1xf32>
    %1381 = math.rsqrt %1380 : vector<8x1xf32>
    %1382 = vector.broadcast %1381 : vector<8x1xf32> to vector<8x512xf32>
    %1383 = arith.mulf %1378, %1382 : vector<8x512xf32>
    %1384 = arith.addf %1363, %1383 : vector<8x512xf32>
    %cst_459 = arith.constant 0.000000e+00 : f32
    %1385 = vector.broadcast %cst_459 : f32 to vector<8x512xf32>
    %1386 = arith.maximumf %1384, %1385 : vector<8x512xf32>
    %c0_460 = arith.constant 0 : index
    %c0_461 = arith.constant 0 : index
    %c0_462 = arith.constant 0 : index
    %1387 = vector.load %arg6[%c0_460, %c0_461, %c0_462] : memref<1x8x512xf32, #tpu.memory_space<vmem>>, vector<1x8x512xf32>
    %1388 = vector.shape_cast %1387 : vector<1x8x512xf32> to vector<8x512xf32>
    %1389 = vector.shape_cast %1386 : vector<8x512xf32> to vector<1x8x512xf32>
    tpu.vector_store %arg6[%c0_460, %c0_461, %c0_462], %1389 {strides = array<i32>} : memref<1x8x512xf32, #tpu.memory_space<vmem>>, vector<1x8x512xf32>,
    return
  }
  func.func @transform_0(%arg0: i32) -> (i32, i32) {
    %c0_i32 = arith.constant 0 : i32
    %c0_i32_0 = arith.constant 0 : i32
    %c0_i32_1 = arith.constant 0 : i32
    return %c0_i32, %c0_i32_0 : i32, i32
  }
  func.func @transform_1(%arg0: i32) -> (i32, i32, i32) {
    %c0_i32 = arith.constant 0 : i32
    %c0_i32_0 = arith.constant 0 : i32
    %c0_i32_1 = arith.constant 0 : i32
    return %arg0, %c0_i32, %c0_i32_0 : i32, i32, i32
  }
  func.func @transform_2(%arg0: i32) -> (i32, i32) {
    %c0_i32 = arith.constant 0 : i32
    %c0_i32_0 = arith.constant 0 : i32
    %c0_i32_1 = arith.constant 0 : i32
    return %c0_i32, %c0_i32_0 : i32, i32
  }
  func.func @transform_3(%arg0: i32) -> (i32, i32) {
    %c0_i32 = arith.constant 0 : i32
    %c0_i32_0 = arith.constant 0 : i32
    %c0_i32_1 = arith.constant 0 : i32
    return %c0_i32, %c0_i32_0 : i32, i32
  }
  func.func @transform_4(%arg0: i32) -> (i32, i32) {
    %c0_i32 = arith.constant 0 : i32
    %c0_i32_0 = arith.constant 0 : i32
    %c0_i32_1 = arith.constant 0 : i32
    return %c0_i32, %c0_i32_0 : i32, i32
  }
  func.func @transform_5(%arg0: i32) -> (i32, i32, i32) {
    %c0_i32 = arith.constant 0 : i32
    %c0_i32_0 = arith.constant 0 : i32
    %c0_i32_1 = arith.constant 0 : i32
    return %arg0, %c0_i32, %c0_i32_0 : i32, i32, i32
  }
}

</mosaic_0001>

<llo_original>
// kernel: tpu_custom_call.1
$region0: #{tpu_custom_call.1}
  #allocation0 [shape = 'u32[]', space=smem, size = 0x4, offset = 0x4, fixed_abs, tag = 'smem constant byte address 0x4 - core index']
  #allocation1 [shape = 'u32[144,128]{1,0:T(1,128)}', space=vmem, size = 0x12000, scoped, tag = 'internal scratch']
  #allocation2 [shape = 'f32[216,512]{1,0:T(8,128)}', space=vmem, size = 0x6c000, scoped, tag = 'scratch operand']
  %s0 = inlined_call_operand.hbm [shape: f32[4,512], index: 0, kind: input, shape index: {}]
  %s1 = inlined_call_operand.hbm [shape: f32[2,8,512], index: 1, kind: input, shape index: {}]
  %s2 = inlined_call_operand.hbm [shape: f32[8,216], index: 2, kind: input, shape index: {}]
  %s3 = inlined_call_operand.hbm [shape: f32[8,216], index: 3, kind: input, shape index: {}]
  %s4 = inlined_call_operand.vmem [shape: f32[8,8], index: 4, kind: input, shape index: {}]
  %s5 = inlined_call_operand.hbm [shape: f32[2,8,512], index: 5, kind: output, shape index: {}]
  %s6 = sld [smem:[#allocation0]]
  $region69: #{tpu_custom_call.1} parent=0
    _
  %s8 = ssub.s32 1, %s6
  %s9 = scalar_select 0, %s8, %s6
  $region1: #{tpu_custom_call.1} parent=0
    #allocation3 [shape = 'u8[8192]{0}', space=vmem, size = 0x2000, scoped, tag = 'input window, operand 0, single buffered']
    #allocation4 [shape = 's32[2]{0}', space=sflag, size = 0x8, scoped, tag = 'scoped memory for tpu_custom_call.1']
    #allocation5 [shape = 's32[2]{0}', space=sflag, size = 0x8, scoped, tag = 'scoped memory for tpu_custom_call.1']
    #allocation6 [shape = 'u8[32768]{0}', space=vmem, size = 0x8000, scoped, tag = 'input window, operand 1']
    #allocation7 [shape = 's32[2]{0}', space=sflag, size = 0x8, scoped, tag = 'scoped memory for tpu_custom_call.1']
    #allocation8 [shape = 'u8[8192]{0}', space=vmem, size = 0x2000, scoped, tag = 'input window, operand 2, single buffered']
    #allocation9 [shape = 'u8[8192]{0}', space=vmem, size = 0x2000, scoped, tag = 'input window, operand 3, single buffered']
    #allocation10 [shape = 's32[1]{0}', space=sflag, size = 0x4, scoped, tag = 'scoped memory for tpu_custom_call.1']
    #allocation11 [shape = 'u8[32768]{0}', space=vmem, size = 0x8000, scoped, tag = 'output window, operand 0']
    %10 = vsyncpa [#allocation4], 0
    %11 = vsyncpa [#allocation7], 0
    %s12 = scalar_lea.sflag [#allocation7], 1
    %13 = vsyncpa %s12, 0
    %14 = vsyncpa [#allocation10], 0
    %15 = vsyncpa [#allocation5], 0
    %s16 = scalar_lea.sflag [#allocation5], 1
    %17 = vsyncpa %s16, 0
    loop: start=0, step=1, limit=4
    $region2: #{tpu_custom_call.1} parent=1 // loop_pre_header
      _
    $region3: #{tpu_custom_call.1} parent=1 // loop_header
      %s19 = sphi 0, %s23
      %p20 = scmp.ge.s32.totalorder %s19, 4
      %s27 = sphi 0, %s27
      %s29 = sphi 0, %s27
      %s30 = sphi 0, %s29
      %s44 = sphi 0, %s30
      %s50 = sphi 0, %s52
      %s53 = sphi 0, %s50
      %s54 = sphi 0, %s53
      %s70 = sphi 0, %s54
      %s74 = sphi 0, %s74
      %s76 = sphi 0, %s74
      %s77 = sphi 0, %s76
      %s91 = sphi 0, %s77
      %s95 = sphi 0, %s95
      %s97 = sphi 0, %s95
      %s98 = sphi 0, %s97
      %s112 = sphi 0, %s98
      %s116 = sphi 0, %s116
      %s118 = sphi 0, %s116
      %s119 = sphi 0, %s118
      %s133 = sphi 0, %s119
      %s139 = sphi 0, %s141
      %s142 = sphi 0, %s139
      %s143 = sphi 0, %s142
      %s159 = sphi 0, %s143
    $region4: #{tpu_custom_call.1} parent=1 // loop_header_branch
      %22 = sbr.rel (%p20) target = $region8
    $region5: #{tpu_custom_call.1} parent=1 // loop_body
      %s24 = ssub.s32 %s19, 1
      %s25 = ssub.s32 %s19, 2
      %s26 = sadd.s32 %s19, 1
      %s28 = sadd.s32 %s27, 1
      %p31 = scmp.eq.s32.totalorder %s19, 1
      %p32 = scmp.ne.s32.totalorder %s27, %s29
      %p33 = scmp.eq.s32.totalorder %s19, 0
      %p34 = por %p32, %p33
      %p35 = scmp.ne.s32.totalorder %s27, %s29
      %p36 = scmp.eq.s32.totalorder %s24, 1
      %p37 = por %p35, %p36
      %p38 = scmp.ne.s32.totalorder %s29, %s30
      %p39 = scmp.eq.s32.totalorder %s24, 0
      %p40 = por %p38, %p39
      %p41 = scmp.ne.s32.totalorder %s29, %s30
      %p42 = scmp.eq.s32.totalorder %s25, 1
      %p43 = por %p41, %p42
      %p45 = scmp.ne.s32.totalorder %s30, %s44
      %p46 = scmp.eq.s32.totalorder %s25, 0
      %p47 = por %p45, %p46
      %s48 = ssub.s32 %s19, %s26
      %p49 = scmp.eq.s32.totalorder %s48, 0
      %s51 = sadd.s32 %s50, 1
      %s52 = scalar_select %p49, %s50, %s51
      %p55 = pneg %p49
      %p56 = scmp.eq.s32.totalorder %s19, 1
      %p57 = por %p55, %p56
      %p58 = scmp.ne.s32.totalorder %s50, %s53
      %p59 = scmp.eq.s32.totalorder %s19, 0
      %p60 = por %p58, %p59
      %p61 = scmp.ne.s32.totalorder %s50, %s53
      %p62 = scmp.eq.s32.totalorder %s24, 1
      %p63 = por %p61, %p62
      %p64 = scmp.ne.s32.totalorder %s53, %s54
      %p65 = scmp.eq.s32.totalorder %s24, 0
      %p66 = por %p64, %p65
      %p67 = scmp.ne.s32.totalorder %s53, %s54
      %p68 = scmp.eq.s32.totalorder %s25, 1
      %p69 = por %p67, %p68
      %p71 = scmp.ne.s32.totalorder %s54, %s70
      %p72 = scmp.eq.s32.totalorder %s25, 0
      %p73 = por %p71, %p72
      %s75 = sadd.s32 %s74, 1
      %p78 = scmp.eq.s32.totalorder %s19, 1
      %p79 = scmp.ne.s32.totalorder %s74, %s76
      %p80 = scmp.eq.s32.totalorder %s19, 0
      %p81 = por %p79, %p80
      %p82 = scmp.ne.s32.totalorder %s74, %s76
      %p83 = scmp.eq.s32.totalorder %s24, 1
      %p84 = por %p82, %p83
      %p85 = scmp.ne.s32.totalorder %s76, %s77
      %p86 = scmp.eq.s32.totalorder %s24, 0
      %p87 = por %p85, %p86
      %p88 = scmp.ne.s32.totalorder %s76, %s77
      %p89 = scmp.eq.s32.totalorder %s25, 1
      %p90 = por %p88, %p89
      %p92 = scmp.ne.s32.totalorder %s77, %s91
      %p93 = scmp.eq.s32.totalorder %s25, 0
      %p94 = por %p92, %p93
      %s96 = sadd.s32 %s95, 1
      %p99 = scmp.eq.s32.totalorder %s19, 1
      %p100 = scmp.ne.s32.totalorder %s95, %s97
      %p101 = scmp.eq.s32.totalorder %s19, 0
      %p102 = por %p100, %p101
      %p103 = scmp.ne.s32.totalorder %s95, %s97
      %p104 = scmp.eq.s32.totalorder %s24, 1
      %p105 = por %p103, %p104
      %p106 = scmp.ne.s32.totalorder %s97, %s98
      %p107 = scmp.eq.s32.totalorder %s24, 0
      %p108 = por %p106, %p107
      %p109 = scmp.ne.s32.totalorder %s97, %s98
      %p110 = scmp.eq.s32.totalorder %s25, 1
      %p111 = por %p109, %p110
      %p113 = scmp.ne.s32.totalorder %s98, %s112
      %p114 = scmp.eq.s32.totalorder %s25, 0
      %p115 = por %p113, %p114
      %s117 = sadd.s32 %s116, 1
      %p120 = scmp.eq.s32.totalorder %s19, 1
      %p121 = scmp.ne.s32.totalorder %s116, %s118
      %p122 = scmp.eq.s32.totalorder %s19, 0
      %p123 = por %p121, %p122
      %p124 = scmp.ne.s32.totalorder %s116, %s118
      %p125 = scmp.eq.s32.totalorder %s24, 1
      %p126 = por %p124, %p125
      %p127 = scmp.ne.s32.totalorder %s118, %s119
      %p128 = scmp.eq.s32.totalorder %s24, 0
      %p129 = por %p127, %p128
      %p130 = scmp.ne.s32.totalorder %s118, %s119
      %p131 = scmp.eq.s32.totalorder %s25, 1
      %p132 = por %p130, %p131
      %p134 = scmp.ne.s32.totalorder %s119, %s133
      %p135 = scmp.eq.s32.totalorder %s25, 0
      %p136 = por %p134, %p135
      %s137 = ssub.s32 %s19, %s26
      %p138 = scmp.eq.s32.totalorder %s137, 0
      %s140 = sadd.s32 %s139, 1
      %s141 = scalar_select %p138, %s139, %s140
      %p144 = pneg %p138
      %p145 = scmp.eq.s32.totalorder %s19, 1
      %p146 = por %p144, %p145
      %p147 = scmp.ne.s32.totalorder %s139, %s142
      %p148 = scmp.eq.s32.totalorder %s19, 0
      %p149 = por %p147, %p148
      %p150 = scmp.ne.s32.totalorder %s139, %s142
      %p151 = scmp.eq.s32.totalorder %s24, 1
      %p152 = por %p150, %p151
      %p153 = scmp.ne.s32.totalorder %s142, %s143
      %p154 = scmp.eq.s32.totalorder %s24, 0
      %p155 = por %p153, %p154
      %p156 = scmp.ne.s32.totalorder %s142, %s143
      %p157 = scmp.eq.s32.totalorder %s25, 1
      %p158 = por %p156, %p157
      %p160 = scmp.ne.s32.totalorder %s143, %s159
      %p161 = scmp.eq.s32.totalorder %s25, 0
      %p162 = por %p160, %p161
      %p163 = scmp.le.s32.totalorder 1, %s19
      %p164 = scmp.lt.s32.totalorder %s19, 3
      %p165 = pnand %p163, %p164
      %p166 = pneg %p165
      // Predicated region
      $region9: #{tpu_custom_call.1} parent=5 // pred_check
        _
      $region10: #{tpu_custom_call.1} parent=5 // pred_check_branch
        %168 = sbr.rel (%p165) target = $region12
      $region11: #{tpu_custom_call.1} parent=5 // pred_region
        %s169 = ssub.s32 %s19, 1
        // Predicated region
        $region13: #{tpu_custom_call.1} parent=11 // pred_check
          %p170 = pneg %p40
        $region14: #{tpu_custom_call.1} parent=11 // pred_check_branch
          %172 = sbr.rel (%p170) target = $region16
        $region15: #{tpu_custom_call.1} parent=11 // pred_region
          %s174 = ssub.s32 256, 256
          %175 = vsyncadd [#allocation4], %s174
          %s177 = sshll.u32 [#allocation3], 4
          %s178 = int_to_ptr.vmem [resolvable:$true] %s177
          %180 = dma.hbm_to_vmem [thread:$0]  %s0, 256, %s178, [#allocation4]
        $region16: #{tpu_custom_call.1} parent=11 // pred_fallthru
          _
        // Predicated region
        $region17: #{tpu_custom_call.1} parent=11 // pred_check
          %p181 = pneg %p87
        $region18: #{tpu_custom_call.1} parent=11 // pred_check_branch
          %183 = sbr.rel (%p181) target = $region20
        $region19: #{tpu_custom_call.1} parent=11 // pred_region
          %s185 = ssub.s32 256, 256
          %186 = vsyncadd [#allocation7], %s185
          %s188 = sshll.u32 [#allocation8], 4
          %s189 = int_to_ptr.vmem [resolvable:$true] %s188
          %191 = dma.hbm_to_vmem [thread:$0]  %s2, 256, %s189, [#allocation7]
        $region20: #{tpu_custom_call.1} parent=11 // pred_fallthru
          _
        // Predicated region
        $region21: #{tpu_custom_call.1} parent=11 // pred_check
          %p192 = pneg %p108
        $region22: #{tpu_custom_call.1} parent=11 // pred_check_branch
          %194 = sbr.rel (%p192) target = $region24
        $region23: #{tpu_custom_call.1} parent=11 // pred_region
          %s196 = ssub.s32 256, 256
          %197 = vsyncadd [#allocation10], %s196
          %s199 = sshll.u32 [#allocation9], 4
          %s200 = int_to_ptr.vmem [resolvable:$true] %s199
          %202 = dma.hbm_to_vmem [thread:$0]  %s3, 256, %s200, [#allocation10]
        $region24: #{tpu_custom_call.1} parent=11 // pred_fallthru
          _
        // Predicated region
        $region25: #{tpu_custom_call.1} parent=11 // pred_check
          %p203 = pneg %p129
        $region26: #{tpu_custom_call.1} parent=11 // pred_check_branch
          %205 = sbr.rel (%p203) target = $region28
        $region27: #{tpu_custom_call.1} parent=11 // pred_region
          _
        $region28: #{tpu_custom_call.1} parent=11 // pred_fallthru
          _
      $region12: #{tpu_custom_call.1} parent=5 // pred_fallthru
        _
      %p206 = scmp.lt.s32.totalorder %s19, 2
      // Predicated region
      $region29: #{tpu_custom_call.1} parent=5 // pred_check
        %p207 = pneg %p206
      $region30: #{tpu_custom_call.1} parent=5 // pred_check_branch
        %209 = sbr.rel (%p207) target = $region32
      $region31: #{tpu_custom_call.1} parent=5 // pred_region
        // Predicated region
        $region33: #{tpu_custom_call.1} parent=31 // pred_check
          %p210 = pneg %p60
        $region34: #{tpu_custom_call.1} parent=31 // pred_check_branch
          %212 = sbr.rel (%p210) target = $region36
        $region35: #{tpu_custom_call.1} parent=31 // pred_region
          %s213 = sand.u32 %s19, 1
          %s214 = scalar_lea.sflag [#allocation7], %s213
          %s215 = sand.u32 %s50, 1
          %s216 = smul.addr %s215, 32
          %s217 = scalar_lea.vmem [#allocation6], %s216
          %s219 = ssub.s32 512, 512
          %220 = vsyncadd %s214, %s219
          %s221 = smul.addr %s19, 4
          %s222 = smul.addr %s221, 128
          %s223 = scalar_lea.hbm %s1, %s222
          %s225 = sshll.u32 %s217, 4
          %s226 = int_to_ptr.vmem [resolvable:$true] %s225
          %228 = dma.hbm_to_vmem [thread:$0]  %s223, 512, %s226, %s214
        $region36: #{tpu_custom_call.1} parent=31 // pred_fallthru
          _
      $region32: #{tpu_custom_call.1} parent=5 // pred_fallthru
        _
      %p229 = scmp.le.s32.totalorder 1, %s19
      %p230 = scmp.lt.s32.totalorder %s19, 3
      %p231 = pnand %p229, %p230
      %p232 = pneg %p231
      // Predicated region
      $region37: #{tpu_custom_call.1} parent=5 // pred_check
        _
      $region38: #{tpu_custom_call.1} parent=5 // pred_check_branch
        %234 = sbr.rel (%p231) target = $region40
      $region39: #{tpu_custom_call.1} parent=5 // pred_region
        %s235 = ssub.s32 %s19, 1
        // Predicated region
        $region41: #{tpu_custom_call.1} parent=39 // pred_check
          %p236 = pneg %p40
        $region42: #{tpu_custom_call.1} parent=39 // pred_check_branch
          %238 = sbr.rel (%p236) target = $region44
        $region43: #{tpu_custom_call.1} parent=39 // pred_region
          %239 = dma.done [#allocation4], 256
        $region44: #{tpu_custom_call.1} parent=39 // pred_fallthru
          _
        %s240 = sand.u32 %s24, 1
        %s241 = scalar_lea.sflag [#allocation7], %s240
        %s242 = sand.u32 %s53, 1
        %s243 = smul.addr %s242, 32
        %s244 = scalar_lea.vmem [#allocation6], %s243
        // Predicated region
        $region45: #{tpu_custom_call.1} parent=39 // pred_check
          %p245 = pneg %p66
        $region46: #{tpu_custom_call.1} parent=39 // pred_check_branch
          %247 = sbr.rel (%p245) target = $region48
        $region47: #{tpu_custom_call.1} parent=39 // pred_region
          %248 = dma.done %s241, 512
        $region48: #{tpu_custom_call.1} parent=39 // pred_fallthru
          _
        // Predicated region
        $region49: #{tpu_custom_call.1} parent=39 // pred_check
          %p249 = pneg %p87
        $region50: #{tpu_custom_call.1} parent=39 // pred_check_branch
          %251 = sbr.rel (%p249) target = $region52
        $region51: #{tpu_custom_call.1} parent=39 // pred_region
          %252 = dma.done [#allocation7], 256
        $region52: #{tpu_custom_call.1} parent=39 // pred_fallthru
          _
        // Predicated region
        $region53: #{tpu_custom_call.1} parent=39 // pred_check
          %p253 = pneg %p108
        $region54: #{tpu_custom_call.1} parent=39 // pred_check_branch
          %255 = sbr.rel (%p253) target = $region56
        $region55: #{tpu_custom_call.1} parent=39 // pred_region
          %256 = dma.done [#allocation10], 256
        $region56: #{tpu_custom_call.1} parent=39 // pred_fallthru
          _
        %p257 = pneg %p40
        %p258 = pneg %p37
        %s259 = sand.u32 %s24, 1
        %s260 = scalar_lea.sflag [#allocation7], %s259
        %s261 = sand.u32 %s53, 1
        %s262 = smul.addr %s261, 32
        %s263 = scalar_lea.vmem [#allocation6], %s262
        %p264 = pneg %p66
        %p265 = pneg %p63
        %p266 = pneg %p87
        %p267 = pneg %p84
        %p268 = pneg %p108
        %p269 = pneg %p105
        %p270 = pneg %p129
        %p271 = pneg %p126
        %p272 = pneg %p155
        %p273 = pneg %p152
        %s274 = sand.u32 %s142, 1
        %s275 = scalar_lea.sflag [#allocation5], %s274
        %s276 = sand.u32 %s142, 1
        %s277 = smul.addr %s276, 32
        %s278 = scalar_lea.vmem [#allocation11], %s277
        %v279 = vld [vmem:[#allocation3] ss:$4 sm:$0xf]
        %s280 = scalar_lea.vmem [#allocation3], 1
        %v281 = vld [vmem:[%s280] ss:$4 sm:$0xf]
        %s282 = scalar_lea.vmem [#allocation3], 2
        %v283 = vld [vmem:[%s282] ss:$4 sm:$0xf]
        %s284 = scalar_lea.vmem [#allocation3], 3
        %v285 = vld [vmem:[%s284] ss:$4 sm:$0xf]
        %v286 = vld [vmem:[%s244] sm:$0xff]
        %v287 = vld [vmem:[%s244 + $0x8] sm:$0xff]
        %v288 = vld [vmem:[%s244 + $0x10] sm:$0xff]
        %v289 = vld [vmem:[%s244 + $0x18] sm:$0xff]
        %v290 = vld [vmem:[#allocation8] sm:$0xff]
        %v291 = vld [vmem:[#allocation8 + $0x8] sm:$0xff]
        %292 = vrot.lane.b32.xlu0 %v286, 55
        %v293 = vpop.permute.xlu0 %292
        %294 = vrot.lane.b32.xlu0 %v287, 55
        %v295 = vpop.permute.xlu0 %294
        %296 = vrot.lane.b32.xlu0 %v288, 55
        %v297 = vpop.permute.xlu0 %296
        %298 = vrot.lane.b32.xlu0 %v289, 55
        %v299 = vpop.permute.xlu0 %298
        %v300 = vlaneseq
        %v301 = vand.u32 %v300, 127
        %vm302 = vcmp.lt.s32.totalorder %v301, 55
        %v303 = vsel %vm302, %v297, %v299
        %v304 = vsel %vm302, %v295, %v297
        %v305 = vsel %vm302, %v293, %v295
        %v306 = vsel %vm302, %v299, %v293
        %307 = vrot.lane.b32.xlu0 %v286, 73
        %v308 = vpop.permute.xlu0 %307
        %309 = vrot.lane.b32.xlu0 %v287, 73
        %v310 = vpop.permute.xlu0 %309
        %311 = vrot.lane.b32.xlu0 %v288, 73
        %v312 = vpop.permute.xlu0 %311
        %313 = vrot.lane.b32.xlu0 %v289, 73
        %v314 = vpop.permute.xlu0 %313
        %vm315 = vcmp.lt.s32.totalorder %v301, 73
        %v316 = vsel %vm315, %v312, %v314
        %v317 = vsel %vm315, %v310, %v312
        %v318 = vsel %vm315, %v308, %v310
        %v319 = vsel %vm315, %v314, %v308
        %v321 = vlaneseq
        %v322 = vshrl.u32 %v321, 7
        %v323 = vsub.s32 0, %v322
        %v324 = vrot.slane %v279, %v323
        %v325 = vlaneseq
        %v326 = vshrl.u32 %v325, 7
        %v327 = vsub.s32 1, %v326
        %v328 = vrot.slane %v279, %v327
        %v329 = vlaneseq
        %v330 = vshrl.u32 %v329, 7
        %v331 = vsub.s32 2, %v330
        %v332 = vrot.slane %v279, %v331
        %v333 = vlaneseq
        %v334 = vshrl.u32 %v333, 7
        %v335 = vsub.s32 3, %v334
        %v336 = vrot.slane %v279, %v335
        %341 = vrot.lane.b32.xlu0 %v324, 55
        %v342 = vpop.permute.xlu0 %341
        %343 = vrot.lane.b32.xlu0 %v328, 55
        %v344 = vpop.permute.xlu0 %343
        %345 = vrot.lane.b32.xlu0 %v332, 55
        %v346 = vpop.permute.xlu0 %345
        %347 = vrot.lane.b32.xlu0 %v336, 55
        %v348 = vpop.permute.xlu0 %347
        %v349 = vsel %vm302, %v346, %v348
        %v350 = vsel %vm302, %v344, %v346
        %v351 = vsel %vm302, %v342, %v344
        %v352 = vsel %vm302, %v348, %v342
        %v353 = vadd.f32 %v279, -73.0
        %v355 = vlaneseq
        %v356 = vshrl.u32 %v355, 7
        %v357 = vsub.s32 0, %v356
        %v358 = vrot.slane %v353, %v357
        %v359 = vlaneseq
        %v360 = vshrl.u32 %v359, 7
        %v361 = vsub.s32 1, %v360
        %v362 = vrot.slane %v353, %v361
        %v363 = vlaneseq
        %v364 = vshrl.u32 %v363, 7
        %v365 = vsub.s32 2, %v364
        %v366 = vrot.slane %v353, %v365
        %v367 = vlaneseq
        %v368 = vshrl.u32 %v367, 7
        %v369 = vsub.s32 3, %v368
        %v370 = vrot.slane %v353, %v369
        %vm375 = vcmp.eq.f32.partialorder %v351, %v358
        %vm376 = vcmp.eq.f32.partialorder %v350, %v362
        %vm377 = vcmp.eq.f32.partialorder %v349, %v366
        %vm378 = vcmp.eq.f32.partialorder %v352, %v370
        %v379 = vsel %vm375, 1, 0
        %v380 = vsel %vm376, 1, 0
        %v381 = vsel %vm377, 1, 0
        %v382 = vsel %vm378, 1, 0
        %v383 = vcvt.s32.f32 %v379
        %v384 = vcvt.s32.f32 %v380
        %v385 = vcvt.s32.f32 %v381
        %v386 = vcvt.s32.f32 %v382
        %v387 = vlaneseq
        %v388 = vshrl.u32 %v387, 7
        %v389 = vsub.s32 0, %v388
        %v390 = vrot.slane %v383, %v389
        %v391 = vlaneseq
        %v392 = vshrl.u32 %v391, 7
        %v393 = vsub.s32 0, %v392
        %v394 = vrot.slane %v384, %v393
        %v395 = vlaneseq
        %v396 = vshrl.u32 %v395, 7
        %v397 = vsub.s32 0, %v396
        %v398 = vrot.slane %v385, %v397
        %v399 = vlaneseq
        %v400 = vshrl.u32 %v399, 7
        %v401 = vsub.s32 0, %v400
        %v402 = vrot.slane %v386, %v401
        %v403 = vmul.f32 %v305, %v390
        %v404 = vmul.f32 %v304, %v394
        %v405 = vmul.f32 %v303, %v398
        %v406 = vmul.f32 %v306, %v402
        %v407 = vsub.f32 1.0, %v383
        %v408 = vsub.f32 1.0, %v384
        %v409 = vsub.f32 1.0, %v385
        %v410 = vsub.f32 1.0, %v386
        %v411 = vlaneseq
        %v412 = vshrl.u32 %v411, 7
        %v413 = vsub.s32 0, %v412
        %v414 = vrot.slane %v407, %v413
        %v415 = vlaneseq
        %v416 = vshrl.u32 %v415, 7
        %v417 = vsub.s32 0, %v416
        %v418 = vrot.slane %v408, %v417
        %v419 = vlaneseq
        %v420 = vshrl.u32 %v419, 7
        %v421 = vsub.s32 0, %v420
        %v422 = vrot.slane %v409, %v421
        %v423 = vlaneseq
        %v424 = vshrl.u32 %v423, 7
        %v425 = vsub.s32 0, %v424
        %v426 = vrot.slane %v410, %v425
        %v427 = vmul.f32 %v319, %v414
        %v428 = vmul.f32 %v318, %v418
        %v429 = vmul.f32 %v317, %v422
        %v430 = vmul.f32 %v316, %v426
        %v431 = vadd.f32 %v403, %v427
        %v432 = vadd.f32 %v404, %v428
        %v433 = vadd.f32 %v405, %v429
        %v434 = vadd.f32 %v406, %v430
        %vm435 = vcmp.ge.f32.partialorder %v281, 1.0
        %vm436 = vcmp.ge.f32.partialorder %v283, 1.0
        %vm437 = vcmp.ge.f32.partialorder %v285, 1.0
        %vm438 = vmand %vm435, %vm436
        %vm439 = vmand %vm438, %vm437
        %v440 = vsel %vm439, 1, 0
        %v441 = vcvt.s32.f32 %v440
        %v443 = vlaneseq
        %v444 = vshrl.u32 %v443, 7
        %v445 = vsub.s32 0, %v444
        %v446 = vrot.slane %v441, %v445
        %v447 = vlaneseq
        %v448 = vshrl.u32 %v447, 7
        %v449 = vsub.s32 1, %v448
        %v450 = vrot.slane %v441, %v449
        %v451 = vlaneseq
        %v452 = vshrl.u32 %v451, 7
        %v453 = vsub.s32 2, %v452
        %v454 = vrot.slane %v441, %v453
        %v455 = vlaneseq
        %v456 = vshrl.u32 %v455, 7
        %v457 = vsub.s32 3, %v456
        %v458 = vrot.slane %v441, %v457
        %v463 = vmul.f32 %v431, %v446
        %v464 = vmul.f32 %v432, %v450
        %v465 = vmul.f32 %v433, %v454
        %v466 = vmul.f32 %v434, %v458
        %467 = vst [vmem:[#allocation2] sm:$0xff] %v463
        %468 = vst [vmem:[#allocation2 + $0x8] sm:$0xff] %v464
        %469 = vst [vmem:[#allocation2 + $0x10] sm:$0xff] %v465
        %470 = vst [vmem:[#allocation2 + $0x18] sm:$0xff] %v466
        %471 = vrot.lane.b32.xlu0 %v286, 56
        %v472 = vpop.permute.xlu0 %471
        %473 = vrot.lane.b32.xlu0 %v287, 56
        %v474 = vpop.permute.xlu0 %473
        %475 = vrot.lane.b32.xlu0 %v288, 56
        %v476 = vpop.permute.xlu0 %475
        %477 = vrot.lane.b32.xlu0 %v289, 56
        %v478 = vpop.permute.xlu0 %477
        %vm479 = vcmp.lt.s32.totalorder %v301, 56
        %v480 = vsel %vm479, %v476, %v478
        %v481 = vsel %vm479, %v474, %v476
        %v482 = vsel %vm479, %v472, %v474
        %v483 = vsel %vm479, %v478, %v472
        %484 = vrot.lane.b32.xlu0 %v286, 72
        %v485 = vpop.permute.xlu0 %484
        %486 = vrot.lane.b32.xlu0 %v287, 72
        %v487 = vpop.permute.xlu0 %486
        %488 = vrot.lane.b32.xlu0 %v288, 72
        %v489 = vpop.permute.xlu0 %488
        %490 = vrot.lane.b32.xlu0 %v289, 72
        %v491 = vpop.permute.xlu0 %490
        %vm492 = vcmp.lt.s32.totalorder %v301, 72
        %v493 = vsel %vm492, %v489, %v491
        %v494 = vsel %vm492, %v487, %v489
        %v495 = vsel %vm492, %v485, %v487
        %v496 = vsel %vm492, %v491, %v485
        %497 = vrot.lane.b32.xlu0 %v324, 56
        %v498 = vpop.permute.xlu0 %497
        %499 = vrot.lane.b32.xlu0 %v328, 56
        %v500 = vpop.permute.xlu0 %499
        %501 = vrot.lane.b32.xlu0 %v332, 56
        %v502 = vpop.permute.xlu0 %501
        %503 = vrot.lane.b32.xlu0 %v336, 56
        %v504 = vpop.permute.xlu0 %503
        %v505 = vsel %vm479, %v502, %v504
        %v506 = vsel %vm479, %v500, %v502
        %v507 = vsel %vm479, %v498, %v500
        %v508 = vsel %vm479, %v504, %v498
        %v509 = vadd.f32 %v279, -72.0
        %v511 = vlaneseq
        %v512 = vshrl.u32 %v511, 7
        %v513 = vsub.s32 0, %v512
        %v514 = vrot.slane %v509, %v513
        %v515 = vlaneseq
        %v516 = vshrl.u32 %v515, 7
        %v517 = vsub.s32 1, %v516
        %v518 = vrot.slane %v509, %v517
        %v519 = vlaneseq
        %v520 = vshrl.u32 %v519, 7
        %v521 = vsub.s32 2, %v520
        %v522 = vrot.slane %v509, %v521
        %v523 = vlaneseq
        %v524 = vshrl.u32 %v523, 7
        %v525 = vsub.s32 3, %v524
        %v526 = vrot.slane %v509, %v525
        %vm531 = vcmp.eq.f32.partialorder %v507, %v514
        %vm532 = vcmp.eq.f32.partialorder %v506, %v518
        %vm533 = vcmp.eq.f32.partialorder %v505, %v522
        %vm534 = vcmp.eq.f32.partialorder %v508, %v526
        %v535 = vsel %vm531, 1, 0
        %v536 = vsel %vm532, 1, 0
        %v537 = vsel %vm533, 1, 0
        %v538 = vsel %vm534, 1, 0
        %v539 = vcvt.s32.f32 %v535
        %v540 = vcvt.s32.f32 %v536
        %v541 = vcvt.s32.f32 %v537
        %v542 = vcvt.s32.f32 %v538
        %v543 = vlaneseq
        %v544 = vshrl.u32 %v543, 7
        %v545 = vsub.s32 0, %v544
        %v546 = vrot.slane %v539, %v545
        %v547 = vlaneseq
        %v548 = vshrl.u32 %v547, 7
        %v549 = vsub.s32 0, %v548
        %v550 = vrot.slane %v540, %v549
        %v551 = vlaneseq
        %v552 = vshrl.u32 %v551, 7
        %v553 = vsub.s32 0, %v552
        %v554 = vrot.slane %v541, %v553
        %v555 = vlaneseq
        %v556 = vshrl.u32 %v555, 7
        %v557 = vsub.s32 0, %v556
        %v558 = vrot.slane %v542, %v557
        %v559 = vmul.f32 %v482, %v546
        %v560 = vmul.f32 %v481, %v550
        %v561 = vmul.f32 %v480, %v554
        %v562 = vmul.f32 %v483, %v558
        %v563 = vsub.f32 1.0, %v539
        %v564 = vsub.f32 1.0, %v540
        %v565 = vsub.f32 1.0, %v541
        %v566 = vsub.f32 1.0, %v542
        %v567 = vlaneseq
        %v568 = vshrl.u32 %v567, 7
        %v569 = vsub.s32 0, %v568
        %v570 = vrot.slane %v563, %v569
        %v571 = vlaneseq
        %v572 = vshrl.u32 %v571, 7
        %v573 = vsub.s32 0, %v572
        %v574 = vrot.slane %v564, %v573
        %v575 = vlaneseq
        %v576 = vshrl.u32 %v575, 7
        %v577 = vsub.s32 0, %v576
        %v578 = vrot.slane %v565, %v577
        %v579 = vlaneseq
        %v580 = vshrl.u32 %v579, 7
        %v581 = vsub.s32 0, %v580
        %v582 = vrot.slane %v566, %v581
        %v583 = vmul.f32 %v496, %v570
        %v584 = vmul.f32 %v495, %v574
        %v585 = vmul.f32 %v494, %v578
        %v586 = vmul.f32 %v493, %v582
        %v587 = vadd.f32 %v559, %v583
        %v588 = vadd.f32 %v560, %v584
        %v589 = vadd.f32 %v561, %v585
        %v590 = vadd.f32 %v562, %v586
        %v591 = vsel %vm438, 1, 0
        %v592 = vcvt.s32.f32 %v591
        %v594 = vlaneseq
        %v595 = vshrl.u32 %v594, 7
        %v596 = vsub.s32 0, %v595
        %v597 = vrot.slane %v592, %v596
        %v598 = vlaneseq
        %v599 = vshrl.u32 %v598, 7
        %v600 = vsub.s32 1, %v599
        %v601 = vrot.slane %v592, %v600
        %v602 = vlaneseq
        %v603 = vshrl.u32 %v602, 7
        %v604 = vsub.s32 2, %v603
        %v605 = vrot.slane %v592, %v604
        %v606 = vlaneseq
        %v607 = vshrl.u32 %v606, 7
        %v608 = vsub.s32 3, %v607
        %v609 = vrot.slane %v592, %v608
        %v614 = vmul.f32 %v587, %v597
        %v615 = vmul.f32 %v588, %v601
        %v616 = vmul.f32 %v589, %v605
        %v617 = vmul.f32 %v590, %v609
        %618 = vst [vmem:[#allocation2 + $0x20] sm:$0xff] %v614
        %619 = vst [vmem:[#allocation2 + $0x28] sm:$0xff] %v615
        %620 = vst [vmem:[#allocation2 + $0x30] sm:$0xff] %v616
        %621 = vst [vmem:[#allocation2 + $0x38] sm:$0xff] %v617
        %622 = vrot.lane.b32.xlu0 %v286, 57
        %v623 = vpop.permute.xlu0 %622
        %624 = vrot.lane.b32.xlu0 %v287, 57
        %v625 = vpop.permute.xlu0 %624
        %626 = vrot.lane.b32.xlu0 %v288, 57
        %v627 = vpop.permute.xlu0 %626
        %628 = vrot.lane.b32.xlu0 %v289, 57
        %v629 = vpop.permute.xlu0 %628
        %vm630 = vcmp.lt.s32.totalorder %v301, 57
        %v631 = vsel %vm630, %v627, %v629
        %v632 = vsel %vm630, %v625, %v627
        %v633 = vsel %vm630, %v623, %v625
        %v634 = vsel %vm630, %v629, %v623
        %635 = vrot.lane.b32.xlu0 %v286, 71
        %v636 = vpop.permute.xlu0 %635
        %637 = vrot.lane.b32.xlu0 %v287, 71
        %v638 = vpop.permute.xlu0 %637
        %639 = vrot.lane.b32.xlu0 %v288, 71
        %v640 = vpop.permute.xlu0 %639
        %641 = vrot.lane.b32.xlu0 %v289, 71
        %v642 = vpop.permute.xlu0 %641
        %vm643 = vcmp.lt.s32.totalorder %v301, 71
        %v644 = vsel %vm643, %v640, %v642
        %v645 = vsel %vm643, %v638, %v640
        %v646 = vsel %vm643, %v636, %v638
        %v647 = vsel %vm643, %v642, %v636
        %648 = vrot.lane.b32.xlu0 %v324, 57
        %v649 = vpop.permute.xlu0 %648
        %650 = vrot.lane.b32.xlu0 %v328, 57
        %v651 = vpop.permute.xlu0 %650
        %652 = vrot.lane.b32.xlu0 %v332, 57
        %v653 = vpop.permute.xlu0 %652
        %654 = vrot.lane.b32.xlu0 %v336, 57
        %v655 = vpop.permute.xlu0 %654
        %v656 = vsel %vm630, %v653, %v655
        %v657 = vsel %vm630, %v651, %v653
        %v658 = vsel %vm630, %v649, %v651
        %v659 = vsel %vm630, %v655, %v649
        %v660 = vadd.f32 %v279, -71.0
        %v662 = vlaneseq
        %v663 = vshrl.u32 %v662, 7
        %v664 = vsub.s32 0, %v663
        %v665 = vrot.slane %v660, %v664
        %v666 = vlaneseq
        %v667 = vshrl.u32 %v666, 7
        %v668 = vsub.s32 1, %v667
        %v669 = vrot.slane %v660, %v668
        %v670 = vlaneseq
        %v671 = vshrl.u32 %v670, 7
        %v672 = vsub.s32 2, %v671
        %v673 = vrot.slane %v660, %v672
        %v674 = vlaneseq
        %v675 = vshrl.u32 %v674, 7
        %v676 = vsub.s32 3, %v675
        %v677 = vrot.slane %v660, %v676
        %vm682 = vcmp.eq.f32.partialorder %v658, %v665
        %vm683 = vcmp.eq.f32.partialorder %v657, %v669
        %vm684 = vcmp.eq.f32.partialorder %v656, %v673
        %vm685 = vcmp.eq.f32.partialorder %v659, %v677
        %v686 = vsel %vm682, 1, 0
        %v687 = vsel %vm683, 1, 0
        %v688 = vsel %vm684, 1, 0
        %v689 = vsel %vm685, 1, 0
        %v690 = vcvt.s32.f32 %v686
        %v691 = vcvt.s32.f32 %v687
        %v692 = vcvt.s32.f32 %v688
        %v693 = vcvt.s32.f32 %v689
        %v694 = vlaneseq
        %v695 = vshrl.u32 %v694, 7
        %v696 = vsub.s32 0, %v695
        %v697 = vrot.slane %v690, %v696
        %v698 = vlaneseq
        %v699 = vshrl.u32 %v698, 7
        %v700 = vsub.s32 0, %v699
        %v701 = vrot.slane %v691, %v700
        %v702 = vlaneseq
        %v703 = vshrl.u32 %v702, 7
        %v704 = vsub.s32 0, %v703
        %v705 = vrot.slane %v692, %v704
        %v706 = vlaneseq
        %v707 = vshrl.u32 %v706, 7
        %v708 = vsub.s32 0, %v707
        %v709 = vrot.slane %v693, %v708
        %v710 = vmul.f32 %v633, %v697
        %v711 = vmul.f32 %v632, %v701
        %v712 = vmul.f32 %v631, %v705
        %v713 = vmul.f32 %v634, %v709
        %v714 = vsub.f32 1.0, %v690
        %v715 = vsub.f32 1.0, %v691
        %v716 = vsub.f32 1.0, %v692
        %v717 = vsub.f32 1.0, %v693
        %v718 = vlaneseq
        %v719 = vshrl.u32 %v718, 7
        %v720 = vsub.s32 0, %v719
        %v721 = vrot.slane %v714, %v720
        %v722 = vlaneseq
        %v723 = vshrl.u32 %v722, 7
        %v724 = vsub.s32 0, %v723
        %v725 = vrot.slane %v715, %v724
        %v726 = vlaneseq
        %v727 = vshrl.u32 %v726, 7
        %v728 = vsub.s32 0, %v727
        %v729 = vrot.slane %v716, %v728
        %v730 = vlaneseq
        %v731 = vshrl.u32 %v730, 7
        %v732 = vsub.s32 0, %v731
        %v733 = vrot.slane %v717, %v732
        %v734 = vmul.f32 %v647, %v721
        %v735 = vmul.f32 %v646, %v725
        %v736 = vmul.f32 %v645, %v729
        %v737 = vmul.f32 %v644, %v733
        %v738 = vadd.f32 %v710, %v734
        %v739 = vadd.f32 %v711, %v735
        %v740 = vadd.f32 %v712, %v736
        %v741 = vadd.f32 %v713, %v737
        %vm742 = vcmp.le.f32.partialorder %v285, 6.0
        %vm743 = vmand %vm438, %vm742
        %v744 = vsel %vm743, 1, 0
        %v745 = vcvt.s32.f32 %v744
        %v747 = vlaneseq
        %v748 = vshrl.u32 %v747, 7
        %v749 = vsub.s32 0, %v748
        %v750 = vrot.slane %v745, %v749
        %v751 = vlaneseq
        %v752 = vshrl.u32 %v751, 7
        %v753 = vsub.s32 1, %v752
        %v754 = vrot.slane %v745, %v753
        %v755 = vlaneseq
        %v756 = vshrl.u32 %v755, 7
        %v757 = vsub.s32 2, %v756
        %v758 = vrot.slane %v745, %v757
        %v759 = vlaneseq
        %v760 = vshrl.u32 %v759, 7
        %v761 = vsub.s32 3, %v760
        %v762 = vrot.slane %v745, %v761
        %v767 = vmul.f32 %v738, %v750
        %v768 = vmul.f32 %v739, %v754
        %v769 = vmul.f32 %v740, %v758
        %v770 = vmul.f32 %v741, %v762
        %771 = vst [vmem:[#allocation2 + $0x40] sm:$0xff] %v767
        %772 = vst [vmem:[#allocation2 + $0x48] sm:$0xff] %v768
        %773 = vst [vmem:[#allocation2 + $0x50] sm:$0xff] %v769
        %774 = vst [vmem:[#allocation2 + $0x58] sm:$0xff] %v770
        %775 = vrot.lane.b32.xlu0 %v286, 63
        %v776 = vpop.permute.xlu0 %775
        %777 = vrot.lane.b32.xlu0 %v287, 63
        %v778 = vpop.permute.xlu0 %777
        %779 = vrot.lane.b32.xlu0 %v288, 63
        %v780 = vpop.permute.xlu0 %779
        %781 = vrot.lane.b32.xlu0 %v289, 63
        %v782 = vpop.permute.xlu0 %781
        %vm783 = vcmp.lt.s32.totalorder %v301, 63
        %v784 = vsel %vm783, %v780, %v782
        %v785 = vsel %vm783, %v778, %v780
        %v786 = vsel %vm783, %v776, %v778
        %v787 = vsel %vm783, %v782, %v776
        %788 = vrot.lane.b32.xlu0 %v286, 65
        %v789 = vpop.permute.xlu0 %788
        %790 = vrot.lane.b32.xlu0 %v287, 65
        %v791 = vpop.permute.xlu0 %790
        %792 = vrot.lane.b32.xlu0 %v288, 65
        %v793 = vpop.permute.xlu0 %792
        %794 = vrot.lane.b32.xlu0 %v289, 65
        %v795 = vpop.permute.xlu0 %794
        %vm796 = vcmp.lt.s32.totalorder %v301, 65
        %v797 = vsel %vm796, %v793, %v795
        %v798 = vsel %vm796, %v791, %v793
        %v799 = vsel %vm796, %v789, %v791
        %v800 = vsel %vm796, %v795, %v789
        %801 = vrot.lane.b32.xlu0 %v324, 63
        %v802 = vpop.permute.xlu0 %801
        %803 = vrot.lane.b32.xlu0 %v328, 63
        %v804 = vpop.permute.xlu0 %803
        %805 = vrot.lane.b32.xlu0 %v332, 63
        %v806 = vpop.permute.xlu0 %805
        %807 = vrot.lane.b32.xlu0 %v336, 63
        %v808 = vpop.permute.xlu0 %807
        %v809 = vsel %vm783, %v806, %v808
        %v810 = vsel %vm783, %v804, %v806
        %v811 = vsel %vm783, %v802, %v804
        %v812 = vsel %vm783, %v808, %v802
        %v813 = vadd.f32 %v279, -65.0
        %v815 = vlaneseq
        %v816 = vshrl.u32 %v815, 7
        %v817 = vsub.s32 0, %v816
        %v818 = vrot.slane %v813, %v817
        %v819 = vlaneseq
        %v820 = vshrl.u32 %v819, 7
        %v821 = vsub.s32 1, %v820
        %v822 = vrot.slane %v813, %v821
        %v823 = vlaneseq
        %v824 = vshrl.u32 %v823, 7
        %v825 = vsub.s32 2, %v824
        %v826 = vrot.slane %v813, %v825
        %v827 = vlaneseq
        %v828 = vshrl.u32 %v827, 7
        %v829 = vsub.s32 3, %v828
        %v830 = vrot.slane %v813, %v829
        %vm835 = vcmp.eq.f32.partialorder %v811, %v818
        %vm836 = vcmp.eq.f32.partialorder %v810, %v822
        %vm837 = vcmp.eq.f32.partialorder %v809, %v826
        %vm838 = vcmp.eq.f32.partialorder %v812, %v830
        %v839 = vsel %vm835, 1, 0
        %v840 = vsel %vm836, 1, 0
        %v841 = vsel %vm837, 1, 0
        %v842 = vsel %vm838, 1, 0
        %v843 = vcvt.s32.f32 %v839
        %v844 = vcvt.s32.f32 %v840
        %v845 = vcvt.s32.f32 %v841
        %v846 = vcvt.s32.f32 %v842
        %v847 = vlaneseq
        %v848 = vshrl.u32 %v847, 7
        %v849 = vsub.s32 0, %v848
        %v850 = vrot.slane %v843, %v849
        %v851 = vlaneseq
        %v852 = vshrl.u32 %v851, 7
        %v853 = vsub.s32 0, %v852
        %v854 = vrot.slane %v844, %v853
        %v855 = vlaneseq
        %v856 = vshrl.u32 %v855, 7
        %v857 = vsub.s32 0, %v856
        %v858 = vrot.slane %v845, %v857
        %v859 = vlaneseq
        %v860 = vshrl.u32 %v859, 7
        %v861 = vsub.s32 0, %v860
        %v862 = vrot.slane %v846, %v861
        %v863 = vmul.f32 %v786, %v850
        %v864 = vmul.f32 %v785, %v854
        %v865 = vmul.f32 %v784, %v858
        %v866 = vmul.f32 %v787, %v862
        %v867 = vsub.f32 1.0, %v843
        %v868 = vsub.f32 1.0, %v844
        %v869 = vsub.f32 1.0, %v845
        %v870 = vsub.f32 1.0, %v846
        %v871 = vlaneseq
        %v872 = vshrl.u32 %v871, 7
        %v873 = vsub.s32 0, %v872
        %v874 = vrot.slane %v867, %v873
        %v875 = vlaneseq
        %v876 = vshrl.u32 %v875, 7
        %v877 = vsub.s32 0, %v876
        %v878 = vrot.slane %v868, %v877
        %v879 = vlaneseq
        %v880 = vshrl.u32 %v879, 7
        %v881 = vsub.s32 0, %v880
        %v882 = vrot.slane %v869, %v881
        %v883 = vlaneseq
        %v884 = vshrl.u32 %v883, 7
        %v885 = vsub.s32 0, %v884
        %v886 = vrot.slane %v870, %v885
        %v887 = vmul.f32 %v800, %v874
        %v888 = vmul.f32 %v799, %v878
        %v889 = vmul.f32 %v798, %v882
        %v890 = vmul.f32 %v797, %v886
        %v891 = vadd.f32 %v863, %v887
        %v892 = vadd.f32 %v864, %v888
        %v893 = vadd.f32 %v865, %v889
        %v894 = vadd.f32 %v866, %v890
        %vm895 = vmand %vm435, %vm437
        %v896 = vsel %vm895, 1, 0
        %v897 = vcvt.s32.f32 %v896
        %v899 = vlaneseq
        %v900 = vshrl.u32 %v899, 7
        %v901 = vsub.s32 0, %v900
        %v902 = vrot.slane %v897, %v901
        %v903 = vlaneseq
        %v904 = vshrl.u32 %v903, 7
        %v905 = vsub.s32 1, %v904
        %v906 = vrot.slane %v897, %v905
        %v907 = vlaneseq
        %v908 = vshrl.u32 %v907, 7
        %v909 = vsub.s32 2, %v908
        %v910 = vrot.slane %v897, %v909
        %v911 = vlaneseq
        %v912 = vshrl.u32 %v911, 7
        %v913 = vsub.s32 3, %v912
        %v914 = vrot.slane %v897, %v913
        %v919 = vmul.f32 %v891, %v902
        %v920 = vmul.f32 %v892, %v906
        %v921 = vmul.f32 %v893, %v910
        %v922 = vmul.f32 %v894, %v914
        %923 = vst [vmem:[#allocation2 + $0x60] sm:$0xff] %v919
        %924 = vst [vmem:[#allocation2 + $0x68] sm:$0xff] %v920
        %925 = vst [vmem:[#allocation2 + $0x70] sm:$0xff] %v921
        %926 = vst [vmem:[#allocation2 + $0x78] sm:$0xff] %v922
        %927 = vrot.lane.b32.xlu0 %v286, 64
        %v928 = vpop.permute.xlu0 %927
        %929 = vrot.lane.b32.xlu0 %v287, 64
        %v930 = vpop.permute.xlu0 %929
        %931 = vrot.lane.b32.xlu0 %v288, 64
        %v932 = vpop.permute.xlu0 %931
        %933 = vrot.lane.b32.xlu0 %v289, 64
        %v934 = vpop.permute.xlu0 %933
        %vm935 = vcmp.lt.s32.totalorder %v301, 64
        %v936 = vsel %vm935, %v932, %v934
        %v937 = vsel %vm935, %v930, %v932
        %v938 = vsel %vm935, %v928, %v930
        %v939 = vsel %vm935, %v934, %v928
        %940 = vrot.lane.b32.xlu0 %v324, 64
        %v941 = vpop.permute.xlu0 %940
        %942 = vrot.lane.b32.xlu0 %v328, 64
        %v943 = vpop.permute.xlu0 %942
        %944 = vrot.lane.b32.xlu0 %v332, 64
        %v945 = vpop.permute.xlu0 %944
        %946 = vrot.lane.b32.xlu0 %v336, 64
        %v947 = vpop.permute.xlu0 %946
        %v948 = vsel %vm935, %v945, %v947
        %v949 = vsel %vm935, %v943, %v945
        %v950 = vsel %vm935, %v941, %v943
        %v951 = vsel %vm935, %v947, %v941
        %v952 = vadd.f32 %v279, -64.0
        %v954 = vlaneseq
        %v955 = vshrl.u32 %v954, 7
        %v956 = vsub.s32 0, %v955
        %v957 = vrot.slane %v952, %v956
        %v958 = vlaneseq
        %v959 = vshrl.u32 %v958, 7
        %v960 = vsub.s32 1, %v959
        %v961 = vrot.slane %v952, %v960
        %v962 = vlaneseq
        %v963 = vshrl.u32 %v962, 7
        %v964 = vsub.s32 2, %v963
        %v965 = vrot.slane %v952, %v964
        %v966 = vlaneseq
        %v967 = vshrl.u32 %v966, 7
        %v968 = vsub.s32 3, %v967
        %v969 = vrot.slane %v952, %v968
        %vm974 = vcmp.eq.f32.partialorder %v950, %v957
        %vm975 = vcmp.eq.f32.partialorder %v949, %v961
        %vm976 = vcmp.eq.f32.partialorder %v948, %v965
        %vm977 = vcmp.eq.f32.partialorder %v951, %v969
        %v978 = vsel %vm974, 1, 0
        %v979 = vsel %vm975, 1, 0
        %v980 = vsel %vm976, 1, 0
        %v981 = vsel %vm977, 1, 0
        %v982 = vcvt.s32.f32 %v978
        %v983 = vcvt.s32.f32 %v979
        %v984 = vcvt.s32.f32 %v980
        %v985 = vcvt.s32.f32 %v981
        %v986 = vlaneseq
        %v987 = vshrl.u32 %v986, 7
        %v988 = vsub.s32 0, %v987
        %v989 = vrot.slane %v982, %v988
        %v990 = vlaneseq
        %v991 = vshrl.u32 %v990, 7
        %v992 = vsub.s32 0, %v991
        %v993 = vrot.slane %v983, %v992
        %v994 = vlaneseq
        %v995 = vshrl.u32 %v994, 7
        %v996 = vsub.s32 0, %v995
        %v997 = vrot.slane %v984, %v996
        %v998 = vlaneseq
        %v999 = vshrl.u32 %v998, 7
        %v1000 = vsub.s32 0, %v999
        %v1001 = vrot.slane %v985, %v1000
        %v1002 = vmul.f32 %v938, %v989
        %v1003 = vmul.f32 %v937, %v993
        %v1004 = vmul.f32 %v936, %v997
        %v1005 = vmul.f32 %v939, %v1001
        %v1006 = vsub.f32 1.0, %v982
        %v1007 = vsub.f32 1.0, %v983
        %v1008 = vsub.f32 1.0, %v984
        %v1009 = vsub.f32 1.0, %v985
        %v1010 = vlaneseq
        %v1011 = vshrl.u32 %v1010, 7
        %v1012 = vsub.s32 0, %v1011
        %v1013 = vrot.slane %v1006, %v1012
        %v1014 = vlaneseq
        %v1015 = vshrl.u32 %v1014, 7
        %v1016 = vsub.s32 0, %v1015
        %v1017 = vrot.slane %v1007, %v1016
        %v1018 = vlaneseq
        %v1019 = vshrl.u32 %v1018, 7
        %v1020 = vsub.s32 0, %v1019
        %v1021 = vrot.slane %v1008, %v1020
        %v1022 = vlaneseq
        %v1023 = vshrl.u32 %v1022, 7
        %v1024 = vsub.s32 0, %v1023
        %v1025 = vrot.slane %v1009, %v1024
        %v1026 = vmul.f32 %v939, %v1013
        %v1027 = vmul.f32 %v938, %v1017
        %v1028 = vmul.f32 %v937, %v1021
        %v1029 = vmul.f32 %v936, %v1025
        %v1030 = vadd.f32 %v1002, %v1026
        %v1031 = vadd.f32 %v1003, %v1027
        %v1032 = vadd.f32 %v1004, %v1028
        %v1033 = vadd.f32 %v1005, %v1029
        %v1034 = vsel %vm435, 1, 0
        %v1035 = vcvt.s32.f32 %v1034
        %v1037 = vlaneseq
        %v1038 = vshrl.u32 %v1037, 7
        %v1039 = vsub.s32 0, %v1038
        %v1040 = vrot.slane %v1035, %v1039
        %v1041 = vlaneseq
        %v1042 = vshrl.u32 %v1041, 7
        %v1043 = vsub.s32 1, %v1042
        %v1044 = vrot.slane %v1035, %v1043
        %v1045 = vlaneseq
        %v1046 = vshrl.u32 %v1045, 7
        %v1047 = vsub.s32 2, %v1046
        %v1048 = vrot.slane %v1035, %v1047
        %v1049 = vlaneseq
        %v1050 = vshrl.u32 %v1049, 7
        %v1051 = vsub.s32 3, %v1050
        %v1052 = vrot.slane %v1035, %v1051
        %v1057 = vmul.f32 %v1030, %v1040
        %v1058 = vmul.f32 %v1031, %v1044
        %v1059 = vmul.f32 %v1032, %v1048
        %v1060 = vmul.f32 %v1033, %v1052
        %1061 = vst [vmem:[#allocation2 + $0x80] sm:$0xff] %v1057
        %1062 = vst [vmem:[#allocation2 + $0x88] sm:$0xff] %v1058
        %1063 = vst [vmem:[#allocation2 + $0x90] sm:$0xff] %v1059
        %1064 = vst [vmem:[#allocation2 + $0x98] sm:$0xff] %v1060
        %1065 = vrot.lane.b32.xlu0 %v324, 65
        %v1066 = vpop.permute.xlu0 %1065
        %1067 = vrot.lane.b32.xlu0 %v328, 65
        %v1068 = vpop.permute.xlu0 %1067
        %1069 = vrot.lane.b32.xlu0 %v332, 65
        %v1070 = vpop.permute.xlu0 %1069
        %1071 = vrot.lane.b32.xlu0 %v336, 65
        %v1072 = vpop.permute.xlu0 %1071
        %v1073 = vsel %vm796, %v1070, %v1072
        %v1074 = vsel %vm796, %v1068, %v1070
        %v1075 = vsel %vm796, %v1066, %v1068
        %v1076 = vsel %vm796, %v1072, %v1066
        %v1077 = vadd.f32 %v279, -63.0
        %v1079 = vlaneseq
        %v1080 = vshrl.u32 %v1079, 7
        %v1081 = vsub.s32 0, %v1080
        %v1082 = vrot.slane %v1077, %v1081
        %v1083 = vlaneseq
        %v1084 = vshrl.u32 %v1083, 7
        %v1085 = vsub.s32 1, %v1084
        %v1086 = vrot.slane %v1077, %v1085
        %v1087 = vlaneseq
        %v1088 = vshrl.u32 %v1087, 7
        %v1089 = vsub.s32 2, %v1088
        %v1090 = vrot.slane %v1077, %v1089
        %v1091 = vlaneseq
        %v1092 = vshrl.u32 %v1091, 7
        %v1093 = vsub.s32 3, %v1092
        %v1094 = vrot.slane %v1077, %v1093
        %vm1099 = vcmp.eq.f32.partialorder %v1075, %v1082
        %vm1100 = vcmp.eq.f32.partialorder %v1074, %v1086
        %vm1101 = vcmp.eq.f32.partialorder %v1073, %v1090
        %vm1102 = vcmp.eq.f32.partialorder %v1076, %v1094
        %v1103 = vsel %vm1099, 1, 0
        %v1104 = vsel %vm1100, 1, 0
        %v1105 = vsel %vm1101, 1, 0
        %v1106 = vsel %vm1102, 1, 0
        %v1107 = vcvt.s32.f32 %v1103
        %v1108 = vcvt.s32.f32 %v1104
        %v1109 = vcvt.s32.f32 %v1105
        %v1110 = vcvt.s32.f32 %v1106
        %v1111 = vlaneseq
        %v1112 = vshrl.u32 %v1111, 7
        %v1113 = vsub.s32 0, %v1112
        %v1114 = vrot.slane %v1107, %v1113
        %v1115 = vlaneseq
        %v1116 = vshrl.u32 %v1115, 7
        %v1117 = vsub.s32 0, %v1116
        %v1118 = vrot.slane %v1108, %v1117
        %v1119 = vlaneseq
        %v1120 = vshrl.u32 %v1119, 7
        %v1121 = vsub.s32 0, %v1120
        %v1122 = vrot.slane %v1109, %v1121
        %v1123 = vlaneseq
        %v1124 = vshrl.u32 %v1123, 7
        %v1125 = vsub.s32 0, %v1124
        %v1126 = vrot.slane %v1110, %v1125
        %v1127 = vmul.f32 %v799, %v1114
        %v1128 = vmul.f32 %v798, %v1118
        %v1129 = vmul.f32 %v797, %v1122
        %v1130 = vmul.f32 %v800, %v1126
        %v1131 = vsub.f32 1.0, %v1107
        %v1132 = vsub.f32 1.0, %v1108
        %v1133 = vsub.f32 1.0, %v1109
        %v1134 = vsub.f32 1.0, %v1110
        %v1135 = vlaneseq
        %v1136 = vshrl.u32 %v1135, 7
        %v1137 = vsub.s32 0, %v1136
        %v1138 = vrot.slane %v1131, %v1137
        %v1139 = vlaneseq
        %v1140 = vshrl.u32 %v1139, 7
        %v1141 = vsub.s32 0, %v1140
        %v1142 = vrot.slane %v1132, %v1141
        %v1143 = vlaneseq
        %v1144 = vshrl.u32 %v1143, 7
        %v1145 = vsub.s32 0, %v1144
        %v1146 = vrot.slane %v1133, %v1145
        %v1147 = vlaneseq
        %v1148 = vshrl.u32 %v1147, 7
        %v1149 = vsub.s32 0, %v1148
        %v1150 = vrot.slane %v1134, %v1149
        %v1151 = vmul.f32 %v787, %v1138
        %v1152 = vmul.f32 %v786, %v1142
        %v1153 = vmul.f32 %v785, %v1146
        %v1154 = vmul.f32 %v784, %v1150
        %v1155 = vadd.f32 %v1127, %v1151
        %v1156 = vadd.f32 %v1128, %v1152
        %v1157 = vadd.f32 %v1129, %v1153
        %v1158 = vadd.f32 %v1130, %v1154
        %vm1159 = vmand %vm435, %vm742
        %v1160 = vsel %vm1159, 1, 0
        %v1161 = vcvt.s32.f32 %v1160
        %v1163 = vlaneseq
        %v1164 = vshrl.u32 %v1163, 7
        %v1165 = vsub.s32 0, %v1164
        %v1166 = vrot.slane %v1161, %v1165
        %v1167 = vlaneseq
        %v1168 = vshrl.u32 %v1167, 7
        %v1169 = vsub.s32 1, %v1168
        %v1170 = vrot.slane %v1161, %v1169
        %v1171 = vlaneseq
        %v1172 = vshrl.u32 %v1171, 7
        %v1173 = vsub.s32 2, %v1172
        %v1174 = vrot.slane %v1161, %v1173
        %v1175 = vlaneseq
        %v1176 = vshrl.u32 %v1175, 7
        %v1177 = vsub.s32 3, %v1176
        %v1178 = vrot.slane %v1161, %v1177
        %v1183 = vmul.f32 %v1155, %v1166
        %v1184 = vmul.f32 %v1156, %v1170
        %v1185 = vmul.f32 %v1157, %v1174
        %v1186 = vmul.f32 %v1158, %v1178
        %1187 = vst [vmem:[#allocation2 + $0xa0] sm:$0xff] %v1183
        %1188 = vst [vmem:[#allocation2 + $0xa8] sm:$0xff] %v1184
        %1189 = vst [vmem:[#allocation2 + $0xb0] sm:$0xff] %v1185
        %1190 = vst [vmem:[#allocation2 + $0xb8] sm:$0xff] %v1186
        %1191 = vrot.lane.b32.xlu0 %v324, 71
        %v1192 = vpop.permute.xlu0 %1191
        %1193 = vrot.lane.b32.xlu0 %v328, 71
        %v1194 = vpop.permute.xlu0 %1193
        %1195 = vrot.lane.b32.xlu0 %v332, 71
        %v1196 = vpop.permute.xlu0 %1195
        %1197 = vrot.lane.b32.xlu0 %v336, 71
        %v1198 = vpop.permute.xlu0 %1197
        %v1199 = vsel %vm643, %v1196, %v1198
        %v1200 = vsel %vm643, %v1194, %v1196
        %v1201 = vsel %vm643, %v1192, %v1194
        %v1202 = vsel %vm643, %v1198, %v1192
        %v1203 = vadd.f32 %v279, -57.0
        %v1205 = vlaneseq
        %v1206 = vshrl.u32 %v1205, 7
        %v1207 = vsub.s32 0, %v1206
        %v1208 = vrot.slane %v1203, %v1207
        %v1209 = vlaneseq
        %v1210 = vshrl.u32 %v1209, 7
        %v1211 = vsub.s32 1, %v1210
        %v1212 = vrot.slane %v1203, %v1211
        %v1213 = vlaneseq
        %v1214 = vshrl.u32 %v1213, 7
        %v1215 = vsub.s32 2, %v1214
        %v1216 = vrot.slane %v1203, %v1215
        %v1217 = vlaneseq
        %v1218 = vshrl.u32 %v1217, 7
        %v1219 = vsub.s32 3, %v1218
        %v1220 = vrot.slane %v1203, %v1219
        %vm1225 = vcmp.eq.f32.partialorder %v1201, %v1208
        %vm1226 = vcmp.eq.f32.partialorder %v1200, %v1212
        %vm1227 = vcmp.eq.f32.partialorder %v1199, %v1216
        %vm1228 = vcmp.eq.f32.partialorder %v1202, %v1220
        %v1229 = vsel %vm1225, 1, 0
        %v1230 = vsel %vm1226, 1, 0
        %v1231 = vsel %vm1227, 1, 0
        %v1232 = vsel %vm1228, 1, 0
        %v1233 = vcvt.s32.f32 %v1229
        %v1234 = vcvt.s32.f32 %v1230
        %v1235 = vcvt.s32.f32 %v1231
        %v1236 = vcvt.s32.f32 %v1232
        %v1237 = vlaneseq
        %v1238 = vshrl.u32 %v1237, 7
        %v1239 = vsub.s32 0, %v1238
        %v1240 = vrot.slane %v1233, %v1239
        %v1241 = vlaneseq
        %v1242 = vshrl.u32 %v1241, 7
        %v1243 = vsub.s32 0, %v1242
        %v1244 = vrot.slane %v1234, %v1243
        %v1245 = vlaneseq
        %v1246 = vshrl.u32 %v1245, 7
        %v1247 = vsub.s32 0, %v1246
        %v1248 = vrot.slane %v1235, %v1247
        %v1249 = vlaneseq
        %v1250 = vshrl.u32 %v1249, 7
        %v1251 = vsub.s32 0, %v1250
        %v1252 = vrot.slane %v1236, %v1251
        %v1253 = vmul.f32 %v646, %v1240
        %v1254 = vmul.f32 %v645, %v1244
        %v1255 = vmul.f32 %v644, %v1248
        %v1256 = vmul.f32 %v647, %v1252
        %v1257 = vsub.f32 1.0, %v1233
        %v1258 = vsub.f32 1.0, %v1234
        %v1259 = vsub.f32 1.0, %v1235
        %v1260 = vsub.f32 1.0, %v1236
        %v1261 = vlaneseq
        %v1262 = vshrl.u32 %v1261, 7
        %v1263 = vsub.s32 0, %v1262
        %v1264 = vrot.slane %v1257, %v1263
        %v1265 = vlaneseq
        %v1266 = vshrl.u32 %v1265, 7
        %v1267 = vsub.s32 0, %v1266
        %v1268 = vrot.slane %v1258, %v1267
        %v1269 = vlaneseq
        %v1270 = vshrl.u32 %v1269, 7
        %v1271 = vsub.s32 0, %v1270
        %v1272 = vrot.slane %v1259, %v1271
        %v1273 = vlaneseq
        %v1274 = vshrl.u32 %v1273, 7
        %v1275 = vsub.s32 0, %v1274
        %v1276 = vrot.slane %v1260, %v1275
        %v1277 = vmul.f32 %v634, %v1264
        %v1278 = vmul.f32 %v633, %v1268
        %v1279 = vmul.f32 %v632, %v1272
        %v1280 = vmul.f32 %v631, %v1276
        %v1281 = vadd.f32 %v1253, %v1277
        %v1282 = vadd.f32 %v1254, %v1278
        %v1283 = vadd.f32 %v1255, %v1279
        %v1284 = vadd.f32 %v1256, %v1280
        %vm1285 = vcmp.le.f32.partialorder %v283, 6.0
        %vm1286 = vmand %vm435, %vm1285
        %vm1287 = vmand %vm1286, %vm437
        %v1288 = vsel %vm1287, 1, 0
        %v1289 = vcvt.s32.f32 %v1288
        %v1291 = vlaneseq
        %v1292 = vshrl.u32 %v1291, 7
        %v1293 = vsub.s32 0, %v1292
        %v1294 = vrot.slane %v1289, %v1293
        %v1295 = vlaneseq
        %v1296 = vshrl.u32 %v1295, 7
        %v1297 = vsub.s32 1, %v1296
        %v1298 = vrot.slane %v1289, %v1297
        %v1299 = vlaneseq
        %v1300 = vshrl.u32 %v1299, 7
        %v1301 = vsub.s32 2, %v1300
        %v1302 = vrot.slane %v1289, %v1301
        %v1303 = vlaneseq
        %v1304 = vshrl.u32 %v1303, 7
        %v1305 = vsub.s32 3, %v1304
        %v1306 = vrot.slane %v1289, %v1305
        %v1311 = vmul.f32 %v1281, %v1294
        %v1312 = vmul.f32 %v1282, %v1298
        %v1313 = vmul.f32 %v1283, %v1302
        %v1314 = vmul.f32 %v1284, %v1306
        %1315 = vst [vmem:[#allocation2 + $0xc0] sm:$0xff] %v1311
        %1316 = vst [vmem:[#allocation2 + $0xc8] sm:$0xff] %v1312
        %1317 = vst [vmem:[#allocation2 + $0xd0] sm:$0xff] %v1313
        %1318 = vst [vmem:[#allocation2 + $0xd8] sm:$0xff] %v1314
        %1319 = vrot.lane.b32.xlu0 %v324, 72
        %v1320 = vpop.permute.xlu0 %1319
        %1321 = vrot.lane.b32.xlu0 %v328, 72
        %v1322 = vpop.permute.xlu0 %1321
        %1323 = vrot.lane.b32.xlu0 %v332, 72
        %v1324 = vpop.permute.xlu0 %1323
        %1325 = vrot.lane.b32.xlu0 %v336, 72
        %v1326 = vpop.permute.xlu0 %1325
        %v1327 = vsel %vm492, %v1324, %v1326
        %v1328 = vsel %vm492, %v1322, %v1324
        %v1329 = vsel %vm492, %v1320, %v1322
        %v1330 = vsel %vm492, %v1326, %v1320
        %v1331 = vadd.f32 %v279, -56.0
        %v1333 = vlaneseq
        %v1334 = vshrl.u32 %v1333, 7
        %v1335 = vsub.s32 0, %v1334
        %v1336 = vrot.slane %v1331, %v1335
        %v1337 = vlaneseq
        %v1338 = vshrl.u32 %v1337, 7
        %v1339 = vsub.s32 1, %v1338
        %v1340 = vrot.slane %v1331, %v1339
        %v1341 = vlaneseq
        %v1342 = vshrl.u32 %v1341, 7
        %v1343 = vsub.s32 2, %v1342
        %v1344 = vrot.slane %v1331, %v1343
        %v1345 = vlaneseq
        %v1346 = vshrl.u32 %v1345, 7
        %v1347 = vsub.s32 3, %v1346
        %v1348 = vrot.slane %v1331, %v1347
        %vm1353 = vcmp.eq.f32.partialorder %v1329, %v1336
        %vm1354 = vcmp.eq.f32.partialorder %v1328, %v1340
        %vm1355 = vcmp.eq.f32.partialorder %v1327, %v1344
        %vm1356 = vcmp.eq.f32.partialorder %v1330, %v1348
        %v1357 = vsel %vm1353, 1, 0
        %v1358 = vsel %vm1354, 1, 0
        %v1359 = vsel %vm1355, 1, 0
        %v1360 = vsel %vm1356, 1, 0
        %v1361 = vcvt.s32.f32 %v1357
        %v1362 = vcvt.s32.f32 %v1358
        %v1363 = vcvt.s32.f32 %v1359
        %v1364 = vcvt.s32.f32 %v1360
        %v1365 = vlaneseq
        %v1366 = vshrl.u32 %v1365, 7
        %v1367 = vsub.s32 0, %v1366
        %v1368 = vrot.slane %v1361, %v1367
        %v1369 = vlaneseq
        %v1370 = vshrl.u32 %v1369, 7
        %v1371 = vsub.s32 0, %v1370
        %v1372 = vrot.slane %v1362, %v1371
        %v1373 = vlaneseq
        %v1374 = vshrl.u32 %v1373, 7
        %v1375 = vsub.s32 0, %v1374
        %v1376 = vrot.slane %v1363, %v1375
        %v1377 = vlaneseq
        %v1378 = vshrl.u32 %v1377, 7
        %v1379 = vsub.s32 0, %v1378
        %v1380 = vrot.slane %v1364, %v1379
        %v1381 = vmul.f32 %v495, %v1368
        %v1382 = vmul.f32 %v494, %v1372
        %v1383 = vmul.f32 %v493, %v1376
        %v1384 = vmul.f32 %v496, %v1380
        %v1385 = vsub.f32 1.0, %v1361
        %v1386 = vsub.f32 1.0, %v1362
        %v1387 = vsub.f32 1.0, %v1363
        %v1388 = vsub.f32 1.0, %v1364
        %v1389 = vlaneseq
        %v1390 = vshrl.u32 %v1389, 7
        %v1391 = vsub.s32 0, %v1390
        %v1392 = vrot.slane %v1385, %v1391
        %v1393 = vlaneseq
        %v1394 = vshrl.u32 %v1393, 7
        %v1395 = vsub.s32 0, %v1394
        %v1396 = vrot.slane %v1386, %v1395
        %v1397 = vlaneseq
        %v1398 = vshrl.u32 %v1397, 7
        %v1399 = vsub.s32 0, %v1398
        %v1400 = vrot.slane %v1387, %v1399
        %v1401 = vlaneseq
        %v1402 = vshrl.u32 %v1401, 7
        %v1403 = vsub.s32 0, %v1402
        %v1404 = vrot.slane %v1388, %v1403
        %v1405 = vmul.f32 %v483, %v1392
        %v1406 = vmul.f32 %v482, %v1396
        %v1407 = vmul.f32 %v481, %v1400
        %v1408 = vmul.f32 %v480, %v1404
        %v1409 = vadd.f32 %v1381, %v1405
        %v1410 = vadd.f32 %v1382, %v1406
        %v1411 = vadd.f32 %v1383, %v1407
        %v1412 = vadd.f32 %v1384, %v1408
        %v1413 = vsel %vm1286, 1, 0
        %v1414 = vcvt.s32.f32 %v1413
        %v1416 = vlaneseq
        %v1417 = vshrl.u32 %v1416, 7
        %v1418 = vsub.s32 0, %v1417
        %v1419 = vrot.slane %v1414, %v1418
        %v1420 = vlaneseq
        %v1421 = vshrl.u32 %v1420, 7
        %v1422 = vsub.s32 1, %v1421
        %v1423 = vrot.slane %v1414, %v1422
        %v1424 = vlaneseq
        %v1425 = vshrl.u32 %v1424, 7
        %v1426 = vsub.s32 2, %v1425
        %v1427 = vrot.slane %v1414, %v1426
        %v1428 = vlaneseq
        %v1429 = vshrl.u32 %v1428, 7
        %v1430 = vsub.s32 3, %v1429
        %v1431 = vrot.slane %v1414, %v1430
        %v1436 = vmul.f32 %v1409, %v1419
        %v1437 = vmul.f32 %v1410, %v1423
        %v1438 = vmul.f32 %v1411, %v1427
        %v1439 = vmul.f32 %v1412, %v1431
        %1440 = vst [vmem:[#allocation2 + $0xe0] sm:$0xff] %v1436
        %1441 = vst [vmem:[#allocation2 + $0xe8] sm:$0xff] %v1437
        %1442 = vst [vmem:[#allocation2 + $0xf0] sm:$0xff] %v1438
        %1443 = vst [vmem:[#allocation2 + $0xf8] sm:$0xff] %v1439
        %1444 = vrot.lane.b32.xlu0 %v324, 73
        %v1445 = vpop.permute.xlu0 %1444
        %1446 = vrot.lane.b32.xlu0 %v328, 73
        %v1447 = vpop.permute.xlu0 %1446
        %1448 = vrot.lane.b32.xlu0 %v332, 73
        %v1449 = vpop.permute.xlu0 %1448
        %1450 = vrot.lane.b32.xlu0 %v336, 73
        %v1451 = vpop.permute.xlu0 %1450
        %v1452 = vsel %vm315, %v1449, %v1451
        %v1453 = vsel %vm315, %v1447, %v1449
        %v1454 = vsel %vm315, %v1445, %v1447
        %v1455 = vsel %vm315, %v1451, %v1445
        %v1456 = vadd.f32 %v279, -55.0
        %v1458 = vlaneseq
        %v1459 = vshrl.u32 %v1458, 7
        %v1460 = vsub.s32 0, %v1459
        %v1461 = vrot.slane %v1456, %v1460
        %v1462 = vlaneseq
        %v1463 = vshrl.u32 %v1462, 7
        %v1464 = vsub.s32 1, %v1463
        %v1465 = vrot.slane %v1456, %v1464
        %v1466 = vlaneseq
        %v1467 = vshrl.u32 %v1466, 7
        %v1468 = vsub.s32 2, %v1467
        %v1469 = vrot.slane %v1456, %v1468
        %v1470 = vlaneseq
        %v1471 = vshrl.u32 %v1470, 7
        %v1472 = vsub.s32 3, %v1471
        %v1473 = vrot.slane %v1456, %v1472
        %vm1478 = vcmp.eq.f32.partialorder %v1454, %v1461
        %vm1479 = vcmp.eq.f32.partialorder %v1453, %v1465
        %vm1480 = vcmp.eq.f32.partialorder %v1452, %v1469
        %vm1481 = vcmp.eq.f32.partialorder %v1455, %v1473
        %v1482 = vsel %vm1478, 1, 0
        %v1483 = vsel %vm1479, 1, 0
        %v1484 = vsel %vm1480, 1, 0
        %v1485 = vsel %vm1481, 1, 0
        %v1486 = vcvt.s32.f32 %v1482
        %v1487 = vcvt.s32.f32 %v1483
        %v1488 = vcvt.s32.f32 %v1484
        %v1489 = vcvt.s32.f32 %v1485
        %v1490 = vlaneseq
        %v1491 = vshrl.u32 %v1490, 7
        %v1492 = vsub.s32 0, %v1491
        %v1493 = vrot.slane %v1486, %v1492
        %v1494 = vlaneseq
        %v1495 = vshrl.u32 %v1494, 7
        %v1496 = vsub.s32 0, %v1495
        %v1497 = vrot.slane %v1487, %v1496
        %v1498 = vlaneseq
        %v1499 = vshrl.u32 %v1498, 7
        %v1500 = vsub.s32 0, %v1499
        %v1501 = vrot.slane %v1488, %v1500
        %v1502 = vlaneseq
        %v1503 = vshrl.u32 %v1502, 7
        %v1504 = vsub.s32 0, %v1503
        %v1505 = vrot.slane %v1489, %v1504
        %v1506 = vmul.f32 %v318, %v1493
        %v1507 = vmul.f32 %v317, %v1497
        %v1508 = vmul.f32 %v316, %v1501
        %v1509 = vmul.f32 %v319, %v1505
        %v1510 = vsub.f32 1.0, %v1486
        %v1511 = vsub.f32 1.0, %v1487
        %v1512 = vsub.f32 1.0, %v1488
        %v1513 = vsub.f32 1.0, %v1489
        %v1514 = vlaneseq
        %v1515 = vshrl.u32 %v1514, 7
        %v1516 = vsub.s32 0, %v1515
        %v1517 = vrot.slane %v1510, %v1516
        %v1518 = vlaneseq
        %v1519 = vshrl.u32 %v1518, 7
        %v1520 = vsub.s32 0, %v1519
        %v1521 = vrot.slane %v1511, %v1520
        %v1522 = vlaneseq
        %v1523 = vshrl.u32 %v1522, 7
        %v1524 = vsub.s32 0, %v1523
        %v1525 = vrot.slane %v1512, %v1524
        %v1526 = vlaneseq
        %v1527 = vshrl.u32 %v1526, 7
        %v1528 = vsub.s32 0, %v1527
        %v1529 = vrot.slane %v1513, %v1528
        %v1530 = vmul.f32 %v306, %v1517
        %v1531 = vmul.f32 %v305, %v1521
        %v1532 = vmul.f32 %v304, %v1525
        %v1533 = vmul.f32 %v303, %v1529
        %v1534 = vadd.f32 %v1506, %v1530
        %v1535 = vadd.f32 %v1507, %v1531
        %v1536 = vadd.f32 %v1508, %v1532
        %v1537 = vadd.f32 %v1509, %v1533
        %vm1538 = vmand %vm1286, %vm742
        %v1539 = vsel %vm1538, 1, 0
        %v1540 = vcvt.s32.f32 %v1539
        %v1542 = vlaneseq
        %v1543 = vshrl.u32 %v1542, 7
        %v1544 = vsub.s32 0, %v1543
        %v1545 = vrot.slane %v1540, %v1544
        %v1546 = vlaneseq
        %v1547 = vshrl.u32 %v1546, 7
        %v1548 = vsub.s32 1, %v1547
        %v1549 = vrot.slane %v1540, %v1548
        %v1550 = vlaneseq
        %v1551 = vshrl.u32 %v1550, 7
        %v1552 = vsub.s32 2, %v1551
        %v1553 = vrot.slane %v1540, %v1552
        %v1554 = vlaneseq
        %v1555 = vshrl.u32 %v1554, 7
        %v1556 = vsub.s32 3, %v1555
        %v1557 = vrot.slane %v1540, %v1556
        %v1562 = vmul.f32 %v1534, %v1545
        %v1563 = vmul.f32 %v1535, %v1549
        %v1564 = vmul.f32 %v1536, %v1553
        %v1565 = vmul.f32 %v1537, %v1557
        %1566 = vst [vmem:[#allocation2 + $0x100] sm:$0xff] %v1562
        %1567 = vst [vmem:[#allocation2 + $0x108] sm:$0xff] %v1563
        %1568 = vst [vmem:[#allocation2 + $0x110] sm:$0xff] %v1564
        %1569 = vst [vmem:[#allocation2 + $0x118] sm:$0xff] %v1565
        %1570 = vrot.lane.b32.xlu0 %v286, 119
        %v1571 = vpop.permute.xlu0 %1570
        %1572 = vrot.lane.b32.xlu0 %v287, 119
        %v1573 = vpop.permute.xlu0 %1572
        %1574 = vrot.lane.b32.xlu0 %v288, 119
        %v1575 = vpop.permute.xlu0 %1574
        %1576 = vrot.lane.b32.xlu0 %v289, 119
        %v1577 = vpop.permute.xlu0 %1576
        %vm1578 = vcmp.lt.s32.totalorder %v301, 119
        %v1579 = vsel %vm1578, %v1575, %v1577
        %v1580 = vsel %vm1578, %v1573, %v1575
        %v1581 = vsel %vm1578, %v1571, %v1573
        %v1582 = vsel %vm1578, %v1577, %v1571
        %1583 = vrot.lane.b32.xlu0 %v286, 9
        %v1584 = vpop.permute.xlu0 %1583
        %1585 = vrot.lane.b32.xlu0 %v287, 9
        %v1586 = vpop.permute.xlu0 %1585
        %1587 = vrot.lane.b32.xlu0 %v288, 9
        %v1588 = vpop.permute.xlu0 %1587
        %1589 = vrot.lane.b32.xlu0 %v289, 9
        %v1590 = vpop.permute.xlu0 %1589
        %vm1591 = vcmp.lt.s32.totalorder %v301, 9
        %v1592 = vsel %vm1591, %v1588, %v1590
        %v1593 = vsel %vm1591, %v1586, %v1588
        %v1594 = vsel %vm1591, %v1584, %v1586
        %v1595 = vsel %vm1591, %v1590, %v1584
        %1596 = vrot.lane.b32.xlu0 %v324, 119
        %v1597 = vpop.permute.xlu0 %1596
        %1598 = vrot.lane.b32.xlu0 %v328, 119
        %v1599 = vpop.permute.xlu0 %1598
        %1600 = vrot.lane.b32.xlu0 %v332, 119
        %v1601 = vpop.permute.xlu0 %1600
        %1602 = vrot.lane.b32.xlu0 %v336, 119
        %v1603 = vpop.permute.xlu0 %1602
        %v1604 = vsel %vm1578, %v1601, %v1603
        %v1605 = vsel %vm1578, %v1599, %v1601
        %v1606 = vsel %vm1578, %v1597, %v1599
        %v1607 = vsel %vm1578, %v1603, %v1597
        %v1608 = vadd.f32 %v279, -9.0
        %v1610 = vlaneseq
        %v1611 = vshrl.u32 %v1610, 7
        %v1612 = vsub.s32 0, %v1611
        %v1613 = vrot.slane %v1608, %v1612
        %v1614 = vlaneseq
        %v1615 = vshrl.u32 %v1614, 7
        %v1616 = vsub.s32 1, %v1615
        %v1617 = vrot.slane %v1608, %v1616
        %v1618 = vlaneseq
        %v1619 = vshrl.u32 %v1618, 7
        %v1620 = vsub.s32 2, %v1619
        %v1621 = vrot.slane %v1608, %v1620
        %v1622 = vlaneseq
        %v1623 = vshrl.u32 %v1622, 7
        %v1624 = vsub.s32 3, %v1623
        %v1625 = vrot.slane %v1608, %v1624
        %vm1630 = vcmp.eq.f32.partialorder %v1606, %v1613
        %vm1631 = vcmp.eq.f32.partialorder %v1605, %v1617
        %vm1632 = vcmp.eq.f32.partialorder %v1604, %v1621
        %vm1633 = vcmp.eq.f32.partialorder %v1607, %v1625
        %v1634 = vsel %vm1630, 1, 0
        %v1635 = vsel %vm1631, 1, 0
        %v1636 = vsel %vm1632, 1, 0
        %v1637 = vsel %vm1633, 1, 0
        %v1638 = vcvt.s32.f32 %v1634
        %v1639 = vcvt.s32.f32 %v1635
        %v1640 = vcvt.s32.f32 %v1636
        %v1641 = vcvt.s32.f32 %v1637
        %v1642 = vlaneseq
        %v1643 = vshrl.u32 %v1642, 7
        %v1644 = vsub.s32 0, %v1643
        %v1645 = vrot.slane %v1638, %v1644
        %v1646 = vlaneseq
        %v1647 = vshrl.u32 %v1646, 7
        %v1648 = vsub.s32 0, %v1647
        %v1649 = vrot.slane %v1639, %v1648
        %v1650 = vlaneseq
        %v1651 = vshrl.u32 %v1650, 7
        %v1652 = vsub.s32 0, %v1651
        %v1653 = vrot.slane %v1640, %v1652
        %v1654 = vlaneseq
        %v1655 = vshrl.u32 %v1654, 7
        %v1656 = vsub.s32 0, %v1655
        %v1657 = vrot.slane %v1641, %v1656
        %v1658 = vmul.f32 %v1581, %v1645
        %v1659 = vmul.f32 %v1580, %v1649
        %v1660 = vmul.f32 %v1579, %v1653
        %v1661 = vmul.f32 %v1582, %v1657
        %v1662 = vsub.f32 1.0, %v1638
        %v1663 = vsub.f32 1.0, %v1639
        %v1664 = vsub.f32 1.0, %v1640
        %v1665 = vsub.f32 1.0, %v1641
        %v1666 = vlaneseq
        %v1667 = vshrl.u32 %v1666, 7
        %v1668 = vsub.s32 0, %v1667
        %v1669 = vrot.slane %v1662, %v1668
        %v1670 = vlaneseq
        %v1671 = vshrl.u32 %v1670, 7
        %v1672 = vsub.s32 0, %v1671
        %v1673 = vrot.slane %v1663, %v1672
        %v1674 = vlaneseq
        %v1675 = vshrl.u32 %v1674, 7
        %v1676 = vsub.s32 0, %v1675
        %v1677 = vrot.slane %v1664, %v1676
        %v1678 = vlaneseq
        %v1679 = vshrl.u32 %v1678, 7
        %v1680 = vsub.s32 0, %v1679
        %v1681 = vrot.slane %v1665, %v1680
        %v1682 = vmul.f32 %v1595, %v1669
        %v1683 = vmul.f32 %v1594, %v1673
        %v1684 = vmul.f32 %v1593, %v1677
        %v1685 = vmul.f32 %v1592, %v1681
        %v1686 = vadd.f32 %v1658, %v1682
        %v1687 = vadd.f32 %v1659, %v1683
        %v1688 = vadd.f32 %v1660, %v1684
        %v1689 = vadd.f32 %v1661, %v1685
        %vm1690 = vmand %vm436, %vm437
        %v1691 = vsel %vm1690, 1, 0
        %v1692 = vcvt.s32.f32 %v1691
        %v1694 = vlaneseq
        %v1695 = vshrl.u32 %v1694, 7
        %v1696 = vsub.s32 0, %v1695
        %v1697 = vrot.slane %v1692, %v1696
        %v1698 = vlaneseq
        %v1699 = vshrl.u32 %v1698, 7
        %v1700 = vsub.s32 1, %v1699
        %v1701 = vrot.slane %v1692, %v1700
        %v1702 = vlaneseq
        %v1703 = vshrl.u32 %v1702, 7
        %v1704 = vsub.s32 2, %v1703
        %v1705 = vrot.slane %v1692, %v1704
        %v1706 = vlaneseq
        %v1707 = vshrl.u32 %v1706, 7
        %v1708 = vsub.s32 3, %v1707
        %v1709 = vrot.slane %v1692, %v1708
        %v1714 = vmul.f32 %v1686, %v1697
        %v1715 = vmul.f32 %v1687, %v1701
        %v1716 = vmul.f32 %v1688, %v1705
        %v1717 = vmul.f32 %v1689, %v1709
        %1718 = vst [vmem:[#allocation2 + $0x120] sm:$0xff] %v1714
        %1719 = vst [vmem:[#allocation2 + $0x128] sm:$0xff] %v1715
        %1720 = vst [vmem:[#allocation2 + $0x130] sm:$0xff] %v1716
        %1721 = vst [vmem:[#allocation2 + $0x138] sm:$0xff] %v1717
        %1722 = vrot.lane.b32.xlu0 %v286, 120
        %v1723 = vpop.permute.xlu0 %1722
        %1724 = vrot.lane.b32.xlu0 %v287, 120
        %v1725 = vpop.permute.xlu0 %1724
        %1726 = vrot.lane.b32.xlu0 %v288, 120
        %v1727 = vpop.permute.xlu0 %1726
        %1728 = vrot.lane.b32.xlu0 %v289, 120
        %v1729 = vpop.permute.xlu0 %1728
        %vm1730 = vcmp.lt.s32.totalorder %v301, 120
        %v1731 = vsel %vm1730, %v1727, %v1729
        %v1732 = vsel %vm1730, %v1725, %v1727
        %v1733 = vsel %vm1730, %v1723, %v1725
        %v1734 = vsel %vm1730, %v1729, %v1723
        %1735 = vrot.lane.b32.xlu0 %v286, 8
        %v1736 = vpop.permute.xlu0 %1735
        %1737 = vrot.lane.b32.xlu0 %v287, 8
        %v1738 = vpop.permute.xlu0 %1737
        %1739 = vrot.lane.b32.xlu0 %v288, 8
        %v1740 = vpop.permute.xlu0 %1739
        %1741 = vrot.lane.b32.xlu0 %v289, 8
        %v1742 = vpop.permute.xlu0 %1741
        %vm1743 = vcmp.lt.s32.totalorder %v301, 8
        %v1744 = vsel %vm1743, %v1740, %v1742
        %v1745 = vsel %vm1743, %v1738, %v1740
        %v1746 = vsel %vm1743, %v1736, %v1738
        %v1747 = vsel %vm1743, %v1742, %v1736
        %1748 = vrot.lane.b32.xlu0 %v324, 120
        %v1749 = vpop.permute.xlu0 %1748
        %1750 = vrot.lane.b32.xlu0 %v328, 120
        %v1751 = vpop.permute.xlu0 %1750
        %1752 = vrot.lane.b32.xlu0 %v332, 120
        %v1753 = vpop.permute.xlu0 %1752
        %1754 = vrot.lane.b32.xlu0 %v336, 120
        %v1755 = vpop.permute.xlu0 %1754
        %v1756 = vsel %vm1730, %v1753, %v1755
        %v1757 = vsel %vm1730, %v1751, %v1753
        %v1758 = vsel %vm1730, %v1749, %v1751
        %v1759 = vsel %vm1730, %v1755, %v1749
        %v1760 = vadd.f32 %v279, -8.0
        %v1762 = vlaneseq
        %v1763 = vshrl.u32 %v1762, 7
        %v1764 = vsub.s32 0, %v1763
        %v1765 = vrot.slane %v1760, %v1764
        %v1766 = vlaneseq
        %v1767 = vshrl.u32 %v1766, 7
        %v1768 = vsub.s32 1, %v1767
        %v1769 = vrot.slane %v1760, %v1768
        %v1770 = vlaneseq
        %v1771 = vshrl.u32 %v1770, 7
        %v1772 = vsub.s32 2, %v1771
        %v1773 = vrot.slane %v1760, %v1772
        %v1774 = vlaneseq
        %v1775 = vshrl.u32 %v1774, 7
        %v1776 = vsub.s32 3, %v1775
        %v1777 = vrot.slane %v1760, %v1776
        %vm1782 = vcmp.eq.f32.partialorder %v1758, %v1765
        %vm1783 = vcmp.eq.f32.partialorder %v1757, %v1769
        %vm1784 = vcmp.eq.f32.partialorder %v1756, %v1773
        %vm1785 = vcmp.eq.f32.partialorder %v1759, %v1777
        %v1786 = vsel %vm1782, 1, 0
        %v1787 = vsel %vm1783, 1, 0
        %v1788 = vsel %vm1784, 1, 0
        %v1789 = vsel %vm1785, 1, 0
        %v1790 = vcvt.s32.f32 %v1786
        %v1791 = vcvt.s32.f32 %v1787
        %v1792 = vcvt.s32.f32 %v1788
        %v1793 = vcvt.s32.f32 %v1789
        %v1794 = vlaneseq
        %v1795 = vshrl.u32 %v1794, 7
        %v1796 = vsub.s32 0, %v1795
        %v1797 = vrot.slane %v1790, %v1796
        %v1798 = vlaneseq
        %v1799 = vshrl.u32 %v1798, 7
        %v1800 = vsub.s32 0, %v1799
        %v1801 = vrot.slane %v1791, %v1800
        %v1802 = vlaneseq
        %v1803 = vshrl.u32 %v1802, 7
        %v1804 = vsub.s32 0, %v1803
        %v1805 = vrot.slane %v1792, %v1804
        %v1806 = vlaneseq
        %v1807 = vshrl.u32 %v1806, 7
        %v1808 = vsub.s32 0, %v1807
        %v1809 = vrot.slane %v1793, %v1808
        %v1810 = vmul.f32 %v1733, %v1797
        %v1811 = vmul.f32 %v1732, %v1801
        %v1812 = vmul.f32 %v1731, %v1805
        %v1813 = vmul.f32 %v1734, %v1809
        %v1814 = vsub.f32 1.0, %v1790
        %v1815 = vsub.f32 1.0, %v1791
        %v1816 = vsub.f32 1.0, %v1792
        %v1817 = vsub.f32 1.0, %v1793
        %v1818 = vlaneseq
        %v1819 = vshrl.u32 %v1818, 7
        %v1820 = vsub.s32 0, %v1819
        %v1821 = vrot.slane %v1814, %v1820
        %v1822 = vlaneseq
        %v1823 = vshrl.u32 %v1822, 7
        %v1824 = vsub.s32 0, %v1823
        %v1825 = vrot.slane %v1815, %v1824
        %v1826 = vlaneseq
        %v1827 = vshrl.u32 %v1826, 7
        %v1828 = vsub.s32 0, %v1827
        %v1829 = vrot.slane %v1816, %v1828
        %v1830 = vlaneseq
        %v1831 = vshrl.u32 %v1830, 7
        %v1832 = vsub.s32 0, %v1831
        %v1833 = vrot.slane %v1817, %v1832
        %v1834 = vmul.f32 %v1747, %v1821
        %v1835 = vmul.f32 %v1746, %v1825
        %v1836 = vmul.f32 %v1745, %v1829
        %v1837 = vmul.f32 %v1744, %v1833
        %v1838 = vadd.f32 %v1810, %v1834
        %v1839 = vadd.f32 %v1811, %v1835
        %v1840 = vadd.f32 %v1812, %v1836
        %v1841 = vadd.f32 %v1813, %v1837
        %v1842 = vsel %vm436, 1, 0
        %v1843 = vcvt.s32.f32 %v1842
        %v1845 = vlaneseq
        %v1846 = vshrl.u32 %v1845, 7
        %v1847 = vsub.s32 0, %v1846
        %v1848 = vrot.slane %v1843, %v1847
        %v1849 = vlaneseq
        %v1850 = vshrl.u32 %v1849, 7
        %v1851 = vsub.s32 1, %v1850
        %v1852 = vrot.slane %v1843, %v1851
        %v1853 = vlaneseq
        %v1854 = vshrl.u32 %v1853, 7
        %v1855 = vsub.s32 2, %v1854
        %v1856 = vrot.slane %v1843, %v1855
        %v1857 = vlaneseq
        %v1858 = vshrl.u32 %v1857, 7
        %v1859 = vsub.s32 3, %v1858
        %v1860 = vrot.slane %v1843, %v1859
        %v1865 = vmul.f32 %v1838, %v1848
        %v1866 = vmul.f32 %v1839, %v1852
        %v1867 = vmul.f32 %v1840, %v1856
        %v1868 = vmul.f32 %v1841, %v1860
        %1869 = vst [vmem:[#allocation2 + $0x140] sm:$0xff] %v1865
        %1870 = vst [vmem:[#allocation2 + $0x148] sm:$0xff] %v1866
        %1871 = vst [vmem:[#allocation2 + $0x150] sm:$0xff] %v1867
        %1872 = vst [vmem:[#allocation2 + $0x158] sm:$0xff] %v1868
        %1873 = vrot.lane.b32.xlu0 %v286, 121
        %v1874 = vpop.permute.xlu0 %1873
        %1875 = vrot.lane.b32.xlu0 %v287, 121
        %v1876 = vpop.permute.xlu0 %1875
        %1877 = vrot.lane.b32.xlu0 %v288, 121
        %v1878 = vpop.permute.xlu0 %1877
        %1879 = vrot.lane.b32.xlu0 %v289, 121
        %v1880 = vpop.permute.xlu0 %1879
        %vm1881 = vcmp.lt.s32.totalorder %v301, 121
        %v1882 = vsel %vm1881, %v1878, %v1880
        %v1883 = vsel %vm1881, %v1876, %v1878
        %v1884 = vsel %vm1881, %v1874, %v1876
        %v1885 = vsel %vm1881, %v1880, %v1874
        %1886 = vrot.lane.b32.xlu0 %v286, 7
        %v1887 = vpop.permute.xlu0 %1886
        %1888 = vrot.lane.b32.xlu0 %v287, 7
        %v1889 = vpop.permute.xlu0 %1888
        %1890 = vrot.lane.b32.xlu0 %v288, 7
        %v1891 = vpop.permute.xlu0 %1890
        %1892 = vrot.lane.b32.xlu0 %v289, 7
        %v1893 = vpop.permute.xlu0 %1892
        %vm1894 = vcmp.lt.s32.totalorder %v301, 7
        %v1895 = vsel %vm1894, %v1891, %v1893
        %v1896 = vsel %vm1894, %v1889, %v1891
        %v1897 = vsel %vm1894, %v1887, %v1889
        %v1898 = vsel %vm1894, %v1893, %v1887
        %1899 = vrot.lane.b32.xlu0 %v324, 121
        %v1900 = vpop.permute.xlu0 %1899
        %1901 = vrot.lane.b32.xlu0 %v328, 121
        %v1902 = vpop.permute.xlu0 %1901
        %1903 = vrot.lane.b32.xlu0 %v332, 121
        %v1904 = vpop.permute.xlu0 %1903
        %1905 = vrot.lane.b32.xlu0 %v336, 121
        %v1906 = vpop.permute.xlu0 %1905
        %v1907 = vsel %vm1881, %v1904, %v1906
        %v1908 = vsel %vm1881, %v1902, %v1904
        %v1909 = vsel %vm1881, %v1900, %v1902
        %v1910 = vsel %vm1881, %v1906, %v1900
        %v1911 = vadd.f32 %v279, -7.0
        %v1913 = vlaneseq
        %v1914 = vshrl.u32 %v1913, 7
        %v1915 = vsub.s32 0, %v1914
        %v1916 = vrot.slane %v1911, %v1915
        %v1917 = vlaneseq
        %v1918 = vshrl.u32 %v1917, 7
        %v1919 = vsub.s32 1, %v1918
        %v1920 = vrot.slane %v1911, %v1919
        %v1921 = vlaneseq
        %v1922 = vshrl.u32 %v1921, 7
        %v1923 = vsub.s32 2, %v1922
        %v1924 = vrot.slane %v1911, %v1923
        %v1925 = vlaneseq
        %v1926 = vshrl.u32 %v1925, 7
        %v1927 = vsub.s32 3, %v1926
        %v1928 = vrot.slane %v1911, %v1927
        %vm1933 = vcmp.eq.f32.partialorder %v1909, %v1916
        %vm1934 = vcmp.eq.f32.partialorder %v1908, %v1920
        %vm1935 = vcmp.eq.f32.partialorder %v1907, %v1924
        %vm1936 = vcmp.eq.f32.partialorder %v1910, %v1928
        %v1937 = vsel %vm1933, 1, 0
        %v1938 = vsel %vm1934, 1, 0
        %v1939 = vsel %vm1935, 1, 0
        %v1940 = vsel %vm1936, 1, 0
        %v1941 = vcvt.s32.f32 %v1937
        %v1942 = vcvt.s32.f32 %v1938
        %v1943 = vcvt.s32.f32 %v1939
        %v1944 = vcvt.s32.f32 %v1940
        %v1945 = vlaneseq
        %v1946 = vshrl.u32 %v1945, 7
        %v1947 = vsub.s32 0, %v1946
        %v1948 = vrot.slane %v1941, %v1947
        %v1949 = vlaneseq
        %v1950 = vshrl.u32 %v1949, 7
        %v1951 = vsub.s32 0, %v1950
        %v1952 = vrot.slane %v1942, %v1951
        %v1953 = vlaneseq
        %v1954 = vshrl.u32 %v1953, 7
        %v1955 = vsub.s32 0, %v1954
        %v1956 = vrot.slane %v1943, %v1955
        %v1957 = vlaneseq
        %v1958 = vshrl.u32 %v1957, 7
        %v1959 = vsub.s32 0, %v1958
        %v1960 = vrot.slane %v1944, %v1959
        %v1961 = vmul.f32 %v1884, %v1948
        %v1962 = vmul.f32 %v1883, %v1952
        %v1963 = vmul.f32 %v1882, %v1956
        %v1964 = vmul.f32 %v1885, %v1960
        %v1965 = vsub.f32 1.0, %v1941
        %v1966 = vsub.f32 1.0, %v1942
        %v1967 = vsub.f32 1.0, %v1943
        %v1968 = vsub.f32 1.0, %v1944
        %v1969 = vlaneseq
        %v1970 = vshrl.u32 %v1969, 7
        %v1971 = vsub.s32 0, %v1970
        %v1972 = vrot.slane %v1965, %v1971
        %v1973 = vlaneseq
        %v1974 = vshrl.u32 %v1973, 7
        %v1975 = vsub.s32 0, %v1974
        %v1976 = vrot.slane %v1966, %v1975
        %v1977 = vlaneseq
        %v1978 = vshrl.u32 %v1977, 7
        %v1979 = vsub.s32 0, %v1978
        %v1980 = vrot.slane %v1967, %v1979
        %v1981 = vlaneseq
        %v1982 = vshrl.u32 %v1981, 7
        %v1983 = vsub.s32 0, %v1982
        %v1984 = vrot.slane %v1968, %v1983
        %v1985 = vmul.f32 %v1898, %v1972
        %v1986 = vmul.f32 %v1897, %v1976
        %v1987 = vmul.f32 %v1896, %v1980
        %v1988 = vmul.f32 %v1895, %v1984
        %v1989 = vadd.f32 %v1961, %v1985
        %v1990 = vadd.f32 %v1962, %v1986
        %v1991 = vadd.f32 %v1963, %v1987
        %v1992 = vadd.f32 %v1964, %v1988
        %vm1993 = vmand %vm436, %vm742
        %v1994 = vsel %vm1993, 1, 0
        %v1995 = vcvt.s32.f32 %v1994
        %v1997 = vlaneseq
        %v1998 = vshrl.u32 %v1997, 7
        %v1999 = vsub.s32 0, %v1998
        %v2000 = vrot.slane %v1995, %v1999
        %v2001 = vlaneseq
        %v2002 = vshrl.u32 %v2001, 7
        %v2003 = vsub.s32 1, %v2002
        %v2004 = vrot.slane %v1995, %v2003
        %v2005 = vlaneseq
        %v2006 = vshrl.u32 %v2005, 7
        %v2007 = vsub.s32 2, %v2006
        %v2008 = vrot.slane %v1995, %v2007
        %v2009 = vlaneseq
        %v2010 = vshrl.u32 %v2009, 7
        %v2011 = vsub.s32 3, %v2010
        %v2012 = vrot.slane %v1995, %v2011
        %v2017 = vmul.f32 %v1989, %v2000
        %v2018 = vmul.f32 %v1990, %v2004
        %v2019 = vmul.f32 %v1991, %v2008
        %v2020 = vmul.f32 %v1992, %v2012
        %2021 = vst [vmem:[#allocation2 + $0x160] sm:$0xff] %v2017
        %2022 = vst [vmem:[#allocation2 + $0x168] sm:$0xff] %v2018
        %2023 = vst [vmem:[#allocation2 + $0x170] sm:$0xff] %v2019
        %2024 = vst [vmem:[#allocation2 + $0x178] sm:$0xff] %v2020
        %2025 = vrot.lane.b32.xlu0 %v286, 127
        %v2026 = vpop.permute.xlu0 %2025
        %2027 = vrot.lane.b32.xlu0 %v287, 127
        %v2028 = vpop.permute.xlu0 %2027
        %2029 = vrot.lane.b32.xlu0 %v288, 127
        %v2030 = vpop.permute.xlu0 %2029
        %2031 = vrot.lane.b32.xlu0 %v289, 127
        %v2032 = vpop.permute.xlu0 %2031
        %vm2033 = vcmp.lt.s32.totalorder %v301, 127
        %v2034 = vsel %vm2033, %v2030, %v2032
        %v2035 = vsel %vm2033, %v2028, %v2030
        %v2036 = vsel %vm2033, %v2026, %v2028
        %v2037 = vsel %vm2033, %v2032, %v2026
        %2038 = vrot.lane.b32.xlu0 %v286, 1
        %v2039 = vpop.permute.xlu0 %2038
        %2040 = vrot.lane.b32.xlu0 %v287, 1
        %v2041 = vpop.permute.xlu0 %2040
        %2042 = vrot.lane.b32.xlu0 %v288, 1
        %v2043 = vpop.permute.xlu0 %2042
        %2044 = vrot.lane.b32.xlu0 %v289, 1
        %v2045 = vpop.permute.xlu0 %2044
        %vm2046 = vcmp.lt.s32.totalorder %v301, 1
        %v2047 = vsel %vm2046, %v2043, %v2045
        %v2048 = vsel %vm2046, %v2041, %v2043
        %v2049 = vsel %vm2046, %v2039, %v2041
        %v2050 = vsel %vm2046, %v2045, %v2039
        %2051 = vrot.lane.b32.xlu0 %v324, 127
        %v2052 = vpop.permute.xlu0 %2051
        %2053 = vrot.lane.b32.xlu0 %v328, 127
        %v2054 = vpop.permute.xlu0 %2053
        %2055 = vrot.lane.b32.xlu0 %v332, 127
        %v2056 = vpop.permute.xlu0 %2055
        %2057 = vrot.lane.b32.xlu0 %v336, 127
        %v2058 = vpop.permute.xlu0 %2057
        %v2059 = vsel %vm2033, %v2056, %v2058
        %v2060 = vsel %vm2033, %v2054, %v2056
        %v2061 = vsel %vm2033, %v2052, %v2054
        %v2062 = vsel %vm2033, %v2058, %v2052
        %v2063 = vadd.f32 %v279, -1.0
        %v2065 = vlaneseq
        %v2066 = vshrl.u32 %v2065, 7
        %v2067 = vsub.s32 0, %v2066
        %v2068 = vrot.slane %v2063, %v2067
        %v2069 = vlaneseq
        %v2070 = vshrl.u32 %v2069, 7
        %v2071 = vsub.s32 1, %v2070
        %v2072 = vrot.slane %v2063, %v2071
        %v2073 = vlaneseq
        %v2074 = vshrl.u32 %v2073, 7
        %v2075 = vsub.s32 2, %v2074
        %v2076 = vrot.slane %v2063, %v2075
        %v2077 = vlaneseq
        %v2078 = vshrl.u32 %v2077, 7
        %v2079 = vsub.s32 3, %v2078
        %v2080 = vrot.slane %v2063, %v2079
        %vm2085 = vcmp.eq.f32.partialorder %v2061, %v2068
        %vm2086 = vcmp.eq.f32.partialorder %v2060, %v2072
        %vm2087 = vcmp.eq.f32.partialorder %v2059, %v2076
        %vm2088 = vcmp.eq.f32.partialorder %v2062, %v2080
        %v2089 = vsel %vm2085, 1, 0
        %v2090 = vsel %vm2086, 1, 0
        %v2091 = vsel %vm2087, 1, 0
        %v2092 = vsel %vm2088, 1, 0
        %v2093 = vcvt.s32.f32 %v2089
        %v2094 = vcvt.s32.f32 %v2090
        %v2095 = vcvt.s32.f32 %v2091
        %v2096 = vcvt.s32.f32 %v2092
        %v2097 = vlaneseq
        %v2098 = vshrl.u32 %v2097, 7
        %v2099 = vsub.s32 0, %v2098
        %v2100 = vrot.slane %v2093, %v2099
        %v2101 = vlaneseq
        %v2102 = vshrl.u32 %v2101, 7
        %v2103 = vsub.s32 0, %v2102
        %v2104 = vrot.slane %v2094, %v2103
        %v2105 = vlaneseq
        %v2106 = vshrl.u32 %v2105, 7
        %v2107 = vsub.s32 0, %v2106
        %v2108 = vrot.slane %v2095, %v2107
        %v2109 = vlaneseq
        %v2110 = vshrl.u32 %v2109, 7
        %v2111 = vsub.s32 0, %v2110
        %v2112 = vrot.slane %v2096, %v2111
        %v2113 = vmul.f32 %v2036, %v2100
        %v2114 = vmul.f32 %v2035, %v2104
        %v2115 = vmul.f32 %v2034, %v2108
        %v2116 = vmul.f32 %v2037, %v2112
        %v2117 = vsub.f32 1.0, %v2093
        %v2118 = vsub.f32 1.0, %v2094
        %v2119 = vsub.f32 1.0, %v2095
        %v2120 = vsub.f32 1.0, %v2096
        %v2121 = vlaneseq
        %v2122 = vshrl.u32 %v2121, 7
        %v2123 = vsub.s32 0, %v2122
        %v2124 = vrot.slane %v2117, %v2123
        %v2125 = vlaneseq
        %v2126 = vshrl.u32 %v2125, 7
        %v2127 = vsub.s32 0, %v2126
        %v2128 = vrot.slane %v2118, %v2127
        %v2129 = vlaneseq
        %v2130 = vshrl.u32 %v2129, 7
        %v2131 = vsub.s32 0, %v2130
        %v2132 = vrot.slane %v2119, %v2131
        %v2133 = vlaneseq
        %v2134 = vshrl.u32 %v2133, 7
        %v2135 = vsub.s32 0, %v2134
        %v2136 = vrot.slane %v2120, %v2135
        %v2137 = vmul.f32 %v2050, %v2124
        %v2138 = vmul.f32 %v2049, %v2128
        %v2139 = vmul.f32 %v2048, %v2132
        %v2140 = vmul.f32 %v2047, %v2136
        %v2141 = vadd.f32 %v2113, %v2137
        %v2142 = vadd.f32 %v2114, %v2138
        %v2143 = vadd.f32 %v2115, %v2139
        %v2144 = vadd.f32 %v2116, %v2140
        %v2145 = vsel %vm437, 1, 0
        %v2146 = vcvt.s32.f32 %v2145
        %v2148 = vlaneseq
        %v2149 = vshrl.u32 %v2148, 7
        %v2150 = vsub.s32 0, %v2149
        %v2151 = vrot.slane %v2146, %v2150
        %v2152 = vlaneseq
        %v2153 = vshrl.u32 %v2152, 7
        %v2154 = vsub.s32 1, %v2153
        %v2155 = vrot.slane %v2146, %v2154
        %v2156 = vlaneseq
        %v2157 = vshrl.u32 %v2156, 7
        %v2158 = vsub.s32 2, %v2157
        %v2159 = vrot.slane %v2146, %v2158
        %v2160 = vlaneseq
        %v2161 = vshrl.u32 %v2160, 7
        %v2162 = vsub.s32 3, %v2161
        %v2163 = vrot.slane %v2146, %v2162
        %v2168 = vmul.f32 %v2141, %v2151
        %v2169 = vmul.f32 %v2142, %v2155
        %v2170 = vmul.f32 %v2143, %v2159
        %v2171 = vmul.f32 %v2144, %v2163
        %2172 = vst [vmem:[#allocation2 + $0x180] sm:$0xff] %v2168
        %2173 = vst [vmem:[#allocation2 + $0x188] sm:$0xff] %v2169
        %2174 = vst [vmem:[#allocation2 + $0x190] sm:$0xff] %v2170
        %2175 = vst [vmem:[#allocation2 + $0x198] sm:$0xff] %v2171
        %2176 = vst [vmem:[#allocation2 + $0x1a0] sm:$0xff] %v286
        %2177 = vst [vmem:[#allocation2 + $0x1a8] sm:$0xff] %v287
        %2178 = vst [vmem:[#allocation2 + $0x1b0] sm:$0xff] %v288
        %2179 = vst [vmem:[#allocation2 + $0x1b8] sm:$0xff] %v289
        %2180 = vrot.lane.b32.xlu0 %v324, 1
        %v2181 = vpop.permute.xlu0 %2180
        %2182 = vrot.lane.b32.xlu0 %v328, 1
        %v2183 = vpop.permute.xlu0 %2182
        %2184 = vrot.lane.b32.xlu0 %v332, 1
        %v2185 = vpop.permute.xlu0 %2184
        %2186 = vrot.lane.b32.xlu0 %v336, 1
        %v2187 = vpop.permute.xlu0 %2186
        %v2188 = vsel %vm2046, %v2185, %v2187
        %v2189 = vsel %vm2046, %v2183, %v2185
        %v2190 = vsel %vm2046, %v2181, %v2183
        %v2191 = vsel %vm2046, %v2187, %v2181
        %v2192 = vadd.f32 %v279, 1.0
        %v2194 = vlaneseq
        %v2195 = vshrl.u32 %v2194, 7
        %v2196 = vsub.s32 0, %v2195
        %v2197 = vrot.slane %v2192, %v2196
        %v2198 = vlaneseq
        %v2199 = vshrl.u32 %v2198, 7
        %v2200 = vsub.s32 1, %v2199
        %v2201 = vrot.slane %v2192, %v2200
        %v2202 = vlaneseq
        %v2203 = vshrl.u32 %v2202, 7
        %v2204 = vsub.s32 2, %v2203
        %v2205 = vrot.slane %v2192, %v2204
        %v2206 = vlaneseq
        %v2207 = vshrl.u32 %v2206, 7
        %v2208 = vsub.s32 3, %v2207
        %v2209 = vrot.slane %v2192, %v2208
        %vm2214 = vcmp.eq.f32.partialorder %v2191, %v2197
        %vm2215 = vcmp.eq.f32.partialorder %v2190, %v2201
        %vm2216 = vcmp.eq.f32.partialorder %v2189, %v2205
        %vm2217 = vcmp.eq.f32.partialorder %v2188, %v2209
        %v2218 = vsel %vm2214, 1, 0
        %v2219 = vsel %vm2215, 1, 0
        %v2220 = vsel %vm2216, 1, 0
        %v2221 = vsel %vm2217, 1, 0
        %v2222 = vcvt.s32.f32 %v2218
        %v2223 = vcvt.s32.f32 %v2219
        %v2224 = vcvt.s32.f32 %v2220
        %v2225 = vcvt.s32.f32 %v2221
        %v2226 = vlaneseq
        %v2227 = vshrl.u32 %v2226, 7
        %v2228 = vsub.s32 0, %v2227
        %v2229 = vrot.slane %v2222, %v2228
        %v2230 = vlaneseq
        %v2231 = vshrl.u32 %v2230, 7
        %v2232 = vsub.s32 0, %v2231
        %v2233 = vrot.slane %v2223, %v2232
        %v2234 = vlaneseq
        %v2235 = vshrl.u32 %v2234, 7
        %v2236 = vsub.s32 0, %v2235
        %v2237 = vrot.slane %v2224, %v2236
        %v2238 = vlaneseq
        %v2239 = vshrl.u32 %v2238, 7
        %v2240 = vsub.s32 0, %v2239
        %v2241 = vrot.slane %v2225, %v2240
        %v2242 = vmul.f32 %v2050, %v2229
        %v2243 = vmul.f32 %v2049, %v2233
        %v2244 = vmul.f32 %v2048, %v2237
        %v2245 = vmul.f32 %v2047, %v2241
        %v2246 = vsub.f32 1.0, %v2222
        %v2247 = vsub.f32 1.0, %v2223
        %v2248 = vsub.f32 1.0, %v2224
        %v2249 = vsub.f32 1.0, %v2225
        %v2250 = vlaneseq
        %v2251 = vshrl.u32 %v2250, 7
        %v2252 = vsub.s32 0, %v2251
        %v2253 = vrot.slane %v2246, %v2252
        %v2254 = vlaneseq
        %v2255 = vshrl.u32 %v2254, 7
        %v2256 = vsub.s32 0, %v2255
        %v2257 = vrot.slane %v2247, %v2256
        %v2258 = vlaneseq
        %v2259 = vshrl.u32 %v2258, 7
        %v2260 = vsub.s32 0, %v2259
        %v2261 = vrot.slane %v2248, %v2260
        %v2262 = vlaneseq
        %v2263 = vshrl.u32 %v2262, 7
        %v2264 = vsub.s32 0, %v2263
        %v2265 = vrot.slane %v2249, %v2264
        %v2266 = vmul.f32 %v2036, %v2253
        %v2267 = vmul.f32 %v2035, %v2257
        %v2268 = vmul.f32 %v2034, %v2261
        %v2269 = vmul.f32 %v2037, %v2265
        %v2270 = vadd.f32 %v2242, %v2266
        %v2271 = vadd.f32 %v2243, %v2267
        %v2272 = vadd.f32 %v2244, %v2268
        %v2273 = vadd.f32 %v2245, %v2269
        %v2274 = vsel %vm742, 1, 0
        %v2275 = vcvt.s32.f32 %v2274
        %v2277 = vlaneseq
        %v2278 = vshrl.u32 %v2277, 7
        %v2279 = vsub.s32 0, %v2278
        %v2280 = vrot.slane %v2275, %v2279
        %v2281 = vlaneseq
        %v2282 = vshrl.u32 %v2281, 7
        %v2283 = vsub.s32 1, %v2282
        %v2284 = vrot.slane %v2275, %v2283
        %v2285 = vlaneseq
        %v2286 = vshrl.u32 %v2285, 7
        %v2287 = vsub.s32 2, %v2286
        %v2288 = vrot.slane %v2275, %v2287
        %v2289 = vlaneseq
        %v2290 = vshrl.u32 %v2289, 7
        %v2291 = vsub.s32 3, %v2290
        %v2292 = vrot.slane %v2275, %v2291
        %v2297 = vmul.f32 %v2270, %v2280
        %v2298 = vmul.f32 %v2271, %v2284
        %v2299 = vmul.f32 %v2272, %v2288
        %v2300 = vmul.f32 %v2273, %v2292
        %2301 = vst [vmem:[#allocation2 + $0x1c0] sm:$0xff] %v2297
        %2302 = vst [vmem:[#allocation2 + $0x1c8] sm:$0xff] %v2298
        %2303 = vst [vmem:[#allocation2 + $0x1d0] sm:$0xff] %v2299
        %2304 = vst [vmem:[#allocation2 + $0x1d8] sm:$0xff] %v2300
        %2305 = vrot.lane.b32.xlu0 %v324, 7
        %v2306 = vpop.permute.xlu0 %2305
        %2307 = vrot.lane.b32.xlu0 %v328, 7
        %v2308 = vpop.permute.xlu0 %2307
        %2309 = vrot.lane.b32.xlu0 %v332, 7
        %v2310 = vpop.permute.xlu0 %2309
        %2311 = vrot.lane.b32.xlu0 %v336, 7
        %v2312 = vpop.permute.xlu0 %2311
        %v2313 = vsel %vm1894, %v2310, %v2312
        %v2314 = vsel %vm1894, %v2308, %v2310
        %v2315 = vsel %vm1894, %v2306, %v2308
        %v2316 = vsel %vm1894, %v2312, %v2306
        %v2317 = vadd.f32 %v279, 7.0
        %v2319 = vlaneseq
        %v2320 = vshrl.u32 %v2319, 7
        %v2321 = vsub.s32 0, %v2320
        %v2322 = vrot.slane %v2317, %v2321
        %v2323 = vlaneseq
        %v2324 = vshrl.u32 %v2323, 7
        %v2325 = vsub.s32 1, %v2324
        %v2326 = vrot.slane %v2317, %v2325
        %v2327 = vlaneseq
        %v2328 = vshrl.u32 %v2327, 7
        %v2329 = vsub.s32 2, %v2328
        %v2330 = vrot.slane %v2317, %v2329
        %v2331 = vlaneseq
        %v2332 = vshrl.u32 %v2331, 7
        %v2333 = vsub.s32 3, %v2332
        %v2334 = vrot.slane %v2317, %v2333
        %vm2339 = vcmp.eq.f32.partialorder %v2316, %v2322
        %vm2340 = vcmp.eq.f32.partialorder %v2315, %v2326
        %vm2341 = vcmp.eq.f32.partialorder %v2314, %v2330
        %vm2342 = vcmp.eq.f32.partialorder %v2313, %v2334
        %v2343 = vsel %vm2339, 1, 0
        %v2344 = vsel %vm2340, 1, 0
        %v2345 = vsel %vm2341, 1, 0
        %v2346 = vsel %vm2342, 1, 0
        %v2347 = vcvt.s32.f32 %v2343
        %v2348 = vcvt.s32.f32 %v2344
        %v2349 = vcvt.s32.f32 %v2345
        %v2350 = vcvt.s32.f32 %v2346
        %v2351 = vlaneseq
        %v2352 = vshrl.u32 %v2351, 7
        %v2353 = vsub.s32 0, %v2352
        %v2354 = vrot.slane %v2347, %v2353
        %v2355 = vlaneseq
        %v2356 = vshrl.u32 %v2355, 7
        %v2357 = vsub.s32 0, %v2356
        %v2358 = vrot.slane %v2348, %v2357
        %v2359 = vlaneseq
        %v2360 = vshrl.u32 %v2359, 7
        %v2361 = vsub.s32 0, %v2360
        %v2362 = vrot.slane %v2349, %v2361
        %v2363 = vlaneseq
        %v2364 = vshrl.u32 %v2363, 7
        %v2365 = vsub.s32 0, %v2364
        %v2366 = vrot.slane %v2350, %v2365
        %v2367 = vmul.f32 %v1898, %v2354
        %v2368 = vmul.f32 %v1897, %v2358
        %v2369 = vmul.f32 %v1896, %v2362
        %v2370 = vmul.f32 %v1895, %v2366
        %v2371 = vsub.f32 1.0, %v2347
        %v2372 = vsub.f32 1.0, %v2348
        %v2373 = vsub.f32 1.0, %v2349
        %v2374 = vsub.f32 1.0, %v2350
        %v2375 = vlaneseq
        %v2376 = vshrl.u32 %v2375, 7
        %v2377 = vsub.s32 0, %v2376
        %v2378 = vrot.slane %v2371, %v2377
        %v2379 = vlaneseq
        %v2380 = vshrl.u32 %v2379, 7
        %v2381 = vsub.s32 0, %v2380
        %v2382 = vrot.slane %v2372, %v2381
        %v2383 = vlaneseq
        %v2384 = vshrl.u32 %v2383, 7
        %v2385 = vsub.s32 0, %v2384
        %v2386 = vrot.slane %v2373, %v2385
        %v2387 = vlaneseq
        %v2388 = vshrl.u32 %v2387, 7
        %v2389 = vsub.s32 0, %v2388
        %v2390 = vrot.slane %v2374, %v2389
        %v2391 = vmul.f32 %v1884, %v2378
        %v2392 = vmul.f32 %v1883, %v2382
        %v2393 = vmul.f32 %v1882, %v2386
        %v2394 = vmul.f32 %v1885, %v2390
        %v2395 = vadd.f32 %v2367, %v2391
        %v2396 = vadd.f32 %v2368, %v2392
        %v2397 = vadd.f32 %v2369, %v2393
        %v2398 = vadd.f32 %v2370, %v2394
        %vm2399 = vmand %vm1285, %vm437
        %v2400 = vsel %vm2399, 1, 0
        %v2401 = vcvt.s32.f32 %v2400
        %v2403 = vlaneseq
        %v2404 = vshrl.u32 %v2403, 7
        %v2405 = vsub.s32 0, %v2404
        %v2406 = vrot.slane %v2401, %v2405
        %v2407 = vlaneseq
        %v2408 = vshrl.u32 %v2407, 7
        %v2409 = vsub.s32 1, %v2408
        %v2410 = vrot.slane %v2401, %v2409
        %v2411 = vlaneseq
        %v2412 = vshrl.u32 %v2411, 7
        %v2413 = vsub.s32 2, %v2412
        %v2414 = vrot.slane %v2401, %v2413
        %v2415 = vlaneseq
        %v2416 = vshrl.u32 %v2415, 7
        %v2417 = vsub.s32 3, %v2416
        %v2418 = vrot.slane %v2401, %v2417
        %v2423 = vmul.f32 %v2395, %v2406
        %v2424 = vmul.f32 %v2396, %v2410
        %v2425 = vmul.f32 %v2397, %v2414
        %v2426 = vmul.f32 %v2398, %v2418
        %2427 = vst [vmem:[#allocation2 + $0x1e0] sm:$0xff] %v2423
        %2428 = vst [vmem:[#allocation2 + $0x1e8] sm:$0xff] %v2424
        %2429 = vst [vmem:[#allocation2 + $0x1f0] sm:$0xff] %v2425
        %2430 = vst [vmem:[#allocation2 + $0x1f8] sm:$0xff] %v2426
        %2431 = vrot.lane.b32.xlu0 %v324, 8
        %v2432 = vpop.permute.xlu0 %2431
        %2433 = vrot.lane.b32.xlu0 %v328, 8
        %v2434 = vpop.permute.xlu0 %2433
        %2435 = vrot.lane.b32.xlu0 %v332, 8
        %v2436 = vpop.permute.xlu0 %2435
        %2437 = vrot.lane.b32.xlu0 %v336, 8
        %v2438 = vpop.permute.xlu0 %2437
        %v2439 = vsel %vm1743, %v2436, %v2438
        %v2440 = vsel %vm1743, %v2434, %v2436
        %v2441 = vsel %vm1743, %v2432, %v2434
        %v2442 = vsel %vm1743, %v2438, %v2432
        %v2443 = vadd.f32 %v279, 8.0
        %v2445 = vlaneseq
        %v2446 = vshrl.u32 %v2445, 7
        %v2447 = vsub.s32 0, %v2446
        %v2448 = vrot.slane %v2443, %v2447
        %v2449 = vlaneseq
        %v2450 = vshrl.u32 %v2449, 7
        %v2451 = vsub.s32 1, %v2450
        %v2452 = vrot.slane %v2443, %v2451
        %v2453 = vlaneseq
        %v2454 = vshrl.u32 %v2453, 7
        %v2455 = vsub.s32 2, %v2454
        %v2456 = vrot.slane %v2443, %v2455
        %v2457 = vlaneseq
        %v2458 = vshrl.u32 %v2457, 7
        %v2459 = vsub.s32 3, %v2458
        %v2460 = vrot.slane %v2443, %v2459
        %vm2465 = vcmp.eq.f32.partialorder %v2442, %v2448
        %vm2466 = vcmp.eq.f32.partialorder %v2441, %v2452
        %vm2467 = vcmp.eq.f32.partialorder %v2440, %v2456
        %vm2468 = vcmp.eq.f32.partialorder %v2439, %v2460
        %v2469 = vsel %vm2465, 1, 0
        %v2470 = vsel %vm2466, 1, 0
        %v2471 = vsel %vm2467, 1, 0
        %v2472 = vsel %vm2468, 1, 0
        %v2473 = vcvt.s32.f32 %v2469
        %v2474 = vcvt.s32.f32 %v2470
        %v2475 = vcvt.s32.f32 %v2471
        %v2476 = vcvt.s32.f32 %v2472
        %v2477 = vlaneseq
        %v2478 = vshrl.u32 %v2477, 7
        %v2479 = vsub.s32 0, %v2478
        %v2480 = vrot.slane %v2473, %v2479
        %v2481 = vlaneseq
        %v2482 = vshrl.u32 %v2481, 7
        %v2483 = vsub.s32 0, %v2482
        %v2484 = vrot.slane %v2474, %v2483
        %v2485 = vlaneseq
        %v2486 = vshrl.u32 %v2485, 7
        %v2487 = vsub.s32 0, %v2486
        %v2488 = vrot.slane %v2475, %v2487
        %v2489 = vlaneseq
        %v2490 = vshrl.u32 %v2489, 7
        %v2491 = vsub.s32 0, %v2490
        %v2492 = vrot.slane %v2476, %v2491
        %v2493 = vmul.f32 %v1747, %v2480
        %v2494 = vmul.f32 %v1746, %v2484
        %v2495 = vmul.f32 %v1745, %v2488
        %v2496 = vmul.f32 %v1744, %v2492
        %v2497 = vsub.f32 1.0, %v2473
        %v2498 = vsub.f32 1.0, %v2474
        %v2499 = vsub.f32 1.0, %v2475
        %v2500 = vsub.f32 1.0, %v2476
        %v2501 = vlaneseq
        %v2502 = vshrl.u32 %v2501, 7
        %v2503 = vsub.s32 0, %v2502
        %v2504 = vrot.slane %v2497, %v2503
        %v2505 = vlaneseq
        %v2506 = vshrl.u32 %v2505, 7
        %v2507 = vsub.s32 0, %v2506
        %v2508 = vrot.slane %v2498, %v2507
        %v2509 = vlaneseq
        %v2510 = vshrl.u32 %v2509, 7
        %v2511 = vsub.s32 0, %v2510
        %v2512 = vrot.slane %v2499, %v2511
        %v2513 = vlaneseq
        %v2514 = vshrl.u32 %v2513, 7
        %v2515 = vsub.s32 0, %v2514
        %v2516 = vrot.slane %v2500, %v2515
        %v2517 = vmul.f32 %v1733, %v2504
        %v2518 = vmul.f32 %v1732, %v2508
        %v2519 = vmul.f32 %v1731, %v2512
        %v2520 = vmul.f32 %v1734, %v2516
        %v2521 = vadd.f32 %v2493, %v2517
        %v2522 = vadd.f32 %v2494, %v2518
        %v2523 = vadd.f32 %v2495, %v2519
        %v2524 = vadd.f32 %v2496, %v2520
        %v2525 = vsel %vm1285, 1, 0
        %v2526 = vcvt.s32.f32 %v2525
        %v2528 = vlaneseq
        %v2529 = vshrl.u32 %v2528, 7
        %v2530 = vsub.s32 0, %v2529
        %v2531 = vrot.slane %v2526, %v2530
        %v2532 = vlaneseq
        %v2533 = vshrl.u32 %v2532, 7
        %v2534 = vsub.s32 1, %v2533
        %v2535 = vrot.slane %v2526, %v2534
        %v2536 = vlaneseq
        %v2537 = vshrl.u32 %v2536, 7
        %v2538 = vsub.s32 2, %v2537
        %v2539 = vrot.slane %v2526, %v2538
        %v2540 = vlaneseq
        %v2541 = vshrl.u32 %v2540, 7
        %v2542 = vsub.s32 3, %v2541
        %v2543 = vrot.slane %v2526, %v2542
        %v2548 = vmul.f32 %v2521, %v2531
        %v2549 = vmul.f32 %v2522, %v2535
        %v2550 = vmul.f32 %v2523, %v2539
        %v2551 = vmul.f32 %v2524, %v2543
        %2552 = vst [vmem:[#allocation2 + $0x200] sm:$0xff] %v2548
        %2553 = vst [vmem:[#allocation2 + $0x208] sm:$0xff] %v2549
        %2554 = vst [vmem:[#allocation2 + $0x210] sm:$0xff] %v2550
        %2555 = vst [vmem:[#allocation2 + $0x218] sm:$0xff] %v2551
        %2556 = vrot.lane.b32.xlu0 %v324, 9
        %v2557 = vpop.permute.xlu0 %2556
        %2558 = vrot.lane.b32.xlu0 %v328, 9
        %v2559 = vpop.permute.xlu0 %2558
        %2560 = vrot.lane.b32.xlu0 %v332, 9
        %v2561 = vpop.permute.xlu0 %2560
        %2562 = vrot.lane.b32.xlu0 %v336, 9
        %v2563 = vpop.permute.xlu0 %2562
        %v2564 = vsel %vm1591, %v2561, %v2563
        %v2565 = vsel %vm1591, %v2559, %v2561
        %v2566 = vsel %vm1591, %v2557, %v2559
        %v2567 = vsel %vm1591, %v2563, %v2557
        %v2568 = vadd.f32 %v279, 9.0
        %v2570 = vlaneseq
        %v2571 = vshrl.u32 %v2570, 7
        %v2572 = vsub.s32 0, %v2571
        %v2573 = vrot.slane %v2568, %v2572
        %v2574 = vlaneseq
        %v2575 = vshrl.u32 %v2574, 7
        %v2576 = vsub.s32 1, %v2575
        %v2577 = vrot.slane %v2568, %v2576
        %v2578 = vlaneseq
        %v2579 = vshrl.u32 %v2578, 7
        %v2580 = vsub.s32 2, %v2579
        %v2581 = vrot.slane %v2568, %v2580
        %v2582 = vlaneseq
        %v2583 = vshrl.u32 %v2582, 7
        %v2584 = vsub.s32 3, %v2583
        %v2585 = vrot.slane %v2568, %v2584
        %vm2590 = vcmp.eq.f32.partialorder %v2567, %v2573
        %vm2591 = vcmp.eq.f32.partialorder %v2566, %v2577
        %vm2592 = vcmp.eq.f32.partialorder %v2565, %v2581
        %vm2593 = vcmp.eq.f32.partialorder %v2564, %v2585
        %v2594 = vsel %vm2590, 1, 0
        %v2595 = vsel %vm2591, 1, 0
        %v2596 = vsel %vm2592, 1, 0
        %v2597 = vsel %vm2593, 1, 0
        %v2598 = vcvt.s32.f32 %v2594
        %v2599 = vcvt.s32.f32 %v2595
        %v2600 = vcvt.s32.f32 %v2596
        %v2601 = vcvt.s32.f32 %v2597
        %v2602 = vlaneseq
        %v2603 = vshrl.u32 %v2602, 7
        %v2604 = vsub.s32 0, %v2603
        %v2605 = vrot.slane %v2598, %v2604
        %v2606 = vlaneseq
        %v2607 = vshrl.u32 %v2606, 7
        %v2608 = vsub.s32 0, %v2607
        %v2609 = vrot.slane %v2599, %v2608
        %v2610 = vlaneseq
        %v2611 = vshrl.u32 %v2610, 7
        %v2612 = vsub.s32 0, %v2611
        %v2613 = vrot.slane %v2600, %v2612
        %v2614 = vlaneseq
        %v2615 = vshrl.u32 %v2614, 7
        %v2616 = vsub.s32 0, %v2615
        %v2617 = vrot.slane %v2601, %v2616
        %v2618 = vmul.f32 %v1595, %v2605
        %v2619 = vmul.f32 %v1594, %v2609
        %v2620 = vmul.f32 %v1593, %v2613
        %v2621 = vmul.f32 %v1592, %v2617
        %v2622 = vsub.f32 1.0, %v2598
        %v2623 = vsub.f32 1.0, %v2599
        %v2624 = vsub.f32 1.0, %v2600
        %v2625 = vsub.f32 1.0, %v2601
        %v2626 = vlaneseq
        %v2627 = vshrl.u32 %v2626, 7
        %v2628 = vsub.s32 0, %v2627
        %v2629 = vrot.slane %v2622, %v2628
        %v2630 = vlaneseq
        %v2631 = vshrl.u32 %v2630, 7
        %v2632 = vsub.s32 0, %v2631
        %v2633 = vrot.slane %v2623, %v2632
        %v2634 = vlaneseq
        %v2635 = vshrl.u32 %v2634, 7
        %v2636 = vsub.s32 0, %v2635
        %v2637 = vrot.slane %v2624, %v2636
        %v2638 = vlaneseq
        %v2639 = vshrl.u32 %v2638, 7
        %v2640 = vsub.s32 0, %v2639
        %v2641 = vrot.slane %v2625, %v2640
        %v2642 = vmul.f32 %v1581, %v2629
        %v2643 = vmul.f32 %v1580, %v2633
        %v2644 = vmul.f32 %v1579, %v2637
        %v2645 = vmul.f32 %v1582, %v2641
        %v2646 = vadd.f32 %v2618, %v2642
        %v2647 = vadd.f32 %v2619, %v2643
        %v2648 = vadd.f32 %v2620, %v2644
        %v2649 = vadd.f32 %v2621, %v2645
        %vm2650 = vmand %vm1285, %vm742
        %v2651 = vsel %vm2650, 1, 0
        %v2652 = vcvt.s32.f32 %v2651
        %v2654 = vlaneseq
        %v2655 = vshrl.u32 %v2654, 7
        %v2656 = vsub.s32 0, %v2655
        %v2657 = vrot.slane %v2652, %v2656
        %v2658 = vlaneseq
        %v2659 = vshrl.u32 %v2658, 7
        %v2660 = vsub.s32 1, %v2659
        %v2661 = vrot.slane %v2652, %v2660
        %v2662 = vlaneseq
        %v2663 = vshrl.u32 %v2662, 7
        %v2664 = vsub.s32 2, %v2663
        %v2665 = vrot.slane %v2652, %v2664
        %v2666 = vlaneseq
        %v2667 = vshrl.u32 %v2666, 7
        %v2668 = vsub.s32 3, %v2667
        %v2669 = vrot.slane %v2652, %v2668
        %v2674 = vmul.f32 %v2646, %v2657
        %v2675 = vmul.f32 %v2647, %v2661
        %v2676 = vmul.f32 %v2648, %v2665
        %v2677 = vmul.f32 %v2649, %v2669
        %2678 = vst [vmem:[#allocation2 + $0x220] sm:$0xff] %v2674
        %2679 = vst [vmem:[#allocation2 + $0x228] sm:$0xff] %v2675
        %2680 = vst [vmem:[#allocation2 + $0x230] sm:$0xff] %v2676
        %2681 = vst [vmem:[#allocation2 + $0x238] sm:$0xff] %v2677
        %v2682 = vadd.f32 %v279, 55.0
        %v2684 = vlaneseq
        %v2685 = vshrl.u32 %v2684, 7
        %v2686 = vsub.s32 0, %v2685
        %v2687 = vrot.slane %v2682, %v2686
        %v2688 = vlaneseq
        %v2689 = vshrl.u32 %v2688, 7
        %v2690 = vsub.s32 1, %v2689
        %v2691 = vrot.slane %v2682, %v2690
        %v2692 = vlaneseq
        %v2693 = vshrl.u32 %v2692, 7
        %v2694 = vsub.s32 2, %v2693
        %v2695 = vrot.slane %v2682, %v2694
        %v2696 = vlaneseq
        %v2697 = vshrl.u32 %v2696, 7
        %v2698 = vsub.s32 3, %v2697
        %v2699 = vrot.slane %v2682, %v2698
        %vm2704 = vcmp.eq.f32.partialorder %v352, %v2687
        %vm2705 = vcmp.eq.f32.partialorder %v351, %v2691
        %vm2706 = vcmp.eq.f32.partialorder %v350, %v2695
        %vm2707 = vcmp.eq.f32.partialorder %v349, %v2699
        %v2708 = vsel %vm2704, 1, 0
        %v2709 = vsel %vm2705, 1, 0
        %v2710 = vsel %vm2706, 1, 0
        %v2711 = vsel %vm2707, 1, 0
        %v2712 = vcvt.s32.f32 %v2708
        %v2713 = vcvt.s32.f32 %v2709
        %v2714 = vcvt.s32.f32 %v2710
        %v2715 = vcvt.s32.f32 %v2711
        %v2716 = vlaneseq
        %v2717 = vshrl.u32 %v2716, 7
        %v2718 = vsub.s32 0, %v2717
        %v2719 = vrot.slane %v2712, %v2718
        %v2720 = vlaneseq
        %v2721 = vshrl.u32 %v2720, 7
        %v2722 = vsub.s32 0, %v2721
        %v2723 = vrot.slane %v2713, %v2722
        %v2724 = vlaneseq
        %v2725 = vshrl.u32 %v2724, 7
        %v2726 = vsub.s32 0, %v2725
        %v2727 = vrot.slane %v2714, %v2726
        %v2728 = vlaneseq
        %v2729 = vshrl.u32 %v2728, 7
        %v2730 = vsub.s32 0, %v2729
        %v2731 = vrot.slane %v2715, %v2730
        %v2732 = vmul.f32 %v306, %v2719
        %v2733 = vmul.f32 %v305, %v2723
        %v2734 = vmul.f32 %v304, %v2727
        %v2735 = vmul.f32 %v303, %v2731
        %v2736 = vsub.f32 1.0, %v2712
        %v2737 = vsub.f32 1.0, %v2713
        %v2738 = vsub.f32 1.0, %v2714
        %v2739 = vsub.f32 1.0, %v2715
        %v2740 = vlaneseq
        %v2741 = vshrl.u32 %v2740, 7
        %v2742 = vsub.s32 0, %v2741
        %v2743 = vrot.slane %v2736, %v2742
        %v2744 = vlaneseq
        %v2745 = vshrl.u32 %v2744, 7
        %v2746 = vsub.s32 0, %v2745
        %v2747 = vrot.slane %v2737, %v2746
        %v2748 = vlaneseq
        %v2749 = vshrl.u32 %v2748, 7
        %v2750 = vsub.s32 0, %v2749
        %v2751 = vrot.slane %v2738, %v2750
        %v2752 = vlaneseq
        %v2753 = vshrl.u32 %v2752, 7
        %v2754 = vsub.s32 0, %v2753
        %v2755 = vrot.slane %v2739, %v2754
        %v2756 = vmul.f32 %v318, %v2743
        %v2757 = vmul.f32 %v317, %v2747
        %v2758 = vmul.f32 %v316, %v2751
        %v2759 = vmul.f32 %v319, %v2755
        %v2760 = vadd.f32 %v2732, %v2756
        %v2761 = vadd.f32 %v2733, %v2757
        %v2762 = vadd.f32 %v2734, %v2758
        %v2763 = vadd.f32 %v2735, %v2759
        %vm2764 = vcmp.le.f32.partialorder %v281, 6.0
        %vm2765 = vmand %vm2764, %vm436
        %vm2766 = vmand %vm2765, %vm437
        %v2767 = vsel %vm2766, 1, 0
        %v2768 = vcvt.s32.f32 %v2767
        %v2770 = vlaneseq
        %v2771 = vshrl.u32 %v2770, 7
        %v2772 = vsub.s32 0, %v2771
        %v2773 = vrot.slane %v2768, %v2772
        %v2774 = vlaneseq
        %v2775 = vshrl.u32 %v2774, 7
        %v2776 = vsub.s32 1, %v2775
        %v2777 = vrot.slane %v2768, %v2776
        %v2778 = vlaneseq
        %v2779 = vshrl.u32 %v2778, 7
        %v2780 = vsub.s32 2, %v2779
        %v2781 = vrot.slane %v2768, %v2780
        %v2782 = vlaneseq
        %v2783 = vshrl.u32 %v2782, 7
        %v2784 = vsub.s32 3, %v2783
        %v2785 = vrot.slane %v2768, %v2784
        %v2790 = vmul.f32 %v2760, %v2773
        %v2791 = vmul.f32 %v2761, %v2777
        %v2792 = vmul.f32 %v2762, %v2781
        %v2793 = vmul.f32 %v2763, %v2785
        %2794 = vst [vmem:[#allocation2 + $0x240] sm:$0xff] %v2790
        %2795 = vst [vmem:[#allocation2 + $0x248] sm:$0xff] %v2791
        %2796 = vst [vmem:[#allocation2 + $0x250] sm:$0xff] %v2792
        %2797 = vst [vmem:[#allocation2 + $0x258] sm:$0xff] %v2793
        %v2798 = vadd.f32 %v279, 56.0
        %v2800 = vlaneseq
        %v2801 = vshrl.u32 %v2800, 7
        %v2802 = vsub.s32 0, %v2801
        %v2803 = vrot.slane %v2798, %v2802
        %v2804 = vlaneseq
        %v2805 = vshrl.u32 %v2804, 7
        %v2806 = vsub.s32 1, %v2805
        %v2807 = vrot.slane %v2798, %v2806
        %v2808 = vlaneseq
        %v2809 = vshrl.u32 %v2808, 7
        %v2810 = vsub.s32 2, %v2809
        %v2811 = vrot.slane %v2798, %v2810
        %v2812 = vlaneseq
        %v2813 = vshrl.u32 %v2812, 7
        %v2814 = vsub.s32 3, %v2813
        %v2815 = vrot.slane %v2798, %v2814
        %vm2820 = vcmp.eq.f32.partialorder %v508, %v2803
        %vm2821 = vcmp.eq.f32.partialorder %v507, %v2807
        %vm2822 = vcmp.eq.f32.partialorder %v506, %v2811
        %vm2823 = vcmp.eq.f32.partialorder %v505, %v2815
        %v2824 = vsel %vm2820, 1, 0
        %v2825 = vsel %vm2821, 1, 0
        %v2826 = vsel %vm2822, 1, 0
        %v2827 = vsel %vm2823, 1, 0
        %v2828 = vcvt.s32.f32 %v2824
        %v2829 = vcvt.s32.f32 %v2825
        %v2830 = vcvt.s32.f32 %v2826
        %v2831 = vcvt.s32.f32 %v2827
        %v2832 = vlaneseq
        %v2833 = vshrl.u32 %v2832, 7
        %v2834 = vsub.s32 0, %v2833
        %v2835 = vrot.slane %v2828, %v2834
        %v2836 = vlaneseq
        %v2837 = vshrl.u32 %v2836, 7
        %v2838 = vsub.s32 0, %v2837
        %v2839 = vrot.slane %v2829, %v2838
        %v2840 = vlaneseq
        %v2841 = vshrl.u32 %v2840, 7
        %v2842 = vsub.s32 0, %v2841
        %v2843 = vrot.slane %v2830, %v2842
        %v2844 = vlaneseq
        %v2845 = vshrl.u32 %v2844, 7
        %v2846 = vsub.s32 0, %v2845
        %v2847 = vrot.slane %v2831, %v2846
        %v2848 = vmul.f32 %v483, %v2835
        %v2849 = vmul.f32 %v482, %v2839
        %v2850 = vmul.f32 %v481, %v2843
        %v2851 = vmul.f32 %v480, %v2847
        %v2852 = vsub.f32 1.0, %v2828
        %v2853 = vsub.f32 1.0, %v2829
        %v2854 = vsub.f32 1.0, %v2830
        %v2855 = vsub.f32 1.0, %v2831
        %v2856 = vlaneseq
        %v2857 = vshrl.u32 %v2856, 7
        %v2858 = vsub.s32 0, %v2857
        %v2859 = vrot.slane %v2852, %v2858
        %v2860 = vlaneseq
        %v2861 = vshrl.u32 %v2860, 7
        %v2862 = vsub.s32 0, %v2861
        %v2863 = vrot.slane %v2853, %v2862
        %v2864 = vlaneseq
        %v2865 = vshrl.u32 %v2864, 7
        %v2866 = vsub.s32 0, %v2865
        %v2867 = vrot.slane %v2854, %v2866
        %v2868 = vlaneseq
        %v2869 = vshrl.u32 %v2868, 7
        %v2870 = vsub.s32 0, %v2869
        %v2871 = vrot.slane %v2855, %v2870
        %v2872 = vmul.f32 %v495, %v2859
        %v2873 = vmul.f32 %v494, %v2863
        %v2874 = vmul.f32 %v493, %v2867
        %v2875 = vmul.f32 %v496, %v2871
        %v2876 = vadd.f32 %v2848, %v2872
        %v2877 = vadd.f32 %v2849, %v2873
        %v2878 = vadd.f32 %v2850, %v2874
        %v2879 = vadd.f32 %v2851, %v2875
        %v2880 = vsel %vm2765, 1, 0
        %v2881 = vcvt.s32.f32 %v2880
        %v2883 = vlaneseq
        %v2884 = vshrl.u32 %v2883, 7
        %v2885 = vsub.s32 0, %v2884
        %v2886 = vrot.slane %v2881, %v2885
        %v2887 = vlaneseq
        %v2888 = vshrl.u32 %v2887, 7
        %v2889 = vsub.s32 1, %v2888
        %v2890 = vrot.slane %v2881, %v2889
        %v2891 = vlaneseq
        %v2892 = vshrl.u32 %v2891, 7
        %v2893 = vsub.s32 2, %v2892
        %v2894 = vrot.slane %v2881, %v2893
        %v2895 = vlaneseq
        %v2896 = vshrl.u32 %v2895, 7
        %v2897 = vsub.s32 3, %v2896
        %v2898 = vrot.slane %v2881, %v2897
        %v2903 = vmul.f32 %v2876, %v2886
        %v2904 = vmul.f32 %v2877, %v2890
        %v2905 = vmul.f32 %v2878, %v2894
        %v2906 = vmul.f32 %v2879, %v2898
        %2907 = vst [vmem:[#allocation2 + $0x260] sm:$0xff] %v2903
        %2908 = vst [vmem:[#allocation2 + $0x268] sm:$0xff] %v2904
        %2909 = vst [vmem:[#allocation2 + $0x270] sm:$0xff] %v2905
        %2910 = vst [vmem:[#allocation2 + $0x278] sm:$0xff] %v2906
        %v2911 = vadd.f32 %v279, 57.0
        %v2913 = vlaneseq
        %v2914 = vshrl.u32 %v2913, 7
        %v2915 = vsub.s32 0, %v2914
        %v2916 = vrot.slane %v2911, %v2915
        %v2917 = vlaneseq
        %v2918 = vshrl.u32 %v2917, 7
        %v2919 = vsub.s32 1, %v2918
        %v2920 = vrot.slane %v2911, %v2919
        %v2921 = vlaneseq
        %v2922 = vshrl.u32 %v2921, 7
        %v2923 = vsub.s32 2, %v2922
        %v2924 = vrot.slane %v2911, %v2923
        %v2925 = vlaneseq
        %v2926 = vshrl.u32 %v2925, 7
        %v2927 = vsub.s32 3, %v2926
        %v2928 = vrot.slane %v2911, %v2927
        %vm2933 = vcmp.eq.f32.partialorder %v659, %v2916
        %vm2934 = vcmp.eq.f32.partialorder %v658, %v2920
        %vm2935 = vcmp.eq.f32.partialorder %v657, %v2924
        %vm2936 = vcmp.eq.f32.partialorder %v656, %v2928
        %v2937 = vsel %vm2933, 1, 0
        %v2938 = vsel %vm2934, 1, 0
        %v2939 = vsel %vm2935, 1, 0
        %v2940 = vsel %vm2936, 1, 0
        %v2941 = vcvt.s32.f32 %v2937
        %v2942 = vcvt.s32.f32 %v2938
        %v2943 = vcvt.s32.f32 %v2939
        %v2944 = vcvt.s32.f32 %v2940
        %v2945 = vlaneseq
        %v2946 = vshrl.u32 %v2945, 7
        %v2947 = vsub.s32 0, %v2946
        %v2948 = vrot.slane %v2941, %v2947
        %v2949 = vlaneseq
        %v2950 = vshrl.u32 %v2949, 7
        %v2951 = vsub.s32 0, %v2950
        %v2952 = vrot.slane %v2942, %v2951
        %v2953 = vlaneseq
        %v2954 = vshrl.u32 %v2953, 7
        %v2955 = vsub.s32 0, %v2954
        %v2956 = vrot.slane %v2943, %v2955
        %v2957 = vlaneseq
        %v2958 = vshrl.u32 %v2957, 7
        %v2959 = vsub.s32 0, %v2958
        %v2960 = vrot.slane %v2944, %v2959
        %v2961 = vmul.f32 %v634, %v2948
        %v2962 = vmul.f32 %v633, %v2952
        %v2963 = vmul.f32 %v632, %v2956
        %v2964 = vmul.f32 %v631, %v2960
        %v2965 = vsub.f32 1.0, %v2941
        %v2966 = vsub.f32 1.0, %v2942
        %v2967 = vsub.f32 1.0, %v2943
        %v2968 = vsub.f32 1.0, %v2944
        %v2969 = vlaneseq
        %v2970 = vshrl.u32 %v2969, 7
        %v2971 = vsub.s32 0, %v2970
        %v2972 = vrot.slane %v2965, %v2971
        %v2973 = vlaneseq
        %v2974 = vshrl.u32 %v2973, 7
        %v2975 = vsub.s32 0, %v2974
        %v2976 = vrot.slane %v2966, %v2975
        %v2977 = vlaneseq
        %v2978 = vshrl.u32 %v2977, 7
        %v2979 = vsub.s32 0, %v2978
        %v2980 = vrot.slane %v2967, %v2979
        %v2981 = vlaneseq
        %v2982 = vshrl.u32 %v2981, 7
        %v2983 = vsub.s32 0, %v2982
        %v2984 = vrot.slane %v2968, %v2983
        %v2985 = vmul.f32 %v646, %v2972
        %v2986 = vmul.f32 %v645, %v2976
        %v2987 = vmul.f32 %v644, %v2980
        %v2988 = vmul.f32 %v647, %v2984
        %v2989 = vadd.f32 %v2961, %v2985
        %v2990 = vadd.f32 %v2962, %v2986
        %v2991 = vadd.f32 %v2963, %v2987
        %v2992 = vadd.f32 %v2964, %v2988
        %vm2993 = vmand %vm2765, %vm742
        %v2994 = vsel %vm2993, 1, 0
        %v2995 = vcvt.s32.f32 %v2994
        %v2997 = vlaneseq
        %v2998 = vshrl.u32 %v2997, 7
        %v2999 = vsub.s32 0, %v2998
        %v3000 = vrot.slane %v2995, %v2999
        %v3001 = vlaneseq
        %v3002 = vshrl.u32 %v3001, 7
        %v3003 = vsub.s32 1, %v3002
        %v3004 = vrot.slane %v2995, %v3003
        %v3005 = vlaneseq
        %v3006 = vshrl.u32 %v3005, 7
        %v3007 = vsub.s32 2, %v3006
        %v3008 = vrot.slane %v2995, %v3007
        %v3009 = vlaneseq
        %v3010 = vshrl.u32 %v3009, 7
        %v3011 = vsub.s32 3, %v3010
        %v3012 = vrot.slane %v2995, %v3011
        %v3017 = vmul.f32 %v2989, %v3000
        %v3018 = vmul.f32 %v2990, %v3004
        %v3019 = vmul.f32 %v2991, %v3008
        %v3020 = vmul.f32 %v2992, %v3012
        %3021 = vst [vmem:[#allocation2 + $0x280] sm:$0xff] %v3017
        %3022 = vst [vmem:[#allocation2 + $0x288] sm:$0xff] %v3018
        %3023 = vst [vmem:[#allocation2 + $0x290] sm:$0xff] %v3019
        %3024 = vst [vmem:[#allocation2 + $0x298] sm:$0xff] %v3020
        %v3025 = vadd.f32 %v279, 63.0
        %v3027 = vlaneseq
        %v3028 = vshrl.u32 %v3027, 7
        %v3029 = vsub.s32 0, %v3028
        %v3030 = vrot.slane %v3025, %v3029
        %v3031 = vlaneseq
        %v3032 = vshrl.u32 %v3031, 7
        %v3033 = vsub.s32 1, %v3032
        %v3034 = vrot.slane %v3025, %v3033
        %v3035 = vlaneseq
        %v3036 = vshrl.u32 %v3035, 7
        %v3037 = vsub.s32 2, %v3036
        %v3038 = vrot.slane %v3025, %v3037
        %v3039 = vlaneseq
        %v3040 = vshrl.u32 %v3039, 7
        %v3041 = vsub.s32 3, %v3040
        %v3042 = vrot.slane %v3025, %v3041
        %vm3047 = vcmp.eq.f32.partialorder %v812, %v3030
        %vm3048 = vcmp.eq.f32.partialorder %v811, %v3034
        %vm3049 = vcmp.eq.f32.partialorder %v810, %v3038
        %vm3050 = vcmp.eq.f32.partialorder %v809, %v3042
        %v3051 = vsel %vm3047, 1, 0
        %v3052 = vsel %vm3048, 1, 0
        %v3053 = vsel %vm3049, 1, 0
        %v3054 = vsel %vm3050, 1, 0
        %v3055 = vcvt.s32.f32 %v3051
        %v3056 = vcvt.s32.f32 %v3052
        %v3057 = vcvt.s32.f32 %v3053
        %v3058 = vcvt.s32.f32 %v3054
        %v3059 = vlaneseq
        %v3060 = vshrl.u32 %v3059, 7
        %v3061 = vsub.s32 0, %v3060
        %v3062 = vrot.slane %v3055, %v3061
        %v3063 = vlaneseq
        %v3064 = vshrl.u32 %v3063, 7
        %v3065 = vsub.s32 0, %v3064
        %v3066 = vrot.slane %v3056, %v3065
        %v3067 = vlaneseq
        %v3068 = vshrl.u32 %v3067, 7
        %v3069 = vsub.s32 0, %v3068
        %v3070 = vrot.slane %v3057, %v3069
        %v3071 = vlaneseq
        %v3072 = vshrl.u32 %v3071, 7
        %v3073 = vsub.s32 0, %v3072
        %v3074 = vrot.slane %v3058, %v3073
        %v3075 = vmul.f32 %v787, %v3062
        %v3076 = vmul.f32 %v786, %v3066
        %v3077 = vmul.f32 %v785, %v3070
        %v3078 = vmul.f32 %v784, %v3074
        %v3079 = vsub.f32 1.0, %v3055
        %v3080 = vsub.f32 1.0, %v3056
        %v3081 = vsub.f32 1.0, %v3057
        %v3082 = vsub.f32 1.0, %v3058
        %v3083 = vlaneseq
        %v3084 = vshrl.u32 %v3083, 7
        %v3085 = vsub.s32 0, %v3084
        %v3086 = vrot.slane %v3079, %v3085
        %v3087 = vlaneseq
        %v3088 = vshrl.u32 %v3087, 7
        %v3089 = vsub.s32 0, %v3088
        %v3090 = vrot.slane %v3080, %v3089
        %v3091 = vlaneseq
        %v3092 = vshrl.u32 %v3091, 7
        %v3093 = vsub.s32 0, %v3092
        %v3094 = vrot.slane %v3081, %v3093
        %v3095 = vlaneseq
        %v3096 = vshrl.u32 %v3095, 7
        %v3097 = vsub.s32 0, %v3096
        %v3098 = vrot.slane %v3082, %v3097
        %v3099 = vmul.f32 %v799, %v3086
        %v3100 = vmul.f32 %v798, %v3090
        %v3101 = vmul.f32 %v797, %v3094
        %v3102 = vmul.f32 %v800, %v3098
        %v3103 = vadd.f32 %v3075, %v3099
        %v3104 = vadd.f32 %v3076, %v3100
        %v3105 = vadd.f32 %v3077, %v3101
        %v3106 = vadd.f32 %v3078, %v3102
        %vm3107 = vmand %vm2764, %vm437
        %v3108 = vsel %vm3107, 1, 0
        %v3109 = vcvt.s32.f32 %v3108
        %v3111 = vlaneseq
        %v3112 = vshrl.u32 %v3111, 7
        %v3113 = vsub.s32 0, %v3112
        %v3114 = vrot.slane %v3109, %v3113
        %v3115 = vlaneseq
        %v3116 = vshrl.u32 %v3115, 7
        %v3117 = vsub.s32 1, %v3116
        %v3118 = vrot.slane %v3109, %v3117
        %v3119 = vlaneseq
        %v3120 = vshrl.u32 %v3119, 7
        %v3121 = vsub.s32 2, %v3120
        %v3122 = vrot.slane %v3109, %v3121
        %v3123 = vlaneseq
        %v3124 = vshrl.u32 %v3123, 7
        %v3125 = vsub.s32 3, %v3124
        %v3126 = vrot.slane %v3109, %v3125
        %v3131 = vmul.f32 %v3103, %v3114
        %v3132 = vmul.f32 %v3104, %v3118
        %v3133 = vmul.f32 %v3105, %v3122
        %v3134 = vmul.f32 %v3106, %v3126
        %3135 = vst [vmem:[#allocation2 + $0x2a0] sm:$0xff] %v3131
        %3136 = vst [vmem:[#allocation2 + $0x2a8] sm:$0xff] %v3132
        %3137 = vst [vmem:[#allocation2 + $0x2b0] sm:$0xff] %v3133
        %3138 = vst [vmem:[#allocation2 + $0x2b8] sm:$0xff] %v3134
        %v3139 = vadd.f32 %v279, 64.0
        %v3141 = vlaneseq
        %v3142 = vshrl.u32 %v3141, 7
        %v3143 = vsub.s32 0, %v3142
        %v3144 = vrot.slane %v3139, %v3143
        %v3145 = vlaneseq
        %v3146 = vshrl.u32 %v3145, 7
        %v3147 = vsub.s32 1, %v3146
        %v3148 = vrot.slane %v3139, %v3147
        %v3149 = vlaneseq
        %v3150 = vshrl.u32 %v3149, 7
        %v3151 = vsub.s32 2, %v3150
        %v3152 = vrot.slane %v3139, %v3151
        %v3153 = vlaneseq
        %v3154 = vshrl.u32 %v3153, 7
        %v3155 = vsub.s32 3, %v3154
        %v3156 = vrot.slane %v3139, %v3155
        %vm3161 = vcmp.eq.f32.partialorder %v951, %v3144
        %vm3162 = vcmp.eq.f32.partialorder %v950, %v3148
        %vm3163 = vcmp.eq.f32.partialorder %v949, %v3152
        %vm3164 = vcmp.eq.f32.partialorder %v948, %v3156
        %v3165 = vsel %vm3161, 1, 0
        %v3166 = vsel %vm3162, 1, 0
        %v3167 = vsel %vm3163, 1, 0
        %v3168 = vsel %vm3164, 1, 0
        %v3169 = vcvt.s32.f32 %v3165
        %v3170 = vcvt.s32.f32 %v3166
        %v3171 = vcvt.s32.f32 %v3167
        %v3172 = vcvt.s32.f32 %v3168
        %v3173 = vlaneseq
        %v3174 = vshrl.u32 %v3173, 7
        %v3175 = vsub.s32 0, %v3174
        %v3176 = vrot.slane %v3169, %v3175
        %v3177 = vlaneseq
        %v3178 = vshrl.u32 %v3177, 7
        %v3179 = vsub.s32 0, %v3178
        %v3180 = vrot.slane %v3170, %v3179
        %v3181 = vlaneseq
        %v3182 = vshrl.u32 %v3181, 7
        %v3183 = vsub.s32 0, %v3182
        %v3184 = vrot.slane %v3171, %v3183
        %v3185 = vlaneseq
        %v3186 = vshrl.u32 %v3185, 7
        %v3187 = vsub.s32 0, %v3186
        %v3188 = vrot.slane %v3172, %v3187
        %v3189 = vmul.f32 %v939, %v3176
        %v3190 = vmul.f32 %v938, %v3180
        %v3191 = vmul.f32 %v937, %v3184
        %v3192 = vmul.f32 %v936, %v3188
        %v3193 = vsub.f32 1.0, %v3169
        %v3194 = vsub.f32 1.0, %v3170
        %v3195 = vsub.f32 1.0, %v3171
        %v3196 = vsub.f32 1.0, %v3172
        %v3197 = vlaneseq
        %v3198 = vshrl.u32 %v3197, 7
        %v3199 = vsub.s32 0, %v3198
        %v3200 = vrot.slane %v3193, %v3199
        %v3201 = vlaneseq
        %v3202 = vshrl.u32 %v3201, 7
        %v3203 = vsub.s32 0, %v3202
        %v3204 = vrot.slane %v3194, %v3203
        %v3205 = vlaneseq
        %v3206 = vshrl.u32 %v3205, 7
        %v3207 = vsub.s32 0, %v3206
        %v3208 = vrot.slane %v3195, %v3207
        %v3209 = vlaneseq
        %v3210 = vshrl.u32 %v3209, 7
        %v3211 = vsub.s32 0, %v3210
        %v3212 = vrot.slane %v3196, %v3211
        %v3213 = vmul.f32 %v938, %v3200
        %v3214 = vmul.f32 %v937, %v3204
        %v3215 = vmul.f32 %v936, %v3208
        %v3216 = vmul.f32 %v939, %v3212
        %v3217 = vadd.f32 %v3189, %v3213
        %v3218 = vadd.f32 %v3190, %v3214
        %v3219 = vadd.f32 %v3191, %v3215
        %v3220 = vadd.f32 %v3192, %v3216
        %v3221 = vsel %vm2764, 1, 0
        %v3222 = vcvt.s32.f32 %v3221
        %v3224 = vlaneseq
        %v3225 = vshrl.u32 %v3224, 7
        %v3226 = vsub.s32 0, %v3225
        %v3227 = vrot.slane %v3222, %v3226
        %v3228 = vlaneseq
        %v3229 = vshrl.u32 %v3228, 7
        %v3230 = vsub.s32 1, %v3229
        %v3231 = vrot.slane %v3222, %v3230
        %v3232 = vlaneseq
        %v3233 = vshrl.u32 %v3232, 7
        %v3234 = vsub.s32 2, %v3233
        %v3235 = vrot.slane %v3222, %v3234
        %v3236 = vlaneseq
        %v3237 = vshrl.u32 %v3236, 7
        %v3238 = vsub.s32 3, %v3237
        %v3239 = vrot.slane %v3222, %v3238
        %v3244 = vmul.f32 %v3217, %v3227
        %v3245 = vmul.f32 %v3218, %v3231
        %v3246 = vmul.f32 %v3219, %v3235
        %v3247 = vmul.f32 %v3220, %v3239
        %3248 = vst [vmem:[#allocation2 + $0x2c0] sm:$0xff] %v3244
        %3249 = vst [vmem:[#allocation2 + $0x2c8] sm:$0xff] %v3245
        %3250 = vst [vmem:[#allocation2 + $0x2d0] sm:$0xff] %v3246
        %3251 = vst [vmem:[#allocation2 + $0x2d8] sm:$0xff] %v3247
        %v3252 = vadd.f32 %v279, 65.0
        %v3254 = vlaneseq
        %v3255 = vshrl.u32 %v3254, 7
        %v3256 = vsub.s32 0, %v3255
        %v3257 = vrot.slane %v3252, %v3256
        %v3258 = vlaneseq
        %v3259 = vshrl.u32 %v3258, 7
        %v3260 = vsub.s32 1, %v3259
        %v3261 = vrot.slane %v3252, %v3260
        %v3262 = vlaneseq
        %v3263 = vshrl.u32 %v3262, 7
        %v3264 = vsub.s32 2, %v3263
        %v3265 = vrot.slane %v3252, %v3264
        %v3266 = vlaneseq
        %v3267 = vshrl.u32 %v3266, 7
        %v3268 = vsub.s32 3, %v3267
        %v3269 = vrot.slane %v3252, %v3268
        %vm3274 = vcmp.eq.f32.partialorder %v1076, %v3257
        %vm3275 = vcmp.eq.f32.partialorder %v1075, %v3261
        %vm3276 = vcmp.eq.f32.partialorder %v1074, %v3265
        %vm3277 = vcmp.eq.f32.partialorder %v1073, %v3269
        %v3278 = vsel %vm3274, 1, 0
        %v3279 = vsel %vm3275, 1, 0
        %v3280 = vsel %vm3276, 1, 0
        %v3281 = vsel %vm3277, 1, 0
        %v3282 = vcvt.s32.f32 %v3278
        %v3283 = vcvt.s32.f32 %v3279
        %v3284 = vcvt.s32.f32 %v3280
        %v3285 = vcvt.s32.f32 %v3281
        %v3286 = vlaneseq
        %v3287 = vshrl.u32 %v3286, 7
        %v3288 = vsub.s32 0, %v3287
        %v3289 = vrot.slane %v3282, %v3288
        %v3290 = vlaneseq
        %v3291 = vshrl.u32 %v3290, 7
        %v3292 = vsub.s32 0, %v3291
        %v3293 = vrot.slane %v3283, %v3292
        %v3294 = vlaneseq
        %v3295 = vshrl.u32 %v3294, 7
        %v3296 = vsub.s32 0, %v3295
        %v3297 = vrot.slane %v3284, %v3296
        %v3298 = vlaneseq
        %v3299 = vshrl.u32 %v3298, 7
        %v3300 = vsub.s32 0, %v3299
        %v3301 = vrot.slane %v3285, %v3300
        %v3302 = vmul.f32 %v800, %v3289
        %v3303 = vmul.f32 %v799, %v3293
        %v3304 = vmul.f32 %v798, %v3297
        %v3305 = vmul.f32 %v797, %v3301
        %v3306 = vsub.f32 1.0, %v3282
        %v3307 = vsub.f32 1.0, %v3283
        %v3308 = vsub.f32 1.0, %v3284
        %v3309 = vsub.f32 1.0, %v3285
        %v3310 = vlaneseq
        %v3311 = vshrl.u32 %v3310, 7
        %v3312 = vsub.s32 0, %v3311
        %v3313 = vrot.slane %v3306, %v3312
        %v3314 = vlaneseq
        %v3315 = vshrl.u32 %v3314, 7
        %v3316 = vsub.s32 0, %v3315
        %v3317 = vrot.slane %v3307, %v3316
        %v3318 = vlaneseq
        %v3319 = vshrl.u32 %v3318, 7
        %v3320 = vsub.s32 0, %v3319
        %v3321 = vrot.slane %v3308, %v3320
        %v3322 = vlaneseq
        %v3323 = vshrl.u32 %v3322, 7
        %v3324 = vsub.s32 0, %v3323
        %v3325 = vrot.slane %v3309, %v3324
        %v3326 = vmul.f32 %v786, %v3313
        %v3327 = vmul.f32 %v785, %v3317
        %v3328 = vmul.f32 %v784, %v3321
        %v3329 = vmul.f32 %v787, %v3325
        %v3330 = vadd.f32 %v3302, %v3326
        %v3331 = vadd.f32 %v3303, %v3327
        %v3332 = vadd.f32 %v3304, %v3328
        %v3333 = vadd.f32 %v3305, %v3329
        %vm3334 = vmand %vm2764, %vm742
        %v3335 = vsel %vm3334, 1, 0
        %v3336 = vcvt.s32.f32 %v3335
        %v3338 = vlaneseq
        %v3339 = vshrl.u32 %v3338, 7
        %v3340 = vsub.s32 0, %v3339
        %v3341 = vrot.slane %v3336, %v3340
        %v3342 = vlaneseq
        %v3343 = vshrl.u32 %v3342, 7
        %v3344 = vsub.s32 1, %v3343
        %v3345 = vrot.slane %v3336, %v3344
        %v3346 = vlaneseq
        %v3347 = vshrl.u32 %v3346, 7
        %v3348 = vsub.s32 2, %v3347
        %v3349 = vrot.slane %v3336, %v3348
        %v3350 = vlaneseq
        %v3351 = vshrl.u32 %v3350, 7
        %v3352 = vsub.s32 3, %v3351
        %v3353 = vrot.slane %v3336, %v3352
        %v3358 = vmul.f32 %v3330, %v3341
        %v3359 = vmul.f32 %v3331, %v3345
        %v3360 = vmul.f32 %v3332, %v3349
        %v3361 = vmul.f32 %v3333, %v3353
        %3362 = vst [vmem:[#allocation2 + $0x2e0] sm:$0xff] %v3358
        %3363 = vst [vmem:[#allocation2 + $0x2e8] sm:$0xff] %v3359
        %3364 = vst [vmem:[#allocation2 + $0x2f0] sm:$0xff] %v3360
        %3365 = vst [vmem:[#allocation2 + $0x2f8] sm:$0xff] %v3361
        %v3366 = vadd.f32 %v279, 71.0
        %v3368 = vlaneseq
        %v3369 = vshrl.u32 %v3368, 7
        %v3370 = vsub.s32 0, %v3369
        %v3371 = vrot.slane %v3366, %v3370
        %v3372 = vlaneseq
        %v3373 = vshrl.u32 %v3372, 7
        %v3374 = vsub.s32 1, %v3373
        %v3375 = vrot.slane %v3366, %v3374
        %v3376 = vlaneseq
        %v3377 = vshrl.u32 %v3376, 7
        %v3378 = vsub.s32 2, %v3377
        %v3379 = vrot.slane %v3366, %v3378
        %v3380 = vlaneseq
        %v3381 = vshrl.u32 %v3380, 7
        %v3382 = vsub.s32 3, %v3381
        %v3383 = vrot.slane %v3366, %v3382
        %vm3388 = vcmp.eq.f32.partialorder %v1202, %v3371
        %vm3389 = vcmp.eq.f32.partialorder %v1201, %v3375
        %vm3390 = vcmp.eq.f32.partialorder %v1200, %v3379
        %vm3391 = vcmp.eq.f32.partialorder %v1199, %v3383
        %v3392 = vsel %vm3388, 1, 0
        %v3393 = vsel %vm3389, 1, 0
        %v3394 = vsel %vm3390, 1, 0
        %v3395 = vsel %vm3391, 1, 0
        %v3396 = vcvt.s32.f32 %v3392
        %v3397 = vcvt.s32.f32 %v3393
        %v3398 = vcvt.s32.f32 %v3394
        %v3399 = vcvt.s32.f32 %v3395
        %v3400 = vlaneseq
        %v3401 = vshrl.u32 %v3400, 7
        %v3402 = vsub.s32 0, %v3401
        %v3403 = vrot.slane %v3396, %v3402
        %v3404 = vlaneseq
        %v3405 = vshrl.u32 %v3404, 7
        %v3406 = vsub.s32 0, %v3405
        %v3407 = vrot.slane %v3397, %v3406
        %v3408 = vlaneseq
        %v3409 = vshrl.u32 %v3408, 7
        %v3410 = vsub.s32 0, %v3409
        %v3411 = vrot.slane %v3398, %v3410
        %v3412 = vlaneseq
        %v3413 = vshrl.u32 %v3412, 7
        %v3414 = vsub.s32 0, %v3413
        %v3415 = vrot.slane %v3399, %v3414
        %v3416 = vmul.f32 %v647, %v3403
        %v3417 = vmul.f32 %v646, %v3407
        %v3418 = vmul.f32 %v645, %v3411
        %v3419 = vmul.f32 %v644, %v3415
        %v3420 = vsub.f32 1.0, %v3396
        %v3421 = vsub.f32 1.0, %v3397
        %v3422 = vsub.f32 1.0, %v3398
        %v3423 = vsub.f32 1.0, %v3399
        %v3424 = vlaneseq
        %v3425 = vshrl.u32 %v3424, 7
        %v3426 = vsub.s32 0, %v3425
        %v3427 = vrot.slane %v3420, %v3426
        %v3428 = vlaneseq
        %v3429 = vshrl.u32 %v3428, 7
        %v3430 = vsub.s32 0, %v3429
        %v3431 = vrot.slane %v3421, %v3430
        %v3432 = vlaneseq
        %v3433 = vshrl.u32 %v3432, 7
        %v3434 = vsub.s32 0, %v3433
        %v3435 = vrot.slane %v3422, %v3434
        %v3436 = vlaneseq
        %v3437 = vshrl.u32 %v3436, 7
        %v3438 = vsub.s32 0, %v3437
        %v3439 = vrot.slane %v3423, %v3438
        %v3440 = vmul.f32 %v633, %v3427
        %v3441 = vmul.f32 %v632, %v3431
        %v3442 = vmul.f32 %v631, %v3435
        %v3443 = vmul.f32 %v634, %v3439
        %v3444 = vadd.f32 %v3416, %v3440
        %v3445 = vadd.f32 %v3417, %v3441
        %v3446 = vadd.f32 %v3418, %v3442
        %v3447 = vadd.f32 %v3419, %v3443
        %vm3448 = vmand %vm2764, %vm1285
        %vm3449 = vmand %vm3448, %vm437
        %v3450 = vsel %vm3449, 1, 0
        %v3451 = vcvt.s32.f32 %v3450
        %v3453 = vlaneseq
        %v3454 = vshrl.u32 %v3453, 7
        %v3455 = vsub.s32 0, %v3454
        %v3456 = vrot.slane %v3451, %v3455
        %v3457 = vlaneseq
        %v3458 = vshrl.u32 %v3457, 7
        %v3459 = vsub.s32 1, %v3458
        %v3460 = vrot.slane %v3451, %v3459
        %v3461 = vlaneseq
        %v3462 = vshrl.u32 %v3461, 7
        %v3463 = vsub.s32 2, %v3462
        %v3464 = vrot.slane %v3451, %v3463
        %v3465 = vlaneseq
        %v3466 = vshrl.u32 %v3465, 7
        %v3467 = vsub.s32 3, %v3466
        %v3468 = vrot.slane %v3451, %v3467
        %v3473 = vmul.f32 %v3444, %v3456
        %v3474 = vmul.f32 %v3445, %v3460
        %v3475 = vmul.f32 %v3446, %v3464
        %v3476 = vmul.f32 %v3447, %v3468
        %3477 = vst [vmem:[#allocation2 + $0x300] sm:$0xff] %v3473
        %3478 = vst [vmem:[#allocation2 + $0x308] sm:$0xff] %v3474
        %3479 = vst [vmem:[#allocation2 + $0x310] sm:$0xff] %v3475
        %3480 = vst [vmem:[#allocation2 + $0x318] sm:$0xff] %v3476
        %v3481 = vadd.f32 %v279, 72.0
        %v3483 = vlaneseq
        %v3484 = vshrl.u32 %v3483, 7
        %v3485 = vsub.s32 0, %v3484
        %v3486 = vrot.slane %v3481, %v3485
        %v3487 = vlaneseq
        %v3488 = vshrl.u32 %v3487, 7
        %v3489 = vsub.s32 1, %v3488
        %v3490 = vrot.slane %v3481, %v3489
        %v3491 = vlaneseq
        %v3492 = vshrl.u32 %v3491, 7
        %v3493 = vsub.s32 2, %v3492
        %v3494 = vrot.slane %v3481, %v3493
        %v3495 = vlaneseq
        %v3496 = vshrl.u32 %v3495, 7
        %v3497 = vsub.s32 3, %v3496
        %v3498 = vrot.slane %v3481, %v3497
        %vm3503 = vcmp.eq.f32.partialorder %v1330, %v3486
        %vm3504 = vcmp.eq.f32.partialorder %v1329, %v3490
        %vm3505 = vcmp.eq.f32.partialorder %v1328, %v3494
        %vm3506 = vcmp.eq.f32.partialorder %v1327, %v3498
        %v3507 = vsel %vm3503, 1, 0
        %v3508 = vsel %vm3504, 1, 0
        %v3509 = vsel %vm3505, 1, 0
        %v3510 = vsel %vm3506, 1, 0
        %v3511 = vcvt.s32.f32 %v3507
        %v3512 = vcvt.s32.f32 %v3508
        %v3513 = vcvt.s32.f32 %v3509
        %v3514 = vcvt.s32.f32 %v3510
        %v3515 = vlaneseq
        %v3516 = vshrl.u32 %v3515, 7
        %v3517 = vsub.s32 0, %v3516
        %v3518 = vrot.slane %v3511, %v3517
        %v3519 = vlaneseq
        %v3520 = vshrl.u32 %v3519, 7
        %v3521 = vsub.s32 0, %v3520
        %v3522 = vrot.slane %v3512, %v3521
        %v3523 = vlaneseq
        %v3524 = vshrl.u32 %v3523, 7
        %v3525 = vsub.s32 0, %v3524
        %v3526 = vrot.slane %v3513, %v3525
        %v3527 = vlaneseq
        %v3528 = vshrl.u32 %v3527, 7
        %v3529 = vsub.s32 0, %v3528
        %v3530 = vrot.slane %v3514, %v3529
        %v3531 = vmul.f32 %v496, %v3518
        %v3532 = vmul.f32 %v495, %v3522
        %v3533 = vmul.f32 %v494, %v3526
        %v3534 = vmul.f32 %v493, %v3530
        %v3535 = vsub.f32 1.0, %v3511
        %v3536 = vsub.f32 1.0, %v3512
        %v3537 = vsub.f32 1.0, %v3513
        %v3538 = vsub.f32 1.0, %v3514
        %v3539 = vlaneseq
        %v3540 = vshrl.u32 %v3539, 7
        %v3541 = vsub.s32 0, %v3540
        %v3542 = vrot.slane %v3535, %v3541
        %v3543 = vlaneseq
        %v3544 = vshrl.u32 %v3543, 7
        %v3545 = vsub.s32 0, %v3544
        %v3546 = vrot.slane %v3536, %v3545
        %v3547 = vlaneseq
        %v3548 = vshrl.u32 %v3547, 7
        %v3549 = vsub.s32 0, %v3548
        %v3550 = vrot.slane %v3537, %v3549
        %v3551 = vlaneseq
        %v3552 = vshrl.u32 %v3551, 7
        %v3553 = vsub.s32 0, %v3552
        %v3554 = vrot.slane %v3538, %v3553
        %v3555 = vmul.f32 %v482, %v3542
        %v3556 = vmul.f32 %v481, %v3546
        %v3557 = vmul.f32 %v480, %v3550
        %v3558 = vmul.f32 %v483, %v3554
        %v3559 = vadd.f32 %v3531, %v3555
        %v3560 = vadd.f32 %v3532, %v3556
        %v3561 = vadd.f32 %v3533, %v3557
        %v3562 = vadd.f32 %v3534, %v3558
        %v3563 = vsel %vm3448, 1, 0
        %v3564 = vcvt.s32.f32 %v3563
        %v3566 = vlaneseq
        %v3567 = vshrl.u32 %v3566, 7
        %v3568 = vsub.s32 0, %v3567
        %v3569 = vrot.slane %v3564, %v3568
        %v3570 = vlaneseq
        %v3571 = vshrl.u32 %v3570, 7
        %v3572 = vsub.s32 1, %v3571
        %v3573 = vrot.slane %v3564, %v3572
        %v3574 = vlaneseq
        %v3575 = vshrl.u32 %v3574, 7
        %v3576 = vsub.s32 2, %v3575
        %v3577 = vrot.slane %v3564, %v3576
        %v3578 = vlaneseq
        %v3579 = vshrl.u32 %v3578, 7
        %v3580 = vsub.s32 3, %v3579
        %v3581 = vrot.slane %v3564, %v3580
        %v3586 = vmul.f32 %v3559, %v3569
        %v3587 = vmul.f32 %v3560, %v3573
        %v3588 = vmul.f32 %v3561, %v3577
        %v3589 = vmul.f32 %v3562, %v3581
        %3590 = vst [vmem:[#allocation2 + $0x320] sm:$0xff] %v3586
        %3591 = vst [vmem:[#allocation2 + $0x328] sm:$0xff] %v3587
        %3592 = vst [vmem:[#allocation2 + $0x330] sm:$0xff] %v3588
        %3593 = vst [vmem:[#allocation2 + $0x338] sm:$0xff] %v3589
        %v3594 = vadd.f32 %v279, 73.0
        %v3596 = vlaneseq
        %v3597 = vshrl.u32 %v3596, 7
        %v3598 = vsub.s32 0, %v3597
        %v3599 = vrot.slane %v3594, %v3598
        %v3600 = vlaneseq
        %v3601 = vshrl.u32 %v3600, 7
        %v3602 = vsub.s32 1, %v3601
        %v3603 = vrot.slane %v3594, %v3602
        %v3604 = vlaneseq
        %v3605 = vshrl.u32 %v3604, 7
        %v3606 = vsub.s32 2, %v3605
        %v3607 = vrot.slane %v3594, %v3606
        %v3608 = vlaneseq
        %v3609 = vshrl.u32 %v3608, 7
        %v3610 = vsub.s32 3, %v3609
        %v3611 = vrot.slane %v3594, %v3610
        %vm3616 = vcmp.eq.f32.partialorder %v1455, %v3599
        %vm3617 = vcmp.eq.f32.partialorder %v1454, %v3603
        %vm3618 = vcmp.eq.f32.partialorder %v1453, %v3607
        %vm3619 = vcmp.eq.f32.partialorder %v1452, %v3611
        %v3620 = vsel %vm3616, 1, 0
        %v3621 = vsel %vm3617, 1, 0
        %v3622 = vsel %vm3618, 1, 0
        %v3623 = vsel %vm3619, 1, 0
        %v3624 = vcvt.s32.f32 %v3620
        %v3625 = vcvt.s32.f32 %v3621
        %v3626 = vcvt.s32.f32 %v3622
        %v3627 = vcvt.s32.f32 %v3623
        %v3628 = vlaneseq
        %v3629 = vshrl.u32 %v3628, 7
        %v3630 = vsub.s32 0, %v3629
        %v3631 = vrot.slane %v3624, %v3630
        %v3632 = vlaneseq
        %v3633 = vshrl.u32 %v3632, 7
        %v3634 = vsub.s32 0, %v3633
        %v3635 = vrot.slane %v3625, %v3634
        %v3636 = vlaneseq
        %v3637 = vshrl.u32 %v3636, 7
        %v3638 = vsub.s32 0, %v3637
        %v3639 = vrot.slane %v3626, %v3638
        %v3640 = vlaneseq
        %v3641 = vshrl.u32 %v3640, 7
        %v3642 = vsub.s32 0, %v3641
        %v3643 = vrot.slane %v3627, %v3642
        %v3644 = vmul.f32 %v319, %v3631
        %v3645 = vmul.f32 %v318, %v3635
        %v3646 = vmul.f32 %v317, %v3639
        %v3647 = vmul.f32 %v316, %v3643
        %v3648 = vsub.f32 1.0, %v3624
        %v3649 = vsub.f32 1.0, %v3625
        %v3650 = vsub.f32 1.0, %v3626
        %v3651 = vsub.f32 1.0, %v3627
        %v3652 = vlaneseq
        %v3653 = vshrl.u32 %v3652, 7
        %v3654 = vsub.s32 0, %v3653
        %v3655 = vrot.slane %v3648, %v3654
        %v3656 = vlaneseq
        %v3657 = vshrl.u32 %v3656, 7
        %v3658 = vsub.s32 0, %v3657
        %v3659 = vrot.slane %v3649, %v3658
        %v3660 = vlaneseq
        %v3661 = vshrl.u32 %v3660, 7
        %v3662 = vsub.s32 0, %v3661
        %v3663 = vrot.slane %v3650, %v3662
        %v3664 = vlaneseq
        %v3665 = vshrl.u32 %v3664, 7
        %v3666 = vsub.s32 0, %v3665
        %v3667 = vrot.slane %v3651, %v3666
        %v3668 = vmul.f32 %v305, %v3655
        %v3669 = vmul.f32 %v304, %v3659
        %v3670 = vmul.f32 %v303, %v3663
        %v3671 = vmul.f32 %v306, %v3667
        %v3672 = vadd.f32 %v3644, %v3668
        %v3673 = vadd.f32 %v3645, %v3669
        %v3674 = vadd.f32 %v3646, %v3670
        %v3675 = vadd.f32 %v3647, %v3671
        %vm3676 = vmand %vm3448, %vm742
        %v3677 = vsel %vm3676, 1, 0
        %v3678 = vcvt.s32.f32 %v3677
        %v3680 = vlaneseq
        %v3681 = vshrl.u32 %v3680, 7
        %v3682 = vsub.s32 0, %v3681
        %v3683 = vrot.slane %v3678, %v3682
        %v3684 = vlaneseq
        %v3685 = vshrl.u32 %v3684, 7
        %v3686 = vsub.s32 1, %v3685
        %v3687 = vrot.slane %v3678, %v3686
        %v3688 = vlaneseq
        %v3689 = vshrl.u32 %v3688, 7
        %v3690 = vsub.s32 2, %v3689
        %v3691 = vrot.slane %v3678, %v3690
        %v3692 = vlaneseq
        %v3693 = vshrl.u32 %v3692, 7
        %v3694 = vsub.s32 3, %v3693
        %v3695 = vrot.slane %v3678, %v3694
        %v3700 = vmul.f32 %v3672, %v3683
        %v3701 = vmul.f32 %v3673, %v3687
        %v3702 = vmul.f32 %v3674, %v3691
        %v3703 = vmul.f32 %v3675, %v3695
        %3704 = vst [vmem:[#allocation2 + $0x340] sm:$0xff] %v3700
        %3705 = vst [vmem:[#allocation2 + $0x348] sm:$0xff] %v3701
        %3706 = vst [vmem:[#allocation2 + $0x350] sm:$0xff] %v3702
        %3707 = vst [vmem:[#allocation2 + $0x358] sm:$0xff] %v3703
        %v3708 = vld [vmem:[#allocation2] sm:$0xff]
        %v3709 = vld [vmem:[#allocation2 + $0x8] sm:$0xff]
        %v3710 = vld [vmem:[#allocation2 + $0x10] sm:$0xff]
        %v3711 = vld [vmem:[#allocation2 + $0x18] sm:$0xff]
        %v3712 = vld [vmem:[#allocation2 + $0x20] sm:$0xff]
        %v3713 = vld [vmem:[#allocation2 + $0x28] sm:$0xff]
        %v3714 = vld [vmem:[#allocation2 + $0x30] sm:$0xff]
        %v3715 = vld [vmem:[#allocation2 + $0x38] sm:$0xff]
        %v3716 = vld [vmem:[#allocation2 + $0x40] sm:$0xff]
        %v3717 = vld [vmem:[#allocation2 + $0x48] sm:$0xff]
        %v3718 = vld [vmem:[#allocation2 + $0x50] sm:$0xff]
        %v3719 = vld [vmem:[#allocation2 + $0x58] sm:$0xff]
        %v3720 = vld [vmem:[#allocation2 + $0x60] sm:$0xff]
        %v3721 = vld [vmem:[#allocation2 + $0x68] sm:$0xff]
        %v3722 = vld [vmem:[#allocation2 + $0x70] sm:$0xff]
        %v3723 = vld [vmem:[#allocation2 + $0x78] sm:$0xff]
        %v3724 = vld [vmem:[#allocation2 + $0x80] sm:$0xff]
        %v3725 = vld [vmem:[#allocation2 + $0x88] sm:$0xff]
        %v3726 = vld [vmem:[#allocation2 + $0x90] sm:$0xff]
        %v3727 = vld [vmem:[#allocation2 + $0x98] sm:$0xff]
        %v3728 = vld [vmem:[#allocation2 + $0xa0] sm:$0xff]
        %v3729 = vld [vmem:[#allocation2 + $0xa8] sm:$0xff]
        %v3730 = vld [vmem:[#allocation2 + $0xb0] sm:$0xff]
        %v3731 = vld [vmem:[#allocation2 + $0xb8] sm:$0xff]
        %v3732 = vld [vmem:[#allocation2 + $0xc0] sm:$0xff]
        %v3733 = vld [vmem:[#allocation2 + $0xc8] sm:$0xff]
        %v3734 = vld [vmem:[#allocation2 + $0xd0] sm:$0xff]
        %v3735 = vld [vmem:[#allocation2 + $0xd8] sm:$0xff]
        %v3736 = vld [vmem:[#allocation2 + $0xe0] sm:$0xff]
        %v3737 = vld [vmem:[#allocation2 + $0xe8] sm:$0xff]
        %v3738 = vld [vmem:[#allocation2 + $0xf0] sm:$0xff]
        %v3739 = vld [vmem:[#allocation2 + $0xf8] sm:$0xff]
        %v3740 = vld [vmem:[#allocation2 + $0x100] sm:$0xff]
        %v3741 = vld [vmem:[#allocation2 + $0x108] sm:$0xff]
        %v3742 = vld [vmem:[#allocation2 + $0x110] sm:$0xff]
        %v3743 = vld [vmem:[#allocation2 + $0x118] sm:$0xff]
        %v3744 = vld [vmem:[#allocation2 + $0x120] sm:$0xff]
        %v3745 = vld [vmem:[#allocation2 + $0x128] sm:$0xff]
        %v3746 = vld [vmem:[#allocation2 + $0x130] sm:$0xff]
        %v3747 = vld [vmem:[#allocation2 + $0x138] sm:$0xff]
        %v3748 = vld [vmem:[#allocation2 + $0x140] sm:$0xff]
        %v3749 = vld [vmem:[#allocation2 + $0x148] sm:$0xff]
        %v3750 = vld [vmem:[#allocation2 + $0x150] sm:$0xff]
        %v3751 = vld [vmem:[#allocation2 + $0x158] sm:$0xff]
        %v3752 = vld [vmem:[#allocation2 + $0x160] sm:$0xff]
        %v3753 = vld [vmem:[#allocation2 + $0x168] sm:$0xff]
        %v3754 = vld [vmem:[#allocation2 + $0x170] sm:$0xff]
        %v3755 = vld [vmem:[#allocation2 + $0x178] sm:$0xff]
        %v3756 = vld [vmem:[#allocation2 + $0x180] sm:$0xff]
        %v3757 = vld [vmem:[#allocation2 + $0x188] sm:$0xff]
        %v3758 = vld [vmem:[#allocation2 + $0x190] sm:$0xff]
        %v3759 = vld [vmem:[#allocation2 + $0x198] sm:$0xff]
        %v3760 = vld [vmem:[#allocation2 + $0x1a0] sm:$0xff]
        %v3761 = vld [vmem:[#allocation2 + $0x1a8] sm:$0xff]
        %v3762 = vld [vmem:[#allocation2 + $0x1b0] sm:$0xff]
        %v3763 = vld [vmem:[#allocation2 + $0x1b8] sm:$0xff]
        %v3764 = vld [vmem:[#allocation2 + $0x1c0] sm:$0xff]
        %v3765 = vld [vmem:[#allocation2 + $0x1c8] sm:$0xff]
        %v3766 = vld [vmem:[#allocation2 + $0x1d0] sm:$0xff]
        %v3767 = vld [vmem:[#allocation2 + $0x1d8] sm:$0xff]
        %v3768 = vld [vmem:[#allocation2 + $0x1e0] sm:$0xff]
        %v3769 = vld [vmem:[#allocation2 + $0x1e8] sm:$0xff]
        %v3770 = vld [vmem:[#allocation2 + $0x1f0] sm:$0xff]
        %v3771 = vld [vmem:[#allocation2 + $0x1f8] sm:$0xff]
        %v3772 = vld [vmem:[#allocation2 + $0x200] sm:$0xff]
        %v3773 = vld [vmem:[#allocation2 + $0x208] sm:$0xff]
        %v3774 = vld [vmem:[#allocation2 + $0x210] sm:$0xff]
        %v3775 = vld [vmem:[#allocation2 + $0x218] sm:$0xff]
        %v3776 = vld [vmem:[#allocation2 + $0x220] sm:$0xff]
        %v3777 = vld [vmem:[#allocation2 + $0x228] sm:$0xff]
        %v3778 = vld [vmem:[#allocation2 + $0x230] sm:$0xff]
        %v3779 = vld [vmem:[#allocation2 + $0x238] sm:$0xff]
        %v3780 = vld [vmem:[#allocation2 + $0x240] sm:$0xff]
        %v3781 = vld [vmem:[#allocation2 + $0x248] sm:$0xff]
        %v3782 = vld [vmem:[#allocation2 + $0x250] sm:$0xff]
        %v3783 = vld [vmem:[#allocation2 + $0x258] sm:$0xff]
        %v3784 = vld [vmem:[#allocation2 + $0x260] sm:$0xff]
        %v3785 = vld [vmem:[#allocation2 + $0x268] sm:$0xff]
        %v3786 = vld [vmem:[#allocation2 + $0x270] sm:$0xff]
        %v3787 = vld [vmem:[#allocation2 + $0x278] sm:$0xff]
        %v3788 = vld [vmem:[#allocation2 + $0x280] sm:$0xff]
        %v3789 = vld [vmem:[#allocation2 + $0x288] sm:$0xff]
        %v3790 = vld [vmem:[#allocation2 + $0x290] sm:$0xff]
        %v3791 = vld [vmem:[#allocation2 + $0x298] sm:$0xff]
        %v3792 = vld [vmem:[#allocation2 + $0x2a0] sm:$0xff]
        %v3793 = vld [vmem:[#allocation2 + $0x2a8] sm:$0xff]
        %v3794 = vld [vmem:[#allocation2 + $0x2b0] sm:$0xff]
        %v3795 = vld [vmem:[#allocation2 + $0x2b8] sm:$0xff]
        %v3796 = vld [vmem:[#allocation2 + $0x2c0] sm:$0xff]
        %v3797 = vld [vmem:[#allocation2 + $0x2c8] sm:$0xff]
        %v3798 = vld [vmem:[#allocation2 + $0x2d0] sm:$0xff]
        %v3799 = vld [vmem:[#allocation2 + $0x2d8] sm:$0xff]
        %v3800 = vld [vmem:[#allocation2 + $0x2e0] sm:$0xff]
        %v3801 = vld [vmem:[#allocation2 + $0x2e8] sm:$0xff]
        %v3802 = vld [vmem:[#allocation2 + $0x2f0] sm:$0xff]
        %v3803 = vld [vmem:[#allocation2 + $0x2f8] sm:$0xff]
        %v3804 = vld [vmem:[#allocation2 + $0x300] sm:$0xff]
        %v3805 = vld [vmem:[#allocation2 + $0x308] sm:$0xff]
        %v3806 = vld [vmem:[#allocation2 + $0x310] sm:$0xff]
        %v3807 = vld [vmem:[#allocation2 + $0x318] sm:$0xff]
        %v3808 = vld [vmem:[#allocation2 + $0x320] sm:$0xff]
        %v3809 = vld [vmem:[#allocation2 + $0x328] sm:$0xff]
        %v3810 = vld [vmem:[#allocation2 + $0x330] sm:$0xff]
        %v3811 = vld [vmem:[#allocation2 + $0x338] sm:$0xff]
        %v3812 = vld [vmem:[#allocation2 + $0x340] sm:$0xff]
        %v3813 = vld [vmem:[#allocation2 + $0x348] sm:$0xff]
        %v3814 = vld [vmem:[#allocation2 + $0x350] sm:$0xff]
        %v3815 = vld [vmem:[#allocation2 + $0x358] sm:$0xff]
        %vm3816 = vcmask 719872
        %v3818 = vsel %vm3816, %v291, 0
        %3820 = vmatprep.subr.mxu0 %v3709
        %3821 = vmatpush1.msra.mxu0 %v3708
        %3822 = vmatprep.subr.mxu0 %v3713
        %3823 = vmatpush1.msra.mxu0 %v3712
        %3824 = vmatprep.subr.mxu0 %v3717
        %3825 = vmatpush1.msra.mxu0 %v3716
        %3826 = vmatprep.subr.mxu0 %v3721
        %3827 = vmatpush1.msra.mxu0 %v3720
        %3828 = vmatprep.subr.mxu0 %v3725
        %3829 = vmatpush1.msra.mxu0 %v3724
        %3830 = vmatprep.subr.mxu0 %v3729
        %3831 = vmatpush1.msra.mxu0 %v3728
        %3832 = vmatprep.subr.mxu0 %v3733
        %3833 = vmatpush1.msra.mxu0 %v3732
        %3834 = vmatprep.subr.mxu0 %v3737
        %3835 = vmatpush1.msra.mxu0 %v3736
        %3836 = vmatprep.subr.mxu0 %v3741
        %3837 = vmatpush1.msra.mxu0 %v3740
        %3838 = vmatprep.subr.mxu0 %v3745
        %3839 = vmatpush1.msra.mxu0 %v3744
        %3840 = vmatprep.subr.mxu0 %v3749
        %3841 = vmatpush1.msra.mxu0 %v3748
        %3842 = vmatprep.subr.mxu0 %v3753
        %3843 = vmatpush1.msra.mxu0 %v3752
        %3844 = vmatprep.subr.mxu0 %v3757
        %3845 = vmatpush1.msra.mxu0 %v3756
        %3846 = vmatprep.subr.mxu0 %v3761
        %3847 = vmatpush1.msra.mxu0 %v3760
        %3848 = vmatprep.subr.mxu0 %v3765
        %3849 = vmatpush1.msra.mxu0 %v3764
        %3850 = vmatprep.subr.mxu0 %v3769
        %3851 = vmatpush1.msra.mxu0 %v3768
        %3852 = vmatprep.subr.mxu0 %v3773
        %3853 = vmatpush1.msra.mxu0 %v3772
        %3854 = vmatprep.subr.mxu0 %v3777
        %3855 = vmatpush1.msra.mxu0 %v3776
        %3856 = vmatprep.subr.mxu0 %v3781
        %3857 = vmatpush1.msra.mxu0 %v3780
        %3858 = vmatprep.subr.mxu0 %v3785
        %3859 = vmatpush1.msra.mxu0 %v3784
        %3860 = vmatprep.subr.mxu0 %v3789
        %3861 = vmatpush1.msra.mxu0 %v3788
        %3862 = vmatprep.subr.mxu0 %v3793
        %3863 = vmatpush1.msra.mxu0 %v3792
        %3864 = vmatprep.subr.mxu0 %v3797
        %3865 = vmatpush1.msra.mxu0 %v3796
        %3866 = vmatprep.subr.mxu0 %v3801
        %3867 = vmatpush1.msra.mxu0 %v3800
        %3868 = vmatprep.subr.mxu0 %v3805
        %3869 = vmatpush1.msra.mxu0 %v3804
        %3870 = vmatprep.subr.mxu0 %v3809
        %3871 = vmatpush1.msra.mxu0 %v3808
        %3872 = vmatprep.subr.mxu0 %v3813
        %3873 = vmatpush1.msra.mxu0 %v3812
        %3874 = vmatprep.subr.mxu0 0.0
        %3875 = vmatpush1.msra.mxu0 0.0
        %3876 = vmatprep.subr.mxu0 0.0
        %3877 = vmatpush1.msra.mxu0 0.0
        %3878 = vmatprep.subr.mxu0 0.0
        %3879 = vmatpush1.msra.mxu0 0.0
        %3880 = vmatprep.subr.mxu0 0.0
        %3881 = vmatpush1.msra.mxu0 0.0
        %3882 = vmatprep.subr.mxu0 0.0
        %3883 = vmatpush1.msra.mxu0 0.0
        %3884 = vmatprep.mubr.f32.mxu0 %v3818
        %3885 = vmatmul.mubr.f32.gmra.mrb[0].mxu0 %v290
        %v3886 = vpop.f32.mrb[0].mxu0
        %v3887 = vadd.f32 0.0, %v3886
        %v3888 = vpop.f32.mrb[0].mxu0
        %v3889 = vadd.f32 0.0, %v3888
        %3890 = vdwg.mxu0
        %3891 = vmatprep.subr.mxu0 %v3711
        %3892 = vmatpush1.msra.mxu0 %v3710
        %3893 = vmatprep.subr.mxu0 %v3715
        %3894 = vmatpush1.msra.mxu0 %v3714
        %3895 = vmatprep.subr.mxu0 %v3719
        %3896 = vmatpush1.msra.mxu0 %v3718
        %3897 = vmatprep.subr.mxu0 %v3723
        %3898 = vmatpush1.msra.mxu0 %v3722
        %3899 = vmatprep.subr.mxu0 %v3727
        %3900 = vmatpush1.msra.mxu0 %v3726
        %3901 = vmatprep.subr.mxu0 %v3731
        %3902 = vmatpush1.msra.mxu0 %v3730
        %3903 = vmatprep.subr.mxu0 %v3735
        %3904 = vmatpush1.msra.mxu0 %v3734
        %3905 = vmatprep.subr.mxu0 %v3739
        %3906 = vmatpush1.msra.mxu0 %v3738
        %3907 = vmatprep.subr.mxu0 %v3743
        %3908 = vmatpush1.msra.mxu0 %v3742
        %3909 = vmatprep.subr.mxu0 %v3747
        %3910 = vmatpush1.msra.mxu0 %v3746
        %3911 = vmatprep.subr.mxu0 %v3751
        %3912 = vmatpush1.msra.mxu0 %v3750
        %3913 = vmatprep.subr.mxu0 %v3755
        %3914 = vmatpush1.msra.mxu0 %v3754
        %3915 = vmatprep.subr.mxu0 %v3759
        %3916 = vmatpush1.msra.mxu0 %v3758
        %3917 = vmatprep.subr.mxu0 %v3763
        %3918 = vmatpush1.msra.mxu0 %v3762
        %3919 = vmatprep.subr.mxu0 %v3767
        %3920 = vmatpush1.msra.mxu0 %v3766
        %3921 = vmatprep.subr.mxu0 %v3771
        %3922 = vmatpush1.msra.mxu0 %v3770
        %3923 = vmatprep.subr.mxu0 %v3775
        %3924 = vmatpush1.msra.mxu0 %v3774
        %3925 = vmatprep.subr.mxu0 %v3779
        %3926 = vmatpush1.msra.mxu0 %v3778
        %3927 = vmatprep.subr.mxu0 %v3783
        %3928 = vmatpush1.msra.mxu0 %v3782
        %3929 = vmatprep.subr.mxu0 %v3787
        %3930 = vmatpush1.msra.mxu0 %v3786
        %3931 = vmatprep.subr.mxu0 %v3791
        %3932 = vmatpush1.msra.mxu0 %v3790
        %3933 = vmatprep.subr.mxu0 %v3795
        %3934 = vmatpush1.msra.mxu0 %v3794
        %3935 = vmatprep.subr.mxu0 %v3799
        %3936 = vmatpush1.msra.mxu0 %v3798
        %3937 = vmatprep.subr.mxu0 %v3803
        %3938 = vmatpush1.msra.mxu0 %v3802
        %3939 = vmatprep.subr.mxu0 %v3807
        %3940 = vmatpush1.msra.mxu0 %v3806
        %3941 = vmatprep.subr.mxu0 %v3811
        %3942 = vmatpush1.msra.mxu0 %v3810
        %3943 = vmatprep.subr.mxu0 %v3815
        %3944 = vmatpush1.msra.mxu0 %v3814
        %3945 = vmatprep.subr.mxu0 0.0
        %3946 = vmatpush1.msra.mxu0 0.0
        %3947 = vmatprep.subr.mxu0 0.0
        %3948 = vmatpush1.msra.mxu0 0.0
        %3949 = vmatprep.subr.mxu0 0.0
        %3950 = vmatpush1.msra.mxu0 0.0
        %3951 = vmatprep.subr.mxu0 0.0
        %3952 = vmatpush1.msra.mxu0 0.0
        %3953 = vmatprep.subr.mxu0 0.0
        %3954 = vmatpush1.msra.mxu0 0.0
        %3955 = vmatprep.mubr.f32.mxu0 %v3818
        %3956 = vmatmul.mubr.f32.gmra.mrb[0].mxu0 %v290
        %v3957 = vpop.f32.mrb[0].mxu0
        %v3958 = vadd.f32 0.0, %v3957
        %v3959 = vpop.f32.mrb[0].mxu0
        %v3960 = vadd.f32 0.0, %v3959
        %3961 = vdwg.mxu0
        %v3962 = vadd.f32 %v3887, %v3889
        %v3963 = vadd.f32 %v3962, %v3958
        %v3964 = vadd.f32 %v3963, %v3960
        %3965 = vadd.xlane.f32.xlu0 %v3964
        %v3966 = vpop.xlane.xlu0 %3965
        %v3967 = vrcp.pop 512.0
        %v3968 = vmul.f32 %v3966, %v3967
        %v3969 = vsub.f32 %v3887, %v3968
        %v3970 = vsub.f32 %v3889, %v3968
        %v3971 = vsub.f32 %v3958, %v3968
        %v3972 = vsub.f32 %v3960, %v3968
        %v3973 = vmul.f32 %v3969, %v3969
        %v3974 = vmul.f32 %v3970, %v3970
        %v3975 = vmul.f32 %v3971, %v3971
        %v3976 = vmul.f32 %v3972, %v3972
        %v3977 = vadd.f32 %v3973, %v3974
        %v3978 = vadd.f32 %v3977, %v3975
        %v3979 = vadd.f32 %v3978, %v3976
        %3980 = vadd.xlane.f32.xlu0 %v3979
        %v3981 = vpop.xlane.xlu0 %3980
        %v3982 = vmul.f32 %v3981, %v3967
        %v3983 = vadd.f32 %v3982, 1e-05
        %v3984 = vrsqrt.pop %v3983
        %v3985 = vmul.f32 %v3969, %v3984
        %v3986 = vmul.f32 %v3970, %v3984
        %v3987 = vmul.f32 %v3971, %v3984
        %v3988 = vmul.f32 %v3972, %v3984
        %v3989 = vmax.f32 %v3985, 0.0
        %v3990 = vmax.f32 %v3986, 0.0
        %v3991 = vmax.f32 %v3987, 0.0
        %v3992 = vmax.f32 %v3988, 0.0
        %v3993 = vld [vmem:[#allocation9] sm:$0xff]
        %v3994 = vld [vmem:[#allocation9 + $0x8] sm:$0xff]
        %3995 = vrot.lane.b32.xlu0 %v3989, 55
        %v3996 = vpop.permute.xlu0 %3995
        %3997 = vrot.lane.b32.xlu0 %v3990, 55
        %v3998 = vpop.permute.xlu0 %3997
        %3999 = vrot.lane.b32.xlu0 %v3991, 55
        %v4000 = vpop.permute.xlu0 %3999
        %4001 = vrot.lane.b32.xlu0 %v3992, 55
        %v4002 = vpop.permute.xlu0 %4001
        %v4003 = vsel %vm302, %v4000, %v4002
        %v4004 = vsel %vm302, %v3998, %v4000
        %v4005 = vsel %vm302, %v3996, %v3998
        %v4006 = vsel %vm302, %v4002, %v3996
        %4007 = vrot.lane.b32.xlu0 %v3989, 73
        %v4008 = vpop.permute.xlu0 %4007
        %4009 = vrot.lane.b32.xlu0 %v3990, 73
        %v4010 = vpop.permute.xlu0 %4009
        %4011 = vrot.lane.b32.xlu0 %v3991, 73
        %v4012 = vpop.permute.xlu0 %4011
        %4013 = vrot.lane.b32.xlu0 %v3992, 73
        %v4014 = vpop.permute.xlu0 %4013
        %v4015 = vsel %vm315, %v4012, %v4014
        %v4016 = vsel %vm315, %v4010, %v4012
        %v4017 = vsel %vm315, %v4008, %v4010
        %v4018 = vsel %vm315, %v4014, %v4008
        %v4019 = vmul.f32 %v4005, %v390
        %v4020 = vmul.f32 %v4004, %v394
        %v4021 = vmul.f32 %v4003, %v398
        %v4022 = vmul.f32 %v4006, %v402
        %v4023 = vmul.f32 %v4018, %v414
        %v4024 = vmul.f32 %v4017, %v418
        %v4025 = vmul.f32 %v4016, %v422
        %v4026 = vmul.f32 %v4015, %v426
        %v4027 = vadd.f32 %v4019, %v4023
        %v4028 = vadd.f32 %v4020, %v4024
        %v4029 = vadd.f32 %v4021, %v4025
        %v4030 = vadd.f32 %v4022, %v4026
        %v4031 = vmul.f32 %v4027, %v446
        %v4032 = vmul.f32 %v4028, %v450
        %v4033 = vmul.f32 %v4029, %v454
        %v4034 = vmul.f32 %v4030, %v458
        %4035 = vst [vmem:[#allocation2] sm:$0xff] %v4031
        %4036 = vst [vmem:[#allocation2 + $0x8] sm:$0xff] %v4032
        %4037 = vst [vmem:[#allocation2 + $0x10] sm:$0xff] %v4033
        %4038 = vst [vmem:[#allocation2 + $0x18] sm:$0xff] %v4034
        %4039 = vrot.lane.b32.xlu0 %v3989, 56
        %v4040 = vpop.permute.xlu0 %4039
        %4041 = vrot.lane.b32.xlu0 %v3990, 56
        %v4042 = vpop.permute.xlu0 %4041
        %4043 = vrot.lane.b32.xlu0 %v3991, 56
        %v4044 = vpop.permute.xlu0 %4043
        %4045 = vrot.lane.b32.xlu0 %v3992, 56
        %v4046 = vpop.permute.xlu0 %4045
        %v4047 = vsel %vm479, %v4044, %v4046
        %v4048 = vsel %vm479, %v4042, %v4044
        %v4049 = vsel %vm479, %v4040, %v4042
        %v4050 = vsel %vm479, %v4046, %v4040
        %4051 = vrot.lane.b32.xlu0 %v3989, 72
        %v4052 = vpop.permute.xlu0 %4051
        %4053 = vrot.lane.b32.xlu0 %v3990, 72
        %v4054 = vpop.permute.xlu0 %4053
        %4055 = vrot.lane.b32.xlu0 %v3991, 72
        %v4056 = vpop.permute.xlu0 %4055
        %4057 = vrot.lane.b32.xlu0 %v3992, 72
        %v4058 = vpop.permute.xlu0 %4057
        %v4059 = vsel %vm492, %v4056, %v4058
        %v4060 = vsel %vm492, %v4054, %v4056
        %v4061 = vsel %vm492, %v4052, %v4054
        %v4062 = vsel %vm492, %v4058, %v4052
        %v4063 = vmul.f32 %v4049, %v546
        %v4064 = vmul.f32 %v4048, %v550
        %v4065 = vmul.f32 %v4047, %v554
        %v4066 = vmul.f32 %v4050, %v558
        %v4067 = vmul.f32 %v4062, %v570
        %v4068 = vmul.f32 %v4061, %v574
        %v4069 = vmul.f32 %v4060, %v578
        %v4070 = vmul.f32 %v4059, %v582
        %v4071 = vadd.f32 %v4063, %v4067
        %v4072 = vadd.f32 %v4064, %v4068
        %v4073 = vadd.f32 %v4065, %v4069
        %v4074 = vadd.f32 %v4066, %v4070
        %v4075 = vmul.f32 %v4071, %v597
        %v4076 = vmul.f32 %v4072, %v601
        %v4077 = vmul.f32 %v4073, %v605
        %v4078 = vmul.f32 %v4074, %v609
        %4079 = vst [vmem:[#allocation2 + $0x20] sm:$0xff] %v4075
        %4080 = vst [vmem:[#allocation2 + $0x28] sm:$0xff] %v4076
        %4081 = vst [vmem:[#allocation2 + $0x30] sm:$0xff] %v4077
        %4082 = vst [vmem:[#allocation2 + $0x38] sm:$0xff] %v4078
        %4083 = vrot.lane.b32.xlu0 %v3989, 57
        %v4084 = vpop.permute.xlu0 %4083
        %4085 = vrot.lane.b32.xlu0 %v3990, 57
        %v4086 = vpop.permute.xlu0 %4085
        %4087 = vrot.lane.b32.xlu0 %v3991, 57
        %v4088 = vpop.permute.xlu0 %4087
        %4089 = vrot.lane.b32.xlu0 %v3992, 57
        %v4090 = vpop.permute.xlu0 %4089
        %v4091 = vsel %vm630, %v4088, %v4090
        %v4092 = vsel %vm630, %v4086, %v4088
        %v4093 = vsel %vm630, %v4084, %v4086
        %v4094 = vsel %vm630, %v4090, %v4084
        %4095 = vrot.lane.b32.xlu0 %v3989, 71
        %v4096 = vpop.permute.xlu0 %4095
        %4097 = vrot.lane.b32.xlu0 %v3990, 71
        %v4098 = vpop.permute.xlu0 %4097
        %4099 = vrot.lane.b32.xlu0 %v3991, 71
        %v4100 = vpop.permute.xlu0 %4099
        %4101 = vrot.lane.b32.xlu0 %v3992, 71
        %v4102 = vpop.permute.xlu0 %4101
        %v4103 = vsel %vm643, %v4100, %v4102
        %v4104 = vsel %vm643, %v4098, %v4100
        %v4105 = vsel %vm643, %v4096, %v4098
        %v4106 = vsel %vm643, %v4102, %v4096
        %v4107 = vmul.f32 %v4093, %v697
        %v4108 = vmul.f32 %v4092, %v701
        %v4109 = vmul.f32 %v4091, %v705
        %v4110 = vmul.f32 %v4094, %v709
        %v4111 = vmul.f32 %v4106, %v721
        %v4112 = vmul.f32 %v4105, %v725
        %v4113 = vmul.f32 %v4104, %v729
        %v4114 = vmul.f32 %v4103, %v733
        %v4115 = vadd.f32 %v4107, %v4111
        %v4116 = vadd.f32 %v4108, %v4112
        %v4117 = vadd.f32 %v4109, %v4113
        %v4118 = vadd.f32 %v4110, %v4114
        %v4119 = vmul.f32 %v4115, %v750
        %v4120 = vmul.f32 %v4116, %v754
        %v4121 = vmul.f32 %v4117, %v758
        %v4122 = vmul.f32 %v4118, %v762
        %4123 = vst [vmem:[#allocation2 + $0x40] sm:$0xff] %v4119
        %4124 = vst [vmem:[#allocation2 + $0x48] sm:$0xff] %v4120
        %4125 = vst [vmem:[#allocation2 + $0x50] sm:$0xff] %v4121
        %4126 = vst [vmem:[#allocation2 + $0x58] sm:$0xff] %v4122
        %4127 = vrot.lane.b32.xlu0 %v3989, 63
        %v4128 = vpop.permute.xlu0 %4127
        %4129 = vrot.lane.b32.xlu0 %v3990, 63
        %v4130 = vpop.permute.xlu0 %4129
        %4131 = vrot.lane.b32.xlu0 %v3991, 63
        %v4132 = vpop.permute.xlu0 %4131
        %4133 = vrot.lane.b32.xlu0 %v3992, 63
        %v4134 = vpop.permute.xlu0 %4133
        %v4135 = vsel %vm783, %v4132, %v4134
        %v4136 = vsel %vm783, %v4130, %v4132
        %v4137 = vsel %vm783, %v4128, %v4130
        %v4138 = vsel %vm783, %v4134, %v4128
        %4139 = vrot.lane.b32.xlu0 %v3989, 65
        %v4140 = vpop.permute.xlu0 %4139
        %4141 = vrot.lane.b32.xlu0 %v3990, 65
        %v4142 = vpop.permute.xlu0 %4141
        %4143 = vrot.lane.b32.xlu0 %v3991, 65
        %v4144 = vpop.permute.xlu0 %4143
        %4145 = vrot.lane.b32.xlu0 %v3992, 65
        %v4146 = vpop.permute.xlu0 %4145
        %v4147 = vsel %vm796, %v4144, %v4146
        %v4148 = vsel %vm796, %v4142, %v4144
        %v4149 = vsel %vm796, %v4140, %v4142
        %v4150 = vsel %vm796, %v4146, %v4140
        %v4151 = vmul.f32 %v4137, %v850
        %v4152 = vmul.f32 %v4136, %v854
        %v4153 = vmul.f32 %v4135, %v858
        %v4154 = vmul.f32 %v4138, %v862
        %v4155 = vmul.f32 %v4150, %v874
        %v4156 = vmul.f32 %v4149, %v878
        %v4157 = vmul.f32 %v4148, %v882
        %v4158 = vmul.f32 %v4147, %v886
        %v4159 = vadd.f32 %v4151, %v4155
        %v4160 = vadd.f32 %v4152, %v4156
        %v4161 = vadd.f32 %v4153, %v4157
        %v4162 = vadd.f32 %v4154, %v4158
        %v4163 = vmul.f32 %v4159, %v902
        %v4164 = vmul.f32 %v4160, %v906
        %v4165 = vmul.f32 %v4161, %v910
        %v4166 = vmul.f32 %v4162, %v914
        %4167 = vst [vmem:[#allocation2 + $0x60] sm:$0xff] %v4163
        %4168 = vst [vmem:[#allocation2 + $0x68] sm:$0xff] %v4164
        %4169 = vst [vmem:[#allocation2 + $0x70] sm:$0xff] %v4165
        %4170 = vst [vmem:[#allocation2 + $0x78] sm:$0xff] %v4166
        %4171 = vrot.lane.b32.xlu0 %v3989, 64
        %v4172 = vpop.permute.xlu0 %4171
        %4173 = vrot.lane.b32.xlu0 %v3990, 64
        %v4174 = vpop.permute.xlu0 %4173
        %4175 = vrot.lane.b32.xlu0 %v3991, 64
        %v4176 = vpop.permute.xlu0 %4175
        %4177 = vrot.lane.b32.xlu0 %v3992, 64
        %v4178 = vpop.permute.xlu0 %4177
        %v4179 = vsel %vm935, %v4176, %v4178
        %v4180 = vsel %vm935, %v4174, %v4176
        %v4181 = vsel %vm935, %v4172, %v4174
        %v4182 = vsel %vm935, %v4178, %v4172
        %v4183 = vmul.f32 %v4181, %v989
        %v4184 = vmul.f32 %v4180, %v993
        %v4185 = vmul.f32 %v4179, %v997
        %v4186 = vmul.f32 %v4182, %v1001
        %v4187 = vmul.f32 %v4182, %v1013
        %v4188 = vmul.f32 %v4181, %v1017
        %v4189 = vmul.f32 %v4180, %v1021
        %v4190 = vmul.f32 %v4179, %v1025
        %v4191 = vadd.f32 %v4183, %v4187
        %v4192 = vadd.f32 %v4184, %v4188
        %v4193 = vadd.f32 %v4185, %v4189
        %v4194 = vadd.f32 %v4186, %v4190
        %v4195 = vmul.f32 %v4191, %v1040
        %v4196 = vmul.f32 %v4192, %v1044
        %v4197 = vmul.f32 %v4193, %v1048
        %v4198 = vmul.f32 %v4194, %v1052
        %4199 = vst [vmem:[#allocation2 + $0x80] sm:$0xff] %v4195
        %4200 = vst [vmem:[#allocation2 + $0x88] sm:$0xff] %v4196
        %4201 = vst [vmem:[#allocation2 + $0x90] sm:$0xff] %v4197
        %4202 = vst [vmem:[#allocation2 + $0x98] sm:$0xff] %v4198
        %v4203 = vmul.f32 %v4149, %v1114
        %v4204 = vmul.f32 %v4148, %v1118
        %v4205 = vmul.f32 %v4147, %v1122
        %v4206 = vmul.f32 %v4150, %v1126
        %v4207 = vmul.f32 %v4138, %v1138
        %v4208 = vmul.f32 %v4137, %v1142
        %v4209 = vmul.f32 %v4136, %v1146
        %v4210 = vmul.f32 %v4135, %v1150
        %v4211 = vadd.f32 %v4203, %v4207
        %v4212 = vadd.f32 %v4204, %v4208
        %v4213 = vadd.f32 %v4205, %v4209
        %v4214 = vadd.f32 %v4206, %v4210
        %v4215 = vmul.f32 %v4211, %v1166
        %v4216 = vmul.f32 %v4212, %v1170
        %v4217 = vmul.f32 %v4213, %v1174
        %v4218 = vmul.f32 %v4214, %v1178
        %4219 = vst [vmem:[#allocation2 + $0xa0] sm:$0xff] %v4215
        %4220 = vst [vmem:[#allocation2 + $0xa8] sm:$0xff] %v4216
        %4221 = vst [vmem:[#allocation2 + $0xb0] sm:$0xff] %v4217
        %4222 = vst [vmem:[#allocation2 + $0xb8] sm:$0xff] %v4218
        %v4223 = vmul.f32 %v4105, %v1240
        %v4224 = vmul.f32 %v4104, %v1244
        %v4225 = vmul.f32 %v4103, %v1248
        %v4226 = vmul.f32 %v4106, %v1252
        %v4227 = vmul.f32 %v4094, %v1264
        %v4228 = vmul.f32 %v4093, %v1268
        %v4229 = vmul.f32 %v4092, %v1272
        %v4230 = vmul.f32 %v4091, %v1276
        %v4231 = vadd.f32 %v4223, %v4227
        %v4232 = vadd.f32 %v4224, %v4228
        %v4233 = vadd.f32 %v4225, %v4229
        %v4234 = vadd.f32 %v4226, %v4230
        %v4235 = vmul.f32 %v4231, %v1294
        %v4236 = vmul.f32 %v4232, %v1298
        %v4237 = vmul.f32 %v4233, %v1302
        %v4238 = vmul.f32 %v4234, %v1306
        %4239 = vst [vmem:[#allocation2 + $0xc0] sm:$0xff] %v4235
        %4240 = vst [vmem:[#allocation2 + $0xc8] sm:$0xff] %v4236
        %4241 = vst [vmem:[#allocation2 + $0xd0] sm:$0xff] %v4237
        %4242 = vst [vmem:[#allocation2 + $0xd8] sm:$0xff] %v4238
        %v4243 = vmul.f32 %v4061, %v1368
        %v4244 = vmul.f32 %v4060, %v1372
        %v4245 = vmul.f32 %v4059, %v1376
        %v4246 = vmul.f32 %v4062, %v1380
        %v4247 = vmul.f32 %v4050, %v1392
        %v4248 = vmul.f32 %v4049, %v1396
        %v4249 = vmul.f32 %v4048, %v1400
        %v4250 = vmul.f32 %v4047, %v1404
        %v4251 = vadd.f32 %v4243, %v4247
        %v4252 = vadd.f32 %v4244, %v4248
        %v4253 = vadd.f32 %v4245, %v4249
        %v4254 = vadd.f32 %v4246, %v4250
        %v4255 = vmul.f32 %v4251, %v1419
        %v4256 = vmul.f32 %v4252, %v1423
        %v4257 = vmul.f32 %v4253, %v1427
        %v4258 = vmul.f32 %v4254, %v1431
        %4259 = vst [vmem:[#allocation2 + $0xe0] sm:$0xff] %v4255
        %4260 = vst [vmem:[#allocation2 + $0xe8] sm:$0xff] %v4256
        %4261 = vst [vmem:[#allocation2 + $0xf0] sm:$0xff] %v4257
        %4262 = vst [vmem:[#allocation2 + $0xf8] sm:$0xff] %v4258
        %v4263 = vmul.f32 %v4017, %v1493
        %v4264 = vmul.f32 %v4016, %v1497
        %v4265 = vmul.f32 %v4015, %v1501
        %v4266 = vmul.f32 %v4018, %v1505
        %v4267 = vmul.f32 %v4006, %v1517
        %v4268 = vmul.f32 %v4005, %v1521
        %v4269 = vmul.f32 %v4004, %v1525
        %v4270 = vmul.f32 %v4003, %v1529
        %v4271 = vadd.f32 %v4263, %v4267
        %v4272 = vadd.f32 %v4264, %v4268
        %v4273 = vadd.f32 %v4265, %v4269
        %v4274 = vadd.f32 %v4266, %v4270
        %v4275 = vmul.f32 %v4271, %v1545
        %v4276 = vmul.f32 %v4272, %v1549
        %v4277 = vmul.f32 %v4273, %v1553
        %v4278 = vmul.f32 %v4274, %v1557
        %4279 = vst [vmem:[#allocation2 + $0x100] sm:$0xff] %v4275
        %4280 = vst [vmem:[#allocation2 + $0x108] sm:$0xff] %v4276
        %4281 = vst [vmem:[#allocation2 + $0x110] sm:$0xff] %v4277
        %4282 = vst [vmem:[#allocation2 + $0x118] sm:$0xff] %v4278
        %4283 = vrot.lane.b32.xlu0 %v3989, 119
        %v4284 = vpop.permute.xlu0 %4283
        %4285 = vrot.lane.b32.xlu0 %v3990, 119
        %v4286 = vpop.permute.xlu0 %4285
        %4287 = vrot.lane.b32.xlu0 %v3991, 119
        %v4288 = vpop.permute.xlu0 %4287
        %4289 = vrot.lane.b32.xlu0 %v3992, 119
        %v4290 = vpop.permute.xlu0 %4289
        %v4291 = vsel %vm1578, %v4288, %v4290
        %v4292 = vsel %vm1578, %v4286, %v4288
        %v4293 = vsel %vm1578, %v4284, %v4286
        %v4294 = vsel %vm1578, %v4290, %v4284
        %4295 = vrot.lane.b32.xlu0 %v3989, 9
        %v4296 = vpop.permute.xlu0 %4295
        %4297 = vrot.lane.b32.xlu0 %v3990, 9
        %v4298 = vpop.permute.xlu0 %4297
        %4299 = vrot.lane.b32.xlu0 %v3991, 9
        %v4300 = vpop.permute.xlu0 %4299
        %4301 = vrot.lane.b32.xlu0 %v3992, 9
        %v4302 = vpop.permute.xlu0 %4301
        %v4303 = vsel %vm1591, %v4300, %v4302
        %v4304 = vsel %vm1591, %v4298, %v4300
        %v4305 = vsel %vm1591, %v4296, %v4298
        %v4306 = vsel %vm1591, %v4302, %v4296
        %v4307 = vmul.f32 %v4293, %v1645
        %v4308 = vmul.f32 %v4292, %v1649
        %v4309 = vmul.f32 %v4291, %v1653
        %v4310 = vmul.f32 %v4294, %v1657
        %v4311 = vmul.f32 %v4306, %v1669
        %v4312 = vmul.f32 %v4305, %v1673
        %v4313 = vmul.f32 %v4304, %v1677
        %v4314 = vmul.f32 %v4303, %v1681
        %v4315 = vadd.f32 %v4307, %v4311
        %v4316 = vadd.f32 %v4308, %v4312
        %v4317 = vadd.f32 %v4309, %v4313
        %v4318 = vadd.f32 %v4310, %v4314
        %v4319 = vmul.f32 %v4315, %v1697
        %v4320 = vmul.f32 %v4316, %v1701
        %v4321 = vmul.f32 %v4317, %v1705
        %v4322 = vmul.f32 %v4318, %v1709
        %4323 = vst [vmem:[#allocation2 + $0x120] sm:$0xff] %v4319
        %4324 = vst [vmem:[#allocation2 + $0x128] sm:$0xff] %v4320
        %4325 = vst [vmem:[#allocation2 + $0x130] sm:$0xff] %v4321
        %4326 = vst [vmem:[#allocation2 + $0x138] sm:$0xff] %v4322
        %4327 = vrot.lane.b32.xlu0 %v3989, 120
        %v4328 = vpop.permute.xlu0 %4327
        %4329 = vrot.lane.b32.xlu0 %v3990, 120
        %v4330 = vpop.permute.xlu0 %4329
        %4331 = vrot.lane.b32.xlu0 %v3991, 120
        %v4332 = vpop.permute.xlu0 %4331
        %4333 = vrot.lane.b32.xlu0 %v3992, 120
        %v4334 = vpop.permute.xlu0 %4333
        %v4335 = vsel %vm1730, %v4332, %v4334
        %v4336 = vsel %vm1730, %v4330, %v4332
        %v4337 = vsel %vm1730, %v4328, %v4330
        %v4338 = vsel %vm1730, %v4334, %v4328
        %4339 = vrot.lane.b32.xlu0 %v3989, 8
        %v4340 = vpop.permute.xlu0 %4339
        %4341 = vrot.lane.b32.xlu0 %v3990, 8
        %v4342 = vpop.permute.xlu0 %4341
        %4343 = vrot.lane.b32.xlu0 %v3991, 8
        %v4344 = vpop.permute.xlu0 %4343
        %4345 = vrot.lane.b32.xlu0 %v3992, 8
        %v4346 = vpop.permute.xlu0 %4345
        %v4347 = vsel %vm1743, %v4344, %v4346
        %v4348 = vsel %vm1743, %v4342, %v4344
        %v4349 = vsel %vm1743, %v4340, %v4342
        %v4350 = vsel %vm1743, %v4346, %v4340
        %v4351 = vmul.f32 %v4337, %v1797
        %v4352 = vmul.f32 %v4336, %v1801
        %v4353 = vmul.f32 %v4335, %v1805
        %v4354 = vmul.f32 %v4338, %v1809
        %v4355 = vmul.f32 %v4350, %v1821
        %v4356 = vmul.f32 %v4349, %v1825
        %v4357 = vmul.f32 %v4348, %v1829
        %v4358 = vmul.f32 %v4347, %v1833
        %v4359 = vadd.f32 %v4351, %v4355
        %v4360 = vadd.f32 %v4352, %v4356
        %v4361 = vadd.f32 %v4353, %v4357
        %v4362 = vadd.f32 %v4354, %v4358
        %v4363 = vmul.f32 %v4359, %v1848
        %v4364 = vmul.f32 %v4360, %v1852
        %v4365 = vmul.f32 %v4361, %v1856
        %v4366 = vmul.f32 %v4362, %v1860
        %4367 = vst [vmem:[#allocation2 + $0x140] sm:$0xff] %v4363
        %4368 = vst [vmem:[#allocation2 + $0x148] sm:$0xff] %v4364
        %4369 = vst [vmem:[#allocation2 + $0x150] sm:$0xff] %v4365
        %4370 = vst [vmem:[#allocation2 + $0x158] sm:$0xff] %v4366
        %4371 = vrot.lane.b32.xlu0 %v3989, 121
        %v4372 = vpop.permute.xlu0 %4371
        %4373 = vrot.lane.b32.xlu0 %v3990, 121
        %v4374 = vpop.permute.xlu0 %4373
        %4375 = vrot.lane.b32.xlu0 %v3991, 121
        %v4376 = vpop.permute.xlu0 %4375
        %4377 = vrot.lane.b32.xlu0 %v3992, 121
        %v4378 = vpop.permute.xlu0 %4377
        %v4379 = vsel %vm1881, %v4376, %v4378
        %v4380 = vsel %vm1881, %v4374, %v4376
        %v4381 = vsel %vm1881, %v4372, %v4374
        %v4382 = vsel %vm1881, %v4378, %v4372
        %4383 = vrot.lane.b32.xlu0 %v3989, 7
        %v4384 = vpop.permute.xlu0 %4383
        %4385 = vrot.lane.b32.xlu0 %v3990, 7
        %v4386 = vpop.permute.xlu0 %4385
        %4387 = vrot.lane.b32.xlu0 %v3991, 7
        %v4388 = vpop.permute.xlu0 %4387
        %4389 = vrot.lane.b32.xlu0 %v3992, 7
        %v4390 = vpop.permute.xlu0 %4389
        %v4391 = vsel %vm1894, %v4388, %v4390
        %v4392 = vsel %vm1894, %v4386, %v4388
        %v4393 = vsel %vm1894, %v4384, %v4386
        %v4394 = vsel %vm1894, %v4390, %v4384
        %v4395 = vmul.f32 %v4381, %v1948
        %v4396 = vmul.f32 %v4380, %v1952
        %v4397 = vmul.f32 %v4379, %v1956
        %v4398 = vmul.f32 %v4382, %v1960
        %v4399 = vmul.f32 %v4394, %v1972
        %v4400 = vmul.f32 %v4393, %v1976
        %v4401 = vmul.f32 %v4392, %v1980
        %v4402 = vmul.f32 %v4391, %v1984
        %v4403 = vadd.f32 %v4395, %v4399
        %v4404 = vadd.f32 %v4396, %v4400
        %v4405 = vadd.f32 %v4397, %v4401
        %v4406 = vadd.f32 %v4398, %v4402
        %v4407 = vmul.f32 %v4403, %v2000
        %v4408 = vmul.f32 %v4404, %v2004
        %v4409 = vmul.f32 %v4405, %v2008
        %v4410 = vmul.f32 %v4406, %v2012
        %4411 = vst [vmem:[#allocation2 + $0x160] sm:$0xff] %v4407
        %4412 = vst [vmem:[#allocation2 + $0x168] sm:$0xff] %v4408
        %4413 = vst [vmem:[#allocation2 + $0x170] sm:$0xff] %v4409
        %4414 = vst [vmem:[#allocation2 + $0x178] sm:$0xff] %v4410
        %4415 = vrot.lane.b32.xlu0 %v3989, 127
        %v4416 = vpop.permute.xlu0 %4415
        %4417 = vrot.lane.b32.xlu0 %v3990, 127
        %v4418 = vpop.permute.xlu0 %4417
        %4419 = vrot.lane.b32.xlu0 %v3991, 127
        %v4420 = vpop.permute.xlu0 %4419
        %4421 = vrot.lane.b32.xlu0 %v3992, 127
        %v4422 = vpop.permute.xlu0 %4421
        %v4423 = vsel %vm2033, %v4420, %v4422
        %v4424 = vsel %vm2033, %v4418, %v4420
        %v4425 = vsel %vm2033, %v4416, %v4418
        %v4426 = vsel %vm2033, %v4422, %v4416
        %4427 = vrot.lane.b32.xlu0 %v3989, 1
        %v4428 = vpop.permute.xlu0 %4427
        %4429 = vrot.lane.b32.xlu0 %v3990, 1
        %v4430 = vpop.permute.xlu0 %4429
        %4431 = vrot.lane.b32.xlu0 %v3991, 1
        %v4432 = vpop.permute.xlu0 %4431
        %4433 = vrot.lane.b32.xlu0 %v3992, 1
        %v4434 = vpop.permute.xlu0 %4433
        %v4435 = vsel %vm2046, %v4432, %v4434
        %v4436 = vsel %vm2046, %v4430, %v4432
        %v4437 = vsel %vm2046, %v4428, %v4430
        %v4438 = vsel %vm2046, %v4434, %v4428
        %v4439 = vmul.f32 %v4425, %v2100
        %v4440 = vmul.f32 %v4424, %v2104
        %v4441 = vmul.f32 %v4423, %v2108
        %v4442 = vmul.f32 %v4426, %v2112
        %v4443 = vmul.f32 %v4438, %v2124
        %v4444 = vmul.f32 %v4437, %v2128
        %v4445 = vmul.f32 %v4436, %v2132
        %v4446 = vmul.f32 %v4435, %v2136
        %v4447 = vadd.f32 %v4439, %v4443
        %v4448 = vadd.f32 %v4440, %v4444
        %v4449 = vadd.f32 %v4441, %v4445
        %v4450 = vadd.f32 %v4442, %v4446
        %v4451 = vmul.f32 %v4447, %v2151
        %v4452 = vmul.f32 %v4448, %v2155
        %v4453 = vmul.f32 %v4449, %v2159
        %v4454 = vmul.f32 %v4450, %v2163
        %4455 = vst [vmem:[#allocation2 + $0x180] sm:$0xff] %v4451
        %4456 = vst [vmem:[#allocation2 + $0x188] sm:$0xff] %v4452
        %4457 = vst [vmem:[#allocation2 + $0x190] sm:$0xff] %v4453
        %4458 = vst [vmem:[#allocation2 + $0x198] sm:$0xff] %v4454
        %4459 = vst [vmem:[#allocation2 + $0x1a0] sm:$0xff] %v3989
        %4460 = vst [vmem:[#allocation2 + $0x1a8] sm:$0xff] %v3990
        %4461 = vst [vmem:[#allocation2 + $0x1b0] sm:$0xff] %v3991
        %4462 = vst [vmem:[#allocation2 + $0x1b8] sm:$0xff] %v3992
        %v4463 = vmul.f32 %v4438, %v2229
        %v4464 = vmul.f32 %v4437, %v2233
        %v4465 = vmul.f32 %v4436, %v2237
        %v4466 = vmul.f32 %v4435, %v2241
        %v4467 = vmul.f32 %v4425, %v2253
        %v4468 = vmul.f32 %v4424, %v2257
        %v4469 = vmul.f32 %v4423, %v2261
        %v4470 = vmul.f32 %v4426, %v2265
        %v4471 = vadd.f32 %v4463, %v4467
        %v4472 = vadd.f32 %v4464, %v4468
        %v4473 = vadd.f32 %v4465, %v4469
        %v4474 = vadd.f32 %v4466, %v4470
        %v4475 = vmul.f32 %v4471, %v2280
        %v4476 = vmul.f32 %v4472, %v2284
        %v4477 = vmul.f32 %v4473, %v2288
        %v4478 = vmul.f32 %v4474, %v2292
        %4479 = vst [vmem:[#allocation2 + $0x1c0] sm:$0xff] %v4475
        %4480 = vst [vmem:[#allocation2 + $0x1c8] sm:$0xff] %v4476
        %4481 = vst [vmem:[#allocation2 + $0x1d0] sm:$0xff] %v4477
        %4482 = vst [vmem:[#allocation2 + $0x1d8] sm:$0xff] %v4478
        %v4483 = vmul.f32 %v4394, %v2354
        %v4484 = vmul.f32 %v4393, %v2358
        %v4485 = vmul.f32 %v4392, %v2362
        %v4486 = vmul.f32 %v4391, %v2366
        %v4487 = vmul.f32 %v4381, %v2378
        %v4488 = vmul.f32 %v4380, %v2382
        %v4489 = vmul.f32 %v4379, %v2386
        %v4490 = vmul.f32 %v4382, %v2390
        %v4491 = vadd.f32 %v4483, %v4487
        %v4492 = vadd.f32 %v4484, %v4488
        %v4493 = vadd.f32 %v4485, %v4489
        %v4494 = vadd.f32 %v4486, %v4490
        %v4495 = vmul.f32 %v4491, %v2406
        %v4496 = vmul.f32 %v4492, %v2410
        %v4497 = vmul.f32 %v4493, %v2414
        %v4498 = vmul.f32 %v4494, %v2418
        %4499 = vst [vmem:[#allocation2 + $0x1e0] sm:$0xff] %v4495
        %4500 = vst [vmem:[#allocation2 + $0x1e8] sm:$0xff] %v4496
        %4501 = vst [vmem:[#allocation2 + $0x1f0] sm:$0xff] %v4497
        %4502 = vst [vmem:[#allocation2 + $0x1f8] sm:$0xff] %v4498
        %v4503 = vmul.f32 %v4350, %v2480
        %v4504 = vmul.f32 %v4349, %v2484
        %v4505 = vmul.f32 %v4348, %v2488
        %v4506 = vmul.f32 %v4347, %v2492
        %v4507 = vmul.f32 %v4337, %v2504
        %v4508 = vmul.f32 %v4336, %v2508
        %v4509 = vmul.f32 %v4335, %v2512
        %v4510 = vmul.f32 %v4338, %v2516
        %v4511 = vadd.f32 %v4503, %v4507
        %v4512 = vadd.f32 %v4504, %v4508
        %v4513 = vadd.f32 %v4505, %v4509
        %v4514 = vadd.f32 %v4506, %v4510
        %v4515 = vmul.f32 %v4511, %v2531
        %v4516 = vmul.f32 %v4512, %v2535
        %v4517 = vmul.f32 %v4513, %v2539
        %v4518 = vmul.f32 %v4514, %v2543
        %4519 = vst [vmem:[#allocation2 + $0x200] sm:$0xff] %v4515
        %4520 = vst [vmem:[#allocation2 + $0x208] sm:$0xff] %v4516
        %4521 = vst [vmem:[#allocation2 + $0x210] sm:$0xff] %v4517
        %4522 = vst [vmem:[#allocation2 + $0x218] sm:$0xff] %v4518
        %v4523 = vmul.f32 %v4306, %v2605
        %v4524 = vmul.f32 %v4305, %v2609
        %v4525 = vmul.f32 %v4304, %v2613
        %v4526 = vmul.f32 %v4303, %v2617
        %v4527 = vmul.f32 %v4293, %v2629
        %v4528 = vmul.f32 %v4292, %v2633
        %v4529 = vmul.f32 %v4291, %v2637
        %v4530 = vmul.f32 %v4294, %v2641
        %v4531 = vadd.f32 %v4523, %v4527
        %v4532 = vadd.f32 %v4524, %v4528
        %v4533 = vadd.f32 %v4525, %v4529
        %v4534 = vadd.f32 %v4526, %v4530
        %v4535 = vmul.f32 %v4531, %v2657
        %v4536 = vmul.f32 %v4532, %v2661
        %v4537 = vmul.f32 %v4533, %v2665
        %v4538 = vmul.f32 %v4534, %v2669
        %4539 = vst [vmem:[#allocation2 + $0x220] sm:$0xff] %v4535
        %4540 = vst [vmem:[#allocation2 + $0x228] sm:$0xff] %v4536
        %4541 = vst [vmem:[#allocation2 + $0x230] sm:$0xff] %v4537
        %4542 = vst [vmem:[#allocation2 + $0x238] sm:$0xff] %v4538
        %v4543 = vmul.f32 %v4006, %v2719
        %v4544 = vmul.f32 %v4005, %v2723
        %v4545 = vmul.f32 %v4004, %v2727
        %v4546 = vmul.f32 %v4003, %v2731
        %v4547 = vmul.f32 %v4017, %v2743
        %v4548 = vmul.f32 %v4016, %v2747
        %v4549 = vmul.f32 %v4015, %v2751
        %v4550 = vmul.f32 %v4018, %v2755
        %v4551 = vadd.f32 %v4543, %v4547
        %v4552 = vadd.f32 %v4544, %v4548
        %v4553 = vadd.f32 %v4545, %v4549
        %v4554 = vadd.f32 %v4546, %v4550
        %v4555 = vmul.f32 %v4551, %v2773
        %v4556 = vmul.f32 %v4552, %v2777
        %v4557 = vmul.f32 %v4553, %v2781
        %v4558 = vmul.f32 %v4554, %v2785
        %4559 = vst [vmem:[#allocation2 + $0x240] sm:$0xff] %v4555
        %4560 = vst [vmem:[#allocation2 + $0x248] sm:$0xff] %v4556
        %4561 = vst [vmem:[#allocation2 + $0x250] sm:$0xff] %v4557
        %4562 = vst [vmem:[#allocation2 + $0x258] sm:$0xff] %v4558
        %v4563 = vmul.f32 %v4050, %v2835
        %v4564 = vmul.f32 %v4049, %v2839
        %v4565 = vmul.f32 %v4048, %v2843
        %v4566 = vmul.f32 %v4047, %v2847
        %v4567 = vmul.f32 %v4061, %v2859
        %v4568 = vmul.f32 %v4060, %v2863
        %v4569 = vmul.f32 %v4059, %v2867
        %v4570 = vmul.f32 %v4062, %v2871
        %v4571 = vadd.f32 %v4563, %v4567
        %v4572 = vadd.f32 %v4564, %v4568
        %v4573 = vadd.f32 %v4565, %v4569
        %v4574 = vadd.f32 %v4566, %v4570
        %v4575 = vmul.f32 %v4571, %v2886
        %v4576 = vmul.f32 %v4572, %v2890
        %v4577 = vmul.f32 %v4573, %v2894
        %v4578 = vmul.f32 %v4574, %v2898
        %4579 = vst [vmem:[#allocation2 + $0x260] sm:$0xff] %v4575
        %4580 = vst [vmem:[#allocation2 + $0x268] sm:$0xff] %v4576
        %4581 = vst [vmem:[#allocation2 + $0x270] sm:$0xff] %v4577
        %4582 = vst [vmem:[#allocation2 + $0x278] sm:$0xff] %v4578
        %v4583 = vmul.f32 %v4094, %v2948
        %v4584 = vmul.f32 %v4093, %v2952
        %v4585 = vmul.f32 %v4092, %v2956
        %v4586 = vmul.f32 %v4091, %v2960
        %v4587 = vmul.f32 %v4105, %v2972
        %v4588 = vmul.f32 %v4104, %v2976
        %v4589 = vmul.f32 %v4103, %v2980
        %v4590 = vmul.f32 %v4106, %v2984
        %v4591 = vadd.f32 %v4583, %v4587
        %v4592 = vadd.f32 %v4584, %v4588
        %v4593 = vadd.f32 %v4585, %v4589
        %v4594 = vadd.f32 %v4586, %v4590
        %v4595 = vmul.f32 %v4591, %v3000
        %v4596 = vmul.f32 %v4592, %v3004
        %v4597 = vmul.f32 %v4593, %v3008
        %v4598 = vmul.f32 %v4594, %v3012
        %4599 = vst [vmem:[#allocation2 + $0x280] sm:$0xff] %v4595
        %4600 = vst [vmem:[#allocation2 + $0x288] sm:$0xff] %v4596
        %4601 = vst [vmem:[#allocation2 + $0x290] sm:$0xff] %v4597
        %4602 = vst [vmem:[#allocation2 + $0x298] sm:$0xff] %v4598
        %v4603 = vmul.f32 %v4138, %v3062
        %v4604 = vmul.f32 %v4137, %v3066
        %v4605 = vmul.f32 %v4136, %v3070
        %v4606 = vmul.f32 %v4135, %v3074
        %v4607 = vmul.f32 %v4149, %v3086
        %v4608 = vmul.f32 %v4148, %v3090
        %v4609 = vmul.f32 %v4147, %v3094
        %v4610 = vmul.f32 %v4150, %v3098
        %v4611 = vadd.f32 %v4603, %v4607
        %v4612 = vadd.f32 %v4604, %v4608
        %v4613 = vadd.f32 %v4605, %v4609
        %v4614 = vadd.f32 %v4606, %v4610
        %v4615 = vmul.f32 %v4611, %v3114
        %v4616 = vmul.f32 %v4612, %v3118
        %v4617 = vmul.f32 %v4613, %v3122
        %v4618 = vmul.f32 %v4614, %v3126
        %4619 = vst [vmem:[#allocation2 + $0x2a0] sm:$0xff] %v4615
        %4620 = vst [vmem:[#allocation2 + $0x2a8] sm:$0xff] %v4616
        %4621 = vst [vmem:[#allocation2 + $0x2b0] sm:$0xff] %v4617
        %4622 = vst [vmem:[#allocation2 + $0x2b8] sm:$0xff] %v4618
        %v4623 = vmul.f32 %v4182, %v3176
        %v4624 = vmul.f32 %v4181, %v3180
        %v4625 = vmul.f32 %v4180, %v3184
        %v4626 = vmul.f32 %v4179, %v3188
        %v4627 = vmul.f32 %v4181, %v3200
        %v4628 = vmul.f32 %v4180, %v3204
        %v4629 = vmul.f32 %v4179, %v3208
        %v4630 = vmul.f32 %v4182, %v3212
        %v4631 = vadd.f32 %v4623, %v4627
        %v4632 = vadd.f32 %v4624, %v4628
        %v4633 = vadd.f32 %v4625, %v4629
        %v4634 = vadd.f32 %v4626, %v4630
        %v4635 = vmul.f32 %v4631, %v3227
        %v4636 = vmul.f32 %v4632, %v3231
        %v4637 = vmul.f32 %v4633, %v3235
        %v4638 = vmul.f32 %v4634, %v3239
        %4639 = vst [vmem:[#allocation2 + $0x2c0] sm:$0xff] %v4635
        %4640 = vst [vmem:[#allocation2 + $0x2c8] sm:$0xff] %v4636
        %4641 = vst [vmem:[#allocation2 + $0x2d0] sm:$0xff] %v4637
        %4642 = vst [vmem:[#allocation2 + $0x2d8] sm:$0xff] %v4638
        %v4643 = vmul.f32 %v4150, %v3289
        %v4644 = vmul.f32 %v4149, %v3293
        %v4645 = vmul.f32 %v4148, %v3297
        %v4646 = vmul.f32 %v4147, %v3301
        %v4647 = vmul.f32 %v4137, %v3313
        %v4648 = vmul.f32 %v4136, %v3317
        %v4649 = vmul.f32 %v4135, %v3321
        %v4650 = vmul.f32 %v4138, %v3325
        %v4651 = vadd.f32 %v4643, %v4647
        %v4652 = vadd.f32 %v4644, %v4648
        %v4653 = vadd.f32 %v4645, %v4649
        %v4654 = vadd.f32 %v4646, %v4650
        %v4655 = vmul.f32 %v4651, %v3341
        %v4656 = vmul.f32 %v4652, %v3345
        %v4657 = vmul.f32 %v4653, %v3349
        %v4658 = vmul.f32 %v4654, %v3353
        %4659 = vst [vmem:[#allocation2 + $0x2e0] sm:$0xff] %v4655
        %4660 = vst [vmem:[#allocation2 + $0x2e8] sm:$0xff] %v4656
        %4661 = vst [vmem:[#allocation2 + $0x2f0] sm:$0xff] %v4657
        %4662 = vst [vmem:[#allocation2 + $0x2f8] sm:$0xff] %v4658
        %v4663 = vmul.f32 %v4106, %v3403
        %v4664 = vmul.f32 %v4105, %v3407
        %v4665 = vmul.f32 %v4104, %v3411
        %v4666 = vmul.f32 %v4103, %v3415
        %v4667 = vmul.f32 %v4093, %v3427
        %v4668 = vmul.f32 %v4092, %v3431
        %v4669 = vmul.f32 %v4091, %v3435
        %v4670 = vmul.f32 %v4094, %v3439
        %v4671 = vadd.f32 %v4663, %v4667
        %v4672 = vadd.f32 %v4664, %v4668
        %v4673 = vadd.f32 %v4665, %v4669
        %v4674 = vadd.f32 %v4666, %v4670
        %v4675 = vmul.f32 %v4671, %v3456
        %v4676 = vmul.f32 %v4672, %v3460
        %v4677 = vmul.f32 %v4673, %v3464
        %v4678 = vmul.f32 %v4674, %v3468
        %4679 = vst [vmem:[#allocation2 + $0x300] sm:$0xff] %v4675
        %4680 = vst [vmem:[#allocation2 + $0x308] sm:$0xff] %v4676
        %4681 = vst [vmem:[#allocation2 + $0x310] sm:$0xff] %v4677
        %4682 = vst [vmem:[#allocation2 + $0x318] sm:$0xff] %v4678
        %v4683 = vmul.f32 %v4062, %v3518
        %v4684 = vmul.f32 %v4061, %v3522
        %v4685 = vmul.f32 %v4060, %v3526
        %v4686 = vmul.f32 %v4059, %v3530
        %v4687 = vmul.f32 %v4049, %v3542
        %v4688 = vmul.f32 %v4048, %v3546
        %v4689 = vmul.f32 %v4047, %v3550
        %v4690 = vmul.f32 %v4050, %v3554
        %v4691 = vadd.f32 %v4683, %v4687
        %v4692 = vadd.f32 %v4684, %v4688
        %v4693 = vadd.f32 %v4685, %v4689
        %v4694 = vadd.f32 %v4686, %v4690
        %v4695 = vmul.f32 %v4691, %v3569
        %v4696 = vmul.f32 %v4692, %v3573
        %v4697 = vmul.f32 %v4693, %v3577
        %v4698 = vmul.f32 %v4694, %v3581
        %4699 = vst [vmem:[#allocation2 + $0x320] sm:$0xff] %v4695
        %4700 = vst [vmem:[#allocation2 + $0x328] sm:$0xff] %v4696
        %4701 = vst [vmem:[#allocation2 + $0x330] sm:$0xff] %v4697
        %4702 = vst [vmem:[#allocation2 + $0x338] sm:$0xff] %v4698
        %v4703 = vmul.f32 %v4018, %v3631
        %v4704 = vmul.f32 %v4017, %v3635
        %v4705 = vmul.f32 %v4016, %v3639
        %v4706 = vmul.f32 %v4015, %v3643
        %v4707 = vmul.f32 %v4005, %v3655
        %v4708 = vmul.f32 %v4004, %v3659
        %v4709 = vmul.f32 %v4003, %v3663
        %v4710 = vmul.f32 %v4006, %v3667
        %v4711 = vadd.f32 %v4703, %v4707
        %v4712 = vadd.f32 %v4704, %v4708
        %v4713 = vadd.f32 %v4705, %v4709
        %v4714 = vadd.f32 %v4706, %v4710
        %v4715 = vmul.f32 %v4711, %v3683
        %v4716 = vmul.f32 %v4712, %v3687
        %v4717 = vmul.f32 %v4713, %v3691
        %v4718 = vmul.f32 %v4714, %v3695
        %4719 = vst [vmem:[#allocation2 + $0x340] sm:$0xff] %v4715
        %4720 = vst [vmem:[#allocation2 + $0x348] sm:$0xff] %v4716
        %4721 = vst [vmem:[#allocation2 + $0x350] sm:$0xff] %v4717
        %4722 = vst [vmem:[#allocation2 + $0x358] sm:$0xff] %v4718
        %v4723 = vld [vmem:[#allocation2] sm:$0xff]
        %v4724 = vld [vmem:[#allocation2 + $0x8] sm:$0xff]
        %v4725 = vld [vmem:[#allocation2 + $0x10] sm:$0xff]
        %v4726 = vld [vmem:[#allocation2 + $0x18] sm:$0xff]
        %v4727 = vld [vmem:[#allocation2 + $0x20] sm:$0xff]
        %v4728 = vld [vmem:[#allocation2 + $0x28] sm:$0xff]
        %v4729 = vld [vmem:[#allocation2 + $0x30] sm:$0xff]
        %v4730 = vld [vmem:[#allocation2 + $0x38] sm:$0xff]
        %v4731 = vld [vmem:[#allocation2 + $0x40] sm:$0xff]
        %v4732 = vld [vmem:[#allocation2 + $0x48] sm:$0xff]
        %v4733 = vld [vmem:[#allocation2 + $0x50] sm:$0xff]
        %v4734 = vld [vmem:[#allocation2 + $0x58] sm:$0xff]
        %v4735 = vld [vmem:[#allocation2 + $0x60] sm:$0xff]
        %v4736 = vld [vmem:[#allocation2 + $0x68] sm:$0xff]
        %v4737 = vld [vmem:[#allocation2 + $0x70] sm:$0xff]
        %v4738 = vld [vmem:[#allocation2 + $0x78] sm:$0xff]
        %v4739 = vld [vmem:[#allocation2 + $0x80] sm:$0xff]
        %v4740 = vld [vmem:[#allocation2 + $0x88] sm:$0xff]
        %v4741 = vld [vmem:[#allocation2 + $0x90] sm:$0xff]
        %v4742 = vld [vmem:[#allocation2 + $0x98] sm:$0xff]
        %v4743 = vld [vmem:[#allocation2 + $0xa0] sm:$0xff]
        %v4744 = vld [vmem:[#allocation2 + $0xa8] sm:$0xff]
        %v4745 = vld [vmem:[#allocation2 + $0xb0] sm:$0xff]
        %v4746 = vld [vmem:[#allocation2 + $0xb8] sm:$0xff]
        %v4747 = vld [vmem:[#allocation2 + $0xc0] sm:$0xff]
        %v4748 = vld [vmem:[#allocation2 + $0xc8] sm:$0xff]
        %v4749 = vld [vmem:[#allocation2 + $0xd0] sm:$0xff]
        %v4750 = vld [vmem:[#allocation2 + $0xd8] sm:$0xff]
        %v4751 = vld [vmem:[#allocation2 + $0xe0] sm:$0xff]
        %v4752 = vld [vmem:[#allocation2 + $0xe8] sm:$0xff]
        %v4753 = vld [vmem:[#allocation2 + $0xf0] sm:$0xff]
        %v4754 = vld [vmem:[#allocation2 + $0xf8] sm:$0xff]
        %v4755 = vld [vmem:[#allocation2 + $0x100] sm:$0xff]
        %v4756 = vld [vmem:[#allocation2 + $0x108] sm:$0xff]
        %v4757 = vld [vmem:[#allocation2 + $0x110] sm:$0xff]
        %v4758 = vld [vmem:[#allocation2 + $0x118] sm:$0xff]
        %v4759 = vld [vmem:[#allocation2 + $0x120] sm:$0xff]
        %v4760 = vld [vmem:[#allocation2 + $0x128] sm:$0xff]
        %v4761 = vld [vmem:[#allocation2 + $0x130] sm:$0xff]
        %v4762 = vld [vmem:[#allocation2 + $0x138] sm:$0xff]
        %v4763 = vld [vmem:[#allocation2 + $0x140] sm:$0xff]
        %v4764 = vld [vmem:[#allocation2 + $0x148] sm:$0xff]
        %v4765 = vld [vmem:[#allocation2 + $0x150] sm:$0xff]
        %v4766 = vld [vmem:[#allocation2 + $0x158] sm:$0xff]
        %v4767 = vld [vmem:[#allocation2 + $0x160] sm:$0xff]
        %v4768 = vld [vmem:[#allocation2 + $0x168] sm:$0xff]
        %v4769 = vld [vmem:[#allocation2 + $0x170] sm:$0xff]
        %v4770 = vld [vmem:[#allocation2 + $0x178] sm:$0xff]
        %v4771 = vld [vmem:[#allocation2 + $0x180] sm:$0xff]
        %v4772 = vld [vmem:[#allocation2 + $0x188] sm:$0xff]
        %v4773 = vld [vmem:[#allocation2 + $0x190] sm:$0xff]
        %v4774 = vld [vmem:[#allocation2 + $0x198] sm:$0xff]
        %v4775 = vld [vmem:[#allocation2 + $0x1a0] sm:$0xff]
        %v4776 = vld [vmem:[#allocation2 + $0x1a8] sm:$0xff]
        %v4777 = vld [vmem:[#allocation2 + $0x1b0] sm:$0xff]
        %v4778 = vld [vmem:[#allocation2 + $0x1b8] sm:$0xff]
        %v4779 = vld [vmem:[#allocation2 + $0x1c0] sm:$0xff]
        %v4780 = vld [vmem:[#allocation2 + $0x1c8] sm:$0xff]
        %v4781 = vld [vmem:[#allocation2 + $0x1d0] sm:$0xff]
        %v4782 = vld [vmem:[#allocation2 + $0x1d8] sm:$0xff]
        %v4783 = vld [vmem:[#allocation2 + $0x1e0] sm:$0xff]
        %v4784 = vld [vmem:[#allocation2 + $0x1e8] sm:$0xff]
        %v4785 = vld [vmem:[#allocation2 + $0x1f0] sm:$0xff]
        %v4786 = vld [vmem:[#allocation2 + $0x1f8] sm:$0xff]
        %v4787 = vld [vmem:[#allocation2 + $0x200] sm:$0xff]
        %v4788 = vld [vmem:[#allocation2 + $0x208] sm:$0xff]
        %v4789 = vld [vmem:[#allocation2 + $0x210] sm:$0xff]
        %v4790 = vld [vmem:[#allocation2 + $0x218] sm:$0xff]
        %v4791 = vld [vmem:[#allocation2 + $0x220] sm:$0xff]
        %v4792 = vld [vmem:[#allocation2 + $0x228] sm:$0xff]
        %v4793 = vld [vmem:[#allocation2 + $0x230] sm:$0xff]
        %v4794 = vld [vmem:[#allocation2 + $0x238] sm:$0xff]
        %v4795 = vld [vmem:[#allocation2 + $0x240] sm:$0xff]
        %v4796 = vld [vmem:[#allocation2 + $0x248] sm:$0xff]
        %v4797 = vld [vmem:[#allocation2 + $0x250] sm:$0xff]
        %v4798 = vld [vmem:[#allocation2 + $0x258] sm:$0xff]
        %v4799 = vld [vmem:[#allocation2 + $0x260] sm:$0xff]
        %v4800 = vld [vmem:[#allocation2 + $0x268] sm:$0xff]
        %v4801 = vld [vmem:[#allocation2 + $0x270] sm:$0xff]
        %v4802 = vld [vmem:[#allocation2 + $0x278] sm:$0xff]
        %v4803 = vld [vmem:[#allocation2 + $0x280] sm:$0xff]
        %v4804 = vld [vmem:[#allocation2 + $0x288] sm:$0xff]
        %v4805 = vld [vmem:[#allocation2 + $0x290] sm:$0xff]
        %v4806 = vld [vmem:[#allocation2 + $0x298] sm:$0xff]
        %v4807 = vld [vmem:[#allocation2 + $0x2a0] sm:$0xff]
        %v4808 = vld [vmem:[#allocation2 + $0x2a8] sm:$0xff]
        %v4809 = vld [vmem:[#allocation2 + $0x2b0] sm:$0xff]
        %v4810 = vld [vmem:[#allocation2 + $0x2b8] sm:$0xff]
        %v4811 = vld [vmem:[#allocation2 + $0x2c0] sm:$0xff]
        %v4812 = vld [vmem:[#allocation2 + $0x2c8] sm:$0xff]
        %v4813 = vld [vmem:[#allocation2 + $0x2d0] sm:$0xff]
        %v4814 = vld [vmem:[#allocation2 + $0x2d8] sm:$0xff]
        %v4815 = vld [vmem:[#allocation2 + $0x2e0] sm:$0xff]
        %v4816 = vld [vmem:[#allocation2 + $0x2e8] sm:$0xff]
        %v4817 = vld [vmem:[#allocation2 + $0x2f0] sm:$0xff]
        %v4818 = vld [vmem:[#allocation2 + $0x2f8] sm:$0xff]
        %v4819 = vld [vmem:[#allocation2 + $0x300] sm:$0xff]
        %v4820 = vld [vmem:[#allocation2 + $0x308] sm:$0xff]
        %v4821 = vld [vmem:[#allocation2 + $0x310] sm:$0xff]
        %v4822 = vld [vmem:[#allocation2 + $0x318] sm:$0xff]
        %v4823 = vld [vmem:[#allocation2 + $0x320] sm:$0xff]
        %v4824 = vld [vmem:[#allocation2 + $0x328] sm:$0xff]
        %v4825 = vld [vmem:[#allocation2 + $0x330] sm:$0xff]
        %v4826 = vld [vmem:[#allocation2 + $0x338] sm:$0xff]
        %v4827 = vld [vmem:[#allocation2 + $0x340] sm:$0xff]
        %v4828 = vld [vmem:[#allocation2 + $0x348] sm:$0xff]
        %v4829 = vld [vmem:[#allocation2 + $0x350] sm:$0xff]
        %v4830 = vld [vmem:[#allocation2 + $0x358] sm:$0xff]
        %v4832 = vsel %vm3816, %v3994, 0
        %4834 = vmatprep.subr.mxu0 %v4724
        %4835 = vmatpush1.msra.mxu0 %v4723
        %4836 = vmatprep.subr.mxu0 %v4728
        %4837 = vmatpush1.msra.mxu0 %v4727
        %4838 = vmatprep.subr.mxu0 %v4732
        %4839 = vmatpush1.msra.mxu0 %v4731
        %4840 = vmatprep.subr.mxu0 %v4736
        %4841 = vmatpush1.msra.mxu0 %v4735
        %4842 = vmatprep.subr.mxu0 %v4740
        %4843 = vmatpush1.msra.mxu0 %v4739
        %4844 = vmatprep.subr.mxu0 %v4744
        %4845 = vmatpush1.msra.mxu0 %v4743
        %4846 = vmatprep.subr.mxu0 %v4748
        %4847 = vmatpush1.msra.mxu0 %v4747
        %4848 = vmatprep.subr.mxu0 %v4752
        %4849 = vmatpush1.msra.mxu0 %v4751
        %4850 = vmatprep.subr.mxu0 %v4756
        %4851 = vmatpush1.msra.mxu0 %v4755
        %4852 = vmatprep.subr.mxu0 %v4760
        %4853 = vmatpush1.msra.mxu0 %v4759
        %4854 = vmatprep.subr.mxu0 %v4764
        %4855 = vmatpush1.msra.mxu0 %v4763
        %4856 = vmatprep.subr.mxu0 %v4768
        %4857 = vmatpush1.msra.mxu0 %v4767
        %4858 = vmatprep.subr.mxu0 %v4772
        %4859 = vmatpush1.msra.mxu0 %v4771
        %4860 = vmatprep.subr.mxu0 %v4776
        %4861 = vmatpush1.msra.mxu0 %v4775
        %4862 = vmatprep.subr.mxu0 %v4780
        %4863 = vmatpush1.msra.mxu0 %v4779
        %4864 = vmatprep.subr.mxu0 %v4784
        %4865 = vmatpush1.msra.mxu0 %v4783
        %4866 = vmatprep.subr.mxu0 %v4788
        %4867 = vmatpush1.msra.mxu0 %v4787
        %4868 = vmatprep.subr.mxu0 %v4792
        %4869 = vmatpush1.msra.mxu0 %v4791
        %4870 = vmatprep.subr.mxu0 %v4796
        %4871 = vmatpush1.msra.mxu0 %v4795
        %4872 = vmatprep.subr.mxu0 %v4800
        %4873 = vmatpush1.msra.mxu0 %v4799
        %4874 = vmatprep.subr.mxu0 %v4804
        %4875 = vmatpush1.msra.mxu0 %v4803
        %4876 = vmatprep.subr.mxu0 %v4808
        %4877 = vmatpush1.msra.mxu0 %v4807
        %4878 = vmatprep.subr.mxu0 %v4812
        %4879 = vmatpush1.msra.mxu0 %v4811
        %4880 = vmatprep.subr.mxu0 %v4816
        %4881 = vmatpush1.msra.mxu0 %v4815
        %4882 = vmatprep.subr.mxu0 %v4820
        %4883 = vmatpush1.msra.mxu0 %v4819
        %4884 = vmatprep.subr.mxu0 %v4824
        %4885 = vmatpush1.msra.mxu0 %v4823
        %4886 = vmatprep.subr.mxu0 %v4828
        %4887 = vmatpush1.msra.mxu0 %v4827
        %4888 = vmatprep.subr.mxu0 0.0
        %4889 = vmatpush1.msra.mxu0 0.0
        %4890 = vmatprep.subr.mxu0 0.0
        %4891 = vmatpush1.msra.mxu0 0.0
        %4892 = vmatprep.subr.mxu0 0.0
        %4893 = vmatpush1.msra.mxu0 0.0
        %4894 = vmatprep.subr.mxu0 0.0
        %4895 = vmatpush1.msra.mxu0 0.0
        %4896 = vmatprep.subr.mxu0 0.0
        %4897 = vmatpush1.msra.mxu0 0.0
        %4898 = vmatprep.mubr.f32.mxu0 %v4832
        %4899 = vmatmul.mubr.f32.gmra.mrb[0].mxu0 %v3993
        %v4900 = vpop.f32.mrb[0].mxu0
        %v4901 = vadd.f32 0.0, %v4900
        %v4902 = vpop.f32.mrb[0].mxu0
        %v4903 = vadd.f32 0.0, %v4902
        %4904 = vdwg.mxu0
        %4905 = vmatprep.subr.mxu0 %v4726
        %4906 = vmatpush1.msra.mxu0 %v4725
        %4907 = vmatprep.subr.mxu0 %v4730
        %4908 = vmatpush1.msra.mxu0 %v4729
        %4909 = vmatprep.subr.mxu0 %v4734
        %4910 = vmatpush1.msra.mxu0 %v4733
        %4911 = vmatprep.subr.mxu0 %v4738
        %4912 = vmatpush1.msra.mxu0 %v4737
        %4913 = vmatprep.subr.mxu0 %v4742
        %4914 = vmatpush1.msra.mxu0 %v4741
        %4915 = vmatprep.subr.mxu0 %v4746
        %4916 = vmatpush1.msra.mxu0 %v4745
        %4917 = vmatprep.subr.mxu0 %v4750
        %4918 = vmatpush1.msra.mxu0 %v4749
        %4919 = vmatprep.subr.mxu0 %v4754
        %4920 = vmatpush1.msra.mxu0 %v4753
        %4921 = vmatprep.subr.mxu0 %v4758
        %4922 = vmatpush1.msra.mxu0 %v4757
        %4923 = vmatprep.subr.mxu0 %v4762
        %4924 = vmatpush1.msra.mxu0 %v4761
        %4925 = vmatprep.subr.mxu0 %v4766
        %4926 = vmatpush1.msra.mxu0 %v4765
        %4927 = vmatprep.subr.mxu0 %v4770
        %4928 = vmatpush1.msra.mxu0 %v4769
        %4929 = vmatprep.subr.mxu0 %v4774
        %4930 = vmatpush1.msra.mxu0 %v4773
        %4931 = vmatprep.subr.mxu0 %v4778
        %4932 = vmatpush1.msra.mxu0 %v4777
        %4933 = vmatprep.subr.mxu0 %v4782
        %4934 = vmatpush1.msra.mxu0 %v4781
        %4935 = vmatprep.subr.mxu0 %v4786
        %4936 = vmatpush1.msra.mxu0 %v4785
        %4937 = vmatprep.subr.mxu0 %v4790
        %4938 = vmatpush1.msra.mxu0 %v4789
        %4939 = vmatprep.subr.mxu0 %v4794
        %4940 = vmatpush1.msra.mxu0 %v4793
        %4941 = vmatprep.subr.mxu0 %v4798
        %4942 = vmatpush1.msra.mxu0 %v4797
        %4943 = vmatprep.subr.mxu0 %v4802
        %4944 = vmatpush1.msra.mxu0 %v4801
        %4945 = vmatprep.subr.mxu0 %v4806
        %4946 = vmatpush1.msra.mxu0 %v4805
        %4947 = vmatprep.subr.mxu0 %v4810
        %4948 = vmatpush1.msra.mxu0 %v4809
        %4949 = vmatprep.subr.mxu0 %v4814
        %4950 = vmatpush1.msra.mxu0 %v4813
        %4951 = vmatprep.subr.mxu0 %v4818
        %4952 = vmatpush1.msra.mxu0 %v4817
        %4953 = vmatprep.subr.mxu0 %v4822
        %4954 = vmatpush1.msra.mxu0 %v4821
        %4955 = vmatprep.subr.mxu0 %v4826
        %4956 = vmatpush1.msra.mxu0 %v4825
        %4957 = vmatprep.subr.mxu0 %v4830
        %4958 = vmatpush1.msra.mxu0 %v4829
        %4959 = vmatprep.subr.mxu0 0.0
        %4960 = vmatpush1.msra.mxu0 0.0
        %4961 = vmatprep.subr.mxu0 0.0
        %4962 = vmatpush1.msra.mxu0 0.0
        %4963 = vmatprep.subr.mxu0 0.0
        %4964 = vmatpush1.msra.mxu0 0.0
        %4965 = vmatprep.subr.mxu0 0.0
        %4966 = vmatpush1.msra.mxu0 0.0
        %4967 = vmatprep.subr.mxu0 0.0
        %4968 = vmatpush1.msra.mxu0 0.0
        %4969 = vmatprep.mubr.f32.mxu0 %v4832
        %4970 = vmatmul.mubr.f32.gmra.mrb[0].mxu0 %v3993
        %v4971 = vpop.f32.mrb[0].mxu0
        %v4972 = vadd.f32 0.0, %v4971
        %v4973 = vpop.f32.mrb[0].mxu0
        %v4974 = vadd.f32 0.0, %v4973
        %4975 = vdwg.mxu0
        %v4976 = vadd.f32 %v4901, %v4903
        %v4977 = vadd.f32 %v4976, %v4972
        %v4978 = vadd.f32 %v4977, %v4974
        %4979 = vadd.xlane.f32.xlu0 %v4978
        %v4980 = vpop.xlane.xlu0 %4979
        %v4981 = vmul.f32 %v4980, %v3967
        %v4982 = vsub.f32 %v4901, %v4981
        %v4983 = vsub.f32 %v4903, %v4981
        %v4984 = vsub.f32 %v4972, %v4981
        %v4985 = vsub.f32 %v4974, %v4981
        %v4986 = vmul.f32 %v4982, %v4982
        %v4987 = vmul.f32 %v4983, %v4983
        %v4988 = vmul.f32 %v4984, %v4984
        %v4989 = vmul.f32 %v4985, %v4985
        %v4990 = vadd.f32 %v4986, %v4987
        %v4991 = vadd.f32 %v4990, %v4988
        %v4992 = vadd.f32 %v4991, %v4989
        %4993 = vadd.xlane.f32.xlu0 %v4992
        %v4994 = vpop.xlane.xlu0 %4993
        %v4995 = vmul.f32 %v4994, %v3967
        %v4996 = vadd.f32 %v4995, 1e-05
        %v4997 = vrsqrt.pop %v4996
        %v4998 = vmul.f32 %v4982, %v4997
        %v4999 = vmul.f32 %v4983, %v4997
        %v5000 = vmul.f32 %v4984, %v4997
        %v5001 = vmul.f32 %v4985, %v4997
        %v5002 = vld [vmem:[%s4] sm:$0xff]
        %vm5003 = vcmask 64512
        %v5005 = vsel %vm5003, %v5002, 0
        %5007 = vmatprep.subr.mxu0 %v287
        %5008 = vmatpush1.msra.mxu0 %v286
        %5009 = vmatprep.subr.mxu0 0.0
        %5010 = vmatpush1.msra.mxu0 0.0
        %5011 = vmatprep.subr.mxu0 0.0
        %5012 = vmatpush1.msra.mxu0 0.0
        %5013 = vmatprep.subr.mxu0 0.0
        %5014 = vmatpush1.msra.mxu0 0.0
        %5015 = vmatprep.subr.mxu0 0.0
        %5016 = vmatpush1.msra.mxu0 0.0
        %5017 = vmatprep.subr.mxu0 0.0
        %5018 = vmatpush1.msra.mxu0 0.0
        %5019 = vmatprep.subr.mxu0 0.0
        %5020 = vmatpush1.msra.mxu0 0.0
        %5021 = vmatprep.subr.mxu0 0.0
        %5022 = vmatpush1.msra.mxu0 0.0
        %5023 = vmatprep.subr.mxu0 0.0
        %5024 = vmatpush1.msra.mxu0 0.0
        %5025 = vmatprep.subr.mxu0 0.0
        %5026 = vmatpush1.msra.mxu0 0.0
        %5027 = vmatprep.subr.mxu0 0.0
        %5028 = vmatpush1.msra.mxu0 0.0
        %5029 = vmatprep.subr.mxu0 0.0
        %5030 = vmatpush1.msra.mxu0 0.0
        %5031 = vmatprep.subr.mxu0 0.0
        %5032 = vmatpush1.msra.mxu0 0.0
        %5033 = vmatprep.subr.mxu0 0.0
        %5034 = vmatpush1.msra.mxu0 0.0
        %5035 = vmatprep.subr.mxu0 0.0
        %5036 = vmatpush1.msra.mxu0 0.0
        %5037 = vmatprep.subr.mxu0 0.0
        %5038 = vmatpush1.msra.mxu0 0.0
        %5039 = vmatprep.subr.mxu0 0.0
        %5040 = vmatpush1.msra.mxu0 0.0
        %5041 = vmatprep.subr.mxu0 0.0
        %5042 = vmatpush1.msra.mxu0 0.0
        %5043 = vmatprep.subr.mxu0 0.0
        %5044 = vmatpush1.msra.mxu0 0.0
        %5045 = vmatprep.subr.mxu0 0.0
        %5046 = vmatpush1.msra.mxu0 0.0
        %5047 = vmatprep.subr.mxu0 0.0
        %5048 = vmatpush1.msra.mxu0 0.0
        %5049 = vmatprep.subr.mxu0 0.0
        %5050 = vmatpush1.msra.mxu0 0.0
        %5051 = vmatprep.subr.mxu0 0.0
        %5052 = vmatpush1.msra.mxu0 0.0
        %5053 = vmatprep.subr.mxu0 0.0
        %5054 = vmatpush1.msra.mxu0 0.0
        %5055 = vmatprep.subr.mxu0 0.0
        %5056 = vmatpush1.msra.mxu0 0.0
        %5057 = vmatprep.subr.mxu0 0.0
        %5058 = vmatpush1.msra.mxu0 0.0
        %5059 = vmatprep.subr.mxu0 0.0
        %5060 = vmatpush1.msra.mxu0 0.0
        %5061 = vmatprep.subr.mxu0 0.0
        %5062 = vmatpush1.msra.mxu0 0.0
        %5063 = vmatprep.subr.mxu0 0.0
        %5064 = vmatpush1.msra.mxu0 0.0
        %5065 = vmatprep.subr.mxu0 0.0
        %5066 = vmatpush1.msra.mxu0 0.0
        %5067 = vmatprep.subr.mxu0 0.0
        %5068 = vmatpush1.msra.mxu0 0.0
        %5069 = vmatprep.subr.mxu0 0.0
        %5070 = vmatpush1.msra.mxu0 0.0
        %5071 = vmatprep.mubr.f32.mxu0 0.0
        %5072 = vmatmul.mubr.f32.gmra.mrb[0].mxu0 %v5005
        %v5073 = vpop.f32.mrb[0].mxu0
        %v5074 = vadd.f32 0.0, %v5073
        %v5075 = vpop.f32.mrb[0].mxu0
        %v5076 = vadd.f32 0.0, %v5075
        %5077 = vdwg.mxu0
        %5078 = vmatprep.subr.mxu0 %v289
        %5079 = vmatpush1.msra.mxu0 %v288
        %5080 = vmatprep.subr.mxu0 0.0
        %5081 = vmatpush1.msra.mxu0 0.0
        %5082 = vmatprep.subr.mxu0 0.0
        %5083 = vmatpush1.msra.mxu0 0.0
        %5084 = vmatprep.subr.mxu0 0.0
        %5085 = vmatpush1.msra.mxu0 0.0
        %5086 = vmatprep.subr.mxu0 0.0
        %5087 = vmatpush1.msra.mxu0 0.0
        %5088 = vmatprep.subr.mxu0 0.0
        %5089 = vmatpush1.msra.mxu0 0.0
        %5090 = vmatprep.subr.mxu0 0.0
        %5091 = vmatpush1.msra.mxu0 0.0
        %5092 = vmatprep.subr.mxu0 0.0
        %5093 = vmatpush1.msra.mxu0 0.0
        %5094 = vmatprep.subr.mxu0 0.0
        %5095 = vmatpush1.msra.mxu0 0.0
        %5096 = vmatprep.subr.mxu0 0.0
        %5097 = vmatpush1.msra.mxu0 0.0
        %5098 = vmatprep.subr.mxu0 0.0
        %5099 = vmatpush1.msra.mxu0 0.0
        %5100 = vmatprep.subr.mxu0 0.0
        %5101 = vmatpush1.msra.mxu0 0.0
        %5102 = vmatprep.subr.mxu0 0.0
        %5103 = vmatpush1.msra.mxu0 0.0
        %5104 = vmatprep.subr.mxu0 0.0
        %5105 = vmatpush1.msra.mxu0 0.0
        %5106 = vmatprep.subr.mxu0 0.0
        %5107 = vmatpush1.msra.mxu0 0.0
        %5108 = vmatprep.subr.mxu0 0.0
        %5109 = vmatpush1.msra.mxu0 0.0
        %5110 = vmatprep.subr.mxu0 0.0
        %5111 = vmatpush1.msra.mxu0 0.0
        %5112 = vmatprep.subr.mxu0 0.0
        %5113 = vmatpush1.msra.mxu0 0.0
        %5114 = vmatprep.subr.mxu0 0.0
        %5115 = vmatpush1.msra.mxu0 0.0
        %5116 = vmatprep.subr.mxu0 0.0
        %5117 = vmatpush1.msra.mxu0 0.0
        %5118 = vmatprep.subr.mxu0 0.0
        %5119 = vmatpush1.msra.mxu0 0.0
        %5120 = vmatprep.subr.mxu0 0.0
        %5121 = vmatpush1.msra.mxu0 0.0
        %5122 = vmatprep.subr.mxu0 0.0
        %5123 = vmatpush1.msra.mxu0 0.0
        %5124 = vmatprep.subr.mxu0 0.0
        %5125 = vmatpush1.msra.mxu0 0.0
        %5126 = vmatprep.subr.mxu0 0.0
        %5127 = vmatpush1.msra.mxu0 0.0
        %5128 = vmatprep.subr.mxu0 0.0
        %5129 = vmatpush1.msra.mxu0 0.0
        %5130 = vmatprep.subr.mxu0 0.0
        %5131 = vmatpush1.msra.mxu0 0.0
        %5132 = vmatprep.subr.mxu0 0.0
        %5133 = vmatpush1.msra.mxu0 0.0
        %5134 = vmatprep.subr.mxu0 0.0
        %5135 = vmatpush1.msra.mxu0 0.0
        %5136 = vmatprep.subr.mxu0 0.0
        %5137 = vmatpush1.msra.mxu0 0.0
        %5138 = vmatprep.subr.mxu0 0.0
        %5139 = vmatpush1.msra.mxu0 0.0
        %5140 = vmatprep.subr.mxu0 0.0
        %5141 = vmatpush1.msra.mxu0 0.0
        %5142 = vmatprep.mubr.f32.mxu0 0.0
        %5143 = vmatmul.mubr.f32.gmra.mrb[0].mxu0 %v5005
        %v5144 = vpop.f32.mrb[0].mxu0
        %v5145 = vadd.f32 0.0, %v5144
        %v5146 = vpop.f32.mrb[0].mxu0
        %v5147 = vadd.f32 0.0, %v5146
        %5148 = vdwg.mxu0
        %v5149 = vadd.f32 %v5074, %v5076
        %v5150 = vadd.f32 %v5149, %v5145
        %v5151 = vadd.f32 %v5150, %v5147
        %5152 = vadd.xlane.f32.xlu0 %v5151
        %v5153 = vpop.xlane.xlu0 %5152
        %v5154 = vmul.f32 %v5153, %v3967
        %v5155 = vsub.f32 %v5074, %v5154
        %v5156 = vsub.f32 %v5076, %v5154
        %v5157 = vsub.f32 %v5145, %v5154
        %v5158 = vsub.f32 %v5147, %v5154
        %v5159 = vmul.f32 %v5155, %v5155
        %v5160 = vmul.f32 %v5156, %v5156
        %v5161 = vmul.f32 %v5157, %v5157
        %v5162 = vmul.f32 %v5158, %v5158
        %v5163 = vadd.f32 %v5159, %v5160
        %v5164 = vadd.f32 %v5163, %v5161
        %v5165 = vadd.f32 %v5164, %v5162
        %5166 = vadd.xlane.f32.xlu0 %v5165
        %v5167 = vpop.xlane.xlu0 %5166
        %v5168 = vmul.f32 %v5167, %v3967
        %v5169 = vadd.f32 %v5168, 1e-05
        %v5170 = vrsqrt.pop %v5169
        %v5171 = vmul.f32 %v5155, %v5170
        %v5172 = vmul.f32 %v5156, %v5170
        %v5173 = vmul.f32 %v5157, %v5170
        %v5174 = vmul.f32 %v5158, %v5170
        %v5175 = vadd.f32 %v4998, %v5171
        %v5176 = vadd.f32 %v4999, %v5172
        %v5177 = vadd.f32 %v5000, %v5173
        %v5178 = vadd.f32 %v5001, %v5174
        %v5179 = vmax.f32 %v5175, 0.0
        %v5180 = vmax.f32 %v5176, 0.0
        %v5181 = vmax.f32 %v5177, 0.0
        %v5182 = vmax.f32 %v5178, 0.0
        %5183 = vst [vmem:[%s278] sm:$0xff] %v5179
        %5184 = vst [vmem:[%s278 + $0x8] sm:$0xff] %v5180
        %5185 = vst [vmem:[%s278 + $0x10] sm:$0xff] %v5181
        %5186 = vst [vmem:[%s278 + $0x18] sm:$0xff] %v5182
        %s5187 = sand.u32 %s142, 1
        %s5188 = scalar_lea.sflag [#allocation5], %s5187
        %s5189 = sand.u32 %s142, 1
        %s5190 = smul.addr %s5189, 32
        %s5191 = scalar_lea.vmem [#allocation11], %s5190
        // Predicated region
        $region57: #{tpu_custom_call.1} parent=39 // pred_check
          %p5192 = pneg %p152
        $region58: #{tpu_custom_call.1} parent=39 // pred_check_branch
          %5194 = sbr.rel (%p5192) target = $region60
        $region59: #{tpu_custom_call.1} parent=39 // pred_region
          %s5196 = ssub.s32 512, 512
          %5197 = vsyncadd %s5188, %s5196
          %s5198 = smul.addr %s24, 4
          %s5199 = smul.addr %s5198, 128
          %s5200 = scalar_lea.hbm %s5, %s5199
          %s5202 = sshll.u32 %s5191, 4
          %s5203 = int_to_ptr.vmem [resolvable:$true] %s5202
          %5205 = dma.vmem_to_hbm [thread:$0]  %s5203, 512, %s5200, %s5188
        $region60: #{tpu_custom_call.1} parent=39 // pred_fallthru
          _
      $region40: #{tpu_custom_call.1} parent=5 // pred_fallthru
        _
      %p5206 = scmp.le.s32.totalorder 2, %s19
      // Predicated region
      $region61: #{tpu_custom_call.1} parent=5 // pred_check
        %p5207 = pneg %p5206
      $region62: #{tpu_custom_call.1} parent=5 // pred_check_branch
        %5209 = sbr.rel (%p5207) target = $region64
      $region63: #{tpu_custom_call.1} parent=5 // pred_region
        %s5210 = ssub.s32 %s19, 2
        // Predicated region
        $region65: #{tpu_custom_call.1} parent=63 // pred_check
          %p5211 = pneg %p158
        $region66: #{tpu_custom_call.1} parent=63 // pred_check_branch
          %5213 = sbr.rel (%p5211) target = $region68
        $region67: #{tpu_custom_call.1} parent=63 // pred_region
          %s5214 = sand.u32 %s143, 1
          %s5215 = scalar_lea.sflag [#allocation5], %s5214
          %s5216 = sand.u32 %s143, 1
          %s5217 = smul.addr %s5216, 32
          %s5218 = scalar_lea.vmem [#allocation11], %s5217
          %5219 = dma.done %s5215, 512
        $region68: #{tpu_custom_call.1} parent=63 // pred_fallthru
          _
      $region64: #{tpu_custom_call.1} parent=5 // pred_fallthru
        _
    $region6: #{tpu_custom_call.1} parent=1 // loop_footer
      %s23 = sadd.s32 1, %s19
    $region7: #{tpu_custom_call.1} parent=1 // loop_footer_branch
      %18 = sbr.rel target = $region3
    $region8: #{tpu_custom_call.1} parent=1 // loop_exit
      _
    %5220 = vsyncpa [#allocation4], 1
    %s5221 = scalar_lea.sflag [#allocation4], 1
    %5222 = vsyncpa %s5221, 1
    %5223 = vsyncpa [#allocation7], 1
    %s5224 = scalar_lea.sflag [#allocation7], 1
    %5225 = vsyncpa %s5224, 1
    %5226 = vsyncpa [#allocation10], 1
    %5227 = vsyncpa [#allocation5], 1
    %s5228 = scalar_lea.sflag [#allocation5], 1
    %5229 = vsyncpa %s5228, 1

</llo_original>
